<compile_context>
chip_gen: v7x
topology: tpu7x:2x2x1
jax: 0.10.0
libtpu: 0.0.40
codegen_flags: <defaults>
</compile_context>

<pallas_src>
import functools

import jax
import jax.numpy as jnp
from jax.experimental import pallas as pl
from jax.experimental.pallas import tpu as pltpu

_EPS = 1e-5


@functools.lru_cache(maxsize=None)
def _vmem_limit_bytes():
    # Generation-gated scoped-VMEM budget: ~5/8 of physical, capped at 96 MiB.
    #   v5e/v6e (128 MiB physical) -> 80 MiB ; v7x (64 MiB) -> 40 MiB.
    try:
        cap = int(pltpu.get_tpu_info().vmem_capacity_bytes)
    except Exception:
        cap = 64 * 1024 * 1024  # conservative fallback (assume v7x-sized VMEM)
    return min((cap * 5) // 8, 96 * 1024 * 1024)


def _compiler_params():
    return pltpu.CompilerParams(
        dimension_semantics=("parallel",),
        vmem_limit_bytes=_vmem_limit_bytes(),
    )


def _row_tile(m, target=1024):
    """Largest multiple-of-8 divisor of m that is <= target (else m itself)."""
    best = None
    t = 8
    while t <= min(m, target):
        if m % t == 0:
            best = t
        t += 8
    return best if best is not None else m


def _full_spec(shape):
    nd = len(shape)
    return pl.BlockSpec(shape, lambda i, _nd=nd: (0,) * _nd)


# --------------------------------------------------------------------------- #
# Pallas kernels
# --------------------------------------------------------------------------- #
def _stage1_kernel(c1, c20, x_ref, w_ref, b_ref, y1_ref, h2_ref, h3_ref, st_ref):
    """Fused 1x1 convs for paths 1-3 over one row tile.

    x_ref: (TM, Cin) bf16, w_ref: (Cin, c1+c20+c30) bf16, b_ref: (1, c20+c30) f32.
    Outputs: y1 (raw conv, pre-BN, bf16) + per-tile BN stats; h2/h3 = relu(conv+b).
    """
    s = jnp.dot(x_ref[...], w_ref[...], preferred_element_type=jnp.float32)
    y1 = s[:, :c1]                                  # bias dropped: cancelled by BN
    h23 = jnp.maximum(s[:, c1:] + b_ref[...], 0.0)
    y1_ref[...] = y1.astype(y1_ref.dtype)
    h2_ref[...] = h23[:, :c20].astype(h2_ref.dtype)
    h3_ref[...] = h23[:, c20:].astype(h3_ref.dtype)
    s0 = jnp.sum(y1, axis=0, keepdims=True)
    s1 = jnp.sum(y1 * y1, axis=0, keepdims=True)
    st_ref[...] = jnp.concatenate([s0, s1], axis=-1)[None]      # (1, 1, 2*c1)


def _conv_kxk_kernel(k, h, w, x_ref, w_ref, y_ref, st_ref, xp_ref):
    """KxK 'same' conv on one image; zero padding happens in a VMEM scratch.

    x_ref: (h, w, Cin) bf16 (un-padded; image dim squeezed by the BlockSpec),
    w_ref: (k, k*Cin, Cout) bf16 (one kernel row, flattened dx-major over Cin),
    xp_ref: (h+2p, w+2p, Cin) f32 scratch.
    The k dx-shifted slices are concatenated on the lane axis so the MXU sees k
    matmuls with contraction k*Cin instead of k*k matmuls with contraction Cin.
    """
    pad = (k - 1) // 2
    cin = x_ref.shape[-1]
    cout = w_ref.shape[-1]
    xp_ref[...] = jnp.zeros(xp_ref.shape, xp_ref.dtype)
    xp_ref[pad:pad + h, pad:pad + w, :] = x_ref[...].astype(xp_ref.dtype)
    xall = xp_ref[...]                                           # (Hp, Wp, cin) f32
    xcat = jnp.concatenate(
        [xall[:, dx:dx + w, :] for dx in range(k)], axis=-1
    ).astype(jnp.bfloat16)                                       # (Hp, w, k*cin)
    wall = w_ref[...]
    acc = jnp.zeros((h * w, cout), jnp.float32)
    for dy in range(k):
        xs = xcat[dy:dy + h].reshape(h * w, k * cin)             # cheap leading slice
        acc = acc + jnp.dot(xs, wall[dy], preferred_element_type=jnp.float32)
    y_ref[...] = acc.astype(y_ref.dtype)                         # bias dropped (BN)
    s0 = jnp.sum(acc, axis=0, keepdims=True)
    s1 = jnp.sum(acc * acc, axis=0, keepdims=True)
    st_ref[...] = jnp.concatenate([s0, s1], axis=-1)[None]


def _pool_conv_kernel(h, w, x_ref, w_ref, y_ref, st_ref, xp_ref):
    """Separable 3x3 max-pool (stride 1, pad 1) + 1x1 conv on one image.

    x_ref: (h, w, Cin) bf16 un-padded; xp_ref: (h+2, w+2, Cin) bf16 scratch filled
    with -inf so the halo never wins the max (pooling in bf16 matches the bf16
    matmul input exactly: max commutes with the monotone bf16 rounding).
    """
    cin = x_ref.shape[-1]
    xp_ref[...] = jnp.full(xp_ref.shape, -jnp.inf, xp_ref.dtype)
    xp_ref[1:1 + h, 1:1 + w, :] = x_ref[...]
    xall = xp_ref[...]
    colmax = xall[:, 0:w, :]
    for dx in (1, 2):
        colmax = jnp.maximum(colmax, xall[:, dx:dx + w, :])
    pooled = colmax[0:h]
    for dy in (1, 2):
        pooled = jnp.maximum(pooled, colmax[dy:dy + h])
    y = jnp.dot(pooled.reshape(h * w, cin), w_ref[...],
                preferred_element_type=jnp.float32)
    y_ref[...] = y.astype(y_ref.dtype)                           # bias dropped (BN)
    s0 = jnp.sum(y, axis=0, keepdims=True)
    s1 = jnp.sum(y * y, axis=0, keepdims=True)
    st_ref[...] = jnp.concatenate([s0, s1], axis=-1)[None]


def _bn_concat_kernel(y1_ref, y2_ref, y3_ref, y4_ref, sc_ref, sh_ref, o_ref):
    """Second BN pass (per image): affine + ReLU, stored channel-major.

    The in-kernel (HW, C) -> (C, HW) transpose folds the NCHW output layout into
    the final store, removing the wrapper-side XLA transpose.  The operand is
    zero-padded up to (8, 128) multiples so the XLU sees an aligned tile.
    """
    y = jnp.concatenate(
        [y1_ref[...].astype(jnp.float32), y2_ref[...].astype(jnp.float32),
         y3_ref[...].astype(jnp.float32), y4_ref[...].astype(jnp.float32)],
        axis=-1)
    z = jnp.maximum(y * sc_ref[...] + sh_ref[...], 0.0)          # (hw, ct) f32
    hw, ct = z.shape
    rpad, cpad = (-hw) % 8, (-ct) % 128
    if cpad:
        z = jnp.concatenate([z, jnp.zeros((z.shape[0], cpad), z.dtype)], axis=-1)
    if rpad:
        z = jnp.concatenate([z, jnp.zeros((rpad, z.shape[1]), z.dtype)], axis=0)
    zt = jnp.transpose(z)[:ct, :hw]                              # (ct, hw)
    o_ref[...] = zt[None].astype(o_ref.dtype)


# --------------------------------------------------------------------------- #
# pallas_call wrappers
# --------------------------------------------------------------------------- #
def _stage1(x2d, w1, w2, w3, b2, b3, tile_rows):
    m, cin = x2d.shape
    c1, c20, c30 = w1.shape[1], w2.shape[1], w3.shape[1]
    tm = _row_tile(m, tile_rows)
    g = m // tm
    wcat = jnp.concatenate([w1, w2, w3], axis=1).astype(jnp.bfloat16)
    b23 = jnp.concatenate([b2, b3]).reshape(1, -1).astype(jnp.float32)
    kern = functools.partial(_stage1_kernel, c1, c20)
    out_shape = (
        jax.ShapeDtypeStruct((m, c1), jnp.bfloat16),
        jax.ShapeDtypeStruct((m, c20), jnp.bfloat16),
        jax.ShapeDtypeStruct((m, c30), jnp.bfloat16),
        jax.ShapeDtypeStruct((g, 1, 2 * c1), jnp.float32),
    )
    in_specs = [
        pl.BlockSpec((tm, cin), lambda i: (i, 0)),
        _full_spec(wcat.shape),
        _full_spec(b23.shape),
    ]
    out_specs = [
        pl.BlockSpec((tm, c1), lambda i: (i, 0)),
        pl.BlockSpec((tm, c20), lambda i: (i, 0)),
        pl.BlockSpec((tm, c30), lambda i: (i, 0)),
        pl.BlockSpec((1, 1, 2 * c1), lambda i: (i, 0, 0)),
    ]
    return pl.pallas_call(
        kern, grid=(g,), in_specs=in_specs, out_specs=out_specs,
        out_shape=out_shape, compiler_params=_compiler_params(),
    )(x2d, wcat, b23)


def _conv_path(h_act, w_khw, k):
    # TODO(synk): for very large feature maps, tile over (image, row-band) with a
    #             row halo so one padded image never has to fit v7x's 64 MiB VMEM.
    n, h, w, cin = h_act.shape
    pad = (k - 1) // 2
    cout = w_khw.shape[-1]
    wt = w_khw.reshape(k, k * cin, cout).astype(jnp.bfloat16)
    kern = functools.partial(_conv_kxk_kernel, k, h, w)
    out_shape = (
        jax.ShapeDtypeStruct((n * h * w, cout), jnp.bfloat16),
        jax.ShapeDtypeStruct((n, 1, 2 * cout), jnp.float32),
    )
    in_specs = [
        pl.BlockSpec((None, h, w, cin), lambda i: (i, 0, 0, 0)),
        _full_spec(wt.shape),
    ]
    out_specs = [
        pl.BlockSpec((h * w, cout), lambda i: (i, 0)),
        pl.BlockSpec((1, 1, 2 * cout), lambda i: (i, 0, 0)),
    ]
    scratch = [pltpu.VMEM((h + 2 * pad, w + 2 * pad, cin), jnp.float32)]
    return pl.pallas_call(
        kern, grid=(n,), in_specs=in_specs, out_specs=out_specs,
        out_shape=out_shape, scratch_shapes=scratch,
        compiler_params=_compiler_params(),
    )(h_act, wt)


def _pool_path(x_img, w4):
    n, h, w, cin = x_img.shape
    c4 = w4.shape[-1]
    kern = functools.partial(_pool_conv_kernel, h, w)
    out_shape = (
        jax.ShapeDtypeStruct((n * h * w, c4), jnp.bfloat16),
        jax.ShapeDtypeStruct((n, 1, 2 * c4), jnp.float32),
    )
    in_specs = [
        pl.BlockSpec((None, h, w, cin), lambda i: (i, 0, 0, 0)),
        _full_spec(w4.shape),
    ]
    out_specs = [
        pl.BlockSpec((h * w, c4), lambda i: (i, 0)),
        pl.BlockSpec((1, 1, 2 * c4), lambda i: (i, 0, 0)),
    ]
    scratch = [pltpu.VMEM((h + 2, w + 2, cin), jnp.bfloat16)]
    return pl.pallas_call(
        kern, grid=(n,), in_specs=in_specs, out_specs=out_specs,
        out_shape=out_shape, scratch_shapes=scratch,
        compiler_params=_compiler_params(),
    )(x_img, w4.astype(jnp.bfloat16))


def _bn_scale_shift(stats, gamma, beta, m):
    # Tiny O(C) finalize of the two-pass BN: var = E[x^2] - E[x]^2 (f32 throughout).
    c = gamma.shape[0]
    tot = jnp.sum(stats, axis=(0, 1))
    mean = tot[:c] / m
    var = jnp.maximum(tot[c:] / m - mean * mean, 0.0)
    scale = gamma * jax.lax.rsqrt(var + _EPS)
    shift = beta - mean * scale
    return scale, shift


def _bn_relu_concat(y1, y2, y3, y4, scale, shift, n, hw):
    ct = scale.shape[-1]
    in_specs = [
        pl.BlockSpec((hw, y1.shape[1]), lambda i: (i, 0)),
        pl.BlockSpec((hw, y2.shape[1]), lambda i: (i, 0)),
        pl.BlockSpec((hw, y3.shape[1]), lambda i: (i, 0)),
        pl.BlockSpec((hw, y4.shape[1]), lambda i: (i, 0)),
        _full_spec(scale.shape),
        _full_spec(shift.shape),
    ]
    out_specs = pl.BlockSpec((1, ct, hw), lambda i: (i, 0, 0))
    return pl.pallas_call(
        _bn_concat_kernel, grid=(n,), in_specs=in_specs, out_specs=out_specs,
        out_shape=jax.ShapeDtypeStruct((n, ct, hw), jnp.float32),
        compiler_params=_compiler_params(),
    )(y1, y2, y3, y4, scale, shift)


# --------------------------------------------------------------------------- #
# Forward wrapper (NCHW in / NCHW out to match the PyTorch module)
# --------------------------------------------------------------------------- #
@jax.jit
def inception_forward(x_nchw, p):
    # Single fused transpose+cast on the input side.
    # TODO(synk): accept NHWC inputs to drop this transpose when callers allow;
    #             the output-side transpose is already folded into the BN kernel.
    x = jnp.transpose(x_nchw, (0, 2, 3, 1)).astype(jnp.bfloat16)
    n, h, w, cin = x.shape
    m = n * h * w
    x2d = x.reshape(m, cin)

    # Stage 1: one fused matmul per row tile for the three 1x1 convs.
    y1, h2, h3, st1 = _stage1(x2d, p["w_p1_1"], p["w_p2_1"], p["w_p3_1"],
                              p["b_p2_1"], p["b_p3_1"], tile_rows=1024)
    c20, c30 = p["w_p2_1"].shape[1], p["w_p3_1"].shape[1]

    # Paths 2/3: kxk conv per image; zero padding happens inside the kernel.
    y2, st2 = _conv_path(h2.reshape(n, h, w, c20), p["w_p2_2"], 3)
    y3, st3 = _conv_path(h3.reshape(n, h, w, c30), p["w_p3_2"], 5)

    # Path 4: separable 3x3 max-pool + 1x1 conv (pooled in bf16, -inf halo in-kernel).
    y4, st4 = _pool_path(x, p["w_p4_2"])

    # Two-pass BatchNorm finalize (per-channel scale/shift from partial sums).
    sc1, sh1 = _bn_scale_shift(st1, p["g_p1"], p["be_p1"], m)
    sc2, sh2 = _bn_scale_shift(st2, p["g_p2"], p["be_p2"], m)
    sc3, sh3 = _bn_scale_shift(st3, p["g_p3"], p["be_p3"], m)
    sc4, sh4 = _bn_scale_shift(st4, p["g_p4"], p["be_p4"], m)
    scale = jnp.concatenate([sc1, sc2, sc3, sc4]).reshape(1, -1)
    shift = jnp.concatenate([sh1, sh2, sh3, sh4]).reshape(1, -1)

    # BN + ReLU + concat, stored channel-major: (n, C_total, H*W) -> free NCHW reshape.
    out3 = _bn_relu_concat(y1, y2, y3, y4, scale, shift, n, h * w)
    return out3.reshape(n, -1, h, w)


# --------------------------------------------------------------------------- #
# Parameter init (deterministic, synthetic)
# --------------------------------------------------------------------------- #
def _conv_params(key, k, cin, cout):
    kw, kb = jax.random.split(key)
    fan_in = k * k * cin
    wshape = (cin, cout) if k == 1 else (k, k, cin, cout)
    w = jax.random.normal(kw, wshape, jnp.float32) / jnp.sqrt(float(fan_in))
    b = 0.1 * jax.random.normal(kb, (cout,), jnp.float32)
    return w, b


def _bn_params(key, c):
    kg, kb = jax.random.split(key)
    gamma = 1.0 + 0.1 * jax.random.normal(kg, (c,), jnp.float32)
    beta = 0.1 * jax.random.normal(kb, (c,), jnp.float32)
    return gamma, beta


def init_params(key, in_channels, c1, c2, c3, c4):
    ks = jax.random.split(key, 10)
    p = {}
    p["w_p1_1"], p["b_p1_1"] = _conv_params(ks[0], 1, in_channels, c1)
    p["g_p1"], p["be_p1"] = _bn_params(ks[1], c1)
    p["w_p2_1"], p["b_p2_1"] = _conv_params(ks[2], 1, in_channels, c2[0])
    p["w_p2_2"], p["b_p2_2"] = _conv_params(ks[3], 3, c2[0], c2[1])
    p["g_p2"], p["be_p2"] = _bn_params(ks[4], c2[1])
    p["w_p3_1"], p["b_p3_1"] = _conv_params(ks[5], 1, in_channels, c3[0])
    p["w_p3_2"], p["b_p3_2"] = _conv_params(ks[6], 5, c3[0], c3[1])
    p["g_p3"], p["be_p3"] = _bn_params(ks[7], c3[1])
    p["w_p4_2"], p["b_p4_2"] = _conv_params(ks[8], 1, in_channels, c4)
    p["g_p4"], p["be_p4"] = _bn_params(ks[9], c4)
    return p


# --------------------------------------------------------------------------- #
# Pure-JAX reference (numerical check only; all-f32, biases included)
# --------------------------------------------------------------------------- #
def reference_forward(x_nchw, p):
    x = jnp.transpose(x_nchw, (0, 2, 3, 1)).astype(jnp.float32)

    def conv(xv, w, b, k, pad):
        if k == 1:
            w = w.reshape(1, 1, *w.shape)
        y = jax.lax.conv_general_dilated(
            xv, w, window_strides=(1, 1),
            padding=((pad, pad), (pad, pad)),
            dimension_numbers=("NHWC", "HWIO", "NHWC"))
        return y + b.reshape(1, 1, 1, -1)

    def bn_relu(y, g, b):
        mean = y.mean(axis=(0, 1, 2), keepdims=True)
        var = ((y - mean) ** 2).mean(axis=(0, 1, 2), keepdims=True)
        return jnp.maximum((y - mean) / jnp.sqrt(var + _EPS) * g.reshape(1, 1, 1, -1)
                           + b.reshape(1, 1, 1, -1), 0.0)

    p1 = bn_relu(conv(x, p["w_p1_1"], p["b_p1_1"], 1, 0), p["g_p1"], p["be_p1"])
    h2 = jnp.maximum(conv(x, p["w_p2_1"], p["b_p2_1"], 1, 0), 0.0)
    p2 = bn_relu(conv(h2, p["w_p2_2"], p["b_p2_2"], 3, 1), p["g_p2"], p["be_p2"])
    h3 = jnp.maximum(conv(x, p["w_p3_1"], p["b_p3_1"], 1, 0), 0.0)
    p3 = bn_relu(conv(h3, p["w_p3_2"], p["b_p3_2"], 5, 2), p["g_p3"], p["be_p3"])
    pooled = jax.lax.reduce_window(
        x, -jnp.inf, jax.lax.max, (1, 3, 3, 1), (1, 1, 1, 1),
        padding=((0, 0), (1, 1), (1, 1), (0, 0)))
    p4 = bn_relu(conv(pooled, p["w_p4_2"], p["b_p4_2"], 1, 0), p["g_p4"], p["be_p4"])
    out = jnp.concatenate([p1, p2, p3, p4], axis=-1)
    return jnp.transpose(out, (0, 3, 1, 2))


# --------------------------------------------------------------------------- #
if __name__ == "__main__":
    key = jax.random.PRNGKey(0)
    in_channels, c1, c2, c3, c4 = 4, 8, (4, 8), (4, 8), 8
    kx, kp = jax.random.split(key)

    x = jax.random.normal(kx, (2, in_channels, 16, 16), jnp.float32)  # NCHW input
    params = init_params(kp, in_channels, c1, c2, c3, c4)

    out = inception_forward(x, params)
    out = jax.block_until_ready(out)

    assert out.shape == (2, c1 + c2[1] + c3[1] + c4, 16, 16), out.shape

    ref = reference_forward(x, params)
    err = float(jnp.max(jnp.abs(out - ref)))
    # bf16 activations + bf16-stored intermediates (f32 accumulation & BN stats)
    # vs an all-f32 reference.
    assert err < 1e-1, f"max abs err {err}"

    print("KERNEL_OK")
</pallas_src>

<mosaic_0001>
module attributes {stable_mosaic.version = 11 : i64} {
  func.func @_stage1_kernel(%arg0: i32, %arg1: memref<512x4xbf16, #tpu.memory_space<vmem>>, %arg2: memref<4x16xbf16, #tpu.memory_space<vmem>>, %arg3: memref<1x8xf32, #tpu.memory_space<vmem>>, %arg4: memref<512x8xbf16, #tpu.memory_space<vmem>>, %arg5: memref<512x4xbf16, #tpu.memory_space<vmem>>, %arg6: memref<512x4xbf16, #tpu.memory_space<vmem>>, %arg7: memref<1x1x16xf32, #tpu.memory_space<vmem>>) attributes {dimension_semantics = [#tpu.dimension_semantics<parallel>], iteration_bounds = array<i64: 1>, scalar_prefetch = 0 : i64, scratch_operands = 0 : i64, tpu.core_type = #tpu.core_type<tc>, window_params = [{transform_indices = @transform_0, window_bounds = array<i64: 512, 4>}, {pipeline_mode = #tpu.pipeline_mode<synchronous>, transform_indices = @transform_1, window_bounds = array<i64: 4, 16>}, {pipeline_mode = #tpu.pipeline_mode<synchronous>, transform_indices = @transform_2, window_bounds = array<i64: 1, 8>}, {transform_indices = @transform_3, window_bounds = array<i64: 512, 8>}, {transform_indices = @transform_4, window_bounds = array<i64: 512, 4>}, {transform_indices = @transform_5, window_bounds = array<i64: 512, 4>}, {transform_indices = @transform_6, window_bounds = array<i64: 1, 1, 16>}]} {
    %c0 = arith.constant 0 : index
    %c0_0 = arith.constant 0 : index
    %0 = vector.load %arg1[%c0, %c0_0] : memref<512x4xbf16, #tpu.memory_space<vmem>>, vector<512x4xbf16>
    %c0_1 = arith.constant 0 : index
    %c0_2 = arith.constant 0 : index
    %1 = vector.load %arg2[%c0_1, %c0_2] : memref<4x16xbf16, #tpu.memory_space<vmem>>, vector<4x16xbf16>
    %cst = arith.constant dense<0.000000e+00> : vector<512x16xf32>
    %2 = tpu.matmul %0, %1, %cst {dimension_numbers = #tpu.dot_dimension_numbers<[1], [0], [0], [1], [0, 0, 1, 1], [], []>} : vector<512x4xbf16>, vector<4x16xbf16>, vector<512x16xf32> -> vector<512x16xf32>
    %3 = vector.extract_strided_slice %2 {offsets = [0, 0], sizes = [512, 8], strides = [1, 1]} : vector<512x16xf32> to vector<512x8xf32>
    %4 = vector.extract_strided_slice %2 {offsets = [0, 8], sizes = [512, 8], strides = [1, 1]} : vector<512x16xf32> to vector<512x8xf32>
    %c0_3 = arith.constant 0 : index
    %c0_4 = arith.constant 0 : index
    %5 = vector.load %arg3[%c0_3, %c0_4] : memref<1x8xf32, #tpu.memory_space<vmem>>, vector<1x8xf32>
    %6 = vector.broadcast %5 : vector<1x8xf32> to vector<512x8xf32>
    %7 = arith.addf %4, %6 : vector<512x8xf32>
    %cst_5 = arith.constant 0.000000e+00 : f32
    %8 = vector.broadcast %cst_5 : f32 to vector<512x8xf32>
    %9 = arith.maximumf %7, %8 : vector<512x8xf32>
    %10 = arith.truncf %3 : vector<512x8xf32> to vector<512x8xbf16>
    %c0_6 = arith.constant 0 : index
    %c0_7 = arith.constant 0 : index
    %11 = vector.load %arg4[%c0_6, %c0_7] : memref<512x8xbf16, #tpu.memory_space<vmem>>, vector<512x8xbf16>
    tpu.vector_store %arg4[%c0_6, %c0_7], %10 {strides = array<i32>} : memref<512x8xbf16, #tpu.memory_space<vmem>>, vector<512x8xbf16>,
    %12 = vector.extract_strided_slice %9 {offsets = [0, 0], sizes = [512, 4], strides = [1, 1]} : vector<512x8xf32> to vector<512x4xf32>
    %13 = arith.truncf %12 : vector<512x4xf32> to vector<512x4xbf16>
    %c0_8 = arith.constant 0 : index
    %c0_9 = arith.constant 0 : index
    %14 = vector.load %arg5[%c0_8, %c0_9] : memref<512x4xbf16, #tpu.memory_space<vmem>>, vector<512x4xbf16>
    tpu.vector_store %arg5[%c0_8, %c0_9], %13 {strides = array<i32>} : memref<512x4xbf16, #tpu.memory_space<vmem>>, vector<512x4xbf16>,
    %15 = vector.extract_strided_slice %9 {offsets = [0, 4], sizes = [512, 4], strides = [1, 1]} : vector<512x8xf32> to vector<512x4xf32>
    %16 = arith.truncf %15 : vector<512x4xf32> to vector<512x4xbf16>
    %c0_10 = arith.constant 0 : index
    %c0_11 = arith.constant 0 : index
    %17 = vector.load %arg6[%c0_10, %c0_11] : memref<512x4xbf16, #tpu.memory_space<vmem>>, vector<512x4xbf16>
    tpu.vector_store %arg6[%c0_10, %c0_11], %16 {strides = array<i32>} : memref<512x4xbf16, #tpu.memory_space<vmem>>, vector<512x4xbf16>,
    %cst_12 = arith.constant dense<0.000000e+00> : vector<8xf32>
    %18 = vector.multi_reduction <add>, %3, %cst_12 [0] : vector<512x8xf32> to vector<8xf32>
    %19 = vector.shape_cast %18 : vector<8xf32> to vector<1x8xf32>
    %20 = arith.mulf %3, %3 : vector<512x8xf32>
    %cst_13 = arith.constant dense<0.000000e+00> : vector<8xf32>
    %21 = vector.multi_reduction <add>, %20, %cst_13 [0] : vector<512x8xf32> to vector<8xf32>
    %22 = vector.shape_cast %21 : vector<8xf32> to vector<1x8xf32>
    %23 = tpu.concatenate %19, %22 in 1 : vector<1x8xf32>, vector<1x8xf32> -> vector<1x16xf32>
    %24 = vector.shape_cast %23 : vector<1x16xf32> to vector<1x1x16xf32>
    %c0_14 = arith.constant 0 : index
    %c0_15 = arith.constant 0 : index
    %c0_16 = arith.constant 0 : index
    %25 = vector.load %arg7[%c0_14, %c0_15, %c0_16] : memref<1x1x16xf32, #tpu.memory_space<vmem>>, vector<1x1x16xf32>
    tpu.vector_store %arg7[%c0_14, %c0_15, %c0_16], %24 {strides = array<i32>} : memref<1x1x16xf32, #tpu.memory_space<vmem>>, vector<1x1x16xf32>,
    return
  }
  func.func @transform_0(%arg0: i32) -> (i32, i32) {
    %c0_i32 = arith.constant 0 : i32
    %c0_i32_0 = arith.constant 0 : i32
    return %arg0, %c0_i32 : i32, i32
  }
  func.func @transform_1(%arg0: i32) -> (i32, i32) {
    %c0_i32 = arith.constant 0 : i32
    %c0_i32_0 = arith.constant 0 : i32
    %c0_i32_1 = arith.constant 0 : i32
    return %c0_i32, %c0_i32_0 : i32, i32
  }
  func.func @transform_2(%arg0: i32) -> (i32, i32) {
    %c0_i32 = arith.constant 0 : i32
    %c0_i32_0 = arith.constant 0 : i32
    %c0_i32_1 = arith.constant 0 : i32
    return %c0_i32, %c0_i32_0 : i32, i32
  }
  func.func @transform_3(%arg0: i32) -> (i32, i32) {
    %c0_i32 = arith.constant 0 : i32
    %c0_i32_0 = arith.constant 0 : i32
    return %arg0, %c0_i32 : i32, i32
  }
  func.func @transform_4(%arg0: i32) -> (i32, i32) {
    %c0_i32 = arith.constant 0 : i32
    %c0_i32_0 = arith.constant 0 : i32
    return %arg0, %c0_i32 : i32, i32
  }
  func.func @transform_5(%arg0: i32) -> (i32, i32) {
    %c0_i32 = arith.constant 0 : i32
    %c0_i32_0 = arith.constant 0 : i32
    return %arg0, %c0_i32 : i32, i32
  }
  func.func @transform_6(%arg0: i32) -> (i32, i32, i32) {
    %c0_i32 = arith.constant 0 : i32
    %c0_i32_0 = arith.constant 0 : i32
    %c0_i32_1 = arith.constant 0 : i32
    return %arg0, %c0_i32, %c0_i32_0 : i32, i32, i32
  }
}

module attributes {stable_mosaic.version = 11 : i64} {
  func.func @_conv_kxk_kernel(%arg0: i32, %arg1: memref<1x16x16x4xbf16, #tpu.memory_space<vmem>>, %arg2: memref<5x20x8xbf16, #tpu.memory_space<vmem>>, %arg3: memref<256x8xbf16, #tpu.memory_space<vmem>>, %arg4: memref<1x1x16xf32, #tpu.memory_space<vmem>>, %arg5: memref<20x20x4xf32, #tpu.memory_space<vmem>>) attributes {dimension_semantics = [#tpu.dimension_semantics<parallel>], iteration_bounds = array<i64: 2>, scalar_prefetch = 0 : i64, scratch_operands = 1 : i64, tpu.core_type = #tpu.core_type<tc>, window_params = [{transform_indices = @transform_0, window_bounds = array<i64: 1, 16, 16, 4>}, {pipeline_mode = #tpu.pipeline_mode<synchronous>, transform_indices = @transform_1, window_bounds = array<i64: 5, 20, 8>}, {transform_indices = @transform_2, window_bounds = array<i64: 256, 8>}, {transform_indices = @transform_3, window_bounds = array<i64: 1, 1, 16>}]} {
    %cst = arith.constant 0.000000e+00 : f32
    %0 = vector.broadcast %cst : f32 to vector<20x20x4xf32>
    %c0 = arith.constant 0 : index
    %c0_0 = arith.constant 0 : index
    %c0_1 = arith.constant 0 : index
    %1 = vector.load %arg5[%c0, %c0_0, %c0_1] : memref<20x20x4xf32, #tpu.memory_space<vmem>>, vector<20x20x4xf32>
    tpu.vector_store %arg5[%c0, %c0_0, %c0_1], %0 {strides = array<i32>} : memref<20x20x4xf32, #tpu.memory_space<vmem>>, vector<20x20x4xf32>,
    %c0_2 = arith.constant 0 : index
    %c0_3 = arith.constant 0 : index
    %c0_4 = arith.constant 0 : index
    %c0_5 = arith.constant 0 : index
    %2 = vector.load %arg1[%c0_2, %c0_3, %c0_4, %c0_5] : memref<1x16x16x4xbf16, #tpu.memory_space<vmem>>, vector<1x16x16x4xbf16>
    %3 = vector.shape_cast %2 : vector<1x16x16x4xbf16> to vector<16x16x4xbf16>
    %4 = arith.extf %3 : vector<16x16x4xbf16> to vector<16x16x4xf32>
    %c2 = arith.constant 2 : index
    %c2_6 = arith.constant 2 : index
    %c0_7 = arith.constant 0 : index
    %5 = vector.load %arg5[%c2, %c2_6, %c0_7] : memref<20x20x4xf32, #tpu.memory_space<vmem>>, vector<16x16x4xf32>
    tpu.vector_store %arg5[%c2, %c2_6, %c0_7], %4 {strides = array<i32>} : memref<20x20x4xf32, #tpu.memory_space<vmem>>, vector<16x16x4xf32>,
    %c0_8 = arith.constant 0 : index
    %c0_9 = arith.constant 0 : index
    %c0_10 = arith.constant 0 : index
    %6 = vector.load %arg5[%c0_8, %c0_9, %c0_10] : memref<20x20x4xf32, #tpu.memory_space<vmem>>, vector<20x20x4xf32>
    %7 = vector.extract_strided_slice %6 {offsets = [0, 0, 0], sizes = [20, 16, 4], strides = [1, 1, 1]} : vector<20x20x4xf32> to vector<20x16x4xf32>
    %8 = vector.extract_strided_slice %6 {offsets = [0, 1, 0], sizes = [20, 16, 4], strides = [1, 1, 1]} : vector<20x20x4xf32> to vector<20x16x4xf32>
    %9 = vector.extract_strided_slice %6 {offsets = [0, 2, 0], sizes = [20, 16, 4], strides = [1, 1, 1]} : vector<20x20x4xf32> to vector<20x16x4xf32>
    %10 = vector.extract_strided_slice %6 {offsets = [0, 3, 0], sizes = [20, 16, 4], strides = [1, 1, 1]} : vector<20x20x4xf32> to vector<20x16x4xf32>
    %11 = vector.extract_strided_slice %6 {offsets = [0, 4, 0], sizes = [20, 16, 4], strides = [1, 1, 1]} : vector<20x20x4xf32> to vector<20x16x4xf32>
    %12 = tpu.concatenate %7, %8, %9, %10, %11 in 2 : vector<20x16x4xf32>, vector<20x16x4xf32>, vector<20x16x4xf32>, vector<20x16x4xf32>, vector<20x16x4xf32> -> vector<20x16x20xf32>
    %13 = arith.truncf %12 : vector<20x16x20xf32> to vector<20x16x20xbf16>
    %c0_11 = arith.constant 0 : index
    %c0_12 = arith.constant 0 : index
    %c0_13 = arith.constant 0 : index
    %14 = vector.load %arg2[%c0_11, %c0_12, %c0_13] : memref<5x20x8xbf16, #tpu.memory_space<vmem>>, vector<5x20x8xbf16>
    %cst_14 = arith.constant 0.000000e+00 : f32
    %15 = vector.broadcast %cst_14 : f32 to vector<256x8xf32>
    %16 = vector.extract_strided_slice %13 {offsets = [0, 0, 0], sizes = [16, 16, 20], strides = [1, 1, 1]} : vector<20x16x20xbf16> to vector<16x16x20xbf16>
    %17 = vector.shape_cast %16 : vector<16x16x20xbf16> to vector<256x20xbf16>
    %18 = vector.extract_strided_slice %14 {offsets = [0, 0, 0], sizes = [1, 20, 8], strides = [1, 1, 1]} : vector<5x20x8xbf16> to vector<1x20x8xbf16>
    %19 = vector.shape_cast %18 : vector<1x20x8xbf16> to vector<20x8xbf16>
    %cst_15 = arith.constant dense<0.000000e+00> : vector<256x8xf32>
    %20 = tpu.matmul %17, %19, %cst_15 {dimension_numbers = #tpu.dot_dimension_numbers<[1], [0], [0], [1], [0, 0, 1, 1], [], []>} : vector<256x20xbf16>, vector<20x8xbf16>, vector<256x8xf32> -> vector<256x8xf32>
    %21 = arith.addf %15, %20 : vector<256x8xf32>
    %22 = vector.extract_strided_slice %13 {offsets = [1, 0, 0], sizes = [16, 16, 20], strides = [1, 1, 1]} : vector<20x16x20xbf16> to vector<16x16x20xbf16>
    %23 = vector.shape_cast %22 : vector<16x16x20xbf16> to vector<256x20xbf16>
    %24 = vector.extract_strided_slice %14 {offsets = [1, 0, 0], sizes = [1, 20, 8], strides = [1, 1, 1]} : vector<5x20x8xbf16> to vector<1x20x8xbf16>
    %25 = vector.shape_cast %24 : vector<1x20x8xbf16> to vector<20x8xbf16>
    %cst_16 = arith.constant dense<0.000000e+00> : vector<256x8xf32>
    %26 = tpu.matmul %23, %25, %cst_16 {dimension_numbers = #tpu.dot_dimension_numbers<[1], [0], [0], [1], [0, 0, 1, 1], [], []>} : vector<256x20xbf16>, vector<20x8xbf16>, vector<256x8xf32> -> vector<256x8xf32>
    %27 = arith.addf %21, %26 : vector<256x8xf32>
    %28 = vector.extract_strided_slice %13 {offsets = [2, 0, 0], sizes = [16, 16, 20], strides = [1, 1, 1]} : vector<20x16x20xbf16> to vector<16x16x20xbf16>
    %29 = vector.shape_cast %28 : vector<16x16x20xbf16> to vector<256x20xbf16>
    %30 = vector.extract_strided_slice %14 {offsets = [2, 0, 0], sizes = [1, 20, 8], strides = [1, 1, 1]} : vector<5x20x8xbf16> to vector<1x20x8xbf16>
    %31 = vector.shape_cast %30 : vector<1x20x8xbf16> to vector<20x8xbf16>
    %cst_17 = arith.constant dense<0.000000e+00> : vector<256x8xf32>
    %32 = tpu.matmul %29, %31, %cst_17 {dimension_numbers = #tpu.dot_dimension_numbers<[1], [0], [0], [1], [0, 0, 1, 1], [], []>} : vector<256x20xbf16>, vector<20x8xbf16>, vector<256x8xf32> -> vector<256x8xf32>
    %33 = arith.addf %27, %32 : vector<256x8xf32>
    %34 = vector.extract_strided_slice %13 {offsets = [3, 0, 0], sizes = [16, 16, 20], strides = [1, 1, 1]} : vector<20x16x20xbf16> to vector<16x16x20xbf16>
    %35 = vector.shape_cast %34 : vector<16x16x20xbf16> to vector<256x20xbf16>
    %36 = vector.extract_strided_slice %14 {offsets = [3, 0, 0], sizes = [1, 20, 8], strides = [1, 1, 1]} : vector<5x20x8xbf16> to vector<1x20x8xbf16>
    %37 = vector.shape_cast %36 : vector<1x20x8xbf16> to vector<20x8xbf16>
    %cst_18 = arith.constant dense<0.000000e+00> : vector<256x8xf32>
    %38 = tpu.matmul %35, %37, %cst_18 {dimension_numbers = #tpu.dot_dimension_numbers<[1], [0], [0], [1], [0, 0, 1, 1], [], []>} : vector<256x20xbf16>, vector<20x8xbf16>, vector<256x8xf32> -> vector<256x8xf32>
    %39 = arith.addf %33, %38 : vector<256x8xf32>
    %40 = vector.extract_strided_slice %13 {offsets = [4, 0, 0], sizes = [16, 16, 20], strides = [1, 1, 1]} : vector<20x16x20xbf16> to vector<16x16x20xbf16>
    %41 = vector.shape_cast %40 : vector<16x16x20xbf16> to vector<256x20xbf16>
    %42 = vector.extract_strided_slice %14 {offsets = [4, 0, 0], sizes = [1, 20, 8], strides = [1, 1, 1]} : vector<5x20x8xbf16> to vector<1x20x8xbf16>
    %43 = vector.shape_cast %42 : vector<1x20x8xbf16> to vector<20x8xbf16>
    %cst_19 = arith.constant dense<0.000000e+00> : vector<256x8xf32>
    %44 = tpu.matmul %41, %43, %cst_19 {dimension_numbers = #tpu.dot_dimension_numbers<[1], [0], [0], [1], [0, 0, 1, 1], [], []>} : vector<256x20xbf16>, vector<20x8xbf16>, vector<256x8xf32> -> vector<256x8xf32>
    %45 = arith.addf %39, %44 : vector<256x8xf32>
    %46 = arith.truncf %45 : vector<256x8xf32> to vector<256x8xbf16>
    %c0_20 = arith.constant 0 : index
    %c0_21 = arith.constant 0 : index
    %47 = vector.load %arg3[%c0_20, %c0_21] : memref<256x8xbf16, #tpu.memory_space<vmem>>, vector<256x8xbf16>
    tpu.vector_store %arg3[%c0_20, %c0_21], %46 {strides = array<i32>} : memref<256x8xbf16, #tpu.memory_space<vmem>>, vector<256x8xbf16>,
    %cst_22 = arith.constant dense<0.000000e+00> : vector<8xf32>
    %48 = vector.multi_reduction <add>, %45, %cst_22 [0] : vector<256x8xf32> to vector<8xf32>
    %49 = vector.shape_cast %48 : vector<8xf32> to vector<1x8xf32>
    %50 = arith.mulf %45, %45 : vector<256x8xf32>
    %cst_23 = arith.constant dense<0.000000e+00> : vector<8xf32>
    %51 = vector.multi_reduction <add>, %50, %cst_23 [0] : vector<256x8xf32> to vector<8xf32>
    %52 = vector.shape_cast %51 : vector<8xf32> to vector<1x8xf32>
    %53 = tpu.concatenate %49, %52 in 1 : vector<1x8xf32>, vector<1x8xf32> -> vector<1x16xf32>
    %54 = vector.shape_cast %53 : vector<1x16xf32> to vector<1x1x16xf32>
    %c0_24 = arith.constant 0 : index
    %c0_25 = arith.constant 0 : index
    %c0_26 = arith.constant 0 : index
    %55 = vector.load %arg4[%c0_24, %c0_25, %c0_26] : memref<1x1x16xf32, #tpu.memory_space<vmem>>, vector<1x1x16xf32>
    tpu.vector_store %arg4[%c0_24, %c0_25, %c0_26], %54 {strides = array<i32>} : memref<1x1x16xf32, #tpu.memory_space<vmem>>, vector<1x1x16xf32>,
    return
  }
  func.func @transform_0(%arg0: i32) -> (i32, i32, i32, i32) {
    %c0_i32 = arith.constant 0 : i32
    %c0_i32_0 = arith.constant 0 : i32
    %c0_i32_1 = arith.constant 0 : i32
    %c0_i32_2 = arith.constant 0 : i32
    return %arg0, %c0_i32, %c0_i32_0, %c0_i32_1 : i32, i32, i32, i32
  }
  func.func @transform_1(%arg0: i32) -> (i32, i32, i32) {
    %c0_i32 = arith.constant 0 : i32
    %c0_i32_0 = arith.constant 0 : i32
    %c0_i32_1 = arith.constant 0 : i32
    %c0_i32_2 = arith.constant 0 : i32
    return %c0_i32, %c0_i32_0, %c0_i32_1 : i32, i32, i32
  }
  func.func @transform_2(%arg0: i32) -> (i32, i32) {
    %c0_i32 = arith.constant 0 : i32
    %c0_i32_0 = arith.constant 0 : i32
    return %arg0, %c0_i32 : i32, i32
  }
  func.func @transform_3(%arg0: i32) -> (i32, i32, i32) {
    %c0_i32 = arith.constant 0 : i32
    %c0_i32_0 = arith.constant 0 : i32
    %c0_i32_1 = arith.constant 0 : i32
    return %arg0, %c0_i32, %c0_i32_0 : i32, i32, i32
  }
}

module attributes {stable_mosaic.version = 11 : i64} {
  func.func @_pool_conv_kernel(%arg0: i32, %arg1: memref<1x16x16x4xbf16, #tpu.memory_space<vmem>>, %arg2: memref<4x8xbf16, #tpu.memory_space<vmem>>, %arg3: memref<256x8xbf16, #tpu.memory_space<vmem>>, %arg4: memref<1x1x16xf32, #tpu.memory_space<vmem>>, %arg5: memref<18x18x4xbf16, #tpu.memory_space<vmem>>) attributes {dimension_semantics = [#tpu.dimension_semantics<parallel>], iteration_bounds = array<i64: 2>, scalar_prefetch = 0 : i64, scratch_operands = 1 : i64, tpu.core_type = #tpu.core_type<tc>, window_params = [{transform_indices = @transform_0, window_bounds = array<i64: 1, 16, 16, 4>}, {pipeline_mode = #tpu.pipeline_mode<synchronous>, transform_indices = @transform_1, window_bounds = array<i64: 4, 8>}, {transform_indices = @transform_2, window_bounds = array<i64: 256, 8>}, {transform_indices = @transform_3, window_bounds = array<i64: 1, 1, 16>}]} {
    %cst = arith.constant 0xFF80 : bf16
    %0 = vector.broadcast %cst : bf16 to vector<18x18x4xbf16>
    %c0 = arith.constant 0 : index
    %c0_0 = arith.constant 0 : index
    %c0_1 = arith.constant 0 : index
    %1 = vector.load %arg5[%c0, %c0_0, %c0_1] : memref<18x18x4xbf16, #tpu.memory_space<vmem>>, vector<18x18x4xbf16>
    tpu.vector_store %arg5[%c0, %c0_0, %c0_1], %0 {strides = array<i32>} : memref<18x18x4xbf16, #tpu.memory_space<vmem>>, vector<18x18x4xbf16>,
    %c0_2 = arith.constant 0 : index
    %c0_3 = arith.constant 0 : index
    %c0_4 = arith.constant 0 : index
    %c0_5 = arith.constant 0 : index
    %2 = vector.load %arg1[%c0_2, %c0_3, %c0_4, %c0_5] : memref<1x16x16x4xbf16, #tpu.memory_space<vmem>>, vector<1x16x16x4xbf16>
    %3 = vector.shape_cast %2 : vector<1x16x16x4xbf16> to vector<16x16x4xbf16>
    %c1 = arith.constant 1 : index
    %c1_6 = arith.constant 1 : index
    %c0_7 = arith.constant 0 : index
    %4 = vector.load %arg5[%c1, %c1_6, %c0_7] : memref<18x18x4xbf16, #tpu.memory_space<vmem>>, vector<16x16x4xbf16>
    tpu.vector_store %arg5[%c1, %c1_6, %c0_7], %3 {strides = array<i32>} : memref<18x18x4xbf16, #tpu.memory_space<vmem>>, vector<16x16x4xbf16>,
    %c0_8 = arith.constant 0 : index
    %c0_9 = arith.constant 0 : index
    %c0_10 = arith.constant 0 : index
    %5 = vector.load %arg5[%c0_8, %c0_9, %c0_10] : memref<18x18x4xbf16, #tpu.memory_space<vmem>>, vector<18x18x4xbf16>
    %6 = vector.extract_strided_slice %5 {offsets = [0, 0, 0], sizes = [18, 16, 4], strides = [1, 1, 1]} : vector<18x18x4xbf16> to vector<18x16x4xbf16>
    %7 = vector.extract_strided_slice %5 {offsets = [0, 1, 0], sizes = [18, 16, 4], strides = [1, 1, 1]} : vector<18x18x4xbf16> to vector<18x16x4xbf16>
    %8 = arith.maximumf %6, %7 : vector<18x16x4xbf16>
    %9 = vector.extract_strided_slice %5 {offsets = [0, 2, 0], sizes = [18, 16, 4], strides = [1, 1, 1]} : vector<18x18x4xbf16> to vector<18x16x4xbf16>
    %10 = arith.maximumf %8, %9 : vector<18x16x4xbf16>
    %11 = vector.extract_strided_slice %10 {offsets = [0, 0, 0], sizes = [16, 16, 4], strides = [1, 1, 1]} : vector<18x16x4xbf16> to vector<16x16x4xbf16>
    %12 = vector.extract_strided_slice %10 {offsets = [1, 0, 0], sizes = [16, 16, 4], strides = [1, 1, 1]} : vector<18x16x4xbf16> to vector<16x16x4xbf16>
    %13 = arith.maximumf %11, %12 : vector<16x16x4xbf16>
    %14 = vector.extract_strided_slice %10 {offsets = [2, 0, 0], sizes = [16, 16, 4], strides = [1, 1, 1]} : vector<18x16x4xbf16> to vector<16x16x4xbf16>
    %15 = arith.maximumf %13, %14 : vector<16x16x4xbf16>
    %16 = vector.shape_cast %15 : vector<16x16x4xbf16> to vector<256x4xbf16>
    %c0_11 = arith.constant 0 : index
    %c0_12 = arith.constant 0 : index
    %17 = vector.load %arg2[%c0_11, %c0_12] : memref<4x8xbf16, #tpu.memory_space<vmem>>, vector<4x8xbf16>
    %cst_13 = arith.constant dense<0.000000e+00> : vector<256x8xf32>
    %18 = tpu.matmul %16, %17, %cst_13 {dimension_numbers = #tpu.dot_dimension_numbers<[1], [0], [0], [1], [0, 0, 1, 1], [], []>} : vector<256x4xbf16>, vector<4x8xbf16>, vector<256x8xf32> -> vector<256x8xf32>
    %19 = arith.truncf %18 : vector<256x8xf32> to vector<256x8xbf16>
    %c0_14 = arith.constant 0 : index
    %c0_15 = arith.constant 0 : index
    %20 = vector.load %arg3[%c0_14, %c0_15] : memref<256x8xbf16, #tpu.memory_space<vmem>>, vector<256x8xbf16>
    tpu.vector_store %arg3[%c0_14, %c0_15], %19 {strides = array<i32>} : memref<256x8xbf16, #tpu.memory_space<vmem>>, vector<256x8xbf16>,
    %cst_16 = arith.constant dense<0.000000e+00> : vector<8xf32>
    %21 = vector.multi_reduction <add>, %18, %cst_16 [0] : vector<256x8xf32> to vector<8xf32>
    %22 = vector.shape_cast %21 : vector<8xf32> to vector<1x8xf32>
    %23 = arith.mulf %18, %18 : vector<256x8xf32>
    %cst_17 = arith.constant dense<0.000000e+00> : vector<8xf32>
    %24 = vector.multi_reduction <add>, %23, %cst_17 [0] : vector<256x8xf32> to vector<8xf32>
    %25 = vector.shape_cast %24 : vector<8xf32> to vector<1x8xf32>
    %26 = tpu.concatenate %22, %25 in 1 : vector<1x8xf32>, vector<1x8xf32> -> vector<1x16xf32>
    %27 = vector.shape_cast %26 : vector<1x16xf32> to vector<1x1x16xf32>
    %c0_18 = arith.constant 0 : index
    %c0_19 = arith.constant 0 : index
    %c0_20 = arith.constant 0 : index
    %28 = vector.load %arg4[%c0_18, %c0_19, %c0_20] : memref<1x1x16xf32, #tpu.memory_space<vmem>>, vector<1x1x16xf32>
    tpu.vector_store %arg4[%c0_18, %c0_19, %c0_20], %27 {strides = array<i32>} : memref<1x1x16xf32, #tpu.memory_space<vmem>>, vector<1x1x16xf32>,
    return
  }
  func.func @transform_0(%arg0: i32) -> (i32, i32, i32, i32) {
    %c0_i32 = arith.constant 0 : i32
    %c0_i32_0 = arith.constant 0 : i32
    %c0_i32_1 = arith.constant 0 : i32
    %c0_i32_2 = arith.constant 0 : i32
    return %arg0, %c0_i32, %c0_i32_0, %c0_i32_1 : i32, i32, i32, i32
  }
  func.func @transform_1(%arg0: i32) -> (i32, i32) {
    %c0_i32 = arith.constant 0 : i32
    %c0_i32_0 = arith.constant 0 : i32
    %c0_i32_1 = arith.constant 0 : i32
    return %c0_i32, %c0_i32_0 : i32, i32
  }
  func.func @transform_2(%arg0: i32) -> (i32, i32) {
    %c0_i32 = arith.constant 0 : i32
    %c0_i32_0 = arith.constant 0 : i32
    return %arg0, %c0_i32 : i32, i32
  }
  func.func @transform_3(%arg0: i32) -> (i32, i32, i32) {
    %c0_i32 = arith.constant 0 : i32
    %c0_i32_0 = arith.constant 0 : i32
    %c0_i32_1 = arith.constant 0 : i32
    return %arg0, %c0_i32, %c0_i32_0 : i32, i32, i32
  }
}

module attributes {stable_mosaic.version = 11 : i64} {
  func.func @_conv_kxk_kernel(%arg0: i32, %arg1: memref<1x16x16x4xbf16, #tpu.memory_space<vmem>>, %arg2: memref<3x12x8xbf16, #tpu.memory_space<vmem>>, %arg3: memref<256x8xbf16, #tpu.memory_space<vmem>>, %arg4: memref<1x1x16xf32, #tpu.memory_space<vmem>>, %arg5: memref<18x18x4xf32, #tpu.memory_space<vmem>>) attributes {dimension_semantics = [#tpu.dimension_semantics<parallel>], iteration_bounds = array<i64: 2>, scalar_prefetch = 0 : i64, scratch_operands = 1 : i64, tpu.core_type = #tpu.core_type<tc>, window_params = [{transform_indices = @transform_0, window_bounds = array<i64: 1, 16, 16, 4>}, {pipeline_mode = #tpu.pipeline_mode<synchronous>, transform_indices = @transform_1, window_bounds = array<i64: 3, 12, 8>}, {transform_indices = @transform_2, window_bounds = array<i64: 256, 8>}, {transform_indices = @transform_3, window_bounds = array<i64: 1, 1, 16>}]} {
    %cst = arith.constant 0.000000e+00 : f32
    %0 = vector.broadcast %cst : f32 to vector<18x18x4xf32>
    %c0 = arith.constant 0 : index
    %c0_0 = arith.constant 0 : index
    %c0_1 = arith.constant 0 : index
    %1 = vector.load %arg5[%c0, %c0_0, %c0_1] : memref<18x18x4xf32, #tpu.memory_space<vmem>>, vector<18x18x4xf32>
    tpu.vector_store %arg5[%c0, %c0_0, %c0_1], %0 {strides = array<i32>} : memref<18x18x4xf32, #tpu.memory_space<vmem>>, vector<18x18x4xf32>,
    %c0_2 = arith.constant 0 : index
    %c0_3 = arith.constant 0 : index
    %c0_4 = arith.constant 0 : index
    %c0_5 = arith.constant 0 : index
    %2 = vector.load %arg1[%c0_2, %c0_3, %c0_4, %c0_5] : memref<1x16x16x4xbf16, #tpu.memory_space<vmem>>, vector<1x16x16x4xbf16>
    %3 = vector.shape_cast %2 : vector<1x16x16x4xbf16> to vector<16x16x4xbf16>
    %4 = arith.extf %3 : vector<16x16x4xbf16> to vector<16x16x4xf32>
    %c1 = arith.constant 1 : index
    %c1_6 = arith.constant 1 : index
    %c0_7 = arith.constant 0 : index
    %5 = vector.load %arg5[%c1, %c1_6, %c0_7] : memref<18x18x4xf32, #tpu.memory_space<vmem>>, vector<16x16x4xf32>
    tpu.vector_store %arg5[%c1, %c1_6, %c0_7], %4 {strides = array<i32>} : memref<18x18x4xf32, #tpu.memory_space<vmem>>, vector<16x16x4xf32>,
    %c0_8 = arith.constant 0 : index
    %c0_9 = arith.constant 0 : index
    %c0_10 = arith.constant 0 : index
    %6 = vector.load %arg5[%c0_8, %c0_9, %c0_10] : memref<18x18x4xf32, #tpu.memory_space<vmem>>, vector<18x18x4xf32>
    %7 = vector.extract_strided_slice %6 {offsets = [0, 0, 0], sizes = [18, 16, 4], strides = [1, 1, 1]} : vector<18x18x4xf32> to vector<18x16x4xf32>
    %8 = vector.extract_strided_slice %6 {offsets = [0, 1, 0], sizes = [18, 16, 4], strides = [1, 1, 1]} : vector<18x18x4xf32> to vector<18x16x4xf32>
    %9 = vector.extract_strided_slice %6 {offsets = [0, 2, 0], sizes = [18, 16, 4], strides = [1, 1, 1]} : vector<18x18x4xf32> to vector<18x16x4xf32>
    %10 = tpu.concatenate %7, %8, %9 in 2 : vector<18x16x4xf32>, vector<18x16x4xf32>, vector<18x16x4xf32> -> vector<18x16x12xf32>
    %11 = arith.truncf %10 : vector<18x16x12xf32> to vector<18x16x12xbf16>
    %c0_11 = arith.constant 0 : index
    %c0_12 = arith.constant 0 : index
    %c0_13 = arith.constant 0 : index
    %12 = vector.load %arg2[%c0_11, %c0_12, %c0_13] : memref<3x12x8xbf16, #tpu.memory_space<vmem>>, vector<3x12x8xbf16>
    %cst_14 = arith.constant 0.000000e+00 : f32
    %13 = vector.broadcast %cst_14 : f32 to vector<256x8xf32>
    %14 = vector.extract_strided_slice %11 {offsets = [0, 0, 0], sizes = [16, 16, 12], strides = [1, 1, 1]} : vector<18x16x12xbf16> to vector<16x16x12xbf16>
    %15 = vector.shape_cast %14 : vector<16x16x12xbf16> to vector<256x12xbf16>
    %16 = vector.extract_strided_slice %12 {offsets = [0, 0, 0], sizes = [1, 12, 8], strides = [1, 1, 1]} : vector<3x12x8xbf16> to vector<1x12x8xbf16>
    %17 = vector.shape_cast %16 : vector<1x12x8xbf16> to vector<12x8xbf16>
    %cst_15 = arith.constant dense<0.000000e+00> : vector<256x8xf32>
    %18 = tpu.matmul %15, %17, %cst_15 {dimension_numbers = #tpu.dot_dimension_numbers<[1], [0], [0], [1], [0, 0, 1, 1], [], []>} : vector<256x12xbf16>, vector<12x8xbf16>, vector<256x8xf32> -> vector<256x8xf32>
    %19 = arith.addf %13, %18 : vector<256x8xf32>
    %20 = vector.extract_strided_slice %11 {offsets = [1, 0, 0], sizes = [16, 16, 12], strides = [1, 1, 1]} : vector<18x16x12xbf16> to vector<16x16x12xbf16>
    %21 = vector.shape_cast %20 : vector<16x16x12xbf16> to vector<256x12xbf16>
    %22 = vector.extract_strided_slice %12 {offsets = [1, 0, 0], sizes = [1, 12, 8], strides = [1, 1, 1]} : vector<3x12x8xbf16> to vector<1x12x8xbf16>
    %23 = vector.shape_cast %22 : vector<1x12x8xbf16> to vector<12x8xbf16>
    %cst_16 = arith.constant dense<0.000000e+00> : vector<256x8xf32>
    %24 = tpu.matmul %21, %23, %cst_16 {dimension_numbers = #tpu.dot_dimension_numbers<[1], [0], [0], [1], [0, 0, 1, 1], [], []>} : vector<256x12xbf16>, vector<12x8xbf16>, vector<256x8xf32> -> vector<256x8xf32>
    %25 = arith.addf %19, %24 : vector<256x8xf32>
    %26 = vector.extract_strided_slice %11 {offsets = [2, 0, 0], sizes = [16, 16, 12], strides = [1, 1, 1]} : vector<18x16x12xbf16> to vector<16x16x12xbf16>
    %27 = vector.shape_cast %26 : vector<16x16x12xbf16> to vector<256x12xbf16>
    %28 = vector.extract_strided_slice %12 {offsets = [2, 0, 0], sizes = [1, 12, 8], strides = [1, 1, 1]} : vector<3x12x8xbf16> to vector<1x12x8xbf16>
    %29 = vector.shape_cast %28 : vector<1x12x8xbf16> to vector<12x8xbf16>
    %cst_17 = arith.constant dense<0.000000e+00> : vector<256x8xf32>
    %30 = tpu.matmul %27, %29, %cst_17 {dimension_numbers = #tpu.dot_dimension_numbers<[1], [0], [0], [1], [0, 0, 1, 1], [], []>} : vector<256x12xbf16>, vector<12x8xbf16>, vector<256x8xf32> -> vector<256x8xf32>
    %31 = arith.addf %25, %30 : vector<256x8xf32>
    %32 = arith.truncf %31 : vector<256x8xf32> to vector<256x8xbf16>
    %c0_18 = arith.constant 0 : index
    %c0_19 = arith.constant 0 : index
    %33 = vector.load %arg3[%c0_18, %c0_19] : memref<256x8xbf16, #tpu.memory_space<vmem>>, vector<256x8xbf16>
    tpu.vector_store %arg3[%c0_18, %c0_19], %32 {strides = array<i32>} : memref<256x8xbf16, #tpu.memory_space<vmem>>, vector<256x8xbf16>,
    %cst_20 = arith.constant dense<0.000000e+00> : vector<8xf32>
    %34 = vector.multi_reduction <add>, %31, %cst_20 [0] : vector<256x8xf32> to vector<8xf32>
    %35 = vector.shape_cast %34 : vector<8xf32> to vector<1x8xf32>
    %36 = arith.mulf %31, %31 : vector<256x8xf32>
    %cst_21 = arith.constant dense<0.000000e+00> : vector<8xf32>
    %37 = vector.multi_reduction <add>, %36, %cst_21 [0] : vector<256x8xf32> to vector<8xf32>
    %38 = vector.shape_cast %37 : vector<8xf32> to vector<1x8xf32>
    %39 = tpu.concatenate %35, %38 in 1 : vector<1x8xf32>, vector<1x8xf32> -> vector<1x16xf32>
    %40 = vector.shape_cast %39 : vector<1x16xf32> to vector<1x1x16xf32>
    %c0_22 = arith.constant 0 : index
    %c0_23 = arith.constant 0 : index
    %c0_24 = arith.constant 0 : index
    %41 = vector.load %arg4[%c0_22, %c0_23, %c0_24] : memref<1x1x16xf32, #tpu.memory_space<vmem>>, vector<1x1x16xf32>
    tpu.vector_store %arg4[%c0_22, %c0_23, %c0_24], %40 {strides = array<i32>} : memref<1x1x16xf32, #tpu.memory_space<vmem>>, vector<1x1x16xf32>,
    return
  }
  func.func @transform_0(%arg0: i32) -> (i32, i32, i32, i32) {
    %c0_i32 = arith.constant 0 : i32
    %c0_i32_0 = arith.constant 0 : i32
    %c0_i32_1 = arith.constant 0 : i32
    %c0_i32_2 = arith.constant 0 : i32
    return %arg0, %c0_i32, %c0_i32_0, %c0_i32_1 : i32, i32, i32, i32
  }
  func.func @transform_1(%arg0: i32) -> (i32, i32, i32) {
    %c0_i32 = arith.constant 0 : i32
    %c0_i32_0 = arith.constant 0 : i32
    %c0_i32_1 = arith.constant 0 : i32
    %c0_i32_2 = arith.constant 0 : i32
    return %c0_i32, %c0_i32_0, %c0_i32_1 : i32, i32, i32
  }
  func.func @transform_2(%arg0: i32) -> (i32, i32) {
    %c0_i32 = arith.constant 0 : i32
    %c0_i32_0 = arith.constant 0 : i32
    return %arg0, %c0_i32 : i32, i32
  }
  func.func @transform_3(%arg0: i32) -> (i32, i32, i32) {
    %c0_i32 = arith.constant 0 : i32
    %c0_i32_0 = arith.constant 0 : i32
    %c0_i32_1 = arith.constant 0 : i32
    return %arg0, %c0_i32, %c0_i32_0 : i32, i32, i32
  }
}

module attributes {stable_mosaic.version = 11 : i64} {
  func.func @_bn_concat_kernel(%arg0: i32, %arg1: memref<256x8xbf16, #tpu.memory_space<vmem>>, %arg2: memref<256x8xbf16, #tpu.memory_space<vmem>>, %arg3: memref<256x8xbf16, #tpu.memory_space<vmem>>, %arg4: memref<256x8xbf16, #tpu.memory_space<vmem>>, %arg5: memref<1x32xf32, #tpu.memory_space<vmem>>, %arg6: memref<1x32xf32, #tpu.memory_space<vmem>>, %arg7: memref<1x32x256xf32, #tpu.memory_space<vmem>>) attributes {dimension_semantics = [#tpu.dimension_semantics<parallel>], iteration_bounds = array<i64: 2>, scalar_prefetch = 0 : i64, scratch_operands = 0 : i64, tpu.core_type = #tpu.core_type<tc>, window_params = [{transform_indices = @transform_0, window_bounds = array<i64: 256, 8>}, {transform_indices = @transform_1, window_bounds = array<i64: 256, 8>}, {transform_indices = @transform_2, window_bounds = array<i64: 256, 8>}, {transform_indices = @transform_3, window_bounds = array<i64: 256, 8>}, {pipeline_mode = #tpu.pipeline_mode<synchronous>, transform_indices = @transform_4, window_bounds = array<i64: 1, 32>}, {pipeline_mode = #tpu.pipeline_mode<synchronous>, transform_indices = @transform_5, window_bounds = array<i64: 1, 32>}, {transform_indices = @transform_6, window_bounds = array<i64: 1, 32, 256>}]} {
    %c0 = arith.constant 0 : index
    %c0_0 = arith.constant 0 : index
    %0 = vector.load %arg1[%c0, %c0_0] : memref<256x8xbf16, #tpu.memory_space<vmem>>, vector<256x8xbf16>
    %1 = arith.extf %0 : vector<256x8xbf16> to vector<256x8xf32>
    %c0_1 = arith.constant 0 : index
    %c0_2 = arith.constant 0 : index
    %2 = vector.load %arg2[%c0_1, %c0_2] : memref<256x8xbf16, #tpu.memory_space<vmem>>, vector<256x8xbf16>
    %3 = arith.extf %2 : vector<256x8xbf16> to vector<256x8xf32>
    %c0_3 = arith.constant 0 : index
    %c0_4 = arith.constant 0 : index
    %4 = vector.load %arg3[%c0_3, %c0_4] : memref<256x8xbf16, #tpu.memory_space<vmem>>, vector<256x8xbf16>
    %5 = arith.extf %4 : vector<256x8xbf16> to vector<256x8xf32>
    %c0_5 = arith.constant 0 : index
    %c0_6 = arith.constant 0 : index
    %6 = vector.load %arg4[%c0_5, %c0_6] : memref<256x8xbf16, #tpu.memory_space<vmem>>, vector<256x8xbf16>
    %7 = arith.extf %6 : vector<256x8xbf16> to vector<256x8xf32>
    %8 = tpu.concatenate %1, %3, %5, %7 in 1 : vector<256x8xf32>, vector<256x8xf32>, vector<256x8xf32>, vector<256x8xf32> -> vector<256x32xf32>
    %c0_7 = arith.constant 0 : index
    %c0_8 = arith.constant 0 : index
    %9 = vector.load %arg5[%c0_7, %c0_8] : memref<1x32xf32, #tpu.memory_space<vmem>>, vector<1x32xf32>
    %10 = vector.broadcast %9 : vector<1x32xf32> to vector<256x32xf32>
    %11 = arith.mulf %8, %10 : vector<256x32xf32>
    %c0_9 = arith.constant 0 : index
    %c0_10 = arith.constant 0 : index
    %12 = vector.load %arg6[%c0_9, %c0_10] : memref<1x32xf32, #tpu.memory_space<vmem>>, vector<1x32xf32>
    %13 = vector.broadcast %12 : vector<1x32xf32> to vector<256x32xf32>
    %14 = arith.addf %11, %13 : vector<256x32xf32>
    %cst = arith.constant 0.000000e+00 : f32
    %15 = vector.broadcast %cst : f32 to vector<256x32xf32>
    %16 = arith.maximumf %14, %15 : vector<256x32xf32>
    %cst_11 = arith.constant 0.000000e+00 : f32
    %17 = vector.broadcast %cst_11 : f32 to vector<256x96xf32>
    %18 = tpu.concatenate %16, %17 in 1 : vector<256x32xf32>, vector<256x96xf32> -> vector<256x128xf32>
    %19 = tpu.transpose %18, [1, 0] : vector<256x128xf32> -> vector<128x256xf32>
    %20 = vector.extract_strided_slice %19 {offsets = [0, 0], sizes = [32, 256], strides = [1, 1]} : vector<128x256xf32> to vector<32x256xf32>
    %21 = vector.shape_cast %20 : vector<32x256xf32> to vector<1x32x256xf32>
    %c0_12 = arith.constant 0 : index
    %c0_13 = arith.constant 0 : index
    %c0_14 = arith.constant 0 : index
    %22 = vector.load %arg7[%c0_12, %c0_13, %c0_14] : memref<1x32x256xf32, #tpu.memory_space<vmem>>, vector<1x32x256xf32>
    tpu.vector_store %arg7[%c0_12, %c0_13, %c0_14], %21 {strides = array<i32>} : memref<1x32x256xf32, #tpu.memory_space<vmem>>, vector<1x32x256xf32>,
    return
  }
  func.func @transform_0(%arg0: i32) -> (i32, i32) {
    %c0_i32 = arith.constant 0 : i32
    %c0_i32_0 = arith.constant 0 : i32
    return %arg0, %c0_i32 : i32, i32
  }
  func.func @transform_1(%arg0: i32) -> (i32, i32) {
    %c0_i32 = arith.constant 0 : i32
    %c0_i32_0 = arith.constant 0 : i32
    return %arg0, %c0_i32 : i32, i32
  }
  func.func @transform_2(%arg0: i32) -> (i32, i32) {
    %c0_i32 = arith.constant 0 : i32
    %c0_i32_0 = arith.constant 0 : i32
    return %arg0, %c0_i32 : i32, i32
  }
  func.func @transform_3(%arg0: i32) -> (i32, i32) {
    %c0_i32 = arith.constant 0 : i32
    %c0_i32_0 = arith.constant 0 : i32
    return %arg0, %c0_i32 : i32, i32
  }
  func.func @transform_4(%arg0: i32) -> (i32, i32) {
    %c0_i32 = arith.constant 0 : i32
    %c0_i32_0 = arith.constant 0 : i32
    %c0_i32_1 = arith.constant 0 : i32
    return %c0_i32, %c0_i32_0 : i32, i32
  }
  func.func @transform_5(%arg0: i32) -> (i32, i32) {
    %c0_i32 = arith.constant 0 : i32
    %c0_i32_0 = arith.constant 0 : i32
    %c0_i32_1 = arith.constant 0 : i32
    return %c0_i32, %c0_i32_0 : i32, i32
  }
  func.func @transform_6(%arg0: i32) -> (i32, i32, i32) {
    %c0_i32 = arith.constant 0 : i32
    %c0_i32_0 = arith.constant 0 : i32
    %c0_i32_1 = arith.constant 0 : i32
    return %arg0, %c0_i32, %c0_i32_0 : i32, i32, i32
  }
}

</mosaic_0001>

<llo_original>
// kernel: inception_forward.5
$region0: #{inception_forward.5}
  #allocation0 [shape = 'u32[]', space=smem, size = 0x4, offset = 0x4, fixed_abs, tag = 'smem constant byte address 0x4 - core index']
  #allocation1 [shape = 'u32[144,128]{1,0:T(1,128)}', space=vmem, size = 0x12000, scoped, tag = 'internal scratch']
  %s0 = inlined_call_operand.vmem [shape: bf16[512,4], index: 0, kind: input, shape index: {}]
  %s1 = inlined_call_operand.vmem [shape: bf16[4,16], index: 1, kind: input, shape index: {}]
  %s2 = inlined_call_operand.vmem [shape: f32[1,8], index: 2, kind: input, shape index: {}]
  %s3 = inlined_call_operand.vmem [shape: bf16[512,8], index: 3, kind: output, shape index: {0}]
  %s4 = inlined_call_operand.vmem [shape: bf16[512,4], index: 4, kind: output, shape index: {1}]
  %s5 = inlined_call_operand.vmem [shape: bf16[512,4], index: 5, kind: output, shape index: {2}]
  %s6 = inlined_call_operand.vmem [shape: f32[1,1,16], index: 6, kind: output, shape index: {3}]
  %7 = xla_tuple %s3, %s4, %s5, %s6
  %s8 = sld [smem:[#allocation0]]
  $region46: #{inception_forward.5} parent=0
    _
  %s10 = ssub.s32 1, %s8
  %s11 = scalar_select 0, %s10, %s8
  // Predicated region
  $region2: #{inception_forward.5} parent=0 // pred_check
    _
  $region3: #{inception_forward.5} parent=0 // pred_check_branch
    %13 = sbr.rel (0) target = $region5
  $region4: #{inception_forward.5} parent=0 // pred_region
    _
  $region5: #{inception_forward.5} parent=0 // pred_fallthru
    _
  // Predicated region
  $region6: #{inception_forward.5} parent=0 // pred_check
    _
  $region7: #{inception_forward.5} parent=0 // pred_check_branch
    %15 = sbr.rel (0) target = $region9
  $region8: #{inception_forward.5} parent=0 // pred_region
    _
  $region9: #{inception_forward.5} parent=0 // pred_fallthru
    _
  // Predicated region
  $region10: #{inception_forward.5} parent=0 // pred_check
    _
  $region11: #{inception_forward.5} parent=0 // pred_check_branch
    %17 = sbr.rel (0) target = $region13
  $region12: #{inception_forward.5} parent=0 // pred_region
    _
  $region13: #{inception_forward.5} parent=0 // pred_fallthru
    _
  %v19 = vld [vmem:[%s0] sm:$0xf]
  %v20 = vld [vmem:[%s0 + $0x4] sm:$0xf]
  %v21 = vld [vmem:[%s0 + $0x8] sm:$0xf]
  %v22 = vld [vmem:[%s0 + $0xc] sm:$0xf]
  %v23 = vld [vmem:[%s0 + $0x10] sm:$0xf]
  %v24 = vld [vmem:[%s0 + $0x14] sm:$0xf]
  %v25 = vld [vmem:[%s0 + $0x18] sm:$0xf]
  %v26 = vld [vmem:[%s0 + $0x1c] sm:$0xf]
  %v27 = vld [vmem:[%s0 + $0x20] sm:$0xf]
  %v28 = vld [vmem:[%s0 + $0x24] sm:$0xf]
  %v29 = vld [vmem:[%s0 + $0x28] sm:$0xf]
  %v30 = vld [vmem:[%s0 + $0x2c] sm:$0xf]
  %v31 = vld [vmem:[%s0 + $0x30] sm:$0xf]
  %v32 = vld [vmem:[%s0 + $0x34] sm:$0xf]
  %v33 = vld [vmem:[%s0 + $0x38] sm:$0xf]
  %v34 = vld [vmem:[%s0 + $0x3c] sm:$0xf]
  %v35 = vld [vmem:[%s0 + $0x40] sm:$0xf]
  %v36 = vld [vmem:[%s0 + $0x44] sm:$0xf]
  %v37 = vld [vmem:[%s0 + $0x48] sm:$0xf]
  %v38 = vld [vmem:[%s0 + $0x4c] sm:$0xf]
  %v39 = vld [vmem:[%s0 + $0x50] sm:$0xf]
  %v40 = vld [vmem:[%s0 + $0x54] sm:$0xf]
  %v41 = vld [vmem:[%s0 + $0x58] sm:$0xf]
  %v42 = vld [vmem:[%s0 + $0x5c] sm:$0xf]
  %v43 = vld [vmem:[%s0 + $0x60] sm:$0xf]
  %v44 = vld [vmem:[%s0 + $0x64] sm:$0xf]
  %v45 = vld [vmem:[%s0 + $0x68] sm:$0xf]
  %v46 = vld [vmem:[%s0 + $0x6c] sm:$0xf]
  %v47 = vld [vmem:[%s0 + $0x70] sm:$0xf]
  %v48 = vld [vmem:[%s0 + $0x74] sm:$0xf]
  %v49 = vld [vmem:[%s0 + $0x78] sm:$0xf]
  %v50 = vld [vmem:[%s0 + $0x7c] sm:$0xf]
  %v51 = vld [vmem:[%s0 + $0x80] sm:$0xf]
  %v52 = vld [vmem:[%s0 + $0x84] sm:$0xf]
  %v53 = vld [vmem:[%s0 + $0x88] sm:$0xf]
  %v54 = vld [vmem:[%s0 + $0x8c] sm:$0xf]
  %v55 = vld [vmem:[%s0 + $0x90] sm:$0xf]
  %v56 = vld [vmem:[%s0 + $0x94] sm:$0xf]
  %v57 = vld [vmem:[%s0 + $0x98] sm:$0xf]
  %v58 = vld [vmem:[%s0 + $0x9c] sm:$0xf]
  %v59 = vld [vmem:[%s0 + $0xa0] sm:$0xf]
  %v60 = vld [vmem:[%s0 + $0xa4] sm:$0xf]
  %v61 = vld [vmem:[%s0 + $0xa8] sm:$0xf]
  %v62 = vld [vmem:[%s0 + $0xac] sm:$0xf]
  %v63 = vld [vmem:[%s0 + $0xb0] sm:$0xf]
  %v64 = vld [vmem:[%s0 + $0xb4] sm:$0xf]
  %v65 = vld [vmem:[%s0 + $0xb8] sm:$0xf]
  %v66 = vld [vmem:[%s0 + $0xbc] sm:$0xf]
  %v67 = vld [vmem:[%s0 + $0xc0] sm:$0xf]
  %v68 = vld [vmem:[%s0 + $0xc4] sm:$0xf]
  %v69 = vld [vmem:[%s0 + $0xc8] sm:$0xf]
  %v70 = vld [vmem:[%s0 + $0xcc] sm:$0xf]
  %v71 = vld [vmem:[%s0 + $0xd0] sm:$0xf]
  %v72 = vld [vmem:[%s0 + $0xd4] sm:$0xf]
  %v73 = vld [vmem:[%s0 + $0xd8] sm:$0xf]
  %v74 = vld [vmem:[%s0 + $0xdc] sm:$0xf]
  %v75 = vld [vmem:[%s0 + $0xe0] sm:$0xf]
  %v76 = vld [vmem:[%s0 + $0xe4] sm:$0xf]
  %v77 = vld [vmem:[%s0 + $0xe8] sm:$0xf]
  %v78 = vld [vmem:[%s0 + $0xec] sm:$0xf]
  %v79 = vld [vmem:[%s0 + $0xf0] sm:$0xf]
  %v80 = vld [vmem:[%s0 + $0xf4] sm:$0xf]
  %v81 = vld [vmem:[%s0 + $0xf8] sm:$0xf]
  %v82 = vld [vmem:[%s0 + $0xfc] sm:$0xf]
  %v83 = vld [vmem:[%s1] sm:$0x3]
  %v148 = vunpack.c.l.b16 %v19
  %v149 = vunpack.c.l.b16 %v20
  %v150 = vunpack.c.l.b16 %v21
  %v151 = vunpack.c.l.b16 %v22
  %v152 = vunpack.c.l.b16 %v23
  %v153 = vunpack.c.l.b16 %v24
  %v154 = vunpack.c.l.b16 %v25
  %v155 = vunpack.c.l.b16 %v26
  %v156 = vunpack.c.l.b16 %v27
  %v157 = vunpack.c.l.b16 %v28
  %v158 = vunpack.c.l.b16 %v29
  %v159 = vunpack.c.l.b16 %v30
  %v160 = vunpack.c.l.b16 %v31
  %v161 = vunpack.c.l.b16 %v32
  %v162 = vunpack.c.l.b16 %v33
  %v163 = vunpack.c.l.b16 %v34
  %v164 = vunpack.c.l.b16 %v35
  %v165 = vunpack.c.l.b16 %v36
  %v166 = vunpack.c.l.b16 %v37
  %v167 = vunpack.c.l.b16 %v38
  %v168 = vunpack.c.l.b16 %v39
  %v169 = vunpack.c.l.b16 %v40
  %v170 = vunpack.c.l.b16 %v41
  %v171 = vunpack.c.l.b16 %v42
  %v172 = vunpack.c.l.b16 %v43
  %v173 = vunpack.c.l.b16 %v44
  %v174 = vunpack.c.l.b16 %v45
  %v175 = vunpack.c.l.b16 %v46
  %v176 = vunpack.c.l.b16 %v47
  %v177 = vunpack.c.l.b16 %v48
  %v178 = vunpack.c.l.b16 %v49
  %v179 = vunpack.c.l.b16 %v50
  %v180 = vunpack.c.l.b16 %v51
  %v181 = vunpack.c.l.b16 %v52
  %v182 = vunpack.c.l.b16 %v53
  %v183 = vunpack.c.l.b16 %v54
  %v184 = vunpack.c.l.b16 %v55
  %v185 = vunpack.c.l.b16 %v56
  %v186 = vunpack.c.l.b16 %v57
  %v187 = vunpack.c.l.b16 %v58
  %v188 = vunpack.c.l.b16 %v59
  %v189 = vunpack.c.l.b16 %v60
  %v190 = vunpack.c.l.b16 %v61
  %v191 = vunpack.c.l.b16 %v62
  %v192 = vunpack.c.l.b16 %v63
  %v193 = vunpack.c.l.b16 %v64
  %v194 = vunpack.c.l.b16 %v65
  %v195 = vunpack.c.l.b16 %v66
  %v196 = vunpack.c.l.b16 %v67
  %v197 = vunpack.c.l.b16 %v68
  %v198 = vunpack.c.l.b16 %v69
  %v199 = vunpack.c.l.b16 %v70
  %v200 = vunpack.c.l.b16 %v71
  %v201 = vunpack.c.l.b16 %v72
  %v202 = vunpack.c.l.b16 %v73
  %v203 = vunpack.c.l.b16 %v74
  %v204 = vunpack.c.l.b16 %v75
  %v205 = vunpack.c.l.b16 %v76
  %v206 = vunpack.c.l.b16 %v77
  %v207 = vunpack.c.l.b16 %v78
  %v208 = vunpack.c.l.b16 %v79
  %v209 = vunpack.c.l.b16 %v80
  %v210 = vunpack.c.l.b16 %v81
  %v211 = vunpack.c.l.b16 %v82
  %v212 = vpack.c.b16 %v149, %v148
  %v213 = vpack.c.b16 %v151, %v150
  %v214 = vpack.c.b16 %v153, %v152
  %v215 = vpack.c.b16 %v155, %v154
  %v216 = vpack.c.b16 %v157, %v156
  %v217 = vpack.c.b16 %v159, %v158
  %v218 = vpack.c.b16 %v161, %v160
  %v219 = vpack.c.b16 %v163, %v162
  %v220 = vpack.c.b16 %v165, %v164
  %v221 = vpack.c.b16 %v167, %v166
  %v222 = vpack.c.b16 %v169, %v168
  %v223 = vpack.c.b16 %v171, %v170
  %v224 = vpack.c.b16 %v173, %v172
  %v225 = vpack.c.b16 %v175, %v174
  %v226 = vpack.c.b16 %v177, %v176
  %v227 = vpack.c.b16 %v179, %v178
  %v228 = vpack.c.b16 %v181, %v180
  %v229 = vpack.c.b16 %v183, %v182
  %v230 = vpack.c.b16 %v185, %v184
  %v231 = vpack.c.b16 %v187, %v186
  %v232 = vpack.c.b16 %v189, %v188
  %v233 = vpack.c.b16 %v191, %v190
  %v234 = vpack.c.b16 %v193, %v192
  %v235 = vpack.c.b16 %v195, %v194
  %v236 = vpack.c.b16 %v197, %v196
  %v237 = vpack.c.b16 %v199, %v198
  %v238 = vpack.c.b16 %v201, %v200
  %v239 = vpack.c.b16 %v203, %v202
  %v240 = vpack.c.b16 %v205, %v204
  %v241 = vpack.c.b16 %v207, %v206
  %v242 = vpack.c.b16 %v209, %v208
  %v243 = vpack.c.b16 %v211, %v210
  %vm244 = vcmask 31744
  %v246 = vsel %vm244, %v212, 0
  %v249 = vsel %vm244, %v213, 0
  %v252 = vsel %vm244, %v214, 0
  %v255 = vsel %vm244, %v215, 0
  %v258 = vsel %vm244, %v216, 0
  %v261 = vsel %vm244, %v217, 0
  %v264 = vsel %vm244, %v218, 0
  %v267 = vsel %vm244, %v219, 0
  %v270 = vsel %vm244, %v220, 0
  %v273 = vsel %vm244, %v221, 0
  %v276 = vsel %vm244, %v222, 0
  %v279 = vsel %vm244, %v223, 0
  %v282 = vsel %vm244, %v224, 0
  %v285 = vsel %vm244, %v225, 0
  %v288 = vsel %vm244, %v226, 0
  %v291 = vsel %vm244, %v227, 0
  %v294 = vsel %vm244, %v228, 0
  %v297 = vsel %vm244, %v229, 0
  %v300 = vsel %vm244, %v230, 0
  %v303 = vsel %vm244, %v231, 0
  %v306 = vsel %vm244, %v232, 0
  %v309 = vsel %vm244, %v233, 0
  %v312 = vsel %vm244, %v234, 0
  %v315 = vsel %vm244, %v235, 0
  %v318 = vsel %vm244, %v236, 0
  %v321 = vsel %vm244, %v237, 0
  %v324 = vsel %vm244, %v238, 0
  %v327 = vsel %vm244, %v239, 0
  %v330 = vsel %vm244, %v240, 0
  %v333 = vsel %vm244, %v241, 0
  %v336 = vsel %vm244, %v242, 0
  %v339 = vsel %vm244, %v243, 0
  %vm341 = vcmask 1041408
  %v343 = vsel %vm341, %v83, 0
  %345 = vmatprep.subr.bf16.mxu0 0
  %346 = vmatpush1.bf16.msra.mxu0 %v343
  %347 = vmatprep.subr.bf16.mxu0 0
  %348 = vmatpush1.bf16.msra.mxu0 0
  %349 = vmatprep.subr.bf16.mxu0 0
  %350 = vmatpush1.bf16.msra.mxu0 0
  %351 = vmatprep.subr.bf16.mxu0 0
  %352 = vmatpush1.bf16.msra.mxu0 0
  %353 = vmatprep.subr.bf16.mxu0 0
  %354 = vmatpush1.bf16.msra.mxu0 0
  %355 = vmatprep.subr.bf16.mxu0 0
  %356 = vmatpush1.bf16.msra.mxu0 0
  %357 = vmatprep.subr.bf16.mxu0 0
  %358 = vmatpush1.bf16.msra.mxu0 0
  %359 = vmatprep.subr.bf16.mxu0 0
  %360 = vmatpush1.bf16.msra.mxu0 0
  %361 = vmatprep.subr.bf16.mxu0 0
  %362 = vmatpush1.bf16.msra.mxu0 0
  %363 = vmatprep.subr.bf16.mxu0 0
  %364 = vmatpush1.bf16.msra.mxu0 0
  %365 = vmatprep.subr.bf16.mxu0 0
  %366 = vmatpush1.bf16.msra.mxu0 0
  %367 = vmatprep.subr.bf16.mxu0 0
  %368 = vmatpush1.bf16.msra.mxu0 0
  %369 = vmatprep.subr.bf16.mxu0 0
  %370 = vmatpush1.bf16.msra.mxu0 0
  %371 = vmatprep.subr.bf16.mxu0 0
  %372 = vmatpush1.bf16.msra.mxu0 0
  %373 = vmatprep.subr.bf16.mxu0 0
  %374 = vmatpush1.bf16.msra.mxu0 0
  %375 = vmatprep.subr.bf16.mxu0 0
  %376 = vmatpush1.bf16.msra.mxu0 0
  %377 = vmatprep.mubr.bf16.mxu0 0
  %378 = vmatmul.mubr.bf16.gmra.mrb[0].mxu0 %v246
  %v379 = vpop.f32.mrb[0].mxu0
  %v380 = vadd.f32 0.0, %v379
  %v381 = vpop.f32.mrb[0].mxu0
  %v382 = vpop.f32.mrb[0].mxu0
  %v383 = vadd.f32 0.0, %v382
  %v384 = vpop.f32.mrb[0].mxu0
  %385 = vmatprep.mubr.bf16.mxu0 0
  %386 = vmatmul.mubr.bf16.gmra.mrb[0].mxu0 %v249
  %v387 = vpop.f32.mrb[0].mxu0
  %v388 = vadd.f32 0.0, %v387
  %v389 = vpop.f32.mrb[0].mxu0
  %v390 = vpop.f32.mrb[0].mxu0
  %v391 = vadd.f32 0.0, %v390
  %v392 = vpop.f32.mrb[0].mxu0
  %393 = vmatprep.mubr.bf16.mxu0 0
  %394 = vmatmul.mubr.bf16.gmra.mrb[0].mxu0 %v252
  %v395 = vpop.f32.mrb[0].mxu0
  %v396 = vadd.f32 0.0, %v395
  %v397 = vpop.f32.mrb[0].mxu0
  %v398 = vpop.f32.mrb[0].mxu0
  %v399 = vadd.f32 0.0, %v398
  %v400 = vpop.f32.mrb[0].mxu0
  %401 = vmatprep.mubr.bf16.mxu0 0
  %402 = vmatmul.mubr.bf16.gmra.mrb[0].mxu0 %v255
  %v403 = vpop.f32.mrb[0].mxu0
  %v404 = vadd.f32 0.0, %v403
  %v405 = vpop.f32.mrb[0].mxu0
  %v406 = vpop.f32.mrb[0].mxu0
  %v407 = vadd.f32 0.0, %v406
  %v408 = vpop.f32.mrb[0].mxu0
  %409 = vmatprep.mubr.bf16.mxu0 0
  %410 = vmatmul.mubr.bf16.gmra.mrb[0].mxu0 %v258
  %v411 = vpop.f32.mrb[0].mxu0
  %v412 = vadd.f32 0.0, %v411
  %v413 = vpop.f32.mrb[0].mxu0
  %v414 = vpop.f32.mrb[0].mxu0
  %v415 = vadd.f32 0.0, %v414
  %v416 = vpop.f32.mrb[0].mxu0
  %417 = vmatprep.mubr.bf16.mxu0 0
  %418 = vmatmul.mubr.bf16.gmra.mrb[0].mxu0 %v261
  %v419 = vpop.f32.mrb[0].mxu0
  %v420 = vadd.f32 0.0, %v419
  %v421 = vpop.f32.mrb[0].mxu0
  %v422 = vpop.f32.mrb[0].mxu0
  %v423 = vadd.f32 0.0, %v422
  %v424 = vpop.f32.mrb[0].mxu0
  %425 = vmatprep.mubr.bf16.mxu0 0
  %426 = vmatmul.mubr.bf16.gmra.mrb[0].mxu0 %v264
  %v427 = vpop.f32.mrb[0].mxu0
  %v428 = vadd.f32 0.0, %v427
  %v429 = vpop.f32.mrb[0].mxu0
  %v430 = vpop.f32.mrb[0].mxu0
  %v431 = vadd.f32 0.0, %v430
  %v432 = vpop.f32.mrb[0].mxu0
  %433 = vmatprep.mubr.bf16.mxu0 0
  %434 = vmatmul.mubr.bf16.gmra.mrb[0].mxu0 %v267
  %v435 = vpop.f32.mrb[0].mxu0
  %v436 = vadd.f32 0.0, %v435
  %v437 = vpop.f32.mrb[0].mxu0
  %v438 = vpop.f32.mrb[0].mxu0
  %v439 = vadd.f32 0.0, %v438
  %v440 = vpop.f32.mrb[0].mxu0
  %441 = vmatprep.mubr.bf16.mxu0 0
  %442 = vmatmul.mubr.bf16.gmra.mrb[0].mxu0 %v270
  %v443 = vpop.f32.mrb[0].mxu0
  %v444 = vadd.f32 0.0, %v443
  %v445 = vpop.f32.mrb[0].mxu0
  %v446 = vpop.f32.mrb[0].mxu0
  %v447 = vadd.f32 0.0, %v446
  %v448 = vpop.f32.mrb[0].mxu0
  %449 = vmatprep.mubr.bf16.mxu0 0
  %450 = vmatmul.mubr.bf16.gmra.mrb[0].mxu0 %v273
  %v451 = vpop.f32.mrb[0].mxu0
  %v452 = vadd.f32 0.0, %v451
  %v453 = vpop.f32.mrb[0].mxu0
  %v454 = vpop.f32.mrb[0].mxu0
  %v455 = vadd.f32 0.0, %v454
  %v456 = vpop.f32.mrb[0].mxu0
  %457 = vmatprep.mubr.bf16.mxu0 0
  %458 = vmatmul.mubr.bf16.gmra.mrb[0].mxu0 %v276
  %v459 = vpop.f32.mrb[0].mxu0
  %v460 = vadd.f32 0.0, %v459
  %v461 = vpop.f32.mrb[0].mxu0
  %v462 = vpop.f32.mrb[0].mxu0
  %v463 = vadd.f32 0.0, %v462
  %v464 = vpop.f32.mrb[0].mxu0
  %465 = vmatprep.mubr.bf16.mxu0 0
  %466 = vmatmul.mubr.bf16.gmra.mrb[0].mxu0 %v279
  %v467 = vpop.f32.mrb[0].mxu0
  %v468 = vadd.f32 0.0, %v467
  %v469 = vpop.f32.mrb[0].mxu0
  %v470 = vpop.f32.mrb[0].mxu0
  %v471 = vadd.f32 0.0, %v470
  %v472 = vpop.f32.mrb[0].mxu0
  %473 = vmatprep.mubr.bf16.mxu0 0
  %474 = vmatmul.mubr.bf16.gmra.mrb[0].mxu0 %v282
  %v475 = vpop.f32.mrb[0].mxu0
  %v476 = vadd.f32 0.0, %v475
  %v477 = vpop.f32.mrb[0].mxu0
  %v478 = vpop.f32.mrb[0].mxu0
  %v479 = vadd.f32 0.0, %v478
  %v480 = vpop.f32.mrb[0].mxu0
  %481 = vmatprep.mubr.bf16.mxu0 0
  %482 = vmatmul.mubr.bf16.gmra.mrb[0].mxu0 %v285
  %v483 = vpop.f32.mrb[0].mxu0
  %v484 = vadd.f32 0.0, %v483
  %v485 = vpop.f32.mrb[0].mxu0
  %v486 = vpop.f32.mrb[0].mxu0
  %v487 = vadd.f32 0.0, %v486
  %v488 = vpop.f32.mrb[0].mxu0
  %489 = vmatprep.mubr.bf16.mxu0 0
  %490 = vmatmul.mubr.bf16.gmra.mrb[0].mxu0 %v288
  %v491 = vpop.f32.mrb[0].mxu0
  %v492 = vadd.f32 0.0, %v491
  %v493 = vpop.f32.mrb[0].mxu0
  %v494 = vpop.f32.mrb[0].mxu0
  %v495 = vadd.f32 0.0, %v494
  %v496 = vpop.f32.mrb[0].mxu0
  %497 = vmatprep.mubr.bf16.mxu0 0
  %498 = vmatmul.mubr.bf16.gmra.mrb[0].mxu0 %v291
  %v499 = vpop.f32.mrb[0].mxu0
  %v500 = vadd.f32 0.0, %v499
  %v501 = vpop.f32.mrb[0].mxu0
  %v502 = vpop.f32.mrb[0].mxu0
  %v503 = vadd.f32 0.0, %v502
  %v504 = vpop.f32.mrb[0].mxu0
  %505 = vmatprep.mubr.bf16.mxu0 0
  %506 = vmatmul.mubr.bf16.gmra.mrb[0].mxu0 %v294
  %v507 = vpop.f32.mrb[0].mxu0
  %v508 = vadd.f32 0.0, %v507
  %v509 = vpop.f32.mrb[0].mxu0
  %v510 = vpop.f32.mrb[0].mxu0
  %v511 = vadd.f32 0.0, %v510
  %v512 = vpop.f32.mrb[0].mxu0
  %513 = vmatprep.mubr.bf16.mxu0 0
  %514 = vmatmul.mubr.bf16.gmra.mrb[0].mxu0 %v297
  %v515 = vpop.f32.mrb[0].mxu0
  %v516 = vadd.f32 0.0, %v515
  %v517 = vpop.f32.mrb[0].mxu0
  %v518 = vpop.f32.mrb[0].mxu0
  %v519 = vadd.f32 0.0, %v518
  %v520 = vpop.f32.mrb[0].mxu0
  %521 = vmatprep.mubr.bf16.mxu0 0
  %522 = vmatmul.mubr.bf16.gmra.mrb[0].mxu0 %v300
  %v523 = vpop.f32.mrb[0].mxu0
  %v524 = vadd.f32 0.0, %v523
  %v525 = vpop.f32.mrb[0].mxu0
  %v526 = vpop.f32.mrb[0].mxu0
  %v527 = vadd.f32 0.0, %v526
  %v528 = vpop.f32.mrb[0].mxu0
  %529 = vmatprep.mubr.bf16.mxu0 0
  %530 = vmatmul.mubr.bf16.gmra.mrb[0].mxu0 %v303
  %v531 = vpop.f32.mrb[0].mxu0
  %v532 = vadd.f32 0.0, %v531
  %v533 = vpop.f32.mrb[0].mxu0
  %v534 = vpop.f32.mrb[0].mxu0
  %v535 = vadd.f32 0.0, %v534
  %v536 = vpop.f32.mrb[0].mxu0
  %537 = vmatprep.mubr.bf16.mxu0 0
  %538 = vmatmul.mubr.bf16.gmra.mrb[0].mxu0 %v306
  %v539 = vpop.f32.mrb[0].mxu0
  %v540 = vadd.f32 0.0, %v539
  %v541 = vpop.f32.mrb[0].mxu0
  %v542 = vpop.f32.mrb[0].mxu0
  %v543 = vadd.f32 0.0, %v542
  %v544 = vpop.f32.mrb[0].mxu0
  %545 = vmatprep.mubr.bf16.mxu0 0
  %546 = vmatmul.mubr.bf16.gmra.mrb[0].mxu0 %v309
  %v547 = vpop.f32.mrb[0].mxu0
  %v548 = vadd.f32 0.0, %v547
  %v549 = vpop.f32.mrb[0].mxu0
  %v550 = vpop.f32.mrb[0].mxu0
  %v551 = vadd.f32 0.0, %v550
  %v552 = vpop.f32.mrb[0].mxu0
  %553 = vmatprep.mubr.bf16.mxu0 0
  %554 = vmatmul.mubr.bf16.gmra.mrb[0].mxu0 %v312
  %v555 = vpop.f32.mrb[0].mxu0
  %v556 = vadd.f32 0.0, %v555
  %v557 = vpop.f32.mrb[0].mxu0
  %v558 = vpop.f32.mrb[0].mxu0
  %v559 = vadd.f32 0.0, %v558
  %v560 = vpop.f32.mrb[0].mxu0
  %561 = vmatprep.mubr.bf16.mxu0 0
  %562 = vmatmul.mubr.bf16.gmra.mrb[0].mxu0 %v315
  %v563 = vpop.f32.mrb[0].mxu0
  %v564 = vadd.f32 0.0, %v563
  %v565 = vpop.f32.mrb[0].mxu0
  %v566 = vpop.f32.mrb[0].mxu0
  %v567 = vadd.f32 0.0, %v566
  %v568 = vpop.f32.mrb[0].mxu0
  %569 = vmatprep.mubr.bf16.mxu0 0
  %570 = vmatmul.mubr.bf16.gmra.mrb[0].mxu0 %v318
  %v571 = vpop.f32.mrb[0].mxu0
  %v572 = vadd.f32 0.0, %v571
  %v573 = vpop.f32.mrb[0].mxu0
  %v574 = vpop.f32.mrb[0].mxu0
  %v575 = vadd.f32 0.0, %v574
  %v576 = vpop.f32.mrb[0].mxu0
  %577 = vmatprep.mubr.bf16.mxu0 0
  %578 = vmatmul.mubr.bf16.gmra.mrb[0].mxu0 %v321
  %v579 = vpop.f32.mrb[0].mxu0
  %v580 = vadd.f32 0.0, %v579
  %v581 = vpop.f32.mrb[0].mxu0
  %v582 = vpop.f32.mrb[0].mxu0
  %v583 = vadd.f32 0.0, %v582
  %v584 = vpop.f32.mrb[0].mxu0
  %585 = vmatprep.mubr.bf16.mxu0 0
  %586 = vmatmul.mubr.bf16.gmra.mrb[0].mxu0 %v324
  %v587 = vpop.f32.mrb[0].mxu0
  %v588 = vadd.f32 0.0, %v587
  %v589 = vpop.f32.mrb[0].mxu0
  %v590 = vpop.f32.mrb[0].mxu0
  %v591 = vadd.f32 0.0, %v590
  %v592 = vpop.f32.mrb[0].mxu0
  %593 = vmatprep.mubr.bf16.mxu0 0
  %594 = vmatmul.mubr.bf16.gmra.mrb[0].mxu0 %v327
  %v595 = vpop.f32.mrb[0].mxu0
  %v596 = vadd.f32 0.0, %v595
  %v597 = vpop.f32.mrb[0].mxu0
  %v598 = vpop.f32.mrb[0].mxu0
  %v599 = vadd.f32 0.0, %v598
  %v600 = vpop.f32.mrb[0].mxu0
  %601 = vmatprep.mubr.bf16.mxu0 0
  %602 = vmatmul.mubr.bf16.gmra.mrb[0].mxu0 %v330
  %v603 = vpop.f32.mrb[0].mxu0
  %v604 = vadd.f32 0.0, %v603
  %v605 = vpop.f32.mrb[0].mxu0
  %v606 = vpop.f32.mrb[0].mxu0
  %v607 = vadd.f32 0.0, %v606
  %v608 = vpop.f32.mrb[0].mxu0
  %609 = vmatprep.mubr.bf16.mxu0 0
  %610 = vmatmul.mubr.bf16.gmra.mrb[0].mxu0 %v333
  %v611 = vpop.f32.mrb[0].mxu0
  %v612 = vadd.f32 0.0, %v611
  %v613 = vpop.f32.mrb[0].mxu0
  %v614 = vpop.f32.mrb[0].mxu0
  %v615 = vadd.f32 0.0, %v614
  %v616 = vpop.f32.mrb[0].mxu0
  %617 = vmatprep.mubr.bf16.mxu0 0
  %618 = vmatmul.mubr.bf16.gmra.mrb[0].mxu0 %v336
  %v619 = vpop.f32.mrb[0].mxu0
  %v620 = vadd.f32 0.0, %v619
  %v621 = vpop.f32.mrb[0].mxu0
  %v622 = vpop.f32.mrb[0].mxu0
  %v623 = vadd.f32 0.0, %v622
  %v624 = vpop.f32.mrb[0].mxu0
  %625 = vmatprep.mubr.bf16.mxu0 0
  %626 = vmatmul.mubr.bf16.gmra.mrb[0].mxu0 %v339
  %v627 = vpop.f32.mrb[0].mxu0
  %v628 = vadd.f32 0.0, %v627
  %v629 = vpop.f32.mrb[0].mxu0
  %v630 = vpop.f32.mrb[0].mxu0
  %v631 = vadd.f32 0.0, %v630
  %v632 = vpop.f32.mrb[0].mxu0
  %633 = vdwg.mxu0
  %v634 = vld [vmem:[%s2] sm:$0x1]
  %v636 = vlaneseq
  %v637 = vshrl.u32 %v636, 7
  %v638 = vsub.s32 0, %v637
  %v639 = vrot.slane %v634, %v638
  %640 = vrot.lane.b32.xlu0 %v639, 8
  %v641 = vpop.permute.xlu0 %640
  %v643 = vadd.f32 %v380, %v641
  %v644 = vadd.f32 %v383, %v641
  %v645 = vadd.f32 %v388, %v641
  %v646 = vadd.f32 %v391, %v641
  %v647 = vadd.f32 %v396, %v641
  %v648 = vadd.f32 %v399, %v641
  %v649 = vadd.f32 %v404, %v641
  %v650 = vadd.f32 %v407, %v641
  %v651 = vadd.f32 %v412, %v641
  %v652 = vadd.f32 %v415, %v641
  %v653 = vadd.f32 %v420, %v641
  %v654 = vadd.f32 %v423, %v641
  %v655 = vadd.f32 %v428, %v641
  %v656 = vadd.f32 %v431, %v641
  %v657 = vadd.f32 %v436, %v641
  %v658 = vadd.f32 %v439, %v641
  %v659 = vadd.f32 %v444, %v641
  %v660 = vadd.f32 %v447, %v641
  %v661 = vadd.f32 %v452, %v641
  %v662 = vadd.f32 %v455, %v641
  %v663 = vadd.f32 %v460, %v641
  %v664 = vadd.f32 %v463, %v641
  %v665 = vadd.f32 %v468, %v641
  %v666 = vadd.f32 %v471, %v641
  %v667 = vadd.f32 %v476, %v641
  %v668 = vadd.f32 %v479, %v641
  %v669 = vadd.f32 %v484, %v641
  %v670 = vadd.f32 %v487, %v641
  %v671 = vadd.f32 %v492, %v641
  %v672 = vadd.f32 %v495, %v641
  %v673 = vadd.f32 %v500, %v641
  %v674 = vadd.f32 %v503, %v641
  %v675 = vadd.f32 %v508, %v641
  %v676 = vadd.f32 %v511, %v641
  %v677 = vadd.f32 %v516, %v641
  %v678 = vadd.f32 %v519, %v641
  %v679 = vadd.f32 %v524, %v641
  %v680 = vadd.f32 %v527, %v641
  %v681 = vadd.f32 %v532, %v641
  %v682 = vadd.f32 %v535, %v641
  %v683 = vadd.f32 %v540, %v641
  %v684 = vadd.f32 %v543, %v641
  %v685 = vadd.f32 %v548, %v641
  %v686 = vadd.f32 %v551, %v641
  %v687 = vadd.f32 %v556, %v641
  %v688 = vadd.f32 %v559, %v641
  %v689 = vadd.f32 %v564, %v641
  %v690 = vadd.f32 %v567, %v641
  %v691 = vadd.f32 %v572, %v641
  %v692 = vadd.f32 %v575, %v641
  %v693 = vadd.f32 %v580, %v641
  %v694 = vadd.f32 %v583, %v641
  %v695 = vadd.f32 %v588, %v641
  %v696 = vadd.f32 %v591, %v641
  %v697 = vadd.f32 %v596, %v641
  %v698 = vadd.f32 %v599, %v641
  %v699 = vadd.f32 %v604, %v641
  %v700 = vadd.f32 %v607, %v641
  %v701 = vadd.f32 %v612, %v641
  %v702 = vadd.f32 %v615, %v641
  %v703 = vadd.f32 %v620, %v641
  %v704 = vadd.f32 %v623, %v641
  %v705 = vadd.f32 %v628, %v641
  %v706 = vadd.f32 %v631, %v641
  %v707 = vmax.f32 %v643, 0.0
  %v708 = vmax.f32 %v644, 0.0
  %v709 = vmax.f32 %v645, 0.0
  %v710 = vmax.f32 %v646, 0.0
  %v711 = vmax.f32 %v647, 0.0
  %v712 = vmax.f32 %v648, 0.0
  %v713 = vmax.f32 %v649, 0.0
  %v714 = vmax.f32 %v650, 0.0
  %v715 = vmax.f32 %v651, 0.0
  %v716 = vmax.f32 %v652, 0.0
  %v717 = vmax.f32 %v653, 0.0
  %v718 = vmax.f32 %v654, 0.0
  %v719 = vmax.f32 %v655, 0.0
  %v720 = vmax.f32 %v656, 0.0
  %v721 = vmax.f32 %v657, 0.0
  %v722 = vmax.f32 %v658, 0.0
  %v723 = vmax.f32 %v659, 0.0
  %v724 = vmax.f32 %v660, 0.0
  %v725 = vmax.f32 %v661, 0.0
  %v726 = vmax.f32 %v662, 0.0
  %v727 = vmax.f32 %v663, 0.0
  %v728 = vmax.f32 %v664, 0.0
  %v729 = vmax.f32 %v665, 0.0
  %v730 = vmax.f32 %v666, 0.0
  %v731 = vmax.f32 %v667, 0.0
  %v732 = vmax.f32 %v668, 0.0
  %v733 = vmax.f32 %v669, 0.0
  %v734 = vmax.f32 %v670, 0.0
  %v735 = vmax.f32 %v671, 0.0
  %v736 = vmax.f32 %v672, 0.0
  %v737 = vmax.f32 %v673, 0.0
  %v738 = vmax.f32 %v674, 0.0
  %v739 = vmax.f32 %v675, 0.0
  %v740 = vmax.f32 %v676, 0.0
  %v741 = vmax.f32 %v677, 0.0
  %v742 = vmax.f32 %v678, 0.0
  %v743 = vmax.f32 %v679, 0.0
  %v744 = vmax.f32 %v680, 0.0
  %v745 = vmax.f32 %v681, 0.0
  %v746 = vmax.f32 %v682, 0.0
  %v747 = vmax.f32 %v683, 0.0
  %v748 = vmax.f32 %v684, 0.0
  %v749 = vmax.f32 %v685, 0.0
  %v750 = vmax.f32 %v686, 0.0
  %v751 = vmax.f32 %v687, 0.0
  %v752 = vmax.f32 %v688, 0.0
  %v753 = vmax.f32 %v689, 0.0
  %v754 = vmax.f32 %v690, 0.0
  %v755 = vmax.f32 %v691, 0.0
  %v756 = vmax.f32 %v692, 0.0
  %v757 = vmax.f32 %v693, 0.0
  %v758 = vmax.f32 %v694, 0.0
  %v759 = vmax.f32 %v695, 0.0
  %v760 = vmax.f32 %v696, 0.0
  %v761 = vmax.f32 %v697, 0.0
  %v762 = vmax.f32 %v698, 0.0
  %v763 = vmax.f32 %v699, 0.0
  %v764 = vmax.f32 %v700, 0.0
  %v765 = vmax.f32 %v701, 0.0
  %v766 = vmax.f32 %v702, 0.0
  %v767 = vmax.f32 %v703, 0.0
  %v768 = vmax.f32 %v704, 0.0
  %v769 = vmax.f32 %v705, 0.0
  %v770 = vmax.f32 %v706, 0.0
  %v771 = vpack.c.bf16 %v383, %v380
  %v772 = vpack.c.bf16 %v391, %v388
  %v773 = vpack.c.bf16 %v399, %v396
  %v774 = vpack.c.bf16 %v407, %v404
  %v775 = vpack.c.bf16 %v415, %v412
  %v776 = vpack.c.bf16 %v423, %v420
  %v777 = vpack.c.bf16 %v431, %v428
  %v778 = vpack.c.bf16 %v439, %v436
  %v779 = vpack.c.bf16 %v447, %v444
  %v780 = vpack.c.bf16 %v455, %v452
  %v781 = vpack.c.bf16 %v463, %v460
  %v782 = vpack.c.bf16 %v471, %v468
  %v783 = vpack.c.bf16 %v479, %v476
  %v784 = vpack.c.bf16 %v487, %v484
  %v785 = vpack.c.bf16 %v495, %v492
  %v786 = vpack.c.bf16 %v503, %v500
  %v787 = vpack.c.bf16 %v511, %v508
  %v788 = vpack.c.bf16 %v519, %v516
  %v789 = vpack.c.bf16 %v527, %v524
  %v790 = vpack.c.bf16 %v535, %v532
  %v791 = vpack.c.bf16 %v543, %v540
  %v792 = vpack.c.bf16 %v551, %v548
  %v793 = vpack.c.bf16 %v559, %v556
  %v794 = vpack.c.bf16 %v567, %v564
  %v795 = vpack.c.bf16 %v575, %v572
  %v796 = vpack.c.bf16 %v583, %v580
  %v797 = vpack.c.bf16 %v591, %v588
  %v798 = vpack.c.bf16 %v599, %v596
  %v799 = vpack.c.bf16 %v607, %v604
  %v800 = vpack.c.bf16 %v615, %v612
  %v801 = vpack.c.bf16 %v623, %v620
  %v802 = vpack.c.bf16 %v631, %v628
  %v835 = vunpack.c.l.b16 %v771
  %v836 = vunpack.c.h.b16 %v771
  %v837 = vunpack.c.l.b16 %v772
  %v838 = vunpack.c.h.b16 %v772
  %v839 = vunpack.c.l.b16 %v773
  %v840 = vunpack.c.h.b16 %v773
  %v841 = vunpack.c.l.b16 %v774
  %v842 = vunpack.c.h.b16 %v774
  %v843 = vunpack.c.l.b16 %v775
  %v844 = vunpack.c.h.b16 %v775
  %v845 = vunpack.c.l.b16 %v776
  %v846 = vunpack.c.h.b16 %v776
  %v847 = vunpack.c.l.b16 %v777
  %v848 = vunpack.c.h.b16 %v777
  %v849 = vunpack.c.l.b16 %v778
  %v850 = vunpack.c.h.b16 %v778
  %v851 = vunpack.c.l.b16 %v779
  %v852 = vunpack.c.h.b16 %v779
  %v853 = vunpack.c.l.b16 %v780
  %v854 = vunpack.c.h.b16 %v780
  %v855 = vunpack.c.l.b16 %v781
  %v856 = vunpack.c.h.b16 %v781
  %v857 = vunpack.c.l.b16 %v782
  %v858 = vunpack.c.h.b16 %v782
  %v859 = vunpack.c.l.b16 %v783
  %v860 = vunpack.c.h.b16 %v783
  %v861 = vunpack.c.l.b16 %v784
  %v862 = vunpack.c.h.b16 %v784
  %v863 = vunpack.c.l.b16 %v785
  %v864 = vunpack.c.h.b16 %v785
  %v865 = vunpack.c.l.b16 %v786
  %v866 = vunpack.c.h.b16 %v786
  %v867 = vunpack.c.l.b16 %v787
  %v868 = vunpack.c.h.b16 %v787
  %v869 = vunpack.c.l.b16 %v788
  %v870 = vunpack.c.h.b16 %v788
  %v871 = vunpack.c.l.b16 %v789
  %v872 = vunpack.c.h.b16 %v789
  %v873 = vunpack.c.l.b16 %v790
  %v874 = vunpack.c.h.b16 %v790
  %v875 = vunpack.c.l.b16 %v791
  %v876 = vunpack.c.h.b16 %v791
  %v877 = vunpack.c.l.b16 %v792
  %v878 = vunpack.c.h.b16 %v792
  %v879 = vunpack.c.l.b16 %v793
  %v880 = vunpack.c.h.b16 %v793
  %v881 = vunpack.c.l.b16 %v794
  %v882 = vunpack.c.h.b16 %v794
  %v883 = vunpack.c.l.b16 %v795
  %v884 = vunpack.c.h.b16 %v795
  %v885 = vunpack.c.l.b16 %v796
  %v886 = vunpack.c.h.b16 %v796
  %v887 = vunpack.c.l.b16 %v797
  %v888 = vunpack.c.h.b16 %v797
  %v889 = vunpack.c.l.b16 %v798
  %v890 = vunpack.c.h.b16 %v798
  %v891 = vunpack.c.l.b16 %v799
  %v892 = vunpack.c.h.b16 %v799
  %v893 = vunpack.c.l.b16 %v800
  %v894 = vunpack.c.h.b16 %v800
  %v895 = vunpack.c.l.b16 %v801
  %v896 = vunpack.c.h.b16 %v801
  %v897 = vunpack.c.l.b16 %v802
  %v898 = vunpack.c.h.b16 %v802
  %v899 = vpack.c.b16 %v835, %v835
  %v900 = vpack.c.b16 %v836, %v836
  %v901 = vpack.c.b16 %v837, %v837
  %v902 = vpack.c.b16 %v838, %v838
  %v903 = vpack.c.b16 %v839, %v839
  %v904 = vpack.c.b16 %v840, %v840
  %v905 = vpack.c.b16 %v841, %v841
  %v906 = vpack.c.b16 %v842, %v842
  %v907 = vpack.c.b16 %v843, %v843
  %v908 = vpack.c.b16 %v844, %v844
  %v909 = vpack.c.b16 %v845, %v845
  %v910 = vpack.c.b16 %v846, %v846
  %v911 = vpack.c.b16 %v847, %v847
  %v912 = vpack.c.b16 %v848, %v848
  %v913 = vpack.c.b16 %v849, %v849
  %v914 = vpack.c.b16 %v850, %v850
  %v915 = vpack.c.b16 %v851, %v851
  %v916 = vpack.c.b16 %v852, %v852
  %v917 = vpack.c.b16 %v853, %v853
  %v918 = vpack.c.b16 %v854, %v854
  %v919 = vpack.c.b16 %v855, %v855
  %v920 = vpack.c.b16 %v856, %v856
  %v921 = vpack.c.b16 %v857, %v857
  %v922 = vpack.c.b16 %v858, %v858
  %v923 = vpack.c.b16 %v859, %v859
  %v924 = vpack.c.b16 %v860, %v860
  %v925 = vpack.c.b16 %v861, %v861
  %v926 = vpack.c.b16 %v862, %v862
  %v927 = vpack.c.b16 %v863, %v863
  %v928 = vpack.c.b16 %v864, %v864
  %v929 = vpack.c.b16 %v865, %v865
  %v930 = vpack.c.b16 %v866, %v866
  %v931 = vpack.c.b16 %v867, %v867
  %v932 = vpack.c.b16 %v868, %v868
  %v933 = vpack.c.b16 %v869, %v869
  %v934 = vpack.c.b16 %v870, %v870
  %v935 = vpack.c.b16 %v871, %v871
  %v936 = vpack.c.b16 %v872, %v872
  %v937 = vpack.c.b16 %v873, %v873
  %v938 = vpack.c.b16 %v874, %v874
  %v939 = vpack.c.b16 %v875, %v875
  %v940 = vpack.c.b16 %v876, %v876
  %v941 = vpack.c.b16 %v877, %v877
  %v942 = vpack.c.b16 %v878, %v878
  %v943 = vpack.c.b16 %v879, %v879
  %v944 = vpack.c.b16 %v880, %v880
  %v945 = vpack.c.b16 %v881, %v881
  %v946 = vpack.c.b16 %v882, %v882
  %v947 = vpack.c.b16 %v883, %v883
  %v948 = vpack.c.b16 %v884, %v884
  %v949 = vpack.c.b16 %v885, %v885
  %v950 = vpack.c.b16 %v886, %v886
  %v951 = vpack.c.b16 %v887, %v887
  %v952 = vpack.c.b16 %v888, %v888
  %v953 = vpack.c.b16 %v889, %v889
  %v954 = vpack.c.b16 %v890, %v890
  %v955 = vpack.c.b16 %v891, %v891
  %v956 = vpack.c.b16 %v892, %v892
  %v957 = vpack.c.b16 %v893, %v893
  %v958 = vpack.c.b16 %v894, %v894
  %v959 = vpack.c.b16 %v895, %v895
  %v960 = vpack.c.b16 %v896, %v896
  %v961 = vpack.c.b16 %v897, %v897
  %v962 = vpack.c.b16 %v898, %v898
  %vm1027 = vcmask 60416
  %1028 = vst.msk [vmem:[%s3] sm:$0xf] %vm1027, %v899
  %1029 = vst.msk [vmem:[%s3 + $0x4] sm:$0xf] %vm1027, %v900
  %1030 = vst.msk [vmem:[%s3 + $0x8] sm:$0xf] %vm1027, %v901
  %1031 = vst.msk [vmem:[%s3 + $0xc] sm:$0xf] %vm1027, %v902
  %1032 = vst.msk [vmem:[%s3 + $0x10] sm:$0xf] %vm1027, %v903
  %1033 = vst.msk [vmem:[%s3 + $0x14] sm:$0xf] %vm1027, %v904
  %1034 = vst.msk [vmem:[%s3 + $0x18] sm:$0xf] %vm1027, %v905
  %1035 = vst.msk [vmem:[%s3 + $0x1c] sm:$0xf] %vm1027, %v906
  %1036 = vst.msk [vmem:[%s3 + $0x20] sm:$0xf] %vm1027, %v907
  %1037 = vst.msk [vmem:[%s3 + $0x24] sm:$0xf] %vm1027, %v908
  %1038 = vst.msk [vmem:[%s3 + $0x28] sm:$0xf] %vm1027, %v909
  %1039 = vst.msk [vmem:[%s3 + $0x2c] sm:$0xf] %vm1027, %v910
  %1040 = vst.msk [vmem:[%s3 + $0x30] sm:$0xf] %vm1027, %v911
  %1041 = vst.msk [vmem:[%s3 + $0x34] sm:$0xf] %vm1027, %v912
  %1042 = vst.msk [vmem:[%s3 + $0x38] sm:$0xf] %vm1027, %v913
  %1043 = vst.msk [vmem:[%s3 + $0x3c] sm:$0xf] %vm1027, %v914
  %1044 = vst.msk [vmem:[%s3 + $0x40] sm:$0xf] %vm1027, %v915
  %1045 = vst.msk [vmem:[%s3 + $0x44] sm:$0xf] %vm1027, %v916
  %1046 = vst.msk [vmem:[%s3 + $0x48] sm:$0xf] %vm1027, %v917
  %1047 = vst.msk [vmem:[%s3 + $0x4c] sm:$0xf] %vm1027, %v918
  %1048 = vst.msk [vmem:[%s3 + $0x50] sm:$0xf] %vm1027, %v919
  %1049 = vst.msk [vmem:[%s3 + $0x54] sm:$0xf] %vm1027, %v920
  %1050 = vst.msk [vmem:[%s3 + $0x58] sm:$0xf] %vm1027, %v921
  %1051 = vst.msk [vmem:[%s3 + $0x5c] sm:$0xf] %vm1027, %v922
  %1052 = vst.msk [vmem:[%s3 + $0x60] sm:$0xf] %vm1027, %v923
  %1053 = vst.msk [vmem:[%s3 + $0x64] sm:$0xf] %vm1027, %v924
  %1054 = vst.msk [vmem:[%s3 + $0x68] sm:$0xf] %vm1027, %v925
  %1055 = vst.msk [vmem:[%s3 + $0x6c] sm:$0xf] %vm1027, %v926
  %1056 = vst.msk [vmem:[%s3 + $0x70] sm:$0xf] %vm1027, %v927
  %1057 = vst.msk [vmem:[%s3 + $0x74] sm:$0xf] %vm1027, %v928
  %1058 = vst.msk [vmem:[%s3 + $0x78] sm:$0xf] %vm1027, %v929
  %1059 = vst.msk [vmem:[%s3 + $0x7c] sm:$0xf] %vm1027, %v930
  %1060 = vst.msk [vmem:[%s3 + $0x80] sm:$0xf] %vm1027, %v931
  %1061 = vst.msk [vmem:[%s3 + $0x84] sm:$0xf] %vm1027, %v932
  %1062 = vst.msk [vmem:[%s3 + $0x88] sm:$0xf] %vm1027, %v933
  %1063 = vst.msk [vmem:[%s3 + $0x8c] sm:$0xf] %vm1027, %v934
  %1064 = vst.msk [vmem:[%s3 + $0x90] sm:$0xf] %vm1027, %v935
  %1065 = vst.msk [vmem:[%s3 + $0x94] sm:$0xf] %vm1027, %v936
  %1066 = vst.msk [vmem:[%s3 + $0x98] sm:$0xf] %vm1027, %v937
  %1067 = vst.msk [vmem:[%s3 + $0x9c] sm:$0xf] %vm1027, %v938
  %1068 = vst.msk [vmem:[%s3 + $0xa0] sm:$0xf] %vm1027, %v939
  %1069 = vst.msk [vmem:[%s3 + $0xa4] sm:$0xf] %vm1027, %v940
  %1070 = vst.msk [vmem:[%s3 + $0xa8] sm:$0xf] %vm1027, %v941
  %1071 = vst.msk [vmem:[%s3 + $0xac] sm:$0xf] %vm1027, %v942
  %1072 = vst.msk [vmem:[%s3 + $0xb0] sm:$0xf] %vm1027, %v943
  %1073 = vst.msk [vmem:[%s3 + $0xb4] sm:$0xf] %vm1027, %v944
  %1074 = vst.msk [vmem:[%s3 + $0xb8] sm:$0xf] %vm1027, %v945
  %1075 = vst.msk [vmem:[%s3 + $0xbc] sm:$0xf] %vm1027, %v946
  %1076 = vst.msk [vmem:[%s3 + $0xc0] sm:$0xf] %vm1027, %v947
  %1077 = vst.msk [vmem:[%s3 + $0xc4] sm:$0xf] %vm1027, %v948
  %1078 = vst.msk [vmem:[%s3 + $0xc8] sm:$0xf] %vm1027, %v949
  %1079 = vst.msk [vmem:[%s3 + $0xcc] sm:$0xf] %vm1027, %v950
  %1080 = vst.msk [vmem:[%s3 + $0xd0] sm:$0xf] %vm1027, %v951
  %1081 = vst.msk [vmem:[%s3 + $0xd4] sm:$0xf] %vm1027, %v952
  %1082 = vst.msk [vmem:[%s3 + $0xd8] sm:$0xf] %vm1027, %v953
  %1083 = vst.msk [vmem:[%s3 + $0xdc] sm:$0xf] %vm1027, %v954
  %1084 = vst.msk [vmem:[%s3 + $0xe0] sm:$0xf] %vm1027, %v955
  %1085 = vst.msk [vmem:[%s3 + $0xe4] sm:$0xf] %vm1027, %v956
  %1086 = vst.msk [vmem:[%s3 + $0xe8] sm:$0xf] %vm1027, %v957
  %1087 = vst.msk [vmem:[%s3 + $0xec] sm:$0xf] %vm1027, %v958
  %1088 = vst.msk [vmem:[%s3 + $0xf0] sm:$0xf] %vm1027, %v959
  %1089 = vst.msk [vmem:[%s3 + $0xf4] sm:$0xf] %vm1027, %v960
  %1090 = vst.msk [vmem:[%s3 + $0xf8] sm:$0xf] %vm1027, %v961
  %1091 = vst.msk [vmem:[%s3 + $0xfc] sm:$0xf] %vm1027, %v962
  %v1092 = vpack.c.bf16 %v708, %v707
  %v1093 = vpack.c.bf16 %v710, %v709
  %v1094 = vpack.c.bf16 %v712, %v711
  %v1095 = vpack.c.bf16 %v714, %v713
  %v1096 = vpack.c.bf16 %v716, %v715
  %v1097 = vpack.c.bf16 %v718, %v717
  %v1098 = vpack.c.bf16 %v720, %v719
  %v1099 = vpack.c.bf16 %v722, %v721
  %v1100 = vpack.c.bf16 %v724, %v723
  %v1101 = vpack.c.bf16 %v726, %v725
  %v1102 = vpack.c.bf16 %v728, %v727
  %v1103 = vpack.c.bf16 %v730, %v729
  %v1104 = vpack.c.bf16 %v732, %v731
  %v1105 = vpack.c.bf16 %v734, %v733
  %v1106 = vpack.c.bf16 %v736, %v735
  %v1107 = vpack.c.bf16 %v738, %v737
  %v1108 = vpack.c.bf16 %v740, %v739
  %v1109 = vpack.c.bf16 %v742, %v741
  %v1110 = vpack.c.bf16 %v744, %v743
  %v1111 = vpack.c.bf16 %v746, %v745
  %v1112 = vpack.c.bf16 %v748, %v747
  %v1113 = vpack.c.bf16 %v750, %v749
  %v1114 = vpack.c.bf16 %v752, %v751
  %v1115 = vpack.c.bf16 %v754, %v753
  %v1116 = vpack.c.bf16 %v756, %v755
  %v1117 = vpack.c.bf16 %v758, %v757
  %v1118 = vpack.c.bf16 %v760, %v759
  %v1119 = vpack.c.bf16 %v762, %v761
  %v1120 = vpack.c.bf16 %v764, %v763
  %v1121 = vpack.c.bf16 %v766, %v765
  %v1122 = vpack.c.bf16 %v768, %v767
  %v1123 = vpack.c.bf16 %v770, %v769
  %v1156 = vunpack.c.l.b16 %v1092
  %v1157 = vunpack.c.h.b16 %v1092
  %v1158 = vunpack.c.l.b16 %v1093
  %v1159 = vunpack.c.h.b16 %v1093
  %v1160 = vunpack.c.l.b16 %v1094
  %v1161 = vunpack.c.h.b16 %v1094
  %v1162 = vunpack.c.l.b16 %v1095
  %v1163 = vunpack.c.h.b16 %v1095
  %v1164 = vunpack.c.l.b16 %v1096
  %v1165 = vunpack.c.h.b16 %v1096
  %v1166 = vunpack.c.l.b16 %v1097
  %v1167 = vunpack.c.h.b16 %v1097
  %v1168 = vunpack.c.l.b16 %v1098
  %v1169 = vunpack.c.h.b16 %v1098
  %v1170 = vunpack.c.l.b16 %v1099
  %v1171 = vunpack.c.h.b16 %v1099
  %v1172 = vunpack.c.l.b16 %v1100
  %v1173 = vunpack.c.h.b16 %v1100
  %v1174 = vunpack.c.l.b16 %v1101
  %v1175 = vunpack.c.h.b16 %v1101
  %v1176 = vunpack.c.l.b16 %v1102
  %v1177 = vunpack.c.h.b16 %v1102
  %v1178 = vunpack.c.l.b16 %v1103
  %v1179 = vunpack.c.h.b16 %v1103
  %v1180 = vunpack.c.l.b16 %v1104
  %v1181 = vunpack.c.h.b16 %v1104
  %v1182 = vunpack.c.l.b16 %v1105
  %v1183 = vunpack.c.h.b16 %v1105
  %v1184 = vunpack.c.l.b16 %v1106
  %v1185 = vunpack.c.h.b16 %v1106
  %v1186 = vunpack.c.l.b16 %v1107
  %v1187 = vunpack.c.h.b16 %v1107
  %v1188 = vunpack.c.l.b16 %v1108
  %v1189 = vunpack.c.h.b16 %v1108
  %v1190 = vunpack.c.l.b16 %v1109
  %v1191 = vunpack.c.h.b16 %v1109
  %v1192 = vunpack.c.l.b16 %v1110
  %v1193 = vunpack.c.h.b16 %v1110
  %v1194 = vunpack.c.l.b16 %v1111
  %v1195 = vunpack.c.h.b16 %v1111
  %v1196 = vunpack.c.l.b16 %v1112
  %v1197 = vunpack.c.h.b16 %v1112
  %v1198 = vunpack.c.l.b16 %v1113
  %v1199 = vunpack.c.h.b16 %v1113
  %v1200 = vunpack.c.l.b16 %v1114
  %v1201 = vunpack.c.h.b16 %v1114
  %v1202 = vunpack.c.l.b16 %v1115
  %v1203 = vunpack.c.h.b16 %v1115
  %v1204 = vunpack.c.l.b16 %v1116
  %v1205 = vunpack.c.h.b16 %v1116
  %v1206 = vunpack.c.l.b16 %v1117
  %v1207 = vunpack.c.h.b16 %v1117
  %v1208 = vunpack.c.l.b16 %v1118
  %v1209 = vunpack.c.h.b16 %v1118
  %v1210 = vunpack.c.l.b16 %v1119
  %v1211 = vunpack.c.h.b16 %v1119
  %v1212 = vunpack.c.l.b16 %v1120
  %v1213 = vunpack.c.h.b16 %v1120
  %v1214 = vunpack.c.l.b16 %v1121
  %v1215 = vunpack.c.h.b16 %v1121
  %v1216 = vunpack.c.l.b16 %v1122
  %v1217 = vunpack.c.h.b16 %v1122
  %v1218 = vunpack.c.l.b16 %v1123
  %v1219 = vunpack.c.h.b16 %v1123
  %v1220 = vpack.c.b16 %v1156, %v1156
  %v1221 = vpack.c.b16 %v1157, %v1157
  %v1222 = vpack.c.b16 %v1158, %v1158
  %v1223 = vpack.c.b16 %v1159, %v1159
  %v1224 = vpack.c.b16 %v1160, %v1160
  %v1225 = vpack.c.b16 %v1161, %v1161
  %v1226 = vpack.c.b16 %v1162, %v1162
  %v1227 = vpack.c.b16 %v1163, %v1163
  %v1228 = vpack.c.b16 %v1164, %v1164
  %v1229 = vpack.c.b16 %v1165, %v1165
  %v1230 = vpack.c.b16 %v1166, %v1166
  %v1231 = vpack.c.b16 %v1167, %v1167
  %v1232 = vpack.c.b16 %v1168, %v1168
  %v1233 = vpack.c.b16 %v1169, %v1169
  %v1234 = vpack.c.b16 %v1170, %v1170
  %v1235 = vpack.c.b16 %v1171, %v1171
  %v1236 = vpack.c.b16 %v1172, %v1172
  %v1237 = vpack.c.b16 %v1173, %v1173
  %v1238 = vpack.c.b16 %v1174, %v1174
  %v1239 = vpack.c.b16 %v1175, %v1175
  %v1240 = vpack.c.b16 %v1176, %v1176
  %v1241 = vpack.c.b16 %v1177, %v1177
  %v1242 = vpack.c.b16 %v1178, %v1178
  %v1243 = vpack.c.b16 %v1179, %v1179
  %v1244 = vpack.c.b16 %v1180, %v1180
  %v1245 = vpack.c.b16 %v1181, %v1181
  %v1246 = vpack.c.b16 %v1182, %v1182
  %v1247 = vpack.c.b16 %v1183, %v1183
  %v1248 = vpack.c.b16 %v1184, %v1184
  %v1249 = vpack.c.b16 %v1185, %v1185
  %v1250 = vpack.c.b16 %v1186, %v1186
  %v1251 = vpack.c.b16 %v1187, %v1187
  %v1252 = vpack.c.b16 %v1188, %v1188
  %v1253 = vpack.c.b16 %v1189, %v1189
  %v1254 = vpack.c.b16 %v1190, %v1190
  %v1255 = vpack.c.b16 %v1191, %v1191
  %v1256 = vpack.c.b16 %v1192, %v1192
  %v1257 = vpack.c.b16 %v1193, %v1193
  %v1258 = vpack.c.b16 %v1194, %v1194
  %v1259 = vpack.c.b16 %v1195, %v1195
  %v1260 = vpack.c.b16 %v1196, %v1196
  %v1261 = vpack.c.b16 %v1197, %v1197
  %v1262 = vpack.c.b16 %v1198, %v1198
  %v1263 = vpack.c.b16 %v1199, %v1199
  %v1264 = vpack.c.b16 %v1200, %v1200
  %v1265 = vpack.c.b16 %v1201, %v1201
  %v1266 = vpack.c.b16 %v1202, %v1202
  %v1267 = vpack.c.b16 %v1203, %v1203
  %v1268 = vpack.c.b16 %v1204, %v1204
  %v1269 = vpack.c.b16 %v1205, %v1205
  %v1270 = vpack.c.b16 %v1206, %v1206
  %v1271 = vpack.c.b16 %v1207, %v1207
  %v1272 = vpack.c.b16 %v1208, %v1208
  %v1273 = vpack.c.b16 %v1209, %v1209
  %v1274 = vpack.c.b16 %v1210, %v1210
  %v1275 = vpack.c.b16 %v1211, %v1211
  %v1276 = vpack.c.b16 %v1212, %v1212
  %v1277 = vpack.c.b16 %v1213, %v1213
  %v1278 = vpack.c.b16 %v1214, %v1214
  %v1279 = vpack.c.b16 %v1215, %v1215
  %v1280 = vpack.c.b16 %v1216, %v1216
  %v1281 = vpack.c.b16 %v1217, %v1217
  %v1282 = vpack.c.b16 %v1218, %v1218
  %v1283 = vpack.c.b16 %v1219, %v1219
  %1284 = vrot.lane.b32.xlu0 %v1220, 120
  %v1285 = vpop.permute.xlu0 %1284
  %1286 = vrot.lane.b32.xlu0 %v1221, 120
  %v1287 = vpop.permute.xlu0 %1286
  %1288 = vrot.lane.b32.xlu0 %v1222, 120
  %v1289 = vpop.permute.xlu0 %1288
  %1290 = vrot.lane.b32.xlu0 %v1223, 120
  %v1291 = vpop.permute.xlu0 %1290
  %1292 = vrot.lane.b32.xlu0 %v1224, 120
  %v1293 = vpop.permute.xlu0 %1292
  %1294 = vrot.lane.b32.xlu0 %v1225, 120
  %v1295 = vpop.permute.xlu0 %1294
  %1296 = vrot.lane.b32.xlu0 %v1226, 120
  %v1297 = vpop.permute.xlu0 %1296
  %1298 = vrot.lane.b32.xlu0 %v1227, 120
  %v1299 = vpop.permute.xlu0 %1298
  %1300 = vrot.lane.b32.xlu0 %v1228, 120
  %v1301 = vpop.permute.xlu0 %1300
  %1302 = vrot.lane.b32.xlu0 %v1229, 120
  %v1303 = vpop.permute.xlu0 %1302
  %1304 = vrot.lane.b32.xlu0 %v1230, 120
  %v1305 = vpop.permute.xlu0 %1304
  %1306 = vrot.lane.b32.xlu0 %v1231, 120
  %v1307 = vpop.permute.xlu0 %1306
  %1308 = vrot.lane.b32.xlu0 %v1232, 120
  %v1309 = vpop.permute.xlu0 %1308
  %1310 = vrot.lane.b32.xlu0 %v1233, 120
  %v1311 = vpop.permute.xlu0 %1310
  %1312 = vrot.lane.b32.xlu0 %v1234, 120
  %v1313 = vpop.permute.xlu0 %1312
  %1314 = vrot.lane.b32.xlu0 %v1235, 120
  %v1315 = vpop.permute.xlu0 %1314
  %1316 = vrot.lane.b32.xlu0 %v1236, 120
  %v1317 = vpop.permute.xlu0 %1316
  %1318 = vrot.lane.b32.xlu0 %v1237, 120
  %v1319 = vpop.permute.xlu0 %1318
  %1320 = vrot.lane.b32.xlu0 %v1238, 120
  %v1321 = vpop.permute.xlu0 %1320
  %1322 = vrot.lane.b32.xlu0 %v1239, 120
  %v1323 = vpop.permute.xlu0 %1322
  %1324 = vrot.lane.b32.xlu0 %v1240, 120
  %v1325 = vpop.permute.xlu0 %1324
  %1326 = vrot.lane.b32.xlu0 %v1241, 120
  %v1327 = vpop.permute.xlu0 %1326
  %1328 = vrot.lane.b32.xlu0 %v1242, 120
  %v1329 = vpop.permute.xlu0 %1328
  %1330 = vrot.lane.b32.xlu0 %v1243, 120
  %v1331 = vpop.permute.xlu0 %1330
  %1332 = vrot.lane.b32.xlu0 %v1244, 120
  %v1333 = vpop.permute.xlu0 %1332
  %1334 = vrot.lane.b32.xlu0 %v1245, 120
  %v1335 = vpop.permute.xlu0 %1334
  %1336 = vrot.lane.b32.xlu0 %v1246, 120
  %v1337 = vpop.permute.xlu0 %1336
  %1338 = vrot.lane.b32.xlu0 %v1247, 120
  %v1339 = vpop.permute.xlu0 %1338
  %1340 = vrot.lane.b32.xlu0 %v1248, 120
  %v1341 = vpop.permute.xlu0 %1340
  %1342 = vrot.lane.b32.xlu0 %v1249, 120
  %v1343 = vpop.permute.xlu0 %1342
  %1344 = vrot.lane.b32.xlu0 %v1250, 120
  %v1345 = vpop.permute.xlu0 %1344
  %1346 = vrot.lane.b32.xlu0 %v1251, 120
  %v1347 = vpop.permute.xlu0 %1346
  %1348 = vrot.lane.b32.xlu0 %v1252, 120
  %v1349 = vpop.permute.xlu0 %1348
  %1350 = vrot.lane.b32.xlu0 %v1253, 120
  %v1351 = vpop.permute.xlu0 %1350
  %1352 = vrot.lane.b32.xlu0 %v1254, 120
  %v1353 = vpop.permute.xlu0 %1352
  %1354 = vrot.lane.b32.xlu0 %v1255, 120
  %v1355 = vpop.permute.xlu0 %1354
  %1356 = vrot.lane.b32.xlu0 %v1256, 120
  %v1357 = vpop.permute.xlu0 %1356
  %1358 = vrot.lane.b32.xlu0 %v1257, 120
  %v1359 = vpop.permute.xlu0 %1358
  %1360 = vrot.lane.b32.xlu0 %v1258, 120
  %v1361 = vpop.permute.xlu0 %1360
  %1362 = vrot.lane.b32.xlu0 %v1259, 120
  %v1363 = vpop.permute.xlu0 %1362
  %1364 = vrot.lane.b32.xlu0 %v1260, 120
  %v1365 = vpop.permute.xlu0 %1364
  %1366 = vrot.lane.b32.xlu0 %v1261, 120
  %v1367 = vpop.permute.xlu0 %1366
  %1368 = vrot.lane.b32.xlu0 %v1262, 120
  %v1369 = vpop.permute.xlu0 %1368
  %1370 = vrot.lane.b32.xlu0 %v1263, 120
  %v1371 = vpop.permute.xlu0 %1370
  %1372 = vrot.lane.b32.xlu0 %v1264, 120
  %v1373 = vpop.permute.xlu0 %1372
  %1374 = vrot.lane.b32.xlu0 %v1265, 120
  %v1375 = vpop.permute.xlu0 %1374
  %1376 = vrot.lane.b32.xlu0 %v1266, 120
  %v1377 = vpop.permute.xlu0 %1376
  %1378 = vrot.lane.b32.xlu0 %v1267, 120
  %v1379 = vpop.permute.xlu0 %1378
  %1380 = vrot.lane.b32.xlu0 %v1268, 120
  %v1381 = vpop.permute.xlu0 %1380
  %1382 = vrot.lane.b32.xlu0 %v1269, 120
  %v1383 = vpop.permute.xlu0 %1382
  %1384 = vrot.lane.b32.xlu0 %v1270, 120
  %v1385 = vpop.permute.xlu0 %1384
  %1386 = vrot.lane.b32.xlu0 %v1271, 120
  %v1387 = vpop.permute.xlu0 %1386
  %1388 = vrot.lane.b32.xlu0 %v1272, 120
  %v1389 = vpop.permute.xlu0 %1388
  %1390 = vrot.lane.b32.xlu0 %v1273, 120
  %v1391 = vpop.permute.xlu0 %1390
  %1392 = vrot.lane.b32.xlu0 %v1274, 120
  %v1393 = vpop.permute.xlu0 %1392
  %1394 = vrot.lane.b32.xlu0 %v1275, 120
  %v1395 = vpop.permute.xlu0 %1394
  %1396 = vrot.lane.b32.xlu0 %v1276, 120
  %v1397 = vpop.permute.xlu0 %1396
  %1398 = vrot.lane.b32.xlu0 %v1277, 120
  %v1399 = vpop.permute.xlu0 %1398
  %1400 = vrot.lane.b32.xlu0 %v1278, 120
  %v1401 = vpop.permute.xlu0 %1400
  %1402 = vrot.lane.b32.xlu0 %v1279, 120
  %v1403 = vpop.permute.xlu0 %1402
  %1404 = vrot.lane.b32.xlu0 %v1280, 120
  %v1405 = vpop.permute.xlu0 %1404
  %1406 = vrot.lane.b32.xlu0 %v1281, 120
  %v1407 = vpop.permute.xlu0 %1406
  %1408 = vrot.lane.b32.xlu0 %v1282, 120
  %v1409 = vpop.permute.xlu0 %1408
  %1410 = vrot.lane.b32.xlu0 %v1283, 120
  %v1411 = vpop.permute.xlu0 %1410
  %vm1476 = vcmask 27648
  %1477 = vst.msk [vmem:[%s4] sm:$0xf] %vm1476, %v1285
  %1478 = vst.msk [vmem:[%s4 + $0x4] sm:$0xf] %vm1476, %v1287
  %1479 = vst.msk [vmem:[%s4 + $0x8] sm:$0xf] %vm1476, %v1289
  %1480 = vst.msk [vmem:[%s4 + $0xc] sm:$0xf] %vm1476, %v1291
  %1481 = vst.msk [vmem:[%s4 + $0x10] sm:$0xf] %vm1476, %v1293
  %1482 = vst.msk [vmem:[%s4 + $0x14] sm:$0xf] %vm1476, %v1295
  %1483 = vst.msk [vmem:[%s4 + $0x18] sm:$0xf] %vm1476, %v1297
  %1484 = vst.msk [vmem:[%s4 + $0x1c] sm:$0xf] %vm1476, %v1299
  %1485 = vst.msk [vmem:[%s4 + $0x20] sm:$0xf] %vm1476, %v1301
  %1486 = vst.msk [vmem:[%s4 + $0x24] sm:$0xf] %vm1476, %v1303
  %1487 = vst.msk [vmem:[%s4 + $0x28] sm:$0xf] %vm1476, %v1305
  %1488 = vst.msk [vmem:[%s4 + $0x2c] sm:$0xf] %vm1476, %v1307
  %1489 = vst.msk [vmem:[%s4 + $0x30] sm:$0xf] %vm1476, %v1309
  %1490 = vst.msk [vmem:[%s4 + $0x34] sm:$0xf] %vm1476, %v1311
  %1491 = vst.msk [vmem:[%s4 + $0x38] sm:$0xf] %vm1476, %v1313
  %1492 = vst.msk [vmem:[%s4 + $0x3c] sm:$0xf] %vm1476, %v1315
  %1493 = vst.msk [vmem:[%s4 + $0x40] sm:$0xf] %vm1476, %v1317
  %1494 = vst.msk [vmem:[%s4 + $0x44] sm:$0xf] %vm1476, %v1319
  %1495 = vst.msk [vmem:[%s4 + $0x48] sm:$0xf] %vm1476, %v1321
  %1496 = vst.msk [vmem:[%s4 + $0x4c] sm:$0xf] %vm1476, %v1323
  %1497 = vst.msk [vmem:[%s4 + $0x50] sm:$0xf] %vm1476, %v1325
  %1498 = vst.msk [vmem:[%s4 + $0x54] sm:$0xf] %vm1476, %v1327
  %1499 = vst.msk [vmem:[%s4 + $0x58] sm:$0xf] %vm1476, %v1329
  %1500 = vst.msk [vmem:[%s4 + $0x5c] sm:$0xf] %vm1476, %v1331
  %1501 = vst.msk [vmem:[%s4 + $0x60] sm:$0xf] %vm1476, %v1333
  %1502 = vst.msk [vmem:[%s4 + $0x64] sm:$0xf] %vm1476, %v1335
  %1503 = vst.msk [vmem:[%s4 + $0x68] sm:$0xf] %vm1476, %v1337
  %1504 = vst.msk [vmem:[%s4 + $0x6c] sm:$0xf] %vm1476, %v1339
  %1505 = vst.msk [vmem:[%s4 + $0x70] sm:$0xf] %vm1476, %v1341
  %1506 = vst.msk [vmem:[%s4 + $0x74] sm:$0xf] %vm1476, %v1343
  %1507 = vst.msk [vmem:[%s4 + $0x78] sm:$0xf] %vm1476, %v1345
  %1508 = vst.msk [vmem:[%s4 + $0x7c] sm:$0xf] %vm1476, %v1347
  %1509 = vst.msk [vmem:[%s4 + $0x80] sm:$0xf] %vm1476, %v1349
  %1510 = vst.msk [vmem:[%s4 + $0x84] sm:$0xf] %vm1476, %v1351
  %1511 = vst.msk [vmem:[%s4 + $0x88] sm:$0xf] %vm1476, %v1353
  %1512 = vst.msk [vmem:[%s4 + $0x8c] sm:$0xf] %vm1476, %v1355
  %1513 = vst.msk [vmem:[%s4 + $0x90] sm:$0xf] %vm1476, %v1357
  %1514 = vst.msk [vmem:[%s4 + $0x94] sm:$0xf] %vm1476, %v1359
  %1515 = vst.msk [vmem:[%s4 + $0x98] sm:$0xf] %vm1476, %v1361
  %1516 = vst.msk [vmem:[%s4 + $0x9c] sm:$0xf] %vm1476, %v1363
  %1517 = vst.msk [vmem:[%s4 + $0xa0] sm:$0xf] %vm1476, %v1365
  %1518 = vst.msk [vmem:[%s4 + $0xa4] sm:$0xf] %vm1476, %v1367
  %1519 = vst.msk [vmem:[%s4 + $0xa8] sm:$0xf] %vm1476, %v1369
  %1520 = vst.msk [vmem:[%s4 + $0xac] sm:$0xf] %vm1476, %v1371
  %1521 = vst.msk [vmem:[%s4 + $0xb0] sm:$0xf] %vm1476, %v1373
  %1522 = vst.msk [vmem:[%s4 + $0xb4] sm:$0xf] %vm1476, %v1375
  %1523 = vst.msk [vmem:[%s4 + $0xb8] sm:$0xf] %vm1476, %v1377
  %1524 = vst.msk [vmem:[%s4 + $0xbc] sm:$0xf] %vm1476, %v1379
  %1525 = vst.msk [vmem:[%s4 + $0xc0] sm:$0xf] %vm1476, %v1381
  %1526 = vst.msk [vmem:[%s4 + $0xc4] sm:$0xf] %vm1476, %v1383
  %1527 = vst.msk [vmem:[%s4 + $0xc8] sm:$0xf] %vm1476, %v1385
  %1528 = vst.msk [vmem:[%s4 + $0xcc] sm:$0xf] %vm1476, %v1387
  %1529 = vst.msk [vmem:[%s4 + $0xd0] sm:$0xf] %vm1476, %v1389
  %1530 = vst.msk [vmem:[%s4 + $0xd4] sm:$0xf] %vm1476, %v1391
  %1531 = vst.msk [vmem:[%s4 + $0xd8] sm:$0xf] %vm1476, %v1393
  %1532 = vst.msk [vmem:[%s4 + $0xdc] sm:$0xf] %vm1476, %v1395
  %1533 = vst.msk [vmem:[%s4 + $0xe0] sm:$0xf] %vm1476, %v1397
  %1534 = vst.msk [vmem:[%s4 + $0xe4] sm:$0xf] %vm1476, %v1399
  %1535 = vst.msk [vmem:[%s4 + $0xe8] sm:$0xf] %vm1476, %v1401
  %1536 = vst.msk [vmem:[%s4 + $0xec] sm:$0xf] %vm1476, %v1403
  %1537 = vst.msk [vmem:[%s4 + $0xf0] sm:$0xf] %vm1476, %v1405
  %1538 = vst.msk [vmem:[%s4 + $0xf4] sm:$0xf] %vm1476, %v1407
  %1539 = vst.msk [vmem:[%s4 + $0xf8] sm:$0xf] %vm1476, %v1409
  %1540 = vst.msk [vmem:[%s4 + $0xfc] sm:$0xf] %vm1476, %v1411
  %1541 = vrot.lane.b32.xlu0 %v1220, 116
  %v1542 = vpop.permute.xlu0 %1541
  %1543 = vrot.lane.b32.xlu0 %v1221, 116
  %v1544 = vpop.permute.xlu0 %1543
  %1545 = vrot.lane.b32.xlu0 %v1222, 116
  %v1546 = vpop.permute.xlu0 %1545
  %1547 = vrot.lane.b32.xlu0 %v1223, 116
  %v1548 = vpop.permute.xlu0 %1547
  %1549 = vrot.lane.b32.xlu0 %v1224, 116
  %v1550 = vpop.permute.xlu0 %1549
  %1551 = vrot.lane.b32.xlu0 %v1225, 116
  %v1552 = vpop.permute.xlu0 %1551
  %1553 = vrot.lane.b32.xlu0 %v1226, 116
  %v1554 = vpop.permute.xlu0 %1553
  %1555 = vrot.lane.b32.xlu0 %v1227, 116
  %v1556 = vpop.permute.xlu0 %1555
  %1557 = vrot.lane.b32.xlu0 %v1228, 116
  %v1558 = vpop.permute.xlu0 %1557
  %1559 = vrot.lane.b32.xlu0 %v1229, 116
  %v1560 = vpop.permute.xlu0 %1559
  %1561 = vrot.lane.b32.xlu0 %v1230, 116
  %v1562 = vpop.permute.xlu0 %1561
  %1563 = vrot.lane.b32.xlu0 %v1231, 116
  %v1564 = vpop.permute.xlu0 %1563
  %1565 = vrot.lane.b32.xlu0 %v1232, 116
  %v1566 = vpop.permute.xlu0 %1565
  %1567 = vrot.lane.b32.xlu0 %v1233, 116
  %v1568 = vpop.permute.xlu0 %1567
  %1569 = vrot.lane.b32.xlu0 %v1234, 116
  %v1570 = vpop.permute.xlu0 %1569
  %1571 = vrot.lane.b32.xlu0 %v1235, 116
  %v1572 = vpop.permute.xlu0 %1571
  %1573 = vrot.lane.b32.xlu0 %v1236, 116
  %v1574 = vpop.permute.xlu0 %1573
  %1575 = vrot.lane.b32.xlu0 %v1237, 116
  %v1576 = vpop.permute.xlu0 %1575
  %1577 = vrot.lane.b32.xlu0 %v1238, 116
  %v1578 = vpop.permute.xlu0 %1577
  %1579 = vrot.lane.b32.xlu0 %v1239, 116
  %v1580 = vpop.permute.xlu0 %1579
  %1581 = vrot.lane.b32.xlu0 %v1240, 116
  %v1582 = vpop.permute.xlu0 %1581
  %1583 = vrot.lane.b32.xlu0 %v1241, 116
  %v1584 = vpop.permute.xlu0 %1583
  %1585 = vrot.lane.b32.xlu0 %v1242, 116
  %v1586 = vpop.permute.xlu0 %1585
  %1587 = vrot.lane.b32.xlu0 %v1243, 116
  %v1588 = vpop.permute.xlu0 %1587
  %1589 = vrot.lane.b32.xlu0 %v1244, 116
  %v1590 = vpop.permute.xlu0 %1589
  %1591 = vrot.lane.b32.xlu0 %v1245, 116
  %v1592 = vpop.permute.xlu0 %1591
  %1593 = vrot.lane.b32.xlu0 %v1246, 116
  %v1594 = vpop.permute.xlu0 %1593
  %1595 = vrot.lane.b32.xlu0 %v1247, 116
  %v1596 = vpop.permute.xlu0 %1595
  %1597 = vrot.lane.b32.xlu0 %v1248, 116
  %v1598 = vpop.permute.xlu0 %1597
  %1599 = vrot.lane.b32.xlu0 %v1249, 116
  %v1600 = vpop.permute.xlu0 %1599
  %1601 = vrot.lane.b32.xlu0 %v1250, 116
  %v1602 = vpop.permute.xlu0 %1601
  %1603 = vrot.lane.b32.xlu0 %v1251, 116
  %v1604 = vpop.permute.xlu0 %1603
  %1605 = vrot.lane.b32.xlu0 %v1252, 116
  %v1606 = vpop.permute.xlu0 %1605
  %1607 = vrot.lane.b32.xlu0 %v1253, 116
  %v1608 = vpop.permute.xlu0 %1607
  %1609 = vrot.lane.b32.xlu0 %v1254, 116
  %v1610 = vpop.permute.xlu0 %1609
  %1611 = vrot.lane.b32.xlu0 %v1255, 116
  %v1612 = vpop.permute.xlu0 %1611
  %1613 = vrot.lane.b32.xlu0 %v1256, 116
  %v1614 = vpop.permute.xlu0 %1613
  %1615 = vrot.lane.b32.xlu0 %v1257, 116
  %v1616 = vpop.permute.xlu0 %1615
  %1617 = vrot.lane.b32.xlu0 %v1258, 116
  %v1618 = vpop.permute.xlu0 %1617
  %1619 = vrot.lane.b32.xlu0 %v1259, 116
  %v1620 = vpop.permute.xlu0 %1619
  %1621 = vrot.lane.b32.xlu0 %v1260, 116
  %v1622 = vpop.permute.xlu0 %1621
  %1623 = vrot.lane.b32.xlu0 %v1261, 116
  %v1624 = vpop.permute.xlu0 %1623
  %1625 = vrot.lane.b32.xlu0 %v1262, 116
  %v1626 = vpop.permute.xlu0 %1625
  %1627 = vrot.lane.b32.xlu0 %v1263, 116
  %v1628 = vpop.permute.xlu0 %1627
  %1629 = vrot.lane.b32.xlu0 %v1264, 116
  %v1630 = vpop.permute.xlu0 %1629
  %1631 = vrot.lane.b32.xlu0 %v1265, 116
  %v1632 = vpop.permute.xlu0 %1631
  %1633 = vrot.lane.b32.xlu0 %v1266, 116
  %v1634 = vpop.permute.xlu0 %1633
  %1635 = vrot.lane.b32.xlu0 %v1267, 116
  %v1636 = vpop.permute.xlu0 %1635
  %1637 = vrot.lane.b32.xlu0 %v1268, 116
  %v1638 = vpop.permute.xlu0 %1637
  %1639 = vrot.lane.b32.xlu0 %v1269, 116
  %v1640 = vpop.permute.xlu0 %1639
  %1641 = vrot.lane.b32.xlu0 %v1270, 116
  %v1642 = vpop.permute.xlu0 %1641
  %1643 = vrot.lane.b32.xlu0 %v1271, 116
  %v1644 = vpop.permute.xlu0 %1643
  %1645 = vrot.lane.b32.xlu0 %v1272, 116
  %v1646 = vpop.permute.xlu0 %1645
  %1647 = vrot.lane.b32.xlu0 %v1273, 116
  %v1648 = vpop.permute.xlu0 %1647
  %1649 = vrot.lane.b32.xlu0 %v1274, 116
  %v1650 = vpop.permute.xlu0 %1649
  %1651 = vrot.lane.b32.xlu0 %v1275, 116
  %v1652 = vpop.permute.xlu0 %1651
  %1653 = vrot.lane.b32.xlu0 %v1276, 116
  %v1654 = vpop.permute.xlu0 %1653
  %1655 = vrot.lane.b32.xlu0 %v1277, 116
  %v1656 = vpop.permute.xlu0 %1655
  %1657 = vrot.lane.b32.xlu0 %v1278, 116
  %v1658 = vpop.permute.xlu0 %1657
  %1659 = vrot.lane.b32.xlu0 %v1279, 116
  %v1660 = vpop.permute.xlu0 %1659
  %1661 = vrot.lane.b32.xlu0 %v1280, 116
  %v1662 = vpop.permute.xlu0 %1661
  %1663 = vrot.lane.b32.xlu0 %v1281, 116
  %v1664 = vpop.permute.xlu0 %1663
  %1665 = vrot.lane.b32.xlu0 %v1282, 116
  %v1666 = vpop.permute.xlu0 %1665
  %1667 = vrot.lane.b32.xlu0 %v1283, 116
  %v1668 = vpop.permute.xlu0 %1667
  %1733 = vst.msk [vmem:[%s5] sm:$0xf] %vm1476, %v1542
  %1734 = vst.msk [vmem:[%s5 + $0x4] sm:$0xf] %vm1476, %v1544
  %1735 = vst.msk [vmem:[%s5 + $0x8] sm:$0xf] %vm1476, %v1546
  %1736 = vst.msk [vmem:[%s5 + $0xc] sm:$0xf] %vm1476, %v1548
  %1737 = vst.msk [vmem:[%s5 + $0x10] sm:$0xf] %vm1476, %v1550
  %1738 = vst.msk [vmem:[%s5 + $0x14] sm:$0xf] %vm1476, %v1552
  %1739 = vst.msk [vmem:[%s5 + $0x18] sm:$0xf] %vm1476, %v1554
  %1740 = vst.msk [vmem:[%s5 + $0x1c] sm:$0xf] %vm1476, %v1556
  %1741 = vst.msk [vmem:[%s5 + $0x20] sm:$0xf] %vm1476, %v1558
  %1742 = vst.msk [vmem:[%s5 + $0x24] sm:$0xf] %vm1476, %v1560
  %1743 = vst.msk [vmem:[%s5 + $0x28] sm:$0xf] %vm1476, %v1562
  %1744 = vst.msk [vmem:[%s5 + $0x2c] sm:$0xf] %vm1476, %v1564
  %1745 = vst.msk [vmem:[%s5 + $0x30] sm:$0xf] %vm1476, %v1566
  %1746 = vst.msk [vmem:[%s5 + $0x34] sm:$0xf] %vm1476, %v1568
  %1747 = vst.msk [vmem:[%s5 + $0x38] sm:$0xf] %vm1476, %v1570
  %1748 = vst.msk [vmem:[%s5 + $0x3c] sm:$0xf] %vm1476, %v1572
  %1749 = vst.msk [vmem:[%s5 + $0x40] sm:$0xf] %vm1476, %v1574
  %1750 = vst.msk [vmem:[%s5 + $0x44] sm:$0xf] %vm1476, %v1576
  %1751 = vst.msk [vmem:[%s5 + $0x48] sm:$0xf] %vm1476, %v1578
  %1752 = vst.msk [vmem:[%s5 + $0x4c] sm:$0xf] %vm1476, %v1580
  %1753 = vst.msk [vmem:[%s5 + $0x50] sm:$0xf] %vm1476, %v1582
  %1754 = vst.msk [vmem:[%s5 + $0x54] sm:$0xf] %vm1476, %v1584
  %1755 = vst.msk [vmem:[%s5 + $0x58] sm:$0xf] %vm1476, %v1586
  %1756 = vst.msk [vmem:[%s5 + $0x5c] sm:$0xf] %vm1476, %v1588
  %1757 = vst.msk [vmem:[%s5 + $0x60] sm:$0xf] %vm1476, %v1590
  %1758 = vst.msk [vmem:[%s5 + $0x64] sm:$0xf] %vm1476, %v1592
  %1759 = vst.msk [vmem:[%s5 + $0x68] sm:$0xf] %vm1476, %v1594
  %1760 = vst.msk [vmem:[%s5 + $0x6c] sm:$0xf] %vm1476, %v1596
  %1761 = vst.msk [vmem:[%s5 + $0x70] sm:$0xf] %vm1476, %v1598
  %1762 = vst.msk [vmem:[%s5 + $0x74] sm:$0xf] %vm1476, %v1600
  %1763 = vst.msk [vmem:[%s5 + $0x78] sm:$0xf] %vm1476, %v1602
  %1764 = vst.msk [vmem:[%s5 + $0x7c] sm:$0xf] %vm1476, %v1604
  %1765 = vst.msk [vmem:[%s5 + $0x80] sm:$0xf] %vm1476, %v1606
  %1766 = vst.msk [vmem:[%s5 + $0x84] sm:$0xf] %vm1476, %v1608
  %1767 = vst.msk [vmem:[%s5 + $0x88] sm:$0xf] %vm1476, %v1610
  %1768 = vst.msk [vmem:[%s5 + $0x8c] sm:$0xf] %vm1476, %v1612
  %1769 = vst.msk [vmem:[%s5 + $0x90] sm:$0xf] %vm1476, %v1614
  %1770 = vst.msk [vmem:[%s5 + $0x94] sm:$0xf] %vm1476, %v1616
  %1771 = vst.msk [vmem:[%s5 + $0x98] sm:$0xf] %vm1476, %v1618
  %1772 = vst.msk [vmem:[%s5 + $0x9c] sm:$0xf] %vm1476, %v1620
  %1773 = vst.msk [vmem:[%s5 + $0xa0] sm:$0xf] %vm1476, %v1622
  %1774 = vst.msk [vmem:[%s5 + $0xa4] sm:$0xf] %vm1476, %v1624
  %1775 = vst.msk [vmem:[%s5 + $0xa8] sm:$0xf] %vm1476, %v1626
  %1776 = vst.msk [vmem:[%s5 + $0xac] sm:$0xf] %vm1476, %v1628
  %1777 = vst.msk [vmem:[%s5 + $0xb0] sm:$0xf] %vm1476, %v1630
  %1778 = vst.msk [vmem:[%s5 + $0xb4] sm:$0xf] %vm1476, %v1632
  %1779 = vst.msk [vmem:[%s5 + $0xb8] sm:$0xf] %vm1476, %v1634
  %1780 = vst.msk [vmem:[%s5 + $0xbc] sm:$0xf] %vm1476, %v1636
  %1781 = vst.msk [vmem:[%s5 + $0xc0] sm:$0xf] %vm1476, %v1638
  %1782 = vst.msk [vmem:[%s5 + $0xc4] sm:$0xf] %vm1476, %v1640
  %1783 = vst.msk [vmem:[%s5 + $0xc8] sm:$0xf] %vm1476, %v1642
  %1784 = vst.msk [vmem:[%s5 + $0xcc] sm:$0xf] %vm1476, %v1644
  %1785 = vst.msk [vmem:[%s5 + $0xd0] sm:$0xf] %vm1476, %v1646
  %1786 = vst.msk [vmem:[%s5 + $0xd4] sm:$0xf] %vm1476, %v1648
  %1787 = vst.msk [vmem:[%s5 + $0xd8] sm:$0xf] %vm1476, %v1650
  %1788 = vst.msk [vmem:[%s5 + $0xdc] sm:$0xf] %vm1476, %v1652
  %1789 = vst.msk [vmem:[%s5 + $0xe0] sm:$0xf] %vm1476, %v1654
  %1790 = vst.msk [vmem:[%s5 + $0xe4] sm:$0xf] %vm1476, %v1656
  %1791 = vst.msk [vmem:[%s5 + $0xe8] sm:$0xf] %vm1476, %v1658
  %1792 = vst.msk [vmem:[%s5 + $0xec] sm:$0xf] %vm1476, %v1660
  %1793 = vst.msk [vmem:[%s5 + $0xf0] sm:$0xf] %vm1476, %v1662
  %1794 = vst.msk [vmem:[%s5 + $0xf4] sm:$0xf] %vm1476, %v1664
  %1795 = vst.msk [vmem:[%s5 + $0xf8] sm:$0xf] %vm1476, %v1666
  %1796 = vst.msk [vmem:[%s5 + $0xfc] sm:$0xf] %vm1476, %v1668
  %vm1797 = vcmask 64512
  %v1798 = vsel %vm1797, %v380, 0.0
  %v1799 = vsel %vm1797, %v383, 0.0
  %v1800 = vadd.f32 %v1798, %v1799
  %v1801 = vsel %vm1797, %v388, 0.0
  %v1802 = vadd.f32 %v1800, %v1801
  %v1803 = vsel %vm1797, %v391, 0.0
  %v1804 = vadd.f32 %v1802, %v1803
  %v1805 = vsel %vm1797, %v396, 0.0
  %v1806 = vadd.f32 %v1804, %v1805
  %v1807 = vsel %vm1797, %v399, 0.0
  %v1808 = vadd.f32 %v1806, %v1807
  %v1809 = vsel %vm1797, %v404, 0.0
  %v1810 = vadd.f32 %v1808, %v1809
  %v1811 = vsel %vm1797, %v407, 0.0
  %v1812 = vadd.f32 %v1810, %v1811
  %v1813 = vsel %vm1797, %v412, 0.0
  %v1814 = vadd.f32 %v1812, %v1813
  %v1815 = vsel %vm1797, %v415, 0.0
  %v1816 = vadd.f32 %v1814, %v1815
  %v1817 = vsel %vm1797, %v420, 0.0
  %v1818 = vadd.f32 %v1816, %v1817
  %v1819 = vsel %vm1797, %v423, 0.0
  %v1820 = vadd.f32 %v1818, %v1819
  %v1821 = vsel %vm1797, %v428, 0.0
  %v1822 = vadd.f32 %v1820, %v1821
  %v1823 = vsel %vm1797, %v431, 0.0
  %v1824 = vadd.f32 %v1822, %v1823
  %v1825 = vsel %vm1797, %v436, 0.0
  %v1826 = vadd.f32 %v1824, %v1825
  %v1827 = vsel %vm1797, %v439, 0.0
  %v1828 = vadd.f32 %v1826, %v1827
  %v1829 = vsel %vm1797, %v444, 0.0
  %v1830 = vadd.f32 %v1828, %v1829
  %v1831 = vsel %vm1797, %v447, 0.0
  %v1832 = vadd.f32 %v1830, %v1831
  %v1833 = vsel %vm1797, %v452, 0.0
  %v1834 = vadd.f32 %v1832, %v1833
  %v1835 = vsel %vm1797, %v455, 0.0
  %v1836 = vadd.f32 %v1834, %v1835
  %v1837 = vsel %vm1797, %v460, 0.0
  %v1838 = vadd.f32 %v1836, %v1837
  %v1839 = vsel %vm1797, %v463, 0.0
  %v1840 = vadd.f32 %v1838, %v1839
  %v1841 = vsel %vm1797, %v468, 0.0
  %v1842 = vadd.f32 %v1840, %v1841
  %v1843 = vsel %vm1797, %v471, 0.0
  %v1844 = vadd.f32 %v1842, %v1843
  %v1845 = vsel %vm1797, %v476, 0.0
  %v1846 = vadd.f32 %v1844, %v1845
  %v1847 = vsel %vm1797, %v479, 0.0
  %v1848 = vadd.f32 %v1846, %v1847
  %v1849 = vsel %vm1797, %v484, 0.0
  %v1850 = vadd.f32 %v1848, %v1849
  %v1851 = vsel %vm1797, %v487, 0.0
  %v1852 = vadd.f32 %v1850, %v1851
  %v1853 = vsel %vm1797, %v492, 0.0
  %v1854 = vadd.f32 %v1852, %v1853
  %v1855 = vsel %vm1797, %v495, 0.0
  %v1856 = vadd.f32 %v1854, %v1855
  %v1857 = vsel %vm1797, %v500, 0.0
  %v1858 = vadd.f32 %v1856, %v1857
  %v1859 = vsel %vm1797, %v503, 0.0
  %v1860 = vadd.f32 %v1858, %v1859
  %v1861 = vsel %vm1797, %v508, 0.0
  %v1862 = vadd.f32 %v1860, %v1861
  %v1863 = vsel %vm1797, %v511, 0.0
  %v1864 = vadd.f32 %v1862, %v1863
  %v1865 = vsel %vm1797, %v516, 0.0
  %v1866 = vadd.f32 %v1864, %v1865
  %v1867 = vsel %vm1797, %v519, 0.0
  %v1868 = vadd.f32 %v1866, %v1867
  %v1869 = vsel %vm1797, %v524, 0.0
  %v1870 = vadd.f32 %v1868, %v1869
  %v1871 = vsel %vm1797, %v527, 0.0
  %v1872 = vadd.f32 %v1870, %v1871
  %v1873 = vsel %vm1797, %v532, 0.0
  %v1874 = vadd.f32 %v1872, %v1873
  %v1875 = vsel %vm1797, %v535, 0.0
  %v1876 = vadd.f32 %v1874, %v1875
  %v1877 = vsel %vm1797, %v540, 0.0
  %v1878 = vadd.f32 %v1876, %v1877
  %v1879 = vsel %vm1797, %v543, 0.0
  %v1880 = vadd.f32 %v1878, %v1879
  %v1881 = vsel %vm1797, %v548, 0.0
  %v1882 = vadd.f32 %v1880, %v1881
  %v1883 = vsel %vm1797, %v551, 0.0
  %v1884 = vadd.f32 %v1882, %v1883
  %v1885 = vsel %vm1797, %v556, 0.0
  %v1886 = vadd.f32 %v1884, %v1885
  %v1887 = vsel %vm1797, %v559, 0.0
  %v1888 = vadd.f32 %v1886, %v1887
  %v1889 = vsel %vm1797, %v564, 0.0
  %v1890 = vadd.f32 %v1888, %v1889
  %v1891 = vsel %vm1797, %v567, 0.0
  %v1892 = vadd.f32 %v1890, %v1891
  %v1893 = vsel %vm1797, %v572, 0.0
  %v1894 = vadd.f32 %v1892, %v1893
  %v1895 = vsel %vm1797, %v575, 0.0
  %v1896 = vadd.f32 %v1894, %v1895
  %v1897 = vsel %vm1797, %v580, 0.0
  %v1898 = vadd.f32 %v1896, %v1897
  %v1899 = vsel %vm1797, %v583, 0.0
  %v1900 = vadd.f32 %v1898, %v1899
  %v1901 = vsel %vm1797, %v588, 0.0
  %v1902 = vadd.f32 %v1900, %v1901
  %v1903 = vsel %vm1797, %v591, 0.0
  %v1904 = vadd.f32 %v1902, %v1903
  %v1905 = vsel %vm1797, %v596, 0.0
  %v1906 = vadd.f32 %v1904, %v1905
  %v1907 = vsel %vm1797, %v599, 0.0
  %v1908 = vadd.f32 %v1906, %v1907
  %v1909 = vsel %vm1797, %v604, 0.0
  %v1910 = vadd.f32 %v1908, %v1909
  %v1911 = vsel %vm1797, %v607, 0.0
  %v1912 = vadd.f32 %v1910, %v1911
  %v1913 = vsel %vm1797, %v612, 0.0
  %v1914 = vadd.f32 %v1912, %v1913
  %v1915 = vsel %vm1797, %v615, 0.0
  %v1916 = vadd.f32 %v1914, %v1915
  %v1917 = vsel %vm1797, %v620, 0.0
  %v1918 = vadd.f32 %v1916, %v1917
  %v1919 = vsel %vm1797, %v623, 0.0
  %v1920 = vadd.f32 %v1918, %v1919
  %v1921 = vsel %vm1797, %v628, 0.0
  %v1922 = vadd.f32 %v1920, %v1921
  %v1923 = vsel %vm1797, %v631, 0.0
  %v1924 = vadd.f32 %v1922, %v1923
  %v1925 = vrot.slane %v1924, 4
  %v1926 = vadd.f32 %v1924, %v1925
  %v1927 = vrot.slane %v1926, 2
  %v1928 = vadd.f32 %v1926, %v1927
  %v1929 = vrot.slane %v1928, 1
  %v1930 = vadd.f32 %v1928, %v1929
  %v1931 = vmul.f32 %v380, %v380
  %v1932 = vmul.f32 %v383, %v383
  %v1933 = vmul.f32 %v388, %v388
  %v1934 = vmul.f32 %v391, %v391
  %v1935 = vmul.f32 %v396, %v396
  %v1936 = vmul.f32 %v399, %v399
  %v1937 = vmul.f32 %v404, %v404
  %v1938 = vmul.f32 %v407, %v407
  %v1939 = vmul.f32 %v412, %v412
  %v1940 = vmul.f32 %v415, %v415
  %v1941 = vmul.f32 %v420, %v420
  %v1942 = vmul.f32 %v423, %v423
  %v1943 = vmul.f32 %v428, %v428
  %v1944 = vmul.f32 %v431, %v431
  %v1945 = vmul.f32 %v436, %v436
  %v1946 = vmul.f32 %v439, %v439
  %v1947 = vmul.f32 %v444, %v444
  %v1948 = vmul.f32 %v447, %v447
  %v1949 = vmul.f32 %v452, %v452
  %v1950 = vmul.f32 %v455, %v455
  %v1951 = vmul.f32 %v460, %v460
  %v1952 = vmul.f32 %v463, %v463
  %v1953 = vmul.f32 %v468, %v468
  %v1954 = vmul.f32 %v471, %v471
  %v1955 = vmul.f32 %v476, %v476
  %v1956 = vmul.f32 %v479, %v479
  %v1957 = vmul.f32 %v484, %v484
  %v1958 = vmul.f32 %v487, %v487
  %v1959 = vmul.f32 %v492, %v492
  %v1960 = vmul.f32 %v495, %v495
  %v1961 = vmul.f32 %v500, %v500
  %v1962 = vmul.f32 %v503, %v503
  %v1963 = vmul.f32 %v508, %v508
  %v1964 = vmul.f32 %v511, %v511
  %v1965 = vmul.f32 %v516, %v516
  %v1966 = vmul.f32 %v519, %v519
  %v1967 = vmul.f32 %v524, %v524
  %v1968 = vmul.f32 %v527, %v527
  %v1969 = vmul.f32 %v532, %v532
  %v1970 = vmul.f32 %v535, %v535
  %v1971 = vmul.f32 %v540, %v540
  %v1972 = vmul.f32 %v543, %v543
  %v1973 = vmul.f32 %v548, %v548
  %v1974 = vmul.f32 %v551, %v551
  %v1975 = vmul.f32 %v556, %v556
  %v1976 = vmul.f32 %v559, %v559
  %v1977 = vmul.f32 %v564, %v564
  %v1978 = vmul.f32 %v567, %v567
  %v1979 = vmul.f32 %v572, %v572
  %v1980 = vmul.f32 %v575, %v575
  %v1981 = vmul.f32 %v580, %v580
  %v1982 = vmul.f32 %v583, %v583
  %v1983 = vmul.f32 %v588, %v588
  %v1984 = vmul.f32 %v591, %v591
  %v1985 = vmul.f32 %v596, %v596
  %v1986 = vmul.f32 %v599, %v599
  %v1987 = vmul.f32 %v604, %v604
  %v1988 = vmul.f32 %v607, %v607
  %v1989 = vmul.f32 %v612, %v612
  %v1990 = vmul.f32 %v615, %v615
  %v1991 = vmul.f32 %v620, %v620
  %v1992 = vmul.f32 %v623, %v623
  %v1993 = vmul.f32 %v628, %v628
  %v1994 = vmul.f32 %v631, %v631
  %v1995 = vsel %vm1797, %v1931, 0.0
  %v1996 = vsel %vm1797, %v1932, 0.0
  %v1997 = vadd.f32 %v1995, %v1996
  %v1998 = vsel %vm1797, %v1933, 0.0
  %v1999 = vadd.f32 %v1997, %v1998
  %v2000 = vsel %vm1797, %v1934, 0.0
  %v2001 = vadd.f32 %v1999, %v2000
  %v2002 = vsel %vm1797, %v1935, 0.0
  %v2003 = vadd.f32 %v2001, %v2002
  %v2004 = vsel %vm1797, %v1936, 0.0
  %v2005 = vadd.f32 %v2003, %v2004
  %v2006 = vsel %vm1797, %v1937, 0.0
  %v2007 = vadd.f32 %v2005, %v2006
  %v2008 = vsel %vm1797, %v1938, 0.0
  %v2009 = vadd.f32 %v2007, %v2008
  %v2010 = vsel %vm1797, %v1939, 0.0
  %v2011 = vadd.f32 %v2009, %v2010
  %v2012 = vsel %vm1797, %v1940, 0.0
  %v2013 = vadd.f32 %v2011, %v2012
  %v2014 = vsel %vm1797, %v1941, 0.0
  %v2015 = vadd.f32 %v2013, %v2014
  %v2016 = vsel %vm1797, %v1942, 0.0
  %v2017 = vadd.f32 %v2015, %v2016
  %v2018 = vsel %vm1797, %v1943, 0.0
  %v2019 = vadd.f32 %v2017, %v2018
  %v2020 = vsel %vm1797, %v1944, 0.0
  %v2021 = vadd.f32 %v2019, %v2020
  %v2022 = vsel %vm1797, %v1945, 0.0
  %v2023 = vadd.f32 %v2021, %v2022
  %v2024 = vsel %vm1797, %v1946, 0.0
  %v2025 = vadd.f32 %v2023, %v2024
  %v2026 = vsel %vm1797, %v1947, 0.0
  %v2027 = vadd.f32 %v2025, %v2026
  %v2028 = vsel %vm1797, %v1948, 0.0
  %v2029 = vadd.f32 %v2027, %v2028
  %v2030 = vsel %vm1797, %v1949, 0.0
  %v2031 = vadd.f32 %v2029, %v2030
  %v2032 = vsel %vm1797, %v1950, 0.0
  %v2033 = vadd.f32 %v2031, %v2032
  %v2034 = vsel %vm1797, %v1951, 0.0
  %v2035 = vadd.f32 %v2033, %v2034
  %v2036 = vsel %vm1797, %v1952, 0.0
  %v2037 = vadd.f32 %v2035, %v2036
  %v2038 = vsel %vm1797, %v1953, 0.0
  %v2039 = vadd.f32 %v2037, %v2038
  %v2040 = vsel %vm1797, %v1954, 0.0
  %v2041 = vadd.f32 %v2039, %v2040
  %v2042 = vsel %vm1797, %v1955, 0.0
  %v2043 = vadd.f32 %v2041, %v2042
  %v2044 = vsel %vm1797, %v1956, 0.0
  %v2045 = vadd.f32 %v2043, %v2044
  %v2046 = vsel %vm1797, %v1957, 0.0
  %v2047 = vadd.f32 %v2045, %v2046
  %v2048 = vsel %vm1797, %v1958, 0.0
  %v2049 = vadd.f32 %v2047, %v2048
  %v2050 = vsel %vm1797, %v1959, 0.0
  %v2051 = vadd.f32 %v2049, %v2050
  %v2052 = vsel %vm1797, %v1960, 0.0
  %v2053 = vadd.f32 %v2051, %v2052
  %v2054 = vsel %vm1797, %v1961, 0.0
  %v2055 = vadd.f32 %v2053, %v2054
  %v2056 = vsel %vm1797, %v1962, 0.0
  %v2057 = vadd.f32 %v2055, %v2056
  %v2058 = vsel %vm1797, %v1963, 0.0
  %v2059 = vadd.f32 %v2057, %v2058
  %v2060 = vsel %vm1797, %v1964, 0.0
  %v2061 = vadd.f32 %v2059, %v2060
  %v2062 = vsel %vm1797, %v1965, 0.0
  %v2063 = vadd.f32 %v2061, %v2062
  %v2064 = vsel %vm1797, %v1966, 0.0
  %v2065 = vadd.f32 %v2063, %v2064
  %v2066 = vsel %vm1797, %v1967, 0.0
  %v2067 = vadd.f32 %v2065, %v2066
  %v2068 = vsel %vm1797, %v1968, 0.0
  %v2069 = vadd.f32 %v2067, %v2068
  %v2070 = vsel %vm1797, %v1969, 0.0
  %v2071 = vadd.f32 %v2069, %v2070
  %v2072 = vsel %vm1797, %v1970, 0.0
  %v2073 = vadd.f32 %v2071, %v2072
  %v2074 = vsel %vm1797, %v1971, 0.0
  %v2075 = vadd.f32 %v2073, %v2074
  %v2076 = vsel %vm1797, %v1972, 0.0
  %v2077 = vadd.f32 %v2075, %v2076
  %v2078 = vsel %vm1797, %v1973, 0.0
  %v2079 = vadd.f32 %v2077, %v2078
  %v2080 = vsel %vm1797, %v1974, 0.0
  %v2081 = vadd.f32 %v2079, %v2080
  %v2082 = vsel %vm1797, %v1975, 0.0
  %v2083 = vadd.f32 %v2081, %v2082
  %v2084 = vsel %vm1797, %v1976, 0.0
  %v2085 = vadd.f32 %v2083, %v2084
  %v2086 = vsel %vm1797, %v1977, 0.0
  %v2087 = vadd.f32 %v2085, %v2086
  %v2088 = vsel %vm1797, %v1978, 0.0
  %v2089 = vadd.f32 %v2087, %v2088
  %v2090 = vsel %vm1797, %v1979, 0.0
  %v2091 = vadd.f32 %v2089, %v2090
  %v2092 = vsel %vm1797, %v1980, 0.0
  %v2093 = vadd.f32 %v2091, %v2092
  %v2094 = vsel %vm1797, %v1981, 0.0
  %v2095 = vadd.f32 %v2093, %v2094
  %v2096 = vsel %vm1797, %v1982, 0.0
  %v2097 = vadd.f32 %v2095, %v2096
  %v2098 = vsel %vm1797, %v1983, 0.0
  %v2099 = vadd.f32 %v2097, %v2098
  %v2100 = vsel %vm1797, %v1984, 0.0
  %v2101 = vadd.f32 %v2099, %v2100
  %v2102 = vsel %vm1797, %v1985, 0.0
  %v2103 = vadd.f32 %v2101, %v2102
  %v2104 = vsel %vm1797, %v1986, 0.0
  %v2105 = vadd.f32 %v2103, %v2104
  %v2106 = vsel %vm1797, %v1987, 0.0
  %v2107 = vadd.f32 %v2105, %v2106
  %v2108 = vsel %vm1797, %v1988, 0.0
  %v2109 = vadd.f32 %v2107, %v2108
  %v2110 = vsel %vm1797, %v1989, 0.0
  %v2111 = vadd.f32 %v2109, %v2110
  %v2112 = vsel %vm1797, %v1990, 0.0
  %v2113 = vadd.f32 %v2111, %v2112
  %v2114 = vsel %vm1797, %v1991, 0.0
  %v2115 = vadd.f32 %v2113, %v2114
  %v2116 = vsel %vm1797, %v1992, 0.0
  %v2117 = vadd.f32 %v2115, %v2116
  %v2118 = vsel %vm1797, %v1993, 0.0
  %v2119 = vadd.f32 %v2117, %v2118
  %v2120 = vsel %vm1797, %v1994, 0.0
  %v2121 = vadd.f32 %v2119, %v2120
  %v2122 = vrot.slane %v2121, 4
  %v2123 = vadd.f32 %v2121, %v2122
  %v2124 = vrot.slane %v2123, 2
  %v2125 = vadd.f32 %v2123, %v2124
  %v2126 = vrot.slane %v2125, 1
  %v2127 = vadd.f32 %v2125, %v2126
  %2129 = vrot.lane.b32.xlu0 %v2127, 8
  %v2130 = vpop.permute.xlu0 %2129
  %v2132 = vsel %vm1797, %v1930, %v2130
  %vm2133 = vcmask 122880
  %2134 = vst.msk [vmem:[%s6] sm:$0x1] %vm2133, %v2132
  // Predicated region
  $region14: #{inception_forward.5} parent=0 // pred_check
    _
  $region15: #{inception_forward.5} parent=0 // pred_check_branch
    %2136 = sbr.rel (0) target = $region17
  $region16: #{inception_forward.5} parent=0 // pred_region
    _
  $region17: #{inception_forward.5} parent=0 // pred_fallthru
    _
  // Predicated region
  $region18: #{inception_forward.5} parent=0 // pred_check
    _
  $region19: #{inception_forward.5} parent=0 // pred_check_branch
    %2138 = sbr.rel (0) target = $region21
  $region20: #{inception_forward.5} parent=0 // pred_region
    _
  $region21: #{inception_forward.5} parent=0 // pred_fallthru
    _
  // Predicated region
  $region22: #{inception_forward.5} parent=0 // pred_check
    _
  $region23: #{inception_forward.5} parent=0 // pred_check_branch
    %2140 = sbr.rel (0) target = $region25
  $region24: #{inception_forward.5} parent=0 // pred_region
    _
  $region25: #{inception_forward.5} parent=0 // pred_fallthru
    _
  // Predicated region
  $region26: #{inception_forward.5} parent=0 // pred_check
    _
  $region27: #{inception_forward.5} parent=0 // pred_check_branch
    %2142 = sbr.rel (0) target = $region29
  $region28: #{inception_forward.5} parent=0 // pred_region
    _
  $region29: #{inception_forward.5} parent=0 // pred_fallthru
    _
  // Predicated region
  $region30: #{inception_forward.5} parent=0 // pred_check
    _
  $region31: #{inception_forward.5} parent=0 // pred_check_branch
    %2144 = sbr.rel (0) target = $region33
  $region32: #{inception_forward.5} parent=0 // pred_region
    _
  $region33: #{inception_forward.5} parent=0 // pred_fallthru
    _
  // Predicated region
  $region34: #{inception_forward.5} parent=0 // pred_check
    _
  $region35: #{inception_forward.5} parent=0 // pred_check_branch
    %2146 = sbr.rel (0) target = $region37
  $region36: #{inception_forward.5} parent=0 // pred_region
    _
  $region37: #{inception_forward.5} parent=0 // pred_fallthru
    _
  // Predicated region
  $region38: #{inception_forward.5} parent=0 // pred_check
    _
  $region39: #{inception_forward.5} parent=0 // pred_check_branch
    %2148 = sbr.rel (0) target = $region41
  $region40: #{inception_forward.5} parent=0 // pred_region
    _
  $region41: #{inception_forward.5} parent=0 // pred_fallthru
    _
  // Predicated region
  $region42: #{inception_forward.5} parent=0 // pred_check
    _
  $region43: #{inception_forward.5} parent=0 // pred_check_branch
    %2150 = sbr.rel (0) target = $region45
  $region44: #{inception_forward.5} parent=0 // pred_region
    _
  $region45: #{inception_forward.5} parent=0 // pred_fallthru
    _

// kernel: inception_forward.6
$region0: #{inception_forward.6}
  #allocation0 [shape = 'u32[]', space=smem, size = 0x4, offset = 0x4, fixed_abs, tag = 'smem constant byte address 0x4 - core index']
  #allocation1 [shape = 'u32[144,128]{1,0:T(1,128)}', space=vmem, size = 0x12000, scoped, tag = 'internal scratch']
  #allocation2 [shape = 'f32[18,18,4]{2,1,0:T(8,128)}', space=vmem, size = 0x36000, scoped, tag = 'scratch operand']
  %s0 = inlined_call_operand.vmem [shape: bf16[2,16,16,4], index: 0, kind: input, shape index: {}]
  %s1 = inlined_call_operand.vmem [shape: bf16[3,12,8], index: 1, kind: input, shape index: {}]
  %s2 = inlined_call_operand.vmem [shape: bf16[512,8], index: 2, kind: output, shape index: {0}]
  %s3 = inlined_call_operand.vmem [shape: f32[2,1,16], index: 3, kind: output, shape index: {1}]
  %4 = xla_tuple %s2, %s3
  %s5 = sld [smem:[#allocation0]]
  $region49: #{inception_forward.6} parent=0
    _
  %s7 = ssub.s32 1, %s5
  %s8 = scalar_select 0, %s7, %s5
  loop: start=0, step=1, limit=4
  $region2: #{inception_forward.6} parent=0 // loop_pre_header
    _
  $region3: #{inception_forward.6} parent=0 // loop_header
    %s10 = sphi 0, %s14
    %p11 = scmp.ge.s32.totalorder %s10, 4
    %s20 = sphi 0, %s22
    %s23 = sphi 0, %s20
    %s24 = sphi 0, %s23
    %s40 = sphi 0, %s24
    %s44 = sphi 0, %s44
    %s46 = sphi 0, %s44
    %s47 = sphi 0, %s46
    %s61 = sphi 0, %s47
    %s67 = sphi 0, %s69
    %s70 = sphi 0, %s67
    %s71 = sphi 0, %s70
    %s87 = sphi 0, %s71
    %s93 = sphi 0, %s95
    %s96 = sphi 0, %s93
    %s97 = sphi 0, %s96
    %s113 = sphi 0, %s97
  $region4: #{inception_forward.6} parent=0 // loop_header_branch
    %13 = sbr.rel (%p11) target = $region8
  $region5: #{inception_forward.6} parent=0 // loop_body
    %s15 = ssub.s32 %s10, 1
    %s16 = ssub.s32 %s10, 2
    %s17 = sadd.s32 %s10, 1
    %s18 = ssub.s32 %s10, %s17
    %p19 = scmp.eq.s32.totalorder %s18, 0
    %s21 = sadd.s32 %s20, 1
    %s22 = scalar_select %p19, %s20, %s21
    %p25 = pneg %p19
    %p26 = scmp.eq.s32.totalorder %s10, 1
    %p27 = por %p25, %p26
    %p28 = scmp.ne.s32.totalorder %s20, %s23
    %p29 = scmp.eq.s32.totalorder %s10, 0
    %p30 = por %p28, %p29
    %p31 = scmp.ne.s32.totalorder %s20, %s23
    %p32 = scmp.eq.s32.totalorder %s15, 1
    %p33 = por %p31, %p32
    %p34 = scmp.ne.s32.totalorder %s23, %s24
    %p35 = scmp.eq.s32.totalorder %s15, 0
    %p36 = por %p34, %p35
    %p37 = scmp.ne.s32.totalorder %s23, %s24
    %p38 = scmp.eq.s32.totalorder %s16, 1
    %p39 = por %p37, %p38
    %p41 = scmp.ne.s32.totalorder %s24, %s40
    %p42 = scmp.eq.s32.totalorder %s16, 0
    %p43 = por %p41, %p42
    %s45 = sadd.s32 %s44, 1
    %p48 = scmp.eq.s32.totalorder %s10, 1
    %p49 = scmp.ne.s32.totalorder %s44, %s46
    %p50 = scmp.eq.s32.totalorder %s10, 0
    %p51 = por %p49, %p50
    %p52 = scmp.ne.s32.totalorder %s44, %s46
    %p53 = scmp.eq.s32.totalorder %s15, 1
    %p54 = por %p52, %p53
    %p55 = scmp.ne.s32.totalorder %s46, %s47
    %p56 = scmp.eq.s32.totalorder %s15, 0
    %p57 = por %p55, %p56
    %p58 = scmp.ne.s32.totalorder %s46, %s47
    %p59 = scmp.eq.s32.totalorder %s16, 1
    %p60 = por %p58, %p59
    %p62 = scmp.ne.s32.totalorder %s47, %s61
    %p63 = scmp.eq.s32.totalorder %s16, 0
    %p64 = por %p62, %p63
    %s65 = ssub.s32 %s10, %s17
    %p66 = scmp.eq.s32.totalorder %s65, 0
    %s68 = sadd.s32 %s67, 1
    %s69 = scalar_select %p66, %s67, %s68
    %p72 = pneg %p66
    %p73 = scmp.eq.s32.totalorder %s10, 1
    %p74 = por %p72, %p73
    %p75 = scmp.ne.s32.totalorder %s67, %s70
    %p76 = scmp.eq.s32.totalorder %s10, 0
    %p77 = por %p75, %p76
    %p78 = scmp.ne.s32.totalorder %s67, %s70
    %p79 = scmp.eq.s32.totalorder %s15, 1
    %p80 = por %p78, %p79
    %p81 = scmp.ne.s32.totalorder %s70, %s71
    %p82 = scmp.eq.s32.totalorder %s15, 0
    %p83 = por %p81, %p82
    %p84 = scmp.ne.s32.totalorder %s70, %s71
    %p85 = scmp.eq.s32.totalorder %s16, 1
    %p86 = por %p84, %p85
    %p88 = scmp.ne.s32.totalorder %s71, %s87
    %p89 = scmp.eq.s32.totalorder %s16, 0
    %p90 = por %p88, %p89
    %s91 = ssub.s32 %s10, %s17
    %p92 = scmp.eq.s32.totalorder %s91, 0
    %s94 = sadd.s32 %s93, 1
    %s95 = scalar_select %p92, %s93, %s94
    %p98 = pneg %p92
    %p99 = scmp.eq.s32.totalorder %s10, 1
    %p100 = por %p98, %p99
    %p101 = scmp.ne.s32.totalorder %s93, %s96
    %p102 = scmp.eq.s32.totalorder %s10, 0
    %p103 = por %p101, %p102
    %p104 = scmp.ne.s32.totalorder %s93, %s96
    %p105 = scmp.eq.s32.totalorder %s15, 1
    %p106 = por %p104, %p105
    %p107 = scmp.ne.s32.totalorder %s96, %s97
    %p108 = scmp.eq.s32.totalorder %s15, 0
    %p109 = por %p107, %p108
    %p110 = scmp.ne.s32.totalorder %s96, %s97
    %p111 = scmp.eq.s32.totalorder %s16, 1
    %p112 = por %p110, %p111
    %p114 = scmp.ne.s32.totalorder %s97, %s113
    %p115 = scmp.eq.s32.totalorder %s16, 0
    %p116 = por %p114, %p115
    %p117 = scmp.le.s32.totalorder 1, %s10
    %p118 = scmp.lt.s32.totalorder %s10, 3
    %p119 = pnand %p117, %p118
    %p120 = pneg %p119
    // Predicated region
    $region9: #{inception_forward.6} parent=5 // pred_check
      _
    $region10: #{inception_forward.6} parent=5 // pred_check_branch
      %122 = sbr.rel (%p119) target = $region12
    $region11: #{inception_forward.6} parent=5 // pred_region
      %s123 = ssub.s32 %s10, 1
      // Predicated region
      $region13: #{inception_forward.6} parent=11 // pred_check
        %p124 = pneg %p57
      $region14: #{inception_forward.6} parent=11 // pred_check_branch
        %126 = sbr.rel (%p124) target = $region16
      $region15: #{inception_forward.6} parent=11 // pred_region
        _
      $region16: #{inception_forward.6} parent=11 // pred_fallthru
        _
    $region12: #{inception_forward.6} parent=5 // pred_fallthru
      _
    %p127 = scmp.lt.s32.totalorder %s10, 2
    // Predicated region
    $region17: #{inception_forward.6} parent=5 // pred_check
      %p128 = pneg %p127
    $region18: #{inception_forward.6} parent=5 // pred_check_branch
      %130 = sbr.rel (%p128) target = $region20
    $region19: #{inception_forward.6} parent=5 // pred_region
      // Predicated region
      $region21: #{inception_forward.6} parent=19 // pred_check
        %p131 = pneg %p30
      $region22: #{inception_forward.6} parent=19 // pred_check_branch
        %133 = sbr.rel (%p131) target = $region24
      $region23: #{inception_forward.6} parent=19 // pred_region
        %p134 = scmp.lt.s32.totalorder %s10, 1
        %s135 = scalar_select %p134, %s10, 1
        %s136 = smul.addr %s135, 32
        %s137 = smul.addr %s136, 4
        %s138 = scalar_lea.vmem %s0, %s137
      $region24: #{inception_forward.6} parent=19 // pred_fallthru
        _
    $region20: #{inception_forward.6} parent=5 // pred_fallthru
      _
    %p139 = scmp.le.s32.totalorder 1, %s10
    %p140 = scmp.lt.s32.totalorder %s10, 3
    %p141 = pnand %p139, %p140
    %p142 = pneg %p141
    // Predicated region
    $region25: #{inception_forward.6} parent=5 // pred_check
      _
    $region26: #{inception_forward.6} parent=5 // pred_check_branch
      %144 = sbr.rel (%p141) target = $region28
    $region27: #{inception_forward.6} parent=5 // pred_region
      %s145 = ssub.s32 %s10, 1
      %p146 = scmp.lt.s32.totalorder %s15, 1
      %s147 = scalar_select %p146, %s15, 1
      %s148 = smul.addr %s147, 32
      %s149 = smul.addr %s148, 4
      %s150 = scalar_lea.vmem %s0, %s149
      %p151 = pneg %p36
      %p152 = pneg %p33
      %p153 = pneg %p57
      %p154 = pneg %p54
      %p155 = pneg %p83
      %p156 = pneg %p80
      %s157 = smul.u32 32, %s15
      %p158 = scmp.lt.s32.totalorder %s157, 63
      %s159 = scalar_select %p158, %s157, 63
      %s160 = smul.addr %s159, 4
      %s161 = scalar_lea.vmem %s2, %s160
      %p162 = pneg %p109
      %p163 = pneg %p106
      %p164 = scmp.lt.s32.totalorder %s15, 1
      %s165 = scalar_select %p164, %s15, 1
      %s166 = scalar_lea.vmem %s3, %s165
      %p167 = scmp.lt.s32.totalorder %s15, 1
      %s168 = scalar_select %p167, %s15, 1
      %s169 = smul.addr %s168, 32
      %s170 = smul.addr %s169, 4
      %s171 = scalar_lea.vmem %s0, %s170
      %s172 = smul.u32 32, %s15
      %p173 = scmp.lt.s32.totalorder %s172, 63
      %s174 = scalar_select %p173, %s172, 63
      %s175 = smul.addr %s174, 4
      %s176 = scalar_lea.vmem %s2, %s175
      %s177 = smul.u32 32, %s15
      %p178 = scmp.lt.s32.totalorder %s15, 1
      %s179 = scalar_select %p178, %s15, 1
      %s180 = scalar_lea.vmem %s3, %s179
      %vm182 = vcmask 31744
      %183 = vst.msk [vmem:[#allocation2] sm:$0xff] %vm182, 0.0
      %184 = vst.msk [vmem:[#allocation2 + $0x8] sm:$0xff] %vm182, 0.0
      %vm185 = vcmask 25600
      %186 = vst.msk [vmem:[#allocation2 + $0x10] sm:$0x3] %vm185, 0.0
      %187 = vst.msk [vmem:[#allocation2 + $0x18] sm:$0xff] %vm182, 0.0
      %188 = vst.msk [vmem:[#allocation2 + $0x20] sm:$0xff] %vm182, 0.0
      %189 = vst.msk [vmem:[#allocation2 + $0x28] sm:$0x3] %vm185, 0.0
      %190 = vst.msk [vmem:[#allocation2 + $0x30] sm:$0xff] %vm182, 0.0
      %191 = vst.msk [vmem:[#allocation2 + $0x38] sm:$0xff] %vm182, 0.0
      %192 = vst.msk [vmem:[#allocation2 + $0x40] sm:$0x3] %vm185, 0.0
      %193 = vst.msk [vmem:[#allocation2 + $0x48] sm:$0xff] %vm182, 0.0
      %194 = vst.msk [vmem:[#allocation2 + $0x50] sm:$0xff] %vm182, 0.0
      %195 = vst.msk [vmem:[#allocation2 + $0x58] sm:$0x3] %vm185, 0.0
      %196 = vst.msk [vmem:[#allocation2 + $0x60] sm:$0xff] %vm182, 0.0
      %197 = vst.msk [vmem:[#allocation2 + $0x68] sm:$0xff] %vm182, 0.0
      %198 = vst.msk [vmem:[#allocation2 + $0x70] sm:$0x3] %vm185, 0.0
      %199 = vst.msk [vmem:[#allocation2 + $0x78] sm:$0xff] %vm182, 0.0
      %200 = vst.msk [vmem:[#allocation2 + $0x80] sm:$0xff] %vm182, 0.0
      %201 = vst.msk [vmem:[#allocation2 + $0x88] sm:$0x3] %vm185, 0.0
      %202 = vst.msk [vmem:[#allocation2 + $0x90] sm:$0xff] %vm182, 0.0
      %203 = vst.msk [vmem:[#allocation2 + $0x98] sm:$0xff] %vm182, 0.0
      %204 = vst.msk [vmem:[#allocation2 + $0xa0] sm:$0x3] %vm185, 0.0
      %205 = vst.msk [vmem:[#allocation2 + $0xa8] sm:$0xff] %vm182, 0.0
      %206 = vst.msk [vmem:[#allocation2 + $0xb0] sm:$0xff] %vm182, 0.0
      %207 = vst.msk [vmem:[#allocation2 + $0xb8] sm:$0x3] %vm185, 0.0
      %208 = vst.msk [vmem:[#allocation2 + $0xc0] sm:$0xff] %vm182, 0.0
      %209 = vst.msk [vmem:[#allocation2 + $0xc8] sm:$0xff] %vm182, 0.0
      %210 = vst.msk [vmem:[#allocation2 + $0xd0] sm:$0x3] %vm185, 0.0
      %211 = vst.msk [vmem:[#allocation2 + $0xd8] sm:$0xff] %vm182, 0.0
      %212 = vst.msk [vmem:[#allocation2 + $0xe0] sm:$0xff] %vm182, 0.0
      %213 = vst.msk [vmem:[#allocation2 + $0xe8] sm:$0x3] %vm185, 0.0
      %214 = vst.msk [vmem:[#allocation2 + $0xf0] sm:$0xff] %vm182, 0.0
      %215 = vst.msk [vmem:[#allocation2 + $0xf8] sm:$0xff] %vm182, 0.0
      %216 = vst.msk [vmem:[#allocation2 + $0x100] sm:$0x3] %vm185, 0.0
      %217 = vst.msk [vmem:[#allocation2 + $0x108] sm:$0xff] %vm182, 0.0
      %218 = vst.msk [vmem:[#allocation2 + $0x110] sm:$0xff] %vm182, 0.0
      %219 = vst.msk [vmem:[#allocation2 + $0x118] sm:$0x3] %vm185, 0.0
      %220 = vst.msk [vmem:[#allocation2 + $0x120] sm:$0xff] %vm182, 0.0
      %221 = vst.msk [vmem:[#allocation2 + $0x128] sm:$0xff] %vm182, 0.0
      %222 = vst.msk [vmem:[#allocation2 + $0x130] sm:$0x3] %vm185, 0.0
      %223 = vst.msk [vmem:[#allocation2 + $0x138] sm:$0xff] %vm182, 0.0
      %224 = vst.msk [vmem:[#allocation2 + $0x140] sm:$0xff] %vm182, 0.0
      %225 = vst.msk [vmem:[#allocation2 + $0x148] sm:$0x3] %vm185, 0.0
      %226 = vst.msk [vmem:[#allocation2 + $0x150] sm:$0xff] %vm182, 0.0
      %227 = vst.msk [vmem:[#allocation2 + $0x158] sm:$0xff] %vm182, 0.0
      %228 = vst.msk [vmem:[#allocation2 + $0x160] sm:$0x3] %vm185, 0.0
      %229 = vst.msk [vmem:[#allocation2 + $0x168] sm:$0xff] %vm182, 0.0
      %230 = vst.msk [vmem:[#allocation2 + $0x170] sm:$0xff] %vm182, 0.0
      %231 = vst.msk [vmem:[#allocation2 + $0x178] sm:$0x3] %vm185, 0.0
      %232 = vst.msk [vmem:[#allocation2 + $0x180] sm:$0xff] %vm182, 0.0
      %233 = vst.msk [vmem:[#allocation2 + $0x188] sm:$0xff] %vm182, 0.0
      %234 = vst.msk [vmem:[#allocation2 + $0x190] sm:$0x3] %vm185, 0.0
      %235 = vst.msk [vmem:[#allocation2 + $0x198] sm:$0xff] %vm182, 0.0
      %236 = vst.msk [vmem:[#allocation2 + $0x1a0] sm:$0xff] %vm182, 0.0
      %237 = vst.msk [vmem:[#allocation2 + $0x1a8] sm:$0x3] %vm185, 0.0
      %v238 = vld [vmem:[%s171] sm:$0xf]
      %v239 = vld [vmem:[%s171 + $0x4] sm:$0xf]
      %v240 = vld [vmem:[%s171 + $0x8] sm:$0xf]
      %v241 = vld [vmem:[%s171 + $0xc] sm:$0xf]
      %v242 = vld [vmem:[%s171 + $0x10] sm:$0xf]
      %v243 = vld [vmem:[%s171 + $0x14] sm:$0xf]
      %v244 = vld [vmem:[%s171 + $0x18] sm:$0xf]
      %v245 = vld [vmem:[%s171 + $0x1c] sm:$0xf]
      %v246 = vld [vmem:[%s171 + $0x20] sm:$0xf]
      %v247 = vld [vmem:[%s171 + $0x24] sm:$0xf]
      %v248 = vld [vmem:[%s171 + $0x28] sm:$0xf]
      %v249 = vld [vmem:[%s171 + $0x2c] sm:$0xf]
      %v250 = vld [vmem:[%s171 + $0x30] sm:$0xf]
      %v251 = vld [vmem:[%s171 + $0x34] sm:$0xf]
      %v252 = vld [vmem:[%s171 + $0x38] sm:$0xf]
      %v253 = vld [vmem:[%s171 + $0x3c] sm:$0xf]
      %v254 = vld [vmem:[%s171 + $0x40] sm:$0xf]
      %v255 = vld [vmem:[%s171 + $0x44] sm:$0xf]
      %v256 = vld [vmem:[%s171 + $0x48] sm:$0xf]
      %v257 = vld [vmem:[%s171 + $0x4c] sm:$0xf]
      %v258 = vld [vmem:[%s171 + $0x50] sm:$0xf]
      %v259 = vld [vmem:[%s171 + $0x54] sm:$0xf]
      %v260 = vld [vmem:[%s171 + $0x58] sm:$0xf]
      %v261 = vld [vmem:[%s171 + $0x5c] sm:$0xf]
      %v262 = vld [vmem:[%s171 + $0x60] sm:$0xf]
      %v263 = vld [vmem:[%s171 + $0x64] sm:$0xf]
      %v264 = vld [vmem:[%s171 + $0x68] sm:$0xf]
      %v265 = vld [vmem:[%s171 + $0x6c] sm:$0xf]
      %v266 = vld [vmem:[%s171 + $0x70] sm:$0xf]
      %v267 = vld [vmem:[%s171 + $0x74] sm:$0xf]
      %v268 = vld [vmem:[%s171 + $0x78] sm:$0xf]
      %v269 = vld [vmem:[%s171 + $0x7c] sm:$0xf]
      %v270 = vunpack.c.l.bf16 %v238
      %v271 = vunpack.c.l.bf16 %v239
      %v272 = vunpack.c.l.bf16 %v240
      %v273 = vunpack.c.l.bf16 %v241
      %v274 = vunpack.c.l.bf16 %v242
      %v275 = vunpack.c.l.bf16 %v243
      %v276 = vunpack.c.l.bf16 %v244
      %v277 = vunpack.c.l.bf16 %v245
      %v278 = vunpack.c.l.bf16 %v246
      %v279 = vunpack.c.l.bf16 %v247
      %v280 = vunpack.c.l.bf16 %v248
      %v281 = vunpack.c.l.bf16 %v249
      %v282 = vunpack.c.l.bf16 %v250
      %v283 = vunpack.c.l.bf16 %v251
      %v284 = vunpack.c.l.bf16 %v252
      %v285 = vunpack.c.l.bf16 %v253
      %v286 = vunpack.c.l.bf16 %v254
      %v287 = vunpack.c.l.bf16 %v255
      %v288 = vunpack.c.l.bf16 %v256
      %v289 = vunpack.c.l.bf16 %v257
      %v290 = vunpack.c.l.bf16 %v258
      %v291 = vunpack.c.l.bf16 %v259
      %v292 = vunpack.c.l.bf16 %v260
      %v293 = vunpack.c.l.bf16 %v261
      %v294 = vunpack.c.l.bf16 %v262
      %v295 = vunpack.c.l.bf16 %v263
      %v296 = vunpack.c.l.bf16 %v264
      %v297 = vunpack.c.l.bf16 %v265
      %v298 = vunpack.c.l.bf16 %v266
      %v299 = vunpack.c.l.bf16 %v267
      %v300 = vunpack.c.l.bf16 %v268
      %v301 = vunpack.c.l.bf16 %v269
      %s302 = scalar_lea.vmem [#allocation2], 24
      %303 = vst.msk [vmem:[%s302 + $0x1] sm:$0xff] %vm182, %v270
      %304 = vst.msk [vmem:[%s302 + $0x9] sm:$0xff] %vm182, %v271
      %305 = vst.msk [vmem:[%s302 + $0x19] sm:$0xff] %vm182, %v272
      %306 = vst.msk [vmem:[%s302 + $0x21] sm:$0xff] %vm182, %v273
      %307 = vst.msk [vmem:[%s302 + $0x31] sm:$0xff] %vm182, %v274
      %308 = vst.msk [vmem:[%s302 + $0x39] sm:$0xff] %vm182, %v275
      %309 = vst.msk [vmem:[%s302 + $0x49] sm:$0xff] %vm182, %v276
      %310 = vst.msk [vmem:[%s302 + $0x51] sm:$0xff] %vm182, %v277
      %311 = vst.msk [vmem:[%s302 + $0x61] sm:$0xff] %vm182, %v278
      %312 = vst.msk [vmem:[%s302 + $0x69] sm:$0xff] %vm182, %v279
      %313 = vst.msk [vmem:[%s302 + $0x79] sm:$0xff] %vm182, %v280
      %314 = vst.msk [vmem:[%s302 + $0x81] sm:$0xff] %vm182, %v281
      %315 = vst.msk [vmem:[%s302 + $0x91] sm:$0xff] %vm182, %v282
      %316 = vst.msk [vmem:[%s302 + $0x99] sm:$0xff] %vm182, %v283
      %317 = vst.msk [vmem:[%s302 + $0xa9] sm:$0xff] %vm182, %v284
      %318 = vst.msk [vmem:[%s302 + $0xb1] sm:$0xff] %vm182, %v285
      %319 = vst.msk [vmem:[%s302 + $0xc1] sm:$0xff] %vm182, %v286
      %320 = vst.msk [vmem:[%s302 + $0xc9] sm:$0xff] %vm182, %v287
      %321 = vst.msk [vmem:[%s302 + $0xd9] sm:$0xff] %vm182, %v288
      %322 = vst.msk [vmem:[%s302 + $0xe1] sm:$0xff] %vm182, %v289
      %323 = vst.msk [vmem:[%s302 + $0xf1] sm:$0xff] %vm182, %v290
      %324 = vst.msk [vmem:[%s302 + $0xf9] sm:$0xff] %vm182, %v291
      %325 = vst.msk [vmem:[%s302 + $0x109] sm:$0xff] %vm182, %v292
      %326 = vst.msk [vmem:[%s302 + $0x111] sm:$0xff] %vm182, %v293
      %327 = vst.msk [vmem:[%s302 + $0x121] sm:$0xff] %vm182, %v294
      %328 = vst.msk [vmem:[%s302 + $0x129] sm:$0xff] %vm182, %v295
      %329 = vst.msk [vmem:[%s302 + $0x139] sm:$0xff] %vm182, %v296
      %330 = vst.msk [vmem:[%s302 + $0x141] sm:$0xff] %vm182, %v297
      %331 = vst.msk [vmem:[%s302 + $0x151] sm:$0xff] %vm182, %v298
      %332 = vst.msk [vmem:[%s302 + $0x159] sm:$0xff] %vm182, %v299
      %333 = vst.msk [vmem:[%s302 + $0x169] sm:$0xff] %vm182, %v300
      %334 = vst.msk [vmem:[%s302 + $0x171] sm:$0xff] %vm182, %v301
      %v335 = vld [vmem:[#allocation2] sm:$0xff]
      %v336 = vld [vmem:[#allocation2 + $0x8] sm:$0xff]
      %v337 = vld [vmem:[#allocation2 + $0x10] sm:$0x3]
      %v338 = vld [vmem:[#allocation2 + $0x18] sm:$0xff]
      %v339 = vld [vmem:[#allocation2 + $0x20] sm:$0xff]
      %v340 = vld [vmem:[#allocation2 + $0x28] sm:$0x3]
      %v341 = vld [vmem:[#allocation2 + $0x30] sm:$0xff]
      %v342 = vld [vmem:[#allocation2 + $0x38] sm:$0xff]
      %v343 = vld [vmem:[#allocation2 + $0x40] sm:$0x3]
      %v344 = vld [vmem:[#allocation2 + $0x48] sm:$0xff]
      %v345 = vld [vmem:[#allocation2 + $0x50] sm:$0xff]
      %v346 = vld [vmem:[#allocation2 + $0x58] sm:$0x3]
      %v347 = vld [vmem:[#allocation2 + $0x60] sm:$0xff]
      %v348 = vld [vmem:[#allocation2 + $0x68] sm:$0xff]
      %v349 = vld [vmem:[#allocation2 + $0x70] sm:$0x3]
      %v350 = vld [vmem:[#allocation2 + $0x78] sm:$0xff]
      %v351 = vld [vmem:[#allocation2 + $0x80] sm:$0xff]
      %v352 = vld [vmem:[#allocation2 + $0x88] sm:$0x3]
      %v353 = vld [vmem:[#allocation2 + $0x90] sm:$0xff]
      %v354 = vld [vmem:[#allocation2 + $0x98] sm:$0xff]
      %v355 = vld [vmem:[#allocation2 + $0xa0] sm:$0x3]
      %v356 = vld [vmem:[#allocation2 + $0xa8] sm:$0xff]
      %v357 = vld [vmem:[#allocation2 + $0xb0] sm:$0xff]
      %v358 = vld [vmem:[#allocation2 + $0xb8] sm:$0x3]
      %v359 = vld [vmem:[#allocation2 + $0xc0] sm:$0xff]
      %v360 = vld [vmem:[#allocation2 + $0xc8] sm:$0xff]
      %v361 = vld [vmem:[#allocation2 + $0xd0] sm:$0x3]
      %v362 = vld [vmem:[#allocation2 + $0xd8] sm:$0xff]
      %v363 = vld [vmem:[#allocation2 + $0xe0] sm:$0xff]
      %v364 = vld [vmem:[#allocation2 + $0xe8] sm:$0x3]
      %v365 = vld [vmem:[#allocation2 + $0xf0] sm:$0xff]
      %v366 = vld [vmem:[#allocation2 + $0xf8] sm:$0xff]
      %v367 = vld [vmem:[#allocation2 + $0x100] sm:$0x3]
      %v368 = vld [vmem:[#allocation2 + $0x108] sm:$0xff]
      %v369 = vld [vmem:[#allocation2 + $0x110] sm:$0xff]
      %v370 = vld [vmem:[#allocation2 + $0x118] sm:$0x3]
      %v371 = vld [vmem:[#allocation2 + $0x120] sm:$0xff]
      %v372 = vld [vmem:[#allocation2 + $0x128] sm:$0xff]
      %v373 = vld [vmem:[#allocation2 + $0x130] sm:$0x3]
      %v374 = vld [vmem:[#allocation2 + $0x138] sm:$0xff]
      %v375 = vld [vmem:[#allocation2 + $0x140] sm:$0xff]
      %v376 = vld [vmem:[#allocation2 + $0x148] sm:$0x3]
      %v377 = vld [vmem:[#allocation2 + $0x150] sm:$0xff]
      %v378 = vld [vmem:[#allocation2 + $0x158] sm:$0xff]
      %v379 = vld [vmem:[#allocation2 + $0x160] sm:$0x3]
      %v380 = vld [vmem:[#allocation2 + $0x168] sm:$0xff]
      %v381 = vld [vmem:[#allocation2 + $0x170] sm:$0xff]
      %v382 = vld [vmem:[#allocation2 + $0x178] sm:$0x3]
      %v383 = vld [vmem:[#allocation2 + $0x180] sm:$0xff]
      %v384 = vld [vmem:[#allocation2 + $0x188] sm:$0xff]
      %v385 = vld [vmem:[#allocation2 + $0x190] sm:$0x3]
      %v386 = vld [vmem:[#allocation2 + $0x198] sm:$0xff]
      %v387 = vld [vmem:[#allocation2 + $0x1a0] sm:$0xff]
      %v388 = vld [vmem:[#allocation2 + $0x1a8] sm:$0x3]
      %vm443 = vcmask 1046528
      %v444 = vrot.slane %v335, 1
      %v445 = vrot.slane %v336, 1
      %v446 = vsel %vm443, %v444, %v445
      %v447 = vrot.slane %v337, 1
      %v448 = vsel %vm443, %v445, %v447
      %v449 = vrot.slane %v338, 1
      %v450 = vrot.slane %v339, 1
      %v451 = vsel %vm443, %v449, %v450
      %v452 = vrot.slane %v340, 1
      %v453 = vsel %vm443, %v450, %v452
      %v454 = vrot.slane %v341, 1
      %v455 = vrot.slane %v342, 1
      %v456 = vsel %vm443, %v454, %v455
      %v457 = vrot.slane %v343, 1
      %v458 = vsel %vm443, %v455, %v457
      %v459 = vrot.slane %v344, 1
      %v460 = vrot.slane %v345, 1
      %v461 = vsel %vm443, %v459, %v460
      %v462 = vrot.slane %v346, 1
      %v463 = vsel %vm443, %v460, %v462
      %v464 = vrot.slane %v347, 1
      %v465 = vrot.slane %v348, 1
      %v466 = vsel %vm443, %v464, %v465
      %v467 = vrot.slane %v349, 1
      %v468 = vsel %vm443, %v465, %v467
      %v469 = vrot.slane %v350, 1
      %v470 = vrot.slane %v351, 1
      %v471 = vsel %vm443, %v469, %v470
      %v472 = vrot.slane %v352, 1
      %v473 = vsel %vm443, %v470, %v472
      %v474 = vrot.slane %v353, 1
      %v475 = vrot.slane %v354, 1
      %v476 = vsel %vm443, %v474, %v475
      %v477 = vrot.slane %v355, 1
      %v478 = vsel %vm443, %v475, %v477
      %v479 = vrot.slane %v356, 1
      %v480 = vrot.slane %v357, 1
      %v481 = vsel %vm443, %v479, %v480
      %v482 = vrot.slane %v358, 1
      %v483 = vsel %vm443, %v480, %v482
      %v484 = vrot.slane %v359, 1
      %v485 = vrot.slane %v360, 1
      %v486 = vsel %vm443, %v484, %v485
      %v487 = vrot.slane %v361, 1
      %v488 = vsel %vm443, %v485, %v487
      %v489 = vrot.slane %v362, 1
      %v490 = vrot.slane %v363, 1
      %v491 = vsel %vm443, %v489, %v490
      %v492 = vrot.slane %v364, 1
      %v493 = vsel %vm443, %v490, %v492
      %v494 = vrot.slane %v365, 1
      %v495 = vrot.slane %v366, 1
      %v496 = vsel %vm443, %v494, %v495
      %v497 = vrot.slane %v367, 1
      %v498 = vsel %vm443, %v495, %v497
      %v499 = vrot.slane %v368, 1
      %v500 = vrot.slane %v369, 1
      %v501 = vsel %vm443, %v499, %v500
      %v502 = vrot.slane %v370, 1
      %v503 = vsel %vm443, %v500, %v502
      %v504 = vrot.slane %v371, 1
      %v505 = vrot.slane %v372, 1
      %v506 = vsel %vm443, %v504, %v505
      %v507 = vrot.slane %v373, 1
      %v508 = vsel %vm443, %v505, %v507
      %v509 = vrot.slane %v374, 1
      %v510 = vrot.slane %v375, 1
      %v511 = vsel %vm443, %v509, %v510
      %v512 = vrot.slane %v376, 1
      %v513 = vsel %vm443, %v510, %v512
      %v514 = vrot.slane %v377, 1
      %v515 = vrot.slane %v378, 1
      %v516 = vsel %vm443, %v514, %v515
      %v517 = vrot.slane %v379, 1
      %v518 = vsel %vm443, %v515, %v517
      %v519 = vrot.slane %v380, 1
      %v520 = vrot.slane %v381, 1
      %v521 = vsel %vm443, %v519, %v520
      %v522 = vrot.slane %v382, 1
      %v523 = vsel %vm443, %v520, %v522
      %v524 = vrot.slane %v383, 1
      %v525 = vrot.slane %v384, 1
      %v526 = vsel %vm443, %v524, %v525
      %v527 = vrot.slane %v385, 1
      %v528 = vsel %vm443, %v525, %v527
      %v529 = vrot.slane %v386, 1
      %v530 = vrot.slane %v387, 1
      %v531 = vsel %vm443, %v529, %v530
      %v532 = vrot.slane %v388, 1
      %v533 = vsel %vm443, %v530, %v532
      %534 = vrot.lane.b32.xlu0 %v446, 4
      %v535 = vpop.permute.xlu0 %534
      %536 = vrot.lane.b32.xlu0 %v448, 4
      %v537 = vpop.permute.xlu0 %536
      %538 = vrot.lane.b32.xlu0 %v451, 4
      %v539 = vpop.permute.xlu0 %538
      %540 = vrot.lane.b32.xlu0 %v453, 4
      %v541 = vpop.permute.xlu0 %540
      %542 = vrot.lane.b32.xlu0 %v456, 4
      %v543 = vpop.permute.xlu0 %542
      %544 = vrot.lane.b32.xlu0 %v458, 4
      %v545 = vpop.permute.xlu0 %544
      %546 = vrot.lane.b32.xlu0 %v461, 4
      %v547 = vpop.permute.xlu0 %546
      %548 = vrot.lane.b32.xlu0 %v463, 4
      %v549 = vpop.permute.xlu0 %548
      %550 = vrot.lane.b32.xlu0 %v466, 4
      %v551 = vpop.permute.xlu0 %550
      %552 = vrot.lane.b32.xlu0 %v468, 4
      %v553 = vpop.permute.xlu0 %552
      %554 = vrot.lane.b32.xlu0 %v471, 4
      %v555 = vpop.permute.xlu0 %554
      %556 = vrot.lane.b32.xlu0 %v473, 4
      %v557 = vpop.permute.xlu0 %556
      %558 = vrot.lane.b32.xlu0 %v476, 4
      %v559 = vpop.permute.xlu0 %558
      %560 = vrot.lane.b32.xlu0 %v478, 4
      %v561 = vpop.permute.xlu0 %560
      %562 = vrot.lane.b32.xlu0 %v481, 4
      %v563 = vpop.permute.xlu0 %562
      %564 = vrot.lane.b32.xlu0 %v483, 4
      %v565 = vpop.permute.xlu0 %564
      %566 = vrot.lane.b32.xlu0 %v486, 4
      %v567 = vpop.permute.xlu0 %566
      %568 = vrot.lane.b32.xlu0 %v488, 4
      %v569 = vpop.permute.xlu0 %568
      %570 = vrot.lane.b32.xlu0 %v491, 4
      %v571 = vpop.permute.xlu0 %570
      %572 = vrot.lane.b32.xlu0 %v493, 4
      %v573 = vpop.permute.xlu0 %572
      %574 = vrot.lane.b32.xlu0 %v496, 4
      %v575 = vpop.permute.xlu0 %574
      %576 = vrot.lane.b32.xlu0 %v498, 4
      %v577 = vpop.permute.xlu0 %576
      %578 = vrot.lane.b32.xlu0 %v501, 4
      %v579 = vpop.permute.xlu0 %578
      %580 = vrot.lane.b32.xlu0 %v503, 4
      %v581 = vpop.permute.xlu0 %580
      %582 = vrot.lane.b32.xlu0 %v506, 4
      %v583 = vpop.permute.xlu0 %582
      %584 = vrot.lane.b32.xlu0 %v508, 4
      %v585 = vpop.permute.xlu0 %584
      %586 = vrot.lane.b32.xlu0 %v511, 4
      %v587 = vpop.permute.xlu0 %586
      %588 = vrot.lane.b32.xlu0 %v513, 4
      %v589 = vpop.permute.xlu0 %588
      %590 = vrot.lane.b32.xlu0 %v516, 4
      %v591 = vpop.permute.xlu0 %590
      %592 = vrot.lane.b32.xlu0 %v518, 4
      %v593 = vpop.permute.xlu0 %592
      %594 = vrot.lane.b32.xlu0 %v521, 4
      %v595 = vpop.permute.xlu0 %594
      %596 = vrot.lane.b32.xlu0 %v523, 4
      %v597 = vpop.permute.xlu0 %596
      %598 = vrot.lane.b32.xlu0 %v526, 4
      %v599 = vpop.permute.xlu0 %598
      %600 = vrot.lane.b32.xlu0 %v528, 4
      %v601 = vpop.permute.xlu0 %600
      %602 = vrot.lane.b32.xlu0 %v531, 4
      %v603 = vpop.permute.xlu0 %602
      %604 = vrot.lane.b32.xlu0 %v533, 4
      %v605 = vpop.permute.xlu0 %604
      %vm642 = vcmask 1045504
      %v643 = vrot.slane %v335, 2
      %v644 = vrot.slane %v336, 2
      %v645 = vsel %vm642, %v643, %v644
      %v646 = vrot.slane %v337, 2
      %v647 = vsel %vm642, %v644, %v646
      %v648 = vrot.slane %v338, 2
      %v649 = vrot.slane %v339, 2
      %v650 = vsel %vm642, %v648, %v649
      %v651 = vrot.slane %v340, 2
      %v652 = vsel %vm642, %v649, %v651
      %v653 = vrot.slane %v341, 2
      %v654 = vrot.slane %v342, 2
      %v655 = vsel %vm642, %v653, %v654
      %v656 = vrot.slane %v343, 2
      %v657 = vsel %vm642, %v654, %v656
      %v658 = vrot.slane %v344, 2
      %v659 = vrot.slane %v345, 2
      %v660 = vsel %vm642, %v658, %v659
      %v661 = vrot.slane %v346, 2
      %v662 = vsel %vm642, %v659, %v661
      %v663 = vrot.slane %v347, 2
      %v664 = vrot.slane %v348, 2
      %v665 = vsel %vm642, %v663, %v664
      %v666 = vrot.slane %v349, 2
      %v667 = vsel %vm642, %v664, %v666
      %v668 = vrot.slane %v350, 2
      %v669 = vrot.slane %v351, 2
      %v670 = vsel %vm642, %v668, %v669
      %v671 = vrot.slane %v352, 2
      %v672 = vsel %vm642, %v669, %v671
      %v673 = vrot.slane %v353, 2
      %v674 = vrot.slane %v354, 2
      %v675 = vsel %vm642, %v673, %v674
      %v676 = vrot.slane %v355, 2
      %v677 = vsel %vm642, %v674, %v676
      %v678 = vrot.slane %v356, 2
      %v679 = vrot.slane %v357, 2
      %v680 = vsel %vm642, %v678, %v679
      %v681 = vrot.slane %v358, 2
      %v682 = vsel %vm642, %v679, %v681
      %v683 = vrot.slane %v359, 2
      %v684 = vrot.slane %v360, 2
      %v685 = vsel %vm642, %v683, %v684
      %v686 = vrot.slane %v361, 2
      %v687 = vsel %vm642, %v684, %v686
      %v688 = vrot.slane %v362, 2
      %v689 = vrot.slane %v363, 2
      %v690 = vsel %vm642, %v688, %v689
      %v691 = vrot.slane %v364, 2
      %v692 = vsel %vm642, %v689, %v691
      %v693 = vrot.slane %v365, 2
      %v694 = vrot.slane %v366, 2
      %v695 = vsel %vm642, %v693, %v694
      %v696 = vrot.slane %v367, 2
      %v697 = vsel %vm642, %v694, %v696
      %v698 = vrot.slane %v368, 2
      %v699 = vrot.slane %v369, 2
      %v700 = vsel %vm642, %v698, %v699
      %v701 = vrot.slane %v370, 2
      %v702 = vsel %vm642, %v699, %v701
      %v703 = vrot.slane %v371, 2
      %v704 = vrot.slane %v372, 2
      %v705 = vsel %vm642, %v703, %v704
      %v706 = vrot.slane %v373, 2
      %v707 = vsel %vm642, %v704, %v706
      %v708 = vrot.slane %v374, 2
      %v709 = vrot.slane %v375, 2
      %v710 = vsel %vm642, %v708, %v709
      %v711 = vrot.slane %v376, 2
      %v712 = vsel %vm642, %v709, %v711
      %v713 = vrot.slane %v377, 2
      %v714 = vrot.slane %v378, 2
      %v715 = vsel %vm642, %v713, %v714
      %v716 = vrot.slane %v379, 2
      %v717 = vsel %vm642, %v714, %v716
      %v718 = vrot.slane %v380, 2
      %v719 = vrot.slane %v381, 2
      %v720 = vsel %vm642, %v718, %v719
      %v721 = vrot.slane %v382, 2
      %v722 = vsel %vm642, %v719, %v721
      %v723 = vrot.slane %v383, 2
      %v724 = vrot.slane %v384, 2
      %v725 = vsel %vm642, %v723, %v724
      %v726 = vrot.slane %v385, 2
      %v727 = vsel %vm642, %v724, %v726
      %v728 = vrot.slane %v386, 2
      %v729 = vrot.slane %v387, 2
      %v730 = vsel %vm642, %v728, %v729
      %v731 = vrot.slane %v388, 2
      %v732 = vsel %vm642, %v729, %v731
      %733 = vrot.lane.b32.xlu0 %v645, 8
      %v734 = vpop.permute.xlu0 %733
      %735 = vrot.lane.b32.xlu0 %v647, 8
      %v736 = vpop.permute.xlu0 %735
      %737 = vrot.lane.b32.xlu0 %v650, 8
      %v738 = vpop.permute.xlu0 %737
      %739 = vrot.lane.b32.xlu0 %v652, 8
      %v740 = vpop.permute.xlu0 %739
      %741 = vrot.lane.b32.xlu0 %v655, 8
      %v742 = vpop.permute.xlu0 %741
      %743 = vrot.lane.b32.xlu0 %v657, 8
      %v744 = vpop.permute.xlu0 %743
      %745 = vrot.lane.b32.xlu0 %v660, 8
      %v746 = vpop.permute.xlu0 %745
      %747 = vrot.lane.b32.xlu0 %v662, 8
      %v748 = vpop.permute.xlu0 %747
      %749 = vrot.lane.b32.xlu0 %v665, 8
      %v750 = vpop.permute.xlu0 %749
      %751 = vrot.lane.b32.xlu0 %v667, 8
      %v752 = vpop.permute.xlu0 %751
      %753 = vrot.lane.b32.xlu0 %v670, 8
      %v754 = vpop.permute.xlu0 %753
      %755 = vrot.lane.b32.xlu0 %v672, 8
      %v756 = vpop.permute.xlu0 %755
      %757 = vrot.lane.b32.xlu0 %v675, 8
      %v758 = vpop.permute.xlu0 %757
      %759 = vrot.lane.b32.xlu0 %v677, 8
      %v760 = vpop.permute.xlu0 %759
      %761 = vrot.lane.b32.xlu0 %v680, 8
      %v762 = vpop.permute.xlu0 %761
      %763 = vrot.lane.b32.xlu0 %v682, 8
      %v764 = vpop.permute.xlu0 %763
      %765 = vrot.lane.b32.xlu0 %v685, 8
      %v766 = vpop.permute.xlu0 %765
      %767 = vrot.lane.b32.xlu0 %v687, 8
      %v768 = vpop.permute.xlu0 %767
      %769 = vrot.lane.b32.xlu0 %v690, 8
      %v770 = vpop.permute.xlu0 %769
      %771 = vrot.lane.b32.xlu0 %v692, 8
      %v772 = vpop.permute.xlu0 %771
      %773 = vrot.lane.b32.xlu0 %v695, 8
      %v774 = vpop.permute.xlu0 %773
      %775 = vrot.lane.b32.xlu0 %v697, 8
      %v776 = vpop.permute.xlu0 %775
      %777 = vrot.lane.b32.xlu0 %v700, 8
      %v778 = vpop.permute.xlu0 %777
      %779 = vrot.lane.b32.xlu0 %v702, 8
      %v780 = vpop.permute.xlu0 %779
      %781 = vrot.lane.b32.xlu0 %v705, 8
      %v782 = vpop.permute.xlu0 %781
      %783 = vrot.lane.b32.xlu0 %v707, 8
      %v784 = vpop.permute.xlu0 %783
      %785 = vrot.lane.b32.xlu0 %v710, 8
      %v786 = vpop.permute.xlu0 %785
      %787 = vrot.lane.b32.xlu0 %v712, 8
      %v788 = vpop.permute.xlu0 %787
      %789 = vrot.lane.b32.xlu0 %v715, 8
      %v790 = vpop.permute.xlu0 %789
      %791 = vrot.lane.b32.xlu0 %v717, 8
      %v792 = vpop.permute.xlu0 %791
      %793 = vrot.lane.b32.xlu0 %v720, 8
      %v794 = vpop.permute.xlu0 %793
      %795 = vrot.lane.b32.xlu0 %v722, 8
      %v796 = vpop.permute.xlu0 %795
      %797 = vrot.lane.b32.xlu0 %v725, 8
      %v798 = vpop.permute.xlu0 %797
      %799 = vrot.lane.b32.xlu0 %v727, 8
      %v800 = vpop.permute.xlu0 %799
      %801 = vrot.lane.b32.xlu0 %v730, 8
      %v802 = vpop.permute.xlu0 %801
      %803 = vrot.lane.b32.xlu0 %v732, 8
      %v804 = vpop.permute.xlu0 %803
      %v841 = vsel %vm182, %v335, %v535
      %v842 = vsel %vm182, %v336, %v537
      %v843 = vsel %vm182, %v338, %v539
      %v844 = vsel %vm182, %v339, %v541
      %v845 = vsel %vm182, %v341, %v543
      %v846 = vsel %vm182, %v342, %v545
      %v847 = vsel %vm182, %v344, %v547
      %v848 = vsel %vm182, %v345, %v549
      %v849 = vsel %vm182, %v347, %v551
      %v850 = vsel %vm182, %v348, %v553
      %v851 = vsel %vm182, %v350, %v555
      %v852 = vsel %vm182, %v351, %v557
      %v853 = vsel %vm182, %v353, %v559
      %v854 = vsel %vm182, %v354, %v561
      %v855 = vsel %vm182, %v356, %v563
      %v856 = vsel %vm182, %v357, %v565
      %v857 = vsel %vm182, %v359, %v567
      %v858 = vsel %vm182, %v360, %v569
      %v859 = vsel %vm182, %v362, %v571
      %v860 = vsel %vm182, %v363, %v573
      %v861 = vsel %vm182, %v365, %v575
      %v862 = vsel %vm182, %v366, %v577
      %v863 = vsel %vm182, %v368, %v579
      %v864 = vsel %vm182, %v369, %v581
      %v865 = vsel %vm182, %v371, %v583
      %v866 = vsel %vm182, %v372, %v585
      %v867 = vsel %vm182, %v374, %v587
      %v868 = vsel %vm182, %v375, %v589
      %v869 = vsel %vm182, %v377, %v591
      %v870 = vsel %vm182, %v378, %v593
      %v871 = vsel %vm182, %v380, %v595
      %v872 = vsel %vm182, %v381, %v597
      %v873 = vsel %vm182, %v383, %v599
      %v874 = vsel %vm182, %v384, %v601
      %v875 = vsel %vm182, %v386, %v603
      %v876 = vsel %vm182, %v387, %v605
      %vm877 = vcmask 64512
      %v878 = vsel %vm877, %v841, %v734
      %v879 = vsel %vm877, %v842, %v736
      %v880 = vsel %vm877, %v843, %v738
      %v881 = vsel %vm877, %v844, %v740
      %v882 = vsel %vm877, %v845, %v742
      %v883 = vsel %vm877, %v846, %v744
      %v884 = vsel %vm877, %v847, %v746
      %v885 = vsel %vm877, %v848, %v748
      %v886 = vsel %vm877, %v849, %v750
      %v887 = vsel %vm877, %v850, %v752
      %v888 = vsel %vm877, %v851, %v754
      %v889 = vsel %vm877, %v852, %v756
      %v890 = vsel %vm877, %v853, %v758
      %v891 = vsel %vm877, %v854, %v760
      %v892 = vsel %vm877, %v855, %v762
      %v893 = vsel %vm877, %v856, %v764
      %v894 = vsel %vm877, %v857, %v766
      %v895 = vsel %vm877, %v858, %v768
      %v896 = vsel %vm877, %v859, %v770
      %v897 = vsel %vm877, %v860, %v772
      %v898 = vsel %vm877, %v861, %v774
      %v899 = vsel %vm877, %v862, %v776
      %v900 = vsel %vm877, %v863, %v778
      %v901 = vsel %vm877, %v864, %v780
      %v902 = vsel %vm877, %v865, %v782
      %v903 = vsel %vm877, %v866, %v784
      %v904 = vsel %vm877, %v867, %v786
      %v905 = vsel %vm877, %v868, %v788
      %v906 = vsel %vm877, %v869, %v790
      %v907 = vsel %vm877, %v870, %v792
      %v908 = vsel %vm877, %v871, %v794
      %v909 = vsel %vm877, %v872, %v796
      %v910 = vsel %vm877, %v873, %v798
      %v911 = vsel %vm877, %v874, %v800
      %v912 = vsel %vm877, %v875, %v802
      %v913 = vsel %vm877, %v876, %v804
      %v914 = vpack.c.bf16 %v879, %v878
      %v915 = vpack.c.bf16 %v881, %v880
      %v916 = vpack.c.bf16 %v883, %v882
      %v917 = vpack.c.bf16 %v885, %v884
      %v918 = vpack.c.bf16 %v887, %v886
      %v919 = vpack.c.bf16 %v889, %v888
      %v920 = vpack.c.bf16 %v891, %v890
      %v921 = vpack.c.bf16 %v893, %v892
      %v922 = vpack.c.bf16 %v895, %v894
      %v923 = vpack.c.bf16 %v897, %v896
      %v924 = vpack.c.bf16 %v899, %v898
      %v925 = vpack.c.bf16 %v901, %v900
      %v926 = vpack.c.bf16 %v903, %v902
      %v927 = vpack.c.bf16 %v905, %v904
      %v928 = vpack.c.bf16 %v907, %v906
      %v929 = vpack.c.bf16 %v909, %v908
      %v930 = vpack.c.bf16 %v911, %v910
      %v931 = vpack.c.bf16 %v913, %v912
      %v932 = vld [vmem:[%s1] sm:$0xf]
      %v933 = vld [vmem:[%s1 + $0x4] sm:$0x3]
      %v934 = vld [vmem:[%s1 + $0x8] sm:$0xf]
      %v935 = vld [vmem:[%s1 + $0xc] sm:$0x3]
      %v936 = vld [vmem:[%s1 + $0x10] sm:$0xf]
      %v937 = vld [vmem:[%s1 + $0x14] sm:$0x3]
      %v940 = vunpack.c.l.b16 %v934
      %v941 = vunpack.c.l.b16 %v935
      %v942 = vpack.c.b16 %v941, %v940
      %vm943 = vcmask 97280
      %v945 = vsel %vm943, %v915, 0
      %v948 = vsel %vm943, %v916, 0
      %v951 = vsel %vm943, %v917, 0
      %v954 = vsel %vm943, %v918, 0
      %v957 = vsel %vm943, %v919, 0
      %v960 = vsel %vm943, %v920, 0
      %v963 = vsel %vm943, %v921, 0
      %v966 = vsel %vm943, %v922, 0
      %v969 = vsel %vm943, %v923, 0
      %v972 = vsel %vm943, %v924, 0
      %v975 = vsel %vm943, %v925, 0
      %v978 = vsel %vm943, %v926, 0
      %v981 = vsel %vm943, %v927, 0
      %v984 = vsel %vm943, %v928, 0
      %v987 = vsel %vm943, %v929, 0
      %v990 = vsel %vm943, %v930, 0
      %v993 = vsel %vm642, %v942, 0
      %995 = vmatprep.subr.bf16.mxu0 0
      %996 = vmatpush1.bf16.msra.mxu0 %v993
      %997 = vmatprep.subr.bf16.mxu0 0
      %998 = vmatpush1.bf16.msra.mxu0 0
      %999 = vmatprep.subr.bf16.mxu0 0
      %1000 = vmatpush1.bf16.msra.mxu0 0
      %1001 = vmatprep.subr.bf16.mxu0 0
      %1002 = vmatpush1.bf16.msra.mxu0 0
      %1003 = vmatprep.subr.bf16.mxu0 0
      %1004 = vmatpush1.bf16.msra.mxu0 0
      %1005 = vmatprep.subr.bf16.mxu0 0
      %1006 = vmatpush1.bf16.msra.mxu0 0
      %1007 = vmatprep.subr.bf16.mxu0 0
      %1008 = vmatpush1.bf16.msra.mxu0 0
      %1009 = vmatprep.subr.bf16.mxu0 0
      %1010 = vmatpush1.bf16.msra.mxu0 0
      %1011 = vmatprep.subr.bf16.mxu0 0
      %1012 = vmatpush1.bf16.msra.mxu0 0
      %1013 = vmatprep.subr.bf16.mxu0 0
      %1014 = vmatpush1.bf16.msra.mxu0 0
      %1015 = vmatprep.subr.bf16.mxu0 0
      %1016 = vmatpush1.bf16.msra.mxu0 0
      %1017 = vmatprep.subr.bf16.mxu0 0
      %1018 = vmatpush1.bf16.msra.mxu0 0
      %1019 = vmatprep.subr.bf16.mxu0 0
      %1020 = vmatpush1.bf16.msra.mxu0 0
      %1021 = vmatprep.subr.bf16.mxu0 0
      %1022 = vmatpush1.bf16.msra.mxu0 0
      %1023 = vmatprep.subr.bf16.mxu0 0
      %1024 = vmatpush1.bf16.msra.mxu0 0
      %1025 = vmatprep.subr.bf16.mxu0 0
      %1026 = vmatpush1.bf16.msra.mxu0 0
      %1027 = vmatprep.mubr.bf16.mxu0 0
      %1028 = vmatmul.mubr.bf16.gmra.mrb[0].mxu0 %v945
      %v1029 = vpop.f32.mrb[0].mxu0
      %v1030 = vadd.f32 0.0, %v1029
      %v1031 = vpop.f32.mrb[0].mxu0
      %v1032 = vpop.f32.mrb[0].mxu0
      %v1033 = vadd.f32 0.0, %v1032
      %v1034 = vpop.f32.mrb[0].mxu0
      %1035 = vmatprep.mubr.bf16.mxu0 0
      %1036 = vmatmul.mubr.bf16.gmra.mrb[0].mxu0 %v948
      %v1037 = vpop.f32.mrb[0].mxu0
      %v1038 = vadd.f32 0.0, %v1037
      %v1039 = vpop.f32.mrb[0].mxu0
      %v1040 = vpop.f32.mrb[0].mxu0
      %v1041 = vadd.f32 0.0, %v1040
      %v1042 = vpop.f32.mrb[0].mxu0
      %1043 = vmatprep.mubr.bf16.mxu0 0
      %1044 = vmatmul.mubr.bf16.gmra.mrb[0].mxu0 %v951
      %v1045 = vpop.f32.mrb[0].mxu0
      %v1046 = vadd.f32 0.0, %v1045
      %v1047 = vpop.f32.mrb[0].mxu0
      %v1048 = vpop.f32.mrb[0].mxu0
      %v1049 = vadd.f32 0.0, %v1048
      %v1050 = vpop.f32.mrb[0].mxu0
      %1051 = vmatprep.mubr.bf16.mxu0 0
      %1052 = vmatmul.mubr.bf16.gmra.mrb[0].mxu0 %v954
      %v1053 = vpop.f32.mrb[0].mxu0
      %v1054 = vadd.f32 0.0, %v1053
      %v1055 = vpop.f32.mrb[0].mxu0
      %v1056 = vpop.f32.mrb[0].mxu0
      %v1057 = vadd.f32 0.0, %v1056
      %v1058 = vpop.f32.mrb[0].mxu0
      %1059 = vmatprep.mubr.bf16.mxu0 0
      %1060 = vmatmul.mubr.bf16.gmra.mrb[0].mxu0 %v957
      %v1061 = vpop.f32.mrb[0].mxu0
      %v1062 = vadd.f32 0.0, %v1061
      %v1063 = vpop.f32.mrb[0].mxu0
      %v1064 = vpop.f32.mrb[0].mxu0
      %v1065 = vadd.f32 0.0, %v1064
      %v1066 = vpop.f32.mrb[0].mxu0
      %1067 = vmatprep.mubr.bf16.mxu0 0
      %1068 = vmatmul.mubr.bf16.gmra.mrb[0].mxu0 %v960
      %v1069 = vpop.f32.mrb[0].mxu0
      %v1070 = vadd.f32 0.0, %v1069
      %v1071 = vpop.f32.mrb[0].mxu0
      %v1072 = vpop.f32.mrb[0].mxu0
      %v1073 = vadd.f32 0.0, %v1072
      %v1074 = vpop.f32.mrb[0].mxu0
      %1075 = vmatprep.mubr.bf16.mxu0 0
      %1076 = vmatmul.mubr.bf16.gmra.mrb[0].mxu0 %v963
      %v1077 = vpop.f32.mrb[0].mxu0
      %v1078 = vadd.f32 0.0, %v1077
      %v1079 = vpop.f32.mrb[0].mxu0
      %v1080 = vpop.f32.mrb[0].mxu0
      %v1081 = vadd.f32 0.0, %v1080
      %v1082 = vpop.f32.mrb[0].mxu0
      %1083 = vmatprep.mubr.bf16.mxu0 0
      %1084 = vmatmul.mubr.bf16.gmra.mrb[0].mxu0 %v966
      %v1085 = vpop.f32.mrb[0].mxu0
      %v1086 = vadd.f32 0.0, %v1085
      %v1087 = vpop.f32.mrb[0].mxu0
      %v1088 = vpop.f32.mrb[0].mxu0
      %v1089 = vadd.f32 0.0, %v1088
      %v1090 = vpop.f32.mrb[0].mxu0
      %1091 = vmatprep.mubr.bf16.mxu0 0
      %1092 = vmatmul.mubr.bf16.gmra.mrb[0].mxu0 %v969
      %v1093 = vpop.f32.mrb[0].mxu0
      %v1094 = vadd.f32 0.0, %v1093
      %v1095 = vpop.f32.mrb[0].mxu0
      %v1096 = vpop.f32.mrb[0].mxu0
      %v1097 = vadd.f32 0.0, %v1096
      %v1098 = vpop.f32.mrb[0].mxu0
      %1099 = vmatprep.mubr.bf16.mxu0 0
      %1100 = vmatmul.mubr.bf16.gmra.mrb[0].mxu0 %v972
      %v1101 = vpop.f32.mrb[0].mxu0
      %v1102 = vadd.f32 0.0, %v1101
      %v1103 = vpop.f32.mrb[0].mxu0
      %v1104 = vpop.f32.mrb[0].mxu0
      %v1105 = vadd.f32 0.0, %v1104
      %v1106 = vpop.f32.mrb[0].mxu0
      %1107 = vmatprep.mubr.bf16.mxu0 0
      %1108 = vmatmul.mubr.bf16.gmra.mrb[0].mxu0 %v975
      %v1109 = vpop.f32.mrb[0].mxu0
      %v1110 = vadd.f32 0.0, %v1109
      %v1111 = vpop.f32.mrb[0].mxu0
      %v1112 = vpop.f32.mrb[0].mxu0
      %v1113 = vadd.f32 0.0, %v1112
      %v1114 = vpop.f32.mrb[0].mxu0
      %1115 = vmatprep.mubr.bf16.mxu0 0
      %1116 = vmatmul.mubr.bf16.gmra.mrb[0].mxu0 %v978
      %v1117 = vpop.f32.mrb[0].mxu0
      %v1118 = vadd.f32 0.0, %v1117
      %v1119 = vpop.f32.mrb[0].mxu0
      %v1120 = vpop.f32.mrb[0].mxu0
      %v1121 = vadd.f32 0.0, %v1120
      %v1122 = vpop.f32.mrb[0].mxu0
      %1123 = vmatprep.mubr.bf16.mxu0 0
      %1124 = vmatmul.mubr.bf16.gmra.mrb[0].mxu0 %v981
      %v1125 = vpop.f32.mrb[0].mxu0
      %v1126 = vadd.f32 0.0, %v1125
      %v1127 = vpop.f32.mrb[0].mxu0
      %v1128 = vpop.f32.mrb[0].mxu0
      %v1129 = vadd.f32 0.0, %v1128
      %v1130 = vpop.f32.mrb[0].mxu0
      %1131 = vmatprep.mubr.bf16.mxu0 0
      %1132 = vmatmul.mubr.bf16.gmra.mrb[0].mxu0 %v984
      %v1133 = vpop.f32.mrb[0].mxu0
      %v1134 = vadd.f32 0.0, %v1133
      %v1135 = vpop.f32.mrb[0].mxu0
      %v1136 = vpop.f32.mrb[0].mxu0
      %v1137 = vadd.f32 0.0, %v1136
      %v1138 = vpop.f32.mrb[0].mxu0
      %1139 = vmatprep.mubr.bf16.mxu0 0
      %1140 = vmatmul.mubr.bf16.gmra.mrb[0].mxu0 %v987
      %v1141 = vpop.f32.mrb[0].mxu0
      %v1142 = vadd.f32 0.0, %v1141
      %v1143 = vpop.f32.mrb[0].mxu0
      %v1144 = vpop.f32.mrb[0].mxu0
      %v1145 = vadd.f32 0.0, %v1144
      %v1146 = vpop.f32.mrb[0].mxu0
      %1147 = vmatprep.mubr.bf16.mxu0 0
      %1148 = vmatmul.mubr.bf16.gmra.mrb[0].mxu0 %v990
      %v1149 = vpop.f32.mrb[0].mxu0
      %v1150 = vadd.f32 0.0, %v1149
      %v1151 = vpop.f32.mrb[0].mxu0
      %v1152 = vpop.f32.mrb[0].mxu0
      %v1153 = vadd.f32 0.0, %v1152
      %v1154 = vpop.f32.mrb[0].mxu0
      %1155 = vdwg.mxu0
      %v1158 = vunpack.c.l.b16 %v932
      %v1159 = vunpack.c.l.b16 %v933
      %v1160 = vpack.c.b16 %v1159, %v1158
      %v1162 = vsel %vm943, %v914, 0
      %v1165 = vsel %vm642, %v1160, 0
      %1167 = vmatprep.subr.bf16.mxu0 0
      %1168 = vmatpush1.bf16.msra.mxu0 %v1165
      %1169 = vmatprep.subr.bf16.mxu0 0
      %1170 = vmatpush1.bf16.msra.mxu0 0
      %1171 = vmatprep.subr.bf16.mxu0 0
      %1172 = vmatpush1.bf16.msra.mxu0 0
      %1173 = vmatprep.subr.bf16.mxu0 0
      %1174 = vmatpush1.bf16.msra.mxu0 0
      %1175 = vmatprep.subr.bf16.mxu0 0
      %1176 = vmatpush1.bf16.msra.mxu0 0
      %1177 = vmatprep.subr.bf16.mxu0 0
      %1178 = vmatpush1.bf16.msra.mxu0 0
      %1179 = vmatprep.subr.bf16.mxu0 0
      %1180 = vmatpush1.bf16.msra.mxu0 0
      %1181 = vmatprep.subr.bf16.mxu0 0
      %1182 = vmatpush1.bf16.msra.mxu0 0
      %1183 = vmatprep.subr.bf16.mxu0 0
      %1184 = vmatpush1.bf16.msra.mxu0 0
      %1185 = vmatprep.subr.bf16.mxu0 0
      %1186 = vmatpush1.bf16.msra.mxu0 0
      %1187 = vmatprep.subr.bf16.mxu0 0
      %1188 = vmatpush1.bf16.msra.mxu0 0
      %1189 = vmatprep.subr.bf16.mxu0 0
      %1190 = vmatpush1.bf16.msra.mxu0 0
      %1191 = vmatprep.subr.bf16.mxu0 0
      %1192 = vmatpush1.bf16.msra.mxu0 0
      %1193 = vmatprep.subr.bf16.mxu0 0
      %1194 = vmatpush1.bf16.msra.mxu0 0
      %1195 = vmatprep.subr.bf16.mxu0 0
      %1196 = vmatpush1.bf16.msra.mxu0 0
      %1197 = vmatprep.subr.bf16.mxu0 0
      %1198 = vmatpush1.bf16.msra.mxu0 0
      %1199 = vmatprep.mubr.bf16.mxu0 0
      %1200 = vmatmul.mubr.bf16.gmra.mrb[0].mxu0 %v1162
      %v1201 = vpop.f32.mrb[0].mxu0
      %v1202 = vadd.f32 %v1030, %v1201
      %v1203 = vpop.f32.mrb[0].mxu0
      %v1204 = vpop.f32.mrb[0].mxu0
      %v1205 = vadd.f32 %v1033, %v1204
      %v1206 = vpop.f32.mrb[0].mxu0
      %1207 = vmatprep.mubr.bf16.mxu0 0
      %1208 = vmatmul.mubr.bf16.gmra.mrb[0].mxu0 %v945
      %v1209 = vpop.f32.mrb[0].mxu0
      %v1210 = vadd.f32 %v1038, %v1209
      %v1211 = vpop.f32.mrb[0].mxu0
      %v1212 = vpop.f32.mrb[0].mxu0
      %v1213 = vadd.f32 %v1041, %v1212
      %v1214 = vpop.f32.mrb[0].mxu0
      %1215 = vmatprep.mubr.bf16.mxu0 0
      %1216 = vmatmul.mubr.bf16.gmra.mrb[0].mxu0 %v948
      %v1217 = vpop.f32.mrb[0].mxu0
      %v1218 = vadd.f32 %v1046, %v1217
      %v1219 = vpop.f32.mrb[0].mxu0
      %v1220 = vpop.f32.mrb[0].mxu0
      %v1221 = vadd.f32 %v1049, %v1220
      %v1222 = vpop.f32.mrb[0].mxu0
      %1223 = vmatprep.mubr.bf16.mxu0 0
      %1224 = vmatmul.mubr.bf16.gmra.mrb[0].mxu0 %v951
      %v1225 = vpop.f32.mrb[0].mxu0
      %v1226 = vadd.f32 %v1054, %v1225
      %v1227 = vpop.f32.mrb[0].mxu0
      %v1228 = vpop.f32.mrb[0].mxu0
      %v1229 = vadd.f32 %v1057, %v1228
      %v1230 = vpop.f32.mrb[0].mxu0
      %1231 = vmatprep.mubr.bf16.mxu0 0
      %1232 = vmatmul.mubr.bf16.gmra.mrb[0].mxu0 %v954
      %v1233 = vpop.f32.mrb[0].mxu0
      %v1234 = vadd.f32 %v1062, %v1233
      %v1235 = vpop.f32.mrb[0].mxu0
      %v1236 = vpop.f32.mrb[0].mxu0
      %v1237 = vadd.f32 %v1065, %v1236
      %v1238 = vpop.f32.mrb[0].mxu0
      %1239 = vmatprep.mubr.bf16.mxu0 0
      %1240 = vmatmul.mubr.bf16.gmra.mrb[0].mxu0 %v957
      %v1241 = vpop.f32.mrb[0].mxu0
      %v1242 = vadd.f32 %v1070, %v1241
      %v1243 = vpop.f32.mrb[0].mxu0
      %v1244 = vpop.f32.mrb[0].mxu0
      %v1245 = vadd.f32 %v1073, %v1244
      %v1246 = vpop.f32.mrb[0].mxu0
      %1247 = vmatprep.mubr.bf16.mxu0 0
      %1248 = vmatmul.mubr.bf16.gmra.mrb[0].mxu0 %v960
      %v1249 = vpop.f32.mrb[0].mxu0
      %v1250 = vadd.f32 %v1078, %v1249
      %v1251 = vpop.f32.mrb[0].mxu0
      %v1252 = vpop.f32.mrb[0].mxu0
      %v1253 = vadd.f32 %v1081, %v1252
      %v1254 = vpop.f32.mrb[0].mxu0
      %1255 = vmatprep.mubr.bf16.mxu0 0
      %1256 = vmatmul.mubr.bf16.gmra.mrb[0].mxu0 %v963
      %v1257 = vpop.f32.mrb[0].mxu0
      %v1258 = vadd.f32 %v1086, %v1257
      %v1259 = vpop.f32.mrb[0].mxu0
      %v1260 = vpop.f32.mrb[0].mxu0
      %v1261 = vadd.f32 %v1089, %v1260
      %v1262 = vpop.f32.mrb[0].mxu0
      %1263 = vmatprep.mubr.bf16.mxu0 0
      %1264 = vmatmul.mubr.bf16.gmra.mrb[0].mxu0 %v966
      %v1265 = vpop.f32.mrb[0].mxu0
      %v1266 = vadd.f32 %v1094, %v1265
      %v1267 = vpop.f32.mrb[0].mxu0
      %v1268 = vpop.f32.mrb[0].mxu0
      %v1269 = vadd.f32 %v1097, %v1268
      %v1270 = vpop.f32.mrb[0].mxu0
      %1271 = vmatprep.mubr.bf16.mxu0 0
      %1272 = vmatmul.mubr.bf16.gmra.mrb[0].mxu0 %v969
      %v1273 = vpop.f32.mrb[0].mxu0
      %v1274 = vadd.f32 %v1102, %v1273
      %v1275 = vpop.f32.mrb[0].mxu0
      %v1276 = vpop.f32.mrb[0].mxu0
      %v1277 = vadd.f32 %v1105, %v1276
      %v1278 = vpop.f32.mrb[0].mxu0
      %1279 = vmatprep.mubr.bf16.mxu0 0
      %1280 = vmatmul.mubr.bf16.gmra.mrb[0].mxu0 %v972
      %v1281 = vpop.f32.mrb[0].mxu0
      %v1282 = vadd.f32 %v1110, %v1281
      %v1283 = vpop.f32.mrb[0].mxu0
      %v1284 = vpop.f32.mrb[0].mxu0
      %v1285 = vadd.f32 %v1113, %v1284
      %v1286 = vpop.f32.mrb[0].mxu0
      %1287 = vmatprep.mubr.bf16.mxu0 0
      %1288 = vmatmul.mubr.bf16.gmra.mrb[0].mxu0 %v975
      %v1289 = vpop.f32.mrb[0].mxu0
      %v1290 = vadd.f32 %v1118, %v1289
      %v1291 = vpop.f32.mrb[0].mxu0
      %v1292 = vpop.f32.mrb[0].mxu0
      %v1293 = vadd.f32 %v1121, %v1292
      %v1294 = vpop.f32.mrb[0].mxu0
      %1295 = vmatprep.mubr.bf16.mxu0 0
      %1296 = vmatmul.mubr.bf16.gmra.mrb[0].mxu0 %v978
      %v1297 = vpop.f32.mrb[0].mxu0
      %v1298 = vadd.f32 %v1126, %v1297
      %v1299 = vpop.f32.mrb[0].mxu0
      %v1300 = vpop.f32.mrb[0].mxu0
      %v1301 = vadd.f32 %v1129, %v1300
      %v1302 = vpop.f32.mrb[0].mxu0
      %1303 = vmatprep.mubr.bf16.mxu0 0
      %1304 = vmatmul.mubr.bf16.gmra.mrb[0].mxu0 %v981
      %v1305 = vpop.f32.mrb[0].mxu0
      %v1306 = vadd.f32 %v1134, %v1305
      %v1307 = vpop.f32.mrb[0].mxu0
      %v1308 = vpop.f32.mrb[0].mxu0
      %v1309 = vadd.f32 %v1137, %v1308
      %v1310 = vpop.f32.mrb[0].mxu0
      %1311 = vmatprep.mubr.bf16.mxu0 0
      %1312 = vmatmul.mubr.bf16.gmra.mrb[0].mxu0 %v984
      %v1313 = vpop.f32.mrb[0].mxu0
      %v1314 = vadd.f32 %v1142, %v1313
      %v1315 = vpop.f32.mrb[0].mxu0
      %v1316 = vpop.f32.mrb[0].mxu0
      %v1317 = vadd.f32 %v1145, %v1316
      %v1318 = vpop.f32.mrb[0].mxu0
      %1319 = vmatprep.mubr.bf16.mxu0 0
      %1320 = vmatmul.mubr.bf16.gmra.mrb[0].mxu0 %v987
      %v1321 = vpop.f32.mrb[0].mxu0
      %v1322 = vadd.f32 %v1150, %v1321
      %v1323 = vpop.f32.mrb[0].mxu0
      %v1324 = vpop.f32.mrb[0].mxu0
      %v1325 = vadd.f32 %v1153, %v1324
      %v1326 = vpop.f32.mrb[0].mxu0
      %1327 = vdwg.mxu0
      %v1330 = vunpack.c.l.b16 %v936
      %v1331 = vunpack.c.l.b16 %v937
      %v1332 = vpack.c.b16 %v1331, %v1330
      %v1334 = vsel %vm943, %v931, 0
      %v1337 = vsel %vm642, %v1332, 0
      %1339 = vmatprep.subr.bf16.mxu0 0
      %1340 = vmatpush1.bf16.msra.mxu0 %v1337
      %1341 = vmatprep.subr.bf16.mxu0 0
      %1342 = vmatpush1.bf16.msra.mxu0 0
      %1343 = vmatprep.subr.bf16.mxu0 0
      %1344 = vmatpush1.bf16.msra.mxu0 0
      %1345 = vmatprep.subr.bf16.mxu0 0
      %1346 = vmatpush1.bf16.msra.mxu0 0
      %1347 = vmatprep.subr.bf16.mxu0 0
      %1348 = vmatpush1.bf16.msra.mxu0 0
      %1349 = vmatprep.subr.bf16.mxu0 0
      %1350 = vmatpush1.bf16.msra.mxu0 0
      %1351 = vmatprep.subr.bf16.mxu0 0
      %1352 = vmatpush1.bf16.msra.mxu0 0
      %1353 = vmatprep.subr.bf16.mxu0 0
      %1354 = vmatpush1.bf16.msra.mxu0 0
      %1355 = vmatprep.subr.bf16.mxu0 0
      %1356 = vmatpush1.bf16.msra.mxu0 0
      %1357 = vmatprep.subr.bf16.mxu0 0
      %1358 = vmatpush1.bf16.msra.mxu0 0
      %1359 = vmatprep.subr.bf16.mxu0 0
      %1360 = vmatpush1.bf16.msra.mxu0 0
      %1361 = vmatprep.subr.bf16.mxu0 0
      %1362 = vmatpush1.bf16.msra.mxu0 0
      %1363 = vmatprep.subr.bf16.mxu0 0
      %1364 = vmatpush1.bf16.msra.mxu0 0
      %1365 = vmatprep.subr.bf16.mxu0 0
      %1366 = vmatpush1.bf16.msra.mxu0 0
      %1367 = vmatprep.subr.bf16.mxu0 0
      %1368 = vmatpush1.bf16.msra.mxu0 0
      %1369 = vmatprep.subr.bf16.mxu0 0
      %1370 = vmatpush1.bf16.msra.mxu0 0
      %1371 = vmatprep.mubr.bf16.mxu0 0
      %1372 = vmatmul.mubr.bf16.gmra.mrb[0].mxu0 %v948
      %v1373 = vpop.f32.mrb[0].mxu0
      %v1374 = vadd.f32 0.0, %v1373
      %v1375 = vpop.f32.mrb[0].mxu0
      %v1376 = vpop.f32.mrb[0].mxu0
      %v1377 = vadd.f32 0.0, %v1376
      %v1378 = vpop.f32.mrb[0].mxu0
      %1379 = vmatprep.mubr.bf16.mxu0 0
      %1380 = vmatmul.mubr.bf16.gmra.mrb[0].mxu0 %v951
      %v1381 = vpop.f32.mrb[0].mxu0
      %v1382 = vadd.f32 0.0, %v1381
      %v1383 = vpop.f32.mrb[0].mxu0
      %v1384 = vpop.f32.mrb[0].mxu0
      %v1385 = vadd.f32 0.0, %v1384
      %v1386 = vpop.f32.mrb[0].mxu0
      %1387 = vmatprep.mubr.bf16.mxu0 0
      %1388 = vmatmul.mubr.bf16.gmra.mrb[0].mxu0 %v954
      %v1389 = vpop.f32.mrb[0].mxu0
      %v1390 = vadd.f32 0.0, %v1389
      %v1391 = vpop.f32.mrb[0].mxu0
      %v1392 = vpop.f32.mrb[0].mxu0
      %v1393 = vadd.f32 0.0, %v1392
      %v1394 = vpop.f32.mrb[0].mxu0
      %1395 = vmatprep.mubr.bf16.mxu0 0
      %1396 = vmatmul.mubr.bf16.gmra.mrb[0].mxu0 %v957
      %v1397 = vpop.f32.mrb[0].mxu0
      %v1398 = vadd.f32 0.0, %v1397
      %v1399 = vpop.f32.mrb[0].mxu0
      %v1400 = vpop.f32.mrb[0].mxu0
      %v1401 = vadd.f32 0.0, %v1400
      %v1402 = vpop.f32.mrb[0].mxu0
      %1403 = vmatprep.mubr.bf16.mxu0 0
      %1404 = vmatmul.mubr.bf16.gmra.mrb[0].mxu0 %v960
      %v1405 = vpop.f32.mrb[0].mxu0
      %v1406 = vadd.f32 0.0, %v1405
      %v1407 = vpop.f32.mrb[0].mxu0
      %v1408 = vpop.f32.mrb[0].mxu0
      %v1409 = vadd.f32 0.0, %v1408
      %v1410 = vpop.f32.mrb[0].mxu0
      %1411 = vmatprep.mubr.bf16.mxu0 0
      %1412 = vmatmul.mubr.bf16.gmra.mrb[0].mxu0 %v963
      %v1413 = vpop.f32.mrb[0].mxu0
      %v1414 = vadd.f32 0.0, %v1413
      %v1415 = vpop.f32.mrb[0].mxu0
      %v1416 = vpop.f32.mrb[0].mxu0
      %v1417 = vadd.f32 0.0, %v1416
      %v1418 = vpop.f32.mrb[0].mxu0
      %1419 = vmatprep.mubr.bf16.mxu0 0
      %1420 = vmatmul.mubr.bf16.gmra.mrb[0].mxu0 %v966
      %v1421 = vpop.f32.mrb[0].mxu0
      %v1422 = vadd.f32 0.0, %v1421
      %v1423 = vpop.f32.mrb[0].mxu0
      %v1424 = vpop.f32.mrb[0].mxu0
      %v1425 = vadd.f32 0.0, %v1424
      %v1426 = vpop.f32.mrb[0].mxu0
      %1427 = vmatprep.mubr.bf16.mxu0 0
      %1428 = vmatmul.mubr.bf16.gmra.mrb[0].mxu0 %v969
      %v1429 = vpop.f32.mrb[0].mxu0
      %v1430 = vadd.f32 0.0, %v1429
      %v1431 = vpop.f32.mrb[0].mxu0
      %v1432 = vpop.f32.mrb[0].mxu0
      %v1433 = vadd.f32 0.0, %v1432
      %v1434 = vpop.f32.mrb[0].mxu0
      %1435 = vmatprep.mubr.bf16.mxu0 0
      %1436 = vmatmul.mubr.bf16.gmra.mrb[0].mxu0 %v972
      %v1437 = vpop.f32.mrb[0].mxu0
      %v1438 = vadd.f32 0.0, %v1437
      %v1439 = vpop.f32.mrb[0].mxu0
      %v1440 = vpop.f32.mrb[0].mxu0
      %v1441 = vadd.f32 0.0, %v1440
      %v1442 = vpop.f32.mrb[0].mxu0
      %1443 = vmatprep.mubr.bf16.mxu0 0
      %1444 = vmatmul.mubr.bf16.gmra.mrb[0].mxu0 %v975
      %v1445 = vpop.f32.mrb[0].mxu0
      %v1446 = vadd.f32 0.0, %v1445
      %v1447 = vpop.f32.mrb[0].mxu0
      %v1448 = vpop.f32.mrb[0].mxu0
      %v1449 = vadd.f32 0.0, %v1448
      %v1450 = vpop.f32.mrb[0].mxu0
      %1451 = vmatprep.mubr.bf16.mxu0 0
      %1452 = vmatmul.mubr.bf16.gmra.mrb[0].mxu0 %v978
      %v1453 = vpop.f32.mrb[0].mxu0
      %v1454 = vadd.f32 0.0, %v1453
      %v1455 = vpop.f32.mrb[0].mxu0
      %v1456 = vpop.f32.mrb[0].mxu0
      %v1457 = vadd.f32 0.0, %v1456
      %v1458 = vpop.f32.mrb[0].mxu0
      %1459 = vmatprep.mubr.bf16.mxu0 0
      %1460 = vmatmul.mubr.bf16.gmra.mrb[0].mxu0 %v981
      %v1461 = vpop.f32.mrb[0].mxu0
      %v1462 = vadd.f32 0.0, %v1461
      %v1463 = vpop.f32.mrb[0].mxu0
      %v1464 = vpop.f32.mrb[0].mxu0
      %v1465 = vadd.f32 0.0, %v1464
      %v1466 = vpop.f32.mrb[0].mxu0
      %1467 = vmatprep.mubr.bf16.mxu0 0
      %1468 = vmatmul.mubr.bf16.gmra.mrb[0].mxu0 %v984
      %v1469 = vpop.f32.mrb[0].mxu0
      %v1470 = vadd.f32 0.0, %v1469
      %v1471 = vpop.f32.mrb[0].mxu0
      %v1472 = vpop.f32.mrb[0].mxu0
      %v1473 = vadd.f32 0.0, %v1472
      %v1474 = vpop.f32.mrb[0].mxu0
      %1475 = vmatprep.mubr.bf16.mxu0 0
      %1476 = vmatmul.mubr.bf16.gmra.mrb[0].mxu0 %v987
      %v1477 = vpop.f32.mrb[0].mxu0
      %v1478 = vadd.f32 0.0, %v1477
      %v1479 = vpop.f32.mrb[0].mxu0
      %v1480 = vpop.f32.mrb[0].mxu0
      %v1481 = vadd.f32 0.0, %v1480
      %v1482 = vpop.f32.mrb[0].mxu0
      %1483 = vmatprep.mubr.bf16.mxu0 0
      %1484 = vmatmul.mubr.bf16.gmra.mrb[0].mxu0 %v990
      %v1485 = vpop.f32.mrb[0].mxu0
      %v1486 = vadd.f32 0.0, %v1485
      %v1487 = vpop.f32.mrb[0].mxu0
      %v1488 = vpop.f32.mrb[0].mxu0
      %v1489 = vadd.f32 0.0, %v1488
      %v1490 = vpop.f32.mrb[0].mxu0
      %1491 = vmatprep.mubr.bf16.mxu0 0
      %1492 = vmatmul.mubr.bf16.gmra.mrb[0].mxu0 %v1334
      %v1493 = vpop.f32.mrb[0].mxu0
      %v1494 = vadd.f32 0.0, %v1493
      %v1495 = vpop.f32.mrb[0].mxu0
      %v1496 = vpop.f32.mrb[0].mxu0
      %v1497 = vadd.f32 0.0, %v1496
      %v1498 = vpop.f32.mrb[0].mxu0
      %1499 = vdwg.mxu0
      %v1500 = vadd.f32 %v1202, %v1374
      %v1501 = vadd.f32 %v1205, %v1377
      %v1502 = vadd.f32 %v1210, %v1382
      %v1503 = vadd.f32 %v1213, %v1385
      %v1504 = vadd.f32 %v1218, %v1390
      %v1505 = vadd.f32 %v1221, %v1393
      %v1506 = vadd.f32 %v1226, %v1398
      %v1507 = vadd.f32 %v1229, %v1401
      %v1508 = vadd.f32 %v1234, %v1406
      %v1509 = vadd.f32 %v1237, %v1409
      %v1510 = vadd.f32 %v1242, %v1414
      %v1511 = vadd.f32 %v1245, %v1417
      %v1512 = vadd.f32 %v1250, %v1422
      %v1513 = vadd.f32 %v1253, %v1425
      %v1514 = vadd.f32 %v1258, %v1430
      %v1515 = vadd.f32 %v1261, %v1433
      %v1516 = vadd.f32 %v1266, %v1438
      %v1517 = vadd.f32 %v1269, %v1441
      %v1518 = vadd.f32 %v1274, %v1446
      %v1519 = vadd.f32 %v1277, %v1449
      %v1520 = vadd.f32 %v1282, %v1454
      %v1521 = vadd.f32 %v1285, %v1457
      %v1522 = vadd.f32 %v1290, %v1462
      %v1523 = vadd.f32 %v1293, %v1465
      %v1524 = vadd.f32 %v1298, %v1470
      %v1525 = vadd.f32 %v1301, %v1473
      %v1526 = vadd.f32 %v1306, %v1478
      %v1527 = vadd.f32 %v1309, %v1481
      %v1528 = vadd.f32 %v1314, %v1486
      %v1529 = vadd.f32 %v1317, %v1489
      %v1530 = vadd.f32 %v1322, %v1494
      %v1531 = vadd.f32 %v1325, %v1497
      %v1532 = vpack.c.bf16 %v1501, %v1500
      %v1533 = vpack.c.bf16 %v1503, %v1502
      %v1534 = vpack.c.bf16 %v1505, %v1504
      %v1535 = vpack.c.bf16 %v1507, %v1506
      %v1536 = vpack.c.bf16 %v1509, %v1508
      %v1537 = vpack.c.bf16 %v1511, %v1510
      %v1538 = vpack.c.bf16 %v1513, %v1512
      %v1539 = vpack.c.bf16 %v1515, %v1514
      %v1540 = vpack.c.bf16 %v1517, %v1516
      %v1541 = vpack.c.bf16 %v1519, %v1518
      %v1542 = vpack.c.bf16 %v1521, %v1520
      %v1543 = vpack.c.bf16 %v1523, %v1522
      %v1544 = vpack.c.bf16 %v1525, %v1524
      %v1545 = vpack.c.bf16 %v1527, %v1526
      %v1546 = vpack.c.bf16 %v1529, %v1528
      %v1547 = vpack.c.bf16 %v1531, %v1530
      %v1564 = vunpack.c.l.b16 %v1532
      %v1565 = vunpack.c.h.b16 %v1532
      %v1566 = vunpack.c.l.b16 %v1533
      %v1567 = vunpack.c.h.b16 %v1533
      %v1568 = vunpack.c.l.b16 %v1534
      %v1569 = vunpack.c.h.b16 %v1534
      %v1570 = vunpack.c.l.b16 %v1535
      %v1571 = vunpack.c.h.b16 %v1535
      %v1572 = vunpack.c.l.b16 %v1536
      %v1573 = vunpack.c.h.b16 %v1536
      %v1574 = vunpack.c.l.b16 %v1537
      %v1575 = vunpack.c.h.b16 %v1537
      %v1576 = vunpack.c.l.b16 %v1538
      %v1577 = vunpack.c.h.b16 %v1538
      %v1578 = vunpack.c.l.b16 %v1539
      %v1579 = vunpack.c.h.b16 %v1539
      %v1580 = vunpack.c.l.b16 %v1540
      %v1581 = vunpack.c.h.b16 %v1540
      %v1582 = vunpack.c.l.b16 %v1541
      %v1583 = vunpack.c.h.b16 %v1541
      %v1584 = vunpack.c.l.b16 %v1542
      %v1585 = vunpack.c.h.b16 %v1542
      %v1586 = vunpack.c.l.b16 %v1543
      %v1587 = vunpack.c.h.b16 %v1543
      %v1588 = vunpack.c.l.b16 %v1544
      %v1589 = vunpack.c.h.b16 %v1544
      %v1590 = vunpack.c.l.b16 %v1545
      %v1591 = vunpack.c.h.b16 %v1545
      %v1592 = vunpack.c.l.b16 %v1546
      %v1593 = vunpack.c.h.b16 %v1546
      %v1594 = vunpack.c.l.b16 %v1547
      %v1595 = vunpack.c.h.b16 %v1547
      %v1596 = vpack.c.b16 %v1564, %v1564
      %v1597 = vpack.c.b16 %v1565, %v1565
      %v1598 = vpack.c.b16 %v1566, %v1566
      %v1599 = vpack.c.b16 %v1567, %v1567
      %v1600 = vpack.c.b16 %v1568, %v1568
      %v1601 = vpack.c.b16 %v1569, %v1569
      %v1602 = vpack.c.b16 %v1570, %v1570
      %v1603 = vpack.c.b16 %v1571, %v1571
      %v1604 = vpack.c.b16 %v1572, %v1572
      %v1605 = vpack.c.b16 %v1573, %v1573
      %v1606 = vpack.c.b16 %v1574, %v1574
      %v1607 = vpack.c.b16 %v1575, %v1575
      %v1608 = vpack.c.b16 %v1576, %v1576
      %v1609 = vpack.c.b16 %v1577, %v1577
      %v1610 = vpack.c.b16 %v1578, %v1578
      %v1611 = vpack.c.b16 %v1579, %v1579
      %v1612 = vpack.c.b16 %v1580, %v1580
      %v1613 = vpack.c.b16 %v1581, %v1581
      %v1614 = vpack.c.b16 %v1582, %v1582
      %v1615 = vpack.c.b16 %v1583, %v1583
      %v1616 = vpack.c.b16 %v1584, %v1584
      %v1617 = vpack.c.b16 %v1585, %v1585
      %v1618 = vpack.c.b16 %v1586, %v1586
      %v1619 = vpack.c.b16 %v1587, %v1587
      %v1620 = vpack.c.b16 %v1588, %v1588
      %v1621 = vpack.c.b16 %v1589, %v1589
      %v1622 = vpack.c.b16 %v1590, %v1590
      %v1623 = vpack.c.b16 %v1591, %v1591
      %v1624 = vpack.c.b16 %v1592, %v1592
      %v1625 = vpack.c.b16 %v1593, %v1593
      %v1626 = vpack.c.b16 %v1594, %v1594
      %v1627 = vpack.c.b16 %v1595, %v1595
      %vm1660 = vcmask 60416
      %1661 = vst.msk [vmem:[%s176] sm:$0xf] %vm1660, %v1596
      %1662 = vst.msk [vmem:[%s176 + $0x4] sm:$0xf] %vm1660, %v1597
      %1663 = vst.msk [vmem:[%s176 + $0x8] sm:$0xf] %vm1660, %v1598
      %1664 = vst.msk [vmem:[%s176 + $0xc] sm:$0xf] %vm1660, %v1599
      %1665 = vst.msk [vmem:[%s176 + $0x10] sm:$0xf] %vm1660, %v1600
      %1666 = vst.msk [vmem:[%s176 + $0x14] sm:$0xf] %vm1660, %v1601
      %1667 = vst.msk [vmem:[%s176 + $0x18] sm:$0xf] %vm1660, %v1602
      %1668 = vst.msk [vmem:[%s176 + $0x1c] sm:$0xf] %vm1660, %v1603
      %1669 = vst.msk [vmem:[%s176 + $0x20] sm:$0xf] %vm1660, %v1604
      %1670 = vst.msk [vmem:[%s176 + $0x24] sm:$0xf] %vm1660, %v1605
      %1671 = vst.msk [vmem:[%s176 + $0x28] sm:$0xf] %vm1660, %v1606
      %1672 = vst.msk [vmem:[%s176 + $0x2c] sm:$0xf] %vm1660, %v1607
      %1673 = vst.msk [vmem:[%s176 + $0x30] sm:$0xf] %vm1660, %v1608
      %1674 = vst.msk [vmem:[%s176 + $0x34] sm:$0xf] %vm1660, %v1609
      %1675 = vst.msk [vmem:[%s176 + $0x38] sm:$0xf] %vm1660, %v1610
      %1676 = vst.msk [vmem:[%s176 + $0x3c] sm:$0xf] %vm1660, %v1611
      %1677 = vst.msk [vmem:[%s176 + $0x40] sm:$0xf] %vm1660, %v1612
      %1678 = vst.msk [vmem:[%s176 + $0x44] sm:$0xf] %vm1660, %v1613
      %1679 = vst.msk [vmem:[%s176 + $0x48] sm:$0xf] %vm1660, %v1614
      %1680 = vst.msk [vmem:[%s176 + $0x4c] sm:$0xf] %vm1660, %v1615
      %1681 = vst.msk [vmem:[%s176 + $0x50] sm:$0xf] %vm1660, %v1616
      %1682 = vst.msk [vmem:[%s176 + $0x54] sm:$0xf] %vm1660, %v1617
      %1683 = vst.msk [vmem:[%s176 + $0x58] sm:$0xf] %vm1660, %v1618
      %1684 = vst.msk [vmem:[%s176 + $0x5c] sm:$0xf] %vm1660, %v1619
      %1685 = vst.msk [vmem:[%s176 + $0x60] sm:$0xf] %vm1660, %v1620
      %1686 = vst.msk [vmem:[%s176 + $0x64] sm:$0xf] %vm1660, %v1621
      %1687 = vst.msk [vmem:[%s176 + $0x68] sm:$0xf] %vm1660, %v1622
      %1688 = vst.msk [vmem:[%s176 + $0x6c] sm:$0xf] %vm1660, %v1623
      %1689 = vst.msk [vmem:[%s176 + $0x70] sm:$0xf] %vm1660, %v1624
      %1690 = vst.msk [vmem:[%s176 + $0x74] sm:$0xf] %vm1660, %v1625
      %1691 = vst.msk [vmem:[%s176 + $0x78] sm:$0xf] %vm1660, %v1626
      %1692 = vst.msk [vmem:[%s176 + $0x7c] sm:$0xf] %vm1660, %v1627
      %v1693 = vsel %vm877, %v1500, 0.0
      %v1694 = vsel %vm877, %v1501, 0.0
      %v1695 = vadd.f32 %v1693, %v1694
      %v1696 = vsel %vm877, %v1502, 0.0
      %v1697 = vadd.f32 %v1695, %v1696
      %v1698 = vsel %vm877, %v1503, 0.0
      %v1699 = vadd.f32 %v1697, %v1698
      %v1700 = vsel %vm877, %v1504, 0.0
      %v1701 = vadd.f32 %v1699, %v1700
      %v1702 = vsel %vm877, %v1505, 0.0
      %v1703 = vadd.f32 %v1701, %v1702
      %v1704 = vsel %vm877, %v1506, 0.0
      %v1705 = vadd.f32 %v1703, %v1704
      %v1706 = vsel %vm877, %v1507, 0.0
      %v1707 = vadd.f32 %v1705, %v1706
      %v1708 = vsel %vm877, %v1508, 0.0
      %v1709 = vadd.f32 %v1707, %v1708
      %v1710 = vsel %vm877, %v1509, 0.0
      %v1711 = vadd.f32 %v1709, %v1710
      %v1712 = vsel %vm877, %v1510, 0.0
      %v1713 = vadd.f32 %v1711, %v1712
      %v1714 = vsel %vm877, %v1511, 0.0
      %v1715 = vadd.f32 %v1713, %v1714
      %v1716 = vsel %vm877, %v1512, 0.0
      %v1717 = vadd.f32 %v1715, %v1716
      %v1718 = vsel %vm877, %v1513, 0.0
      %v1719 = vadd.f32 %v1717, %v1718
      %v1720 = vsel %vm877, %v1514, 0.0
      %v1721 = vadd.f32 %v1719, %v1720
      %v1722 = vsel %vm877, %v1515, 0.0
      %v1723 = vadd.f32 %v1721, %v1722
      %v1724 = vsel %vm877, %v1516, 0.0
      %v1725 = vadd.f32 %v1723, %v1724
      %v1726 = vsel %vm877, %v1517, 0.0
      %v1727 = vadd.f32 %v1725, %v1726
      %v1728 = vsel %vm877, %v1518, 0.0
      %v1729 = vadd.f32 %v1727, %v1728
      %v1730 = vsel %vm877, %v1519, 0.0
      %v1731 = vadd.f32 %v1729, %v1730
      %v1732 = vsel %vm877, %v1520, 0.0
      %v1733 = vadd.f32 %v1731, %v1732
      %v1734 = vsel %vm877, %v1521, 0.0
      %v1735 = vadd.f32 %v1733, %v1734
      %v1736 = vsel %vm877, %v1522, 0.0
      %v1737 = vadd.f32 %v1735, %v1736
      %v1738 = vsel %vm877, %v1523, 0.0
      %v1739 = vadd.f32 %v1737, %v1738
      %v1740 = vsel %vm877, %v1524, 0.0
      %v1741 = vadd.f32 %v1739, %v1740
      %v1742 = vsel %vm877, %v1525, 0.0
      %v1743 = vadd.f32 %v1741, %v1742
      %v1744 = vsel %vm877, %v1526, 0.0
      %v1745 = vadd.f32 %v1743, %v1744
      %v1746 = vsel %vm877, %v1527, 0.0
      %v1747 = vadd.f32 %v1745, %v1746
      %v1748 = vsel %vm877, %v1528, 0.0
      %v1749 = vadd.f32 %v1747, %v1748
      %v1750 = vsel %vm877, %v1529, 0.0
      %v1751 = vadd.f32 %v1749, %v1750
      %v1752 = vsel %vm877, %v1530, 0.0
      %v1753 = vadd.f32 %v1751, %v1752
      %v1754 = vsel %vm877, %v1531, 0.0
      %v1755 = vadd.f32 %v1753, %v1754
      %v1756 = vrot.slane %v1755, 4
      %v1757 = vadd.f32 %v1755, %v1756
      %v1758 = vrot.slane %v1757, 2
      %v1759 = vadd.f32 %v1757, %v1758
      %v1760 = vrot.slane %v1759, 1
      %v1761 = vadd.f32 %v1759, %v1760
      %v1762 = vmul.f32 %v1500, %v1500
      %v1763 = vmul.f32 %v1501, %v1501
      %v1764 = vmul.f32 %v1502, %v1502
      %v1765 = vmul.f32 %v1503, %v1503
      %v1766 = vmul.f32 %v1504, %v1504
      %v1767 = vmul.f32 %v1505, %v1505
      %v1768 = vmul.f32 %v1506, %v1506
      %v1769 = vmul.f32 %v1507, %v1507
      %v1770 = vmul.f32 %v1508, %v1508
      %v1771 = vmul.f32 %v1509, %v1509
      %v1772 = vmul.f32 %v1510, %v1510
      %v1773 = vmul.f32 %v1511, %v1511
      %v1774 = vmul.f32 %v1512, %v1512
      %v1775 = vmul.f32 %v1513, %v1513
      %v1776 = vmul.f32 %v1514, %v1514
      %v1777 = vmul.f32 %v1515, %v1515
      %v1778 = vmul.f32 %v1516, %v1516
      %v1779 = vmul.f32 %v1517, %v1517
      %v1780 = vmul.f32 %v1518, %v1518
      %v1781 = vmul.f32 %v1519, %v1519
      %v1782 = vmul.f32 %v1520, %v1520
      %v1783 = vmul.f32 %v1521, %v1521
      %v1784 = vmul.f32 %v1522, %v1522
      %v1785 = vmul.f32 %v1523, %v1523
      %v1786 = vmul.f32 %v1524, %v1524
      %v1787 = vmul.f32 %v1525, %v1525
      %v1788 = vmul.f32 %v1526, %v1526
      %v1789 = vmul.f32 %v1527, %v1527
      %v1790 = vmul.f32 %v1528, %v1528
      %v1791 = vmul.f32 %v1529, %v1529
      %v1792 = vmul.f32 %v1530, %v1530
      %v1793 = vmul.f32 %v1531, %v1531
      %v1794 = vsel %vm877, %v1762, 0.0
      %v1795 = vsel %vm877, %v1763, 0.0
      %v1796 = vadd.f32 %v1794, %v1795
      %v1797 = vsel %vm877, %v1764, 0.0
      %v1798 = vadd.f32 %v1796, %v1797
      %v1799 = vsel %vm877, %v1765, 0.0
      %v1800 = vadd.f32 %v1798, %v1799
      %v1801 = vsel %vm877, %v1766, 0.0
      %v1802 = vadd.f32 %v1800, %v1801
      %v1803 = vsel %vm877, %v1767, 0.0
      %v1804 = vadd.f32 %v1802, %v1803
      %v1805 = vsel %vm877, %v1768, 0.0
      %v1806 = vadd.f32 %v1804, %v1805
      %v1807 = vsel %vm877, %v1769, 0.0
      %v1808 = vadd.f32 %v1806, %v1807
      %v1809 = vsel %vm877, %v1770, 0.0
      %v1810 = vadd.f32 %v1808, %v1809
      %v1811 = vsel %vm877, %v1771, 0.0
      %v1812 = vadd.f32 %v1810, %v1811
      %v1813 = vsel %vm877, %v1772, 0.0
      %v1814 = vadd.f32 %v1812, %v1813
      %v1815 = vsel %vm877, %v1773, 0.0
      %v1816 = vadd.f32 %v1814, %v1815
      %v1817 = vsel %vm877, %v1774, 0.0
      %v1818 = vadd.f32 %v1816, %v1817
      %v1819 = vsel %vm877, %v1775, 0.0
      %v1820 = vadd.f32 %v1818, %v1819
      %v1821 = vsel %vm877, %v1776, 0.0
      %v1822 = vadd.f32 %v1820, %v1821
      %v1823 = vsel %vm877, %v1777, 0.0
      %v1824 = vadd.f32 %v1822, %v1823
      %v1825 = vsel %vm877, %v1778, 0.0
      %v1826 = vadd.f32 %v1824, %v1825
      %v1827 = vsel %vm877, %v1779, 0.0
      %v1828 = vadd.f32 %v1826, %v1827
      %v1829 = vsel %vm877, %v1780, 0.0
      %v1830 = vadd.f32 %v1828, %v1829
      %v1831 = vsel %vm877, %v1781, 0.0
      %v1832 = vadd.f32 %v1830, %v1831
      %v1833 = vsel %vm877, %v1782, 0.0
      %v1834 = vadd.f32 %v1832, %v1833
      %v1835 = vsel %vm877, %v1783, 0.0
      %v1836 = vadd.f32 %v1834, %v1835
      %v1837 = vsel %vm877, %v1784, 0.0
      %v1838 = vadd.f32 %v1836, %v1837
      %v1839 = vsel %vm877, %v1785, 0.0
      %v1840 = vadd.f32 %v1838, %v1839
      %v1841 = vsel %vm877, %v1786, 0.0
      %v1842 = vadd.f32 %v1840, %v1841
      %v1843 = vsel %vm877, %v1787, 0.0
      %v1844 = vadd.f32 %v1842, %v1843
      %v1845 = vsel %vm877, %v1788, 0.0
      %v1846 = vadd.f32 %v1844, %v1845
      %v1847 = vsel %vm877, %v1789, 0.0
      %v1848 = vadd.f32 %v1846, %v1847
      %v1849 = vsel %vm877, %v1790, 0.0
      %v1850 = vadd.f32 %v1848, %v1849
      %v1851 = vsel %vm877, %v1791, 0.0
      %v1852 = vadd.f32 %v1850, %v1851
      %v1853 = vsel %vm877, %v1792, 0.0
      %v1854 = vadd.f32 %v1852, %v1853
      %v1855 = vsel %vm877, %v1793, 0.0
      %v1856 = vadd.f32 %v1854, %v1855
      %v1857 = vrot.slane %v1856, 4
      %v1858 = vadd.f32 %v1856, %v1857
      %v1859 = vrot.slane %v1858, 2
      %v1860 = vadd.f32 %v1858, %v1859
      %v1861 = vrot.slane %v1860, 1
      %v1862 = vadd.f32 %v1860, %v1861
      %1864 = vrot.lane.b32.xlu0 %v1862, 8
      %v1865 = vpop.permute.xlu0 %1864
      %v1867 = vsel %vm877, %v1761, %v1865
      %vm1868 = vcmask 122880
      %1869 = vst.msk [vmem:[%s180] sm:$0x1] %vm1868, %v1867
      %s1870 = smul.u32 32, %s15
      %p1871 = scmp.lt.s32.totalorder %s1870, 63
      %s1872 = scalar_select %p1871, %s1870, 63
      %s1873 = smul.addr %s1872, 4
      %s1874 = scalar_lea.vmem %s2, %s1873
      %p1875 = scmp.lt.s32.totalorder %s15, 1
      %s1876 = scalar_select %p1875, %s15, 1
      %s1877 = scalar_lea.vmem %s3, %s1876
      // Predicated region
      $region29: #{inception_forward.6} parent=27 // pred_check
        %p1878 = pneg %p80
      $region30: #{inception_forward.6} parent=27 // pred_check_branch
        %1880 = sbr.rel (%p1878) target = $region32
      $region31: #{inception_forward.6} parent=27 // pred_region
        %s1881 = smul.u32 32, %s15
      $region32: #{inception_forward.6} parent=27 // pred_fallthru
        _
      // Predicated region
      $region33: #{inception_forward.6} parent=27 // pred_check
        %p1882 = pneg %p106
      $region34: #{inception_forward.6} parent=27 // pred_check_branch
        %1884 = sbr.rel (%p1882) target = $region36
      $region35: #{inception_forward.6} parent=27 // pred_region
        _
      $region36: #{inception_forward.6} parent=27 // pred_fallthru
        _
    $region28: #{inception_forward.6} parent=5 // pred_fallthru
      _
    %p1885 = scmp.le.s32.totalorder 2, %s10
    // Predicated region
    $region37: #{inception_forward.6} parent=5 // pred_check
      %p1886 = pneg %p1885
    $region38: #{inception_forward.6} parent=5 // pred_check_branch
      %1888 = sbr.rel (%p1886) target = $region40
    $region39: #{inception_forward.6} parent=5 // pred_region
      %s1889 = ssub.s32 %s10, 2
      // Predicated region
      $region41: #{inception_forward.6} parent=39 // pred_check
        %p1890 = pneg %p86
      $region42: #{inception_forward.6} parent=39 // pred_check_branch
        %1892 = sbr.rel (%p1890) target = $region44
      $region43: #{inception_forward.6} parent=39 // pred_region
        %s1893 = smul.u32 32, %s16
        %p1894 = scmp.lt.s32.totalorder %s1893, 63
        %s1895 = scalar_select %p1894, %s1893, 63
        %s1896 = smul.addr %s1895, 4
        %s1897 = scalar_lea.vmem %s2, %s1896
      $region44: #{inception_forward.6} parent=39 // pred_fallthru
        _
      // Predicated region
      $region45: #{inception_forward.6} parent=39 // pred_check
        %p1898 = pneg %p112
      $region46: #{inception_forward.6} parent=39 // pred_check_branch
        %1900 = sbr.rel (%p1898) target = $region48
      $region47: #{inception_forward.6} parent=39 // pred_region
        %p1901 = scmp.lt.s32.totalorder %s16, 1
        %s1902 = scalar_select %p1901, %s16, 1
        %s1903 = scalar_lea.vmem %s3, %s1902
      $region48: #{inception_forward.6} parent=39 // pred_fallthru
        _
    $region40: #{inception_forward.6} parent=5 // pred_fallthru
      _
  $region6: #{inception_forward.6} parent=0 // loop_footer
    %s14 = sadd.s32 1, %s10
  $region7: #{inception_forward.6} parent=0 // loop_footer_branch
    %9 = sbr.rel target = $region3
  $region8: #{inception_forward.6} parent=0 // loop_exit
    _

// kernel: inception_forward.7
$region0: #{inception_forward.7}
  #allocation0 [shape = 'u32[]', space=smem, size = 0x4, offset = 0x4, fixed_abs, tag = 'smem constant byte address 0x4 - core index']
  #allocation1 [shape = 'u32[144,128]{1,0:T(1,128)}', space=vmem, size = 0x12000, scoped, tag = 'internal scratch']
  #allocation2 [shape = 'f32[20,20,4]{2,1,0:T(8,128)}', space=vmem, size = 0x3c000, scoped, tag = 'scratch operand']
  %s0 = inlined_call_operand.vmem [shape: bf16[2,16,16,4], index: 0, kind: input, shape index: {}]
  %s1 = inlined_call_operand.vmem [shape: bf16[5,20,8], index: 1, kind: input, shape index: {}]
  %s2 = inlined_call_operand.vmem [shape: bf16[512,8], index: 2, kind: output, shape index: {0}]
  %s3 = inlined_call_operand.vmem [shape: f32[2,1,16], index: 3, kind: output, shape index: {1}]
  %4 = xla_tuple %s2, %s3
  %s5 = sld [smem:[#allocation0]]
  $region49: #{inception_forward.7} parent=0
    _
  %s7 = ssub.s32 1, %s5
  %s8 = scalar_select 0, %s7, %s5
  loop: start=0, step=1, limit=4
  $region2: #{inception_forward.7} parent=0 // loop_pre_header
    _
  $region3: #{inception_forward.7} parent=0 // loop_header
    %s10 = sphi 0, %s14
    %p11 = scmp.ge.s32.totalorder %s10, 4
    %s20 = sphi 0, %s22
    %s23 = sphi 0, %s20
    %s24 = sphi 0, %s23
    %s40 = sphi 0, %s24
    %s44 = sphi 0, %s44
    %s46 = sphi 0, %s44
    %s47 = sphi 0, %s46
    %s61 = sphi 0, %s47
    %s67 = sphi 0, %s69
    %s70 = sphi 0, %s67
    %s71 = sphi 0, %s70
    %s87 = sphi 0, %s71
    %s93 = sphi 0, %s95
    %s96 = sphi 0, %s93
    %s97 = sphi 0, %s96
    %s113 = sphi 0, %s97
  $region4: #{inception_forward.7} parent=0 // loop_header_branch
    %13 = sbr.rel (%p11) target = $region8
  $region5: #{inception_forward.7} parent=0 // loop_body
    %s15 = ssub.s32 %s10, 1
    %s16 = ssub.s32 %s10, 2
    %s17 = sadd.s32 %s10, 1
    %s18 = ssub.s32 %s10, %s17
    %p19 = scmp.eq.s32.totalorder %s18, 0
    %s21 = sadd.s32 %s20, 1
    %s22 = scalar_select %p19, %s20, %s21
    %p25 = pneg %p19
    %p26 = scmp.eq.s32.totalorder %s10, 1
    %p27 = por %p25, %p26
    %p28 = scmp.ne.s32.totalorder %s20, %s23
    %p29 = scmp.eq.s32.totalorder %s10, 0
    %p30 = por %p28, %p29
    %p31 = scmp.ne.s32.totalorder %s20, %s23
    %p32 = scmp.eq.s32.totalorder %s15, 1
    %p33 = por %p31, %p32
    %p34 = scmp.ne.s32.totalorder %s23, %s24
    %p35 = scmp.eq.s32.totalorder %s15, 0
    %p36 = por %p34, %p35
    %p37 = scmp.ne.s32.totalorder %s23, %s24
    %p38 = scmp.eq.s32.totalorder %s16, 1
    %p39 = por %p37, %p38
    %p41 = scmp.ne.s32.totalorder %s24, %s40
    %p42 = scmp.eq.s32.totalorder %s16, 0
    %p43 = por %p41, %p42
    %s45 = sadd.s32 %s44, 1
    %p48 = scmp.eq.s32.totalorder %s10, 1
    %p49 = scmp.ne.s32.totalorder %s44, %s46
    %p50 = scmp.eq.s32.totalorder %s10, 0
    %p51 = por %p49, %p50
    %p52 = scmp.ne.s32.totalorder %s44, %s46
    %p53 = scmp.eq.s32.totalorder %s15, 1
    %p54 = por %p52, %p53
    %p55 = scmp.ne.s32.totalorder %s46, %s47
    %p56 = scmp.eq.s32.totalorder %s15, 0
    %p57 = por %p55, %p56
    %p58 = scmp.ne.s32.totalorder %s46, %s47
    %p59 = scmp.eq.s32.totalorder %s16, 1
    %p60 = por %p58, %p59
    %p62 = scmp.ne.s32.totalorder %s47, %s61
    %p63 = scmp.eq.s32.totalorder %s16, 0
    %p64 = por %p62, %p63
    %s65 = ssub.s32 %s10, %s17
    %p66 = scmp.eq.s32.totalorder %s65, 0
    %s68 = sadd.s32 %s67, 1
    %s69 = scalar_select %p66, %s67, %s68
    %p72 = pneg %p66
    %p73 = scmp.eq.s32.totalorder %s10, 1
    %p74 = por %p72, %p73
    %p75 = scmp.ne.s32.totalorder %s67, %s70
    %p76 = scmp.eq.s32.totalorder %s10, 0
    %p77 = por %p75, %p76
    %p78 = scmp.ne.s32.totalorder %s67, %s70
    %p79 = scmp.eq.s32.totalorder %s15, 1
    %p80 = por %p78, %p79
    %p81 = scmp.ne.s32.totalorder %s70, %s71
    %p82 = scmp.eq.s32.totalorder %s15, 0
    %p83 = por %p81, %p82
    %p84 = scmp.ne.s32.totalorder %s70, %s71
    %p85 = scmp.eq.s32.totalorder %s16, 1
    %p86 = por %p84, %p85
    %p88 = scmp.ne.s32.totalorder %s71, %s87
    %p89 = scmp.eq.s32.totalorder %s16, 0
    %p90 = por %p88, %p89
    %s91 = ssub.s32 %s10, %s17
    %p92 = scmp.eq.s32.totalorder %s91, 0
    %s94 = sadd.s32 %s93, 1
    %s95 = scalar_select %p92, %s93, %s94
    %p98 = pneg %p92
    %p99 = scmp.eq.s32.totalorder %s10, 1
    %p100 = por %p98, %p99
    %p101 = scmp.ne.s32.totalorder %s93, %s96
    %p102 = scmp.eq.s32.totalorder %s10, 0
    %p103 = por %p101, %p102
    %p104 = scmp.ne.s32.totalorder %s93, %s96
    %p105 = scmp.eq.s32.totalorder %s15, 1
    %p106 = por %p104, %p105
    %p107 = scmp.ne.s32.totalorder %s96, %s97
    %p108 = scmp.eq.s32.totalorder %s15, 0
    %p109 = por %p107, %p108
    %p110 = scmp.ne.s32.totalorder %s96, %s97
    %p111 = scmp.eq.s32.totalorder %s16, 1
    %p112 = por %p110, %p111
    %p114 = scmp.ne.s32.totalorder %s97, %s113
    %p115 = scmp.eq.s32.totalorder %s16, 0
    %p116 = por %p114, %p115
    %p117 = scmp.le.s32.totalorder 1, %s10
    %p118 = scmp.lt.s32.totalorder %s10, 3
    %p119 = pnand %p117, %p118
    %p120 = pneg %p119
    // Predicated region
    $region9: #{inception_forward.7} parent=5 // pred_check
      _
    $region10: #{inception_forward.7} parent=5 // pred_check_branch
      %122 = sbr.rel (%p119) target = $region12
    $region11: #{inception_forward.7} parent=5 // pred_region
      %s123 = ssub.s32 %s10, 1
      // Predicated region
      $region13: #{inception_forward.7} parent=11 // pred_check
        %p124 = pneg %p57
      $region14: #{inception_forward.7} parent=11 // pred_check_branch
        %126 = sbr.rel (%p124) target = $region16
      $region15: #{inception_forward.7} parent=11 // pred_region
        _
      $region16: #{inception_forward.7} parent=11 // pred_fallthru
        _
    $region12: #{inception_forward.7} parent=5 // pred_fallthru
      _
    %p127 = scmp.lt.s32.totalorder %s10, 2
    // Predicated region
    $region17: #{inception_forward.7} parent=5 // pred_check
      %p128 = pneg %p127
    $region18: #{inception_forward.7} parent=5 // pred_check_branch
      %130 = sbr.rel (%p128) target = $region20
    $region19: #{inception_forward.7} parent=5 // pred_region
      // Predicated region
      $region21: #{inception_forward.7} parent=19 // pred_check
        %p131 = pneg %p30
      $region22: #{inception_forward.7} parent=19 // pred_check_branch
        %133 = sbr.rel (%p131) target = $region24
      $region23: #{inception_forward.7} parent=19 // pred_region
        %p134 = scmp.lt.s32.totalorder %s10, 1
        %s135 = scalar_select %p134, %s10, 1
        %s136 = smul.addr %s135, 32
        %s137 = smul.addr %s136, 4
        %s138 = scalar_lea.vmem %s0, %s137
      $region24: #{inception_forward.7} parent=19 // pred_fallthru
        _
    $region20: #{inception_forward.7} parent=5 // pred_fallthru
      _
    %p139 = scmp.le.s32.totalorder 1, %s10
    %p140 = scmp.lt.s32.totalorder %s10, 3
    %p141 = pnand %p139, %p140
    %p142 = pneg %p141
    // Predicated region
    $region25: #{inception_forward.7} parent=5 // pred_check
      _
    $region26: #{inception_forward.7} parent=5 // pred_check_branch
      %144 = sbr.rel (%p141) target = $region28
    $region27: #{inception_forward.7} parent=5 // pred_region
      %s145 = ssub.s32 %s10, 1
      %p146 = scmp.lt.s32.totalorder %s15, 1
      %s147 = scalar_select %p146, %s15, 1
      %s148 = smul.addr %s147, 32
      %s149 = smul.addr %s148, 4
      %s150 = scalar_lea.vmem %s0, %s149
      %p151 = pneg %p36
      %p152 = pneg %p33
      %p153 = pneg %p57
      %p154 = pneg %p54
      %p155 = pneg %p83
      %p156 = pneg %p80
      %s157 = smul.u32 32, %s15
      %p158 = scmp.lt.s32.totalorder %s157, 63
      %s159 = scalar_select %p158, %s157, 63
      %s160 = smul.addr %s159, 4
      %s161 = scalar_lea.vmem %s2, %s160
      %p162 = pneg %p109
      %p163 = pneg %p106
      %p164 = scmp.lt.s32.totalorder %s15, 1
      %s165 = scalar_select %p164, %s15, 1
      %s166 = scalar_lea.vmem %s3, %s165
      %p167 = scmp.lt.s32.totalorder %s15, 1
      %s168 = scalar_select %p167, %s15, 1
      %s169 = smul.addr %s168, 32
      %s170 = smul.addr %s169, 4
      %s171 = scalar_lea.vmem %s0, %s170
      %s172 = smul.u32 32, %s15
      %p173 = scmp.lt.s32.totalorder %s172, 63
      %s174 = scalar_select %p173, %s172, 63
      %s175 = smul.addr %s174, 4
      %s176 = scalar_lea.vmem %s2, %s175
      %s177 = smul.u32 32, %s15
      %p178 = scmp.lt.s32.totalorder %s15, 1
      %s179 = scalar_select %p178, %s15, 1
      %s180 = scalar_lea.vmem %s3, %s179
      %vm182 = vcmask 31744
      %183 = vst.msk [vmem:[#allocation2] sm:$0xff] %vm182, 0.0
      %184 = vst.msk [vmem:[#allocation2 + $0x8] sm:$0xff] %vm182, 0.0
      %vm185 = vcmask 27648
      %186 = vst.msk [vmem:[#allocation2 + $0x10] sm:$0xf] %vm185, 0.0
      %187 = vst.msk [vmem:[#allocation2 + $0x18] sm:$0xff] %vm182, 0.0
      %188 = vst.msk [vmem:[#allocation2 + $0x20] sm:$0xff] %vm182, 0.0
      %189 = vst.msk [vmem:[#allocation2 + $0x28] sm:$0xf] %vm185, 0.0
      %190 = vst.msk [vmem:[#allocation2 + $0x30] sm:$0xff] %vm182, 0.0
      %191 = vst.msk [vmem:[#allocation2 + $0x38] sm:$0xff] %vm182, 0.0
      %192 = vst.msk [vmem:[#allocation2 + $0x40] sm:$0xf] %vm185, 0.0
      %193 = vst.msk [vmem:[#allocation2 + $0x48] sm:$0xff] %vm182, 0.0
      %194 = vst.msk [vmem:[#allocation2 + $0x50] sm:$0xff] %vm182, 0.0
      %195 = vst.msk [vmem:[#allocation2 + $0x58] sm:$0xf] %vm185, 0.0
      %196 = vst.msk [vmem:[#allocation2 + $0x60] sm:$0xff] %vm182, 0.0
      %197 = vst.msk [vmem:[#allocation2 + $0x68] sm:$0xff] %vm182, 0.0
      %198 = vst.msk [vmem:[#allocation2 + $0x70] sm:$0xf] %vm185, 0.0
      %199 = vst.msk [vmem:[#allocation2 + $0x78] sm:$0xff] %vm182, 0.0
      %200 = vst.msk [vmem:[#allocation2 + $0x80] sm:$0xff] %vm182, 0.0
      %201 = vst.msk [vmem:[#allocation2 + $0x88] sm:$0xf] %vm185, 0.0
      %202 = vst.msk [vmem:[#allocation2 + $0x90] sm:$0xff] %vm182, 0.0
      %203 = vst.msk [vmem:[#allocation2 + $0x98] sm:$0xff] %vm182, 0.0
      %204 = vst.msk [vmem:[#allocation2 + $0xa0] sm:$0xf] %vm185, 0.0
      %205 = vst.msk [vmem:[#allocation2 + $0xa8] sm:$0xff] %vm182, 0.0
      %206 = vst.msk [vmem:[#allocation2 + $0xb0] sm:$0xff] %vm182, 0.0
      %207 = vst.msk [vmem:[#allocation2 + $0xb8] sm:$0xf] %vm185, 0.0
      %208 = vst.msk [vmem:[#allocation2 + $0xc0] sm:$0xff] %vm182, 0.0
      %209 = vst.msk [vmem:[#allocation2 + $0xc8] sm:$0xff] %vm182, 0.0
      %210 = vst.msk [vmem:[#allocation2 + $0xd0] sm:$0xf] %vm185, 0.0
      %211 = vst.msk [vmem:[#allocation2 + $0xd8] sm:$0xff] %vm182, 0.0
      %212 = vst.msk [vmem:[#allocation2 + $0xe0] sm:$0xff] %vm182, 0.0
      %213 = vst.msk [vmem:[#allocation2 + $0xe8] sm:$0xf] %vm185, 0.0
      %214 = vst.msk [vmem:[#allocation2 + $0xf0] sm:$0xff] %vm182, 0.0
      %215 = vst.msk [vmem:[#allocation2 + $0xf8] sm:$0xff] %vm182, 0.0
      %216 = vst.msk [vmem:[#allocation2 + $0x100] sm:$0xf] %vm185, 0.0
      %217 = vst.msk [vmem:[#allocation2 + $0x108] sm:$0xff] %vm182, 0.0
      %218 = vst.msk [vmem:[#allocation2 + $0x110] sm:$0xff] %vm182, 0.0
      %219 = vst.msk [vmem:[#allocation2 + $0x118] sm:$0xf] %vm185, 0.0
      %220 = vst.msk [vmem:[#allocation2 + $0x120] sm:$0xff] %vm182, 0.0
      %221 = vst.msk [vmem:[#allocation2 + $0x128] sm:$0xff] %vm182, 0.0
      %222 = vst.msk [vmem:[#allocation2 + $0x130] sm:$0xf] %vm185, 0.0
      %223 = vst.msk [vmem:[#allocation2 + $0x138] sm:$0xff] %vm182, 0.0
      %224 = vst.msk [vmem:[#allocation2 + $0x140] sm:$0xff] %vm182, 0.0
      %225 = vst.msk [vmem:[#allocation2 + $0x148] sm:$0xf] %vm185, 0.0
      %226 = vst.msk [vmem:[#allocation2 + $0x150] sm:$0xff] %vm182, 0.0
      %227 = vst.msk [vmem:[#allocation2 + $0x158] sm:$0xff] %vm182, 0.0
      %228 = vst.msk [vmem:[#allocation2 + $0x160] sm:$0xf] %vm185, 0.0
      %229 = vst.msk [vmem:[#allocation2 + $0x168] sm:$0xff] %vm182, 0.0
      %230 = vst.msk [vmem:[#allocation2 + $0x170] sm:$0xff] %vm182, 0.0
      %231 = vst.msk [vmem:[#allocation2 + $0x178] sm:$0xf] %vm185, 0.0
      %232 = vst.msk [vmem:[#allocation2 + $0x180] sm:$0xff] %vm182, 0.0
      %233 = vst.msk [vmem:[#allocation2 + $0x188] sm:$0xff] %vm182, 0.0
      %234 = vst.msk [vmem:[#allocation2 + $0x190] sm:$0xf] %vm185, 0.0
      %235 = vst.msk [vmem:[#allocation2 + $0x198] sm:$0xff] %vm182, 0.0
      %236 = vst.msk [vmem:[#allocation2 + $0x1a0] sm:$0xff] %vm182, 0.0
      %237 = vst.msk [vmem:[#allocation2 + $0x1a8] sm:$0xf] %vm185, 0.0
      %238 = vst.msk [vmem:[#allocation2 + $0x1b0] sm:$0xff] %vm182, 0.0
      %239 = vst.msk [vmem:[#allocation2 + $0x1b8] sm:$0xff] %vm182, 0.0
      %240 = vst.msk [vmem:[#allocation2 + $0x1c0] sm:$0xf] %vm185, 0.0
      %241 = vst.msk [vmem:[#allocation2 + $0x1c8] sm:$0xff] %vm182, 0.0
      %242 = vst.msk [vmem:[#allocation2 + $0x1d0] sm:$0xff] %vm182, 0.0
      %243 = vst.msk [vmem:[#allocation2 + $0x1d8] sm:$0xf] %vm185, 0.0
      %v244 = vld [vmem:[%s171] sm:$0xf]
      %v245 = vld [vmem:[%s171 + $0x4] sm:$0xf]
      %v246 = vld [vmem:[%s171 + $0x8] sm:$0xf]
      %v247 = vld [vmem:[%s171 + $0xc] sm:$0xf]
      %v248 = vld [vmem:[%s171 + $0x10] sm:$0xf]
      %v249 = vld [vmem:[%s171 + $0x14] sm:$0xf]
      %v250 = vld [vmem:[%s171 + $0x18] sm:$0xf]
      %v251 = vld [vmem:[%s171 + $0x1c] sm:$0xf]
      %v252 = vld [vmem:[%s171 + $0x20] sm:$0xf]
      %v253 = vld [vmem:[%s171 + $0x24] sm:$0xf]
      %v254 = vld [vmem:[%s171 + $0x28] sm:$0xf]
      %v255 = vld [vmem:[%s171 + $0x2c] sm:$0xf]
      %v256 = vld [vmem:[%s171 + $0x30] sm:$0xf]
      %v257 = vld [vmem:[%s171 + $0x34] sm:$0xf]
      %v258 = vld [vmem:[%s171 + $0x38] sm:$0xf]
      %v259 = vld [vmem:[%s171 + $0x3c] sm:$0xf]
      %v260 = vld [vmem:[%s171 + $0x40] sm:$0xf]
      %v261 = vld [vmem:[%s171 + $0x44] sm:$0xf]
      %v262 = vld [vmem:[%s171 + $0x48] sm:$0xf]
      %v263 = vld [vmem:[%s171 + $0x4c] sm:$0xf]
      %v264 = vld [vmem:[%s171 + $0x50] sm:$0xf]
      %v265 = vld [vmem:[%s171 + $0x54] sm:$0xf]
      %v266 = vld [vmem:[%s171 + $0x58] sm:$0xf]
      %v267 = vld [vmem:[%s171 + $0x5c] sm:$0xf]
      %v268 = vld [vmem:[%s171 + $0x60] sm:$0xf]
      %v269 = vld [vmem:[%s171 + $0x64] sm:$0xf]
      %v270 = vld [vmem:[%s171 + $0x68] sm:$0xf]
      %v271 = vld [vmem:[%s171 + $0x6c] sm:$0xf]
      %v272 = vld [vmem:[%s171 + $0x70] sm:$0xf]
      %v273 = vld [vmem:[%s171 + $0x74] sm:$0xf]
      %v274 = vld [vmem:[%s171 + $0x78] sm:$0xf]
      %v275 = vld [vmem:[%s171 + $0x7c] sm:$0xf]
      %v276 = vunpack.c.l.bf16 %v244
      %v277 = vunpack.c.l.bf16 %v245
      %v278 = vunpack.c.l.bf16 %v246
      %v279 = vunpack.c.l.bf16 %v247
      %v280 = vunpack.c.l.bf16 %v248
      %v281 = vunpack.c.l.bf16 %v249
      %v282 = vunpack.c.l.bf16 %v250
      %v283 = vunpack.c.l.bf16 %v251
      %v284 = vunpack.c.l.bf16 %v252
      %v285 = vunpack.c.l.bf16 %v253
      %v286 = vunpack.c.l.bf16 %v254
      %v287 = vunpack.c.l.bf16 %v255
      %v288 = vunpack.c.l.bf16 %v256
      %v289 = vunpack.c.l.bf16 %v257
      %v290 = vunpack.c.l.bf16 %v258
      %v291 = vunpack.c.l.bf16 %v259
      %v292 = vunpack.c.l.bf16 %v260
      %v293 = vunpack.c.l.bf16 %v261
      %v294 = vunpack.c.l.bf16 %v262
      %v295 = vunpack.c.l.bf16 %v263
      %v296 = vunpack.c.l.bf16 %v264
      %v297 = vunpack.c.l.bf16 %v265
      %v298 = vunpack.c.l.bf16 %v266
      %v299 = vunpack.c.l.bf16 %v267
      %v300 = vunpack.c.l.bf16 %v268
      %v301 = vunpack.c.l.bf16 %v269
      %v302 = vunpack.c.l.bf16 %v270
      %v303 = vunpack.c.l.bf16 %v271
      %v304 = vunpack.c.l.bf16 %v272
      %v305 = vunpack.c.l.bf16 %v273
      %v306 = vunpack.c.l.bf16 %v274
      %v307 = vunpack.c.l.bf16 %v275
      %s308 = scalar_lea.vmem [#allocation2], 48
      %309 = vst.msk [vmem:[%s308 + $0x2] sm:$0xff] %vm182, %v276
      %310 = vst.msk [vmem:[%s308 + $0xa] sm:$0xff] %vm182, %v277
      %311 = vst.msk [vmem:[%s308 + $0x1a] sm:$0xff] %vm182, %v278
      %312 = vst.msk [vmem:[%s308 + $0x22] sm:$0xff] %vm182, %v279
      %313 = vst.msk [vmem:[%s308 + $0x32] sm:$0xff] %vm182, %v280
      %314 = vst.msk [vmem:[%s308 + $0x3a] sm:$0xff] %vm182, %v281
      %315 = vst.msk [vmem:[%s308 + $0x4a] sm:$0xff] %vm182, %v282
      %316 = vst.msk [vmem:[%s308 + $0x52] sm:$0xff] %vm182, %v283
      %317 = vst.msk [vmem:[%s308 + $0x62] sm:$0xff] %vm182, %v284
      %318 = vst.msk [vmem:[%s308 + $0x6a] sm:$0xff] %vm182, %v285
      %319 = vst.msk [vmem:[%s308 + $0x7a] sm:$0xff] %vm182, %v286
      %320 = vst.msk [vmem:[%s308 + $0x82] sm:$0xff] %vm182, %v287
      %321 = vst.msk [vmem:[%s308 + $0x92] sm:$0xff] %vm182, %v288
      %322 = vst.msk [vmem:[%s308 + $0x9a] sm:$0xff] %vm182, %v289
      %323 = vst.msk [vmem:[%s308 + $0xaa] sm:$0xff] %vm182, %v290
      %324 = vst.msk [vmem:[%s308 + $0xb2] sm:$0xff] %vm182, %v291
      %325 = vst.msk [vmem:[%s308 + $0xc2] sm:$0xff] %vm182, %v292
      %326 = vst.msk [vmem:[%s308 + $0xca] sm:$0xff] %vm182, %v293
      %327 = vst.msk [vmem:[%s308 + $0xda] sm:$0xff] %vm182, %v294
      %328 = vst.msk [vmem:[%s308 + $0xe2] sm:$0xff] %vm182, %v295
      %329 = vst.msk [vmem:[%s308 + $0xf2] sm:$0xff] %vm182, %v296
      %330 = vst.msk [vmem:[%s308 + $0xfa] sm:$0xff] %vm182, %v297
      %331 = vst.msk [vmem:[%s308 + $0x10a] sm:$0xff] %vm182, %v298
      %332 = vst.msk [vmem:[%s308 + $0x112] sm:$0xff] %vm182, %v299
      %333 = vst.msk [vmem:[%s308 + $0x122] sm:$0xff] %vm182, %v300
      %334 = vst.msk [vmem:[%s308 + $0x12a] sm:$0xff] %vm182, %v301
      %335 = vst.msk [vmem:[%s308 + $0x13a] sm:$0xff] %vm182, %v302
      %336 = vst.msk [vmem:[%s308 + $0x142] sm:$0xff] %vm182, %v303
      %337 = vst.msk [vmem:[%s308 + $0x152] sm:$0xff] %vm182, %v304
      %338 = vst.msk [vmem:[%s308 + $0x15a] sm:$0xff] %vm182, %v305
      %339 = vst.msk [vmem:[%s308 + $0x16a] sm:$0xff] %vm182, %v306
      %340 = vst.msk [vmem:[%s308 + $0x172] sm:$0xff] %vm182, %v307
      %v341 = vld [vmem:[#allocation2] sm:$0xff]
      %v342 = vld [vmem:[#allocation2 + $0x8] sm:$0xff]
      %v343 = vld [vmem:[#allocation2 + $0x10] sm:$0xf]
      %v344 = vld [vmem:[#allocation2 + $0x18] sm:$0xff]
      %v345 = vld [vmem:[#allocation2 + $0x20] sm:$0xff]
      %v346 = vld [vmem:[#allocation2 + $0x28] sm:$0xf]
      %v347 = vld [vmem:[#allocation2 + $0x30] sm:$0xff]
      %v348 = vld [vmem:[#allocation2 + $0x38] sm:$0xff]
      %v349 = vld [vmem:[#allocation2 + $0x40] sm:$0xf]
      %v350 = vld [vmem:[#allocation2 + $0x48] sm:$0xff]
      %v351 = vld [vmem:[#allocation2 + $0x50] sm:$0xff]
      %v352 = vld [vmem:[#allocation2 + $0x58] sm:$0xf]
      %v353 = vld [vmem:[#allocation2 + $0x60] sm:$0xff]
      %v354 = vld [vmem:[#allocation2 + $0x68] sm:$0xff]
      %v355 = vld [vmem:[#allocation2 + $0x70] sm:$0xf]
      %v356 = vld [vmem:[#allocation2 + $0x78] sm:$0xff]
      %v357 = vld [vmem:[#allocation2 + $0x80] sm:$0xff]
      %v358 = vld [vmem:[#allocation2 + $0x88] sm:$0xf]
      %v359 = vld [vmem:[#allocation2 + $0x90] sm:$0xff]
      %v360 = vld [vmem:[#allocation2 + $0x98] sm:$0xff]
      %v361 = vld [vmem:[#allocation2 + $0xa0] sm:$0xf]
      %v362 = vld [vmem:[#allocation2 + $0xa8] sm:$0xff]
      %v363 = vld [vmem:[#allocation2 + $0xb0] sm:$0xff]
      %v364 = vld [vmem:[#allocation2 + $0xb8] sm:$0xf]
      %v365 = vld [vmem:[#allocation2 + $0xc0] sm:$0xff]
      %v366 = vld [vmem:[#allocation2 + $0xc8] sm:$0xff]
      %v367 = vld [vmem:[#allocation2 + $0xd0] sm:$0xf]
      %v368 = vld [vmem:[#allocation2 + $0xd8] sm:$0xff]
      %v369 = vld [vmem:[#allocation2 + $0xe0] sm:$0xff]
      %v370 = vld [vmem:[#allocation2 + $0xe8] sm:$0xf]
      %v371 = vld [vmem:[#allocation2 + $0xf0] sm:$0xff]
      %v372 = vld [vmem:[#allocation2 + $0xf8] sm:$0xff]
      %v373 = vld [vmem:[#allocation2 + $0x100] sm:$0xf]
      %v374 = vld [vmem:[#allocation2 + $0x108] sm:$0xff]
      %v375 = vld [vmem:[#allocation2 + $0x110] sm:$0xff]
      %v376 = vld [vmem:[#allocation2 + $0x118] sm:$0xf]
      %v377 = vld [vmem:[#allocation2 + $0x120] sm:$0xff]
      %v378 = vld [vmem:[#allocation2 + $0x128] sm:$0xff]
      %v379 = vld [vmem:[#allocation2 + $0x130] sm:$0xf]
      %v380 = vld [vmem:[#allocation2 + $0x138] sm:$0xff]
      %v381 = vld [vmem:[#allocation2 + $0x140] sm:$0xff]
      %v382 = vld [vmem:[#allocation2 + $0x148] sm:$0xf]
      %v383 = vld [vmem:[#allocation2 + $0x150] sm:$0xff]
      %v384 = vld [vmem:[#allocation2 + $0x158] sm:$0xff]
      %v385 = vld [vmem:[#allocation2 + $0x160] sm:$0xf]
      %v386 = vld [vmem:[#allocation2 + $0x168] sm:$0xff]
      %v387 = vld [vmem:[#allocation2 + $0x170] sm:$0xff]
      %v388 = vld [vmem:[#allocation2 + $0x178] sm:$0xf]
      %v389 = vld [vmem:[#allocation2 + $0x180] sm:$0xff]
      %v390 = vld [vmem:[#allocation2 + $0x188] sm:$0xff]
      %v391 = vld [vmem:[#allocation2 + $0x190] sm:$0xf]
      %v392 = vld [vmem:[#allocation2 + $0x198] sm:$0xff]
      %v393 = vld [vmem:[#allocation2 + $0x1a0] sm:$0xff]
      %v394 = vld [vmem:[#allocation2 + $0x1a8] sm:$0xf]
      %v395 = vld [vmem:[#allocation2 + $0x1b0] sm:$0xff]
      %v396 = vld [vmem:[#allocation2 + $0x1b8] sm:$0xff]
      %v397 = vld [vmem:[#allocation2 + $0x1c0] sm:$0xf]
      %v398 = vld [vmem:[#allocation2 + $0x1c8] sm:$0xff]
      %v399 = vld [vmem:[#allocation2 + $0x1d0] sm:$0xff]
      %v400 = vld [vmem:[#allocation2 + $0x1d8] sm:$0xf]
      %vm461 = vcmask 1046528
      %v462 = vrot.slane %v341, 1
      %v463 = vrot.slane %v342, 1
      %v464 = vsel %vm461, %v462, %v463
      %v465 = vrot.slane %v343, 1
      %v466 = vsel %vm461, %v463, %v465
      %v467 = vrot.slane %v344, 1
      %v468 = vrot.slane %v345, 1
      %v469 = vsel %vm461, %v467, %v468
      %v470 = vrot.slane %v346, 1
      %v471 = vsel %vm461, %v468, %v470
      %v472 = vrot.slane %v347, 1
      %v473 = vrot.slane %v348, 1
      %v474 = vsel %vm461, %v472, %v473
      %v475 = vrot.slane %v349, 1
      %v476 = vsel %vm461, %v473, %v475
      %v477 = vrot.slane %v350, 1
      %v478 = vrot.slane %v351, 1
      %v479 = vsel %vm461, %v477, %v478
      %v480 = vrot.slane %v352, 1
      %v481 = vsel %vm461, %v478, %v480
      %v482 = vrot.slane %v353, 1
      %v483 = vrot.slane %v354, 1
      %v484 = vsel %vm461, %v482, %v483
      %v485 = vrot.slane %v355, 1
      %v486 = vsel %vm461, %v483, %v485
      %v487 = vrot.slane %v356, 1
      %v488 = vrot.slane %v357, 1
      %v489 = vsel %vm461, %v487, %v488
      %v490 = vrot.slane %v358, 1
      %v491 = vsel %vm461, %v488, %v490
      %v492 = vrot.slane %v359, 1
      %v493 = vrot.slane %v360, 1
      %v494 = vsel %vm461, %v492, %v493
      %v495 = vrot.slane %v361, 1
      %v496 = vsel %vm461, %v493, %v495
      %v497 = vrot.slane %v362, 1
      %v498 = vrot.slane %v363, 1
      %v499 = vsel %vm461, %v497, %v498
      %v500 = vrot.slane %v364, 1
      %v501 = vsel %vm461, %v498, %v500
      %v502 = vrot.slane %v365, 1
      %v503 = vrot.slane %v366, 1
      %v504 = vsel %vm461, %v502, %v503
      %v505 = vrot.slane %v367, 1
      %v506 = vsel %vm461, %v503, %v505
      %v507 = vrot.slane %v368, 1
      %v508 = vrot.slane %v369, 1
      %v509 = vsel %vm461, %v507, %v508
      %v510 = vrot.slane %v370, 1
      %v511 = vsel %vm461, %v508, %v510
      %v512 = vrot.slane %v371, 1
      %v513 = vrot.slane %v372, 1
      %v514 = vsel %vm461, %v512, %v513
      %v515 = vrot.slane %v373, 1
      %v516 = vsel %vm461, %v513, %v515
      %v517 = vrot.slane %v374, 1
      %v518 = vrot.slane %v375, 1
      %v519 = vsel %vm461, %v517, %v518
      %v520 = vrot.slane %v376, 1
      %v521 = vsel %vm461, %v518, %v520
      %v522 = vrot.slane %v377, 1
      %v523 = vrot.slane %v378, 1
      %v524 = vsel %vm461, %v522, %v523
      %v525 = vrot.slane %v379, 1
      %v526 = vsel %vm461, %v523, %v525
      %v527 = vrot.slane %v380, 1
      %v528 = vrot.slane %v381, 1
      %v529 = vsel %vm461, %v527, %v528
      %v530 = vrot.slane %v382, 1
      %v531 = vsel %vm461, %v528, %v530
      %v532 = vrot.slane %v383, 1
      %v533 = vrot.slane %v384, 1
      %v534 = vsel %vm461, %v532, %v533
      %v535 = vrot.slane %v385, 1
      %v536 = vsel %vm461, %v533, %v535
      %v537 = vrot.slane %v386, 1
      %v538 = vrot.slane %v387, 1
      %v539 = vsel %vm461, %v537, %v538
      %v540 = vrot.slane %v388, 1
      %v541 = vsel %vm461, %v538, %v540
      %v542 = vrot.slane %v389, 1
      %v543 = vrot.slane %v390, 1
      %v544 = vsel %vm461, %v542, %v543
      %v545 = vrot.slane %v391, 1
      %v546 = vsel %vm461, %v543, %v545
      %v547 = vrot.slane %v392, 1
      %v548 = vrot.slane %v393, 1
      %v549 = vsel %vm461, %v547, %v548
      %v550 = vrot.slane %v394, 1
      %v551 = vsel %vm461, %v548, %v550
      %v552 = vrot.slane %v395, 1
      %v553 = vrot.slane %v396, 1
      %v554 = vsel %vm461, %v552, %v553
      %v555 = vrot.slane %v397, 1
      %v556 = vsel %vm461, %v553, %v555
      %v557 = vrot.slane %v398, 1
      %v558 = vrot.slane %v399, 1
      %v559 = vsel %vm461, %v557, %v558
      %v560 = vrot.slane %v400, 1
      %v561 = vsel %vm461, %v558, %v560
      %562 = vrot.lane.b32.xlu0 %v464, 4
      %v563 = vpop.permute.xlu0 %562
      %564 = vrot.lane.b32.xlu0 %v466, 4
      %v565 = vpop.permute.xlu0 %564
      %566 = vrot.lane.b32.xlu0 %v469, 4
      %v567 = vpop.permute.xlu0 %566
      %568 = vrot.lane.b32.xlu0 %v471, 4
      %v569 = vpop.permute.xlu0 %568
      %570 = vrot.lane.b32.xlu0 %v474, 4
      %v571 = vpop.permute.xlu0 %570
      %572 = vrot.lane.b32.xlu0 %v476, 4
      %v573 = vpop.permute.xlu0 %572
      %574 = vrot.lane.b32.xlu0 %v479, 4
      %v575 = vpop.permute.xlu0 %574
      %576 = vrot.lane.b32.xlu0 %v481, 4
      %v577 = vpop.permute.xlu0 %576
      %578 = vrot.lane.b32.xlu0 %v484, 4
      %v579 = vpop.permute.xlu0 %578
      %580 = vrot.lane.b32.xlu0 %v486, 4
      %v581 = vpop.permute.xlu0 %580
      %582 = vrot.lane.b32.xlu0 %v489, 4
      %v583 = vpop.permute.xlu0 %582
      %584 = vrot.lane.b32.xlu0 %v491, 4
      %v585 = vpop.permute.xlu0 %584
      %586 = vrot.lane.b32.xlu0 %v494, 4
      %v587 = vpop.permute.xlu0 %586
      %588 = vrot.lane.b32.xlu0 %v496, 4
      %v589 = vpop.permute.xlu0 %588
      %590 = vrot.lane.b32.xlu0 %v499, 4
      %v591 = vpop.permute.xlu0 %590
      %592 = vrot.lane.b32.xlu0 %v501, 4
      %v593 = vpop.permute.xlu0 %592
      %594 = vrot.lane.b32.xlu0 %v504, 4
      %v595 = vpop.permute.xlu0 %594
      %596 = vrot.lane.b32.xlu0 %v506, 4
      %v597 = vpop.permute.xlu0 %596
      %598 = vrot.lane.b32.xlu0 %v509, 4
      %v599 = vpop.permute.xlu0 %598
      %600 = vrot.lane.b32.xlu0 %v511, 4
      %v601 = vpop.permute.xlu0 %600
      %602 = vrot.lane.b32.xlu0 %v514, 4
      %v603 = vpop.permute.xlu0 %602
      %604 = vrot.lane.b32.xlu0 %v516, 4
      %v605 = vpop.permute.xlu0 %604
      %606 = vrot.lane.b32.xlu0 %v519, 4
      %v607 = vpop.permute.xlu0 %606
      %608 = vrot.lane.b32.xlu0 %v521, 4
      %v609 = vpop.permute.xlu0 %608
      %610 = vrot.lane.b32.xlu0 %v524, 4
      %v611 = vpop.permute.xlu0 %610
      %612 = vrot.lane.b32.xlu0 %v526, 4
      %v613 = vpop.permute.xlu0 %612
      %614 = vrot.lane.b32.xlu0 %v529, 4
      %v615 = vpop.permute.xlu0 %614
      %616 = vrot.lane.b32.xlu0 %v531, 4
      %v617 = vpop.permute.xlu0 %616
      %618 = vrot.lane.b32.xlu0 %v534, 4
      %v619 = vpop.permute.xlu0 %618
      %620 = vrot.lane.b32.xlu0 %v536, 4
      %v621 = vpop.permute.xlu0 %620
      %622 = vrot.lane.b32.xlu0 %v539, 4
      %v623 = vpop.permute.xlu0 %622
      %624 = vrot.lane.b32.xlu0 %v541, 4
      %v625 = vpop.permute.xlu0 %624
      %626 = vrot.lane.b32.xlu0 %v544, 4
      %v627 = vpop.permute.xlu0 %626
      %628 = vrot.lane.b32.xlu0 %v546, 4
      %v629 = vpop.permute.xlu0 %628
      %630 = vrot.lane.b32.xlu0 %v549, 4
      %v631 = vpop.permute.xlu0 %630
      %632 = vrot.lane.b32.xlu0 %v551, 4
      %v633 = vpop.permute.xlu0 %632
      %634 = vrot.lane.b32.xlu0 %v554, 4
      %v635 = vpop.permute.xlu0 %634
      %636 = vrot.lane.b32.xlu0 %v556, 4
      %v637 = vpop.permute.xlu0 %636
      %638 = vrot.lane.b32.xlu0 %v559, 4
      %v639 = vpop.permute.xlu0 %638
      %640 = vrot.lane.b32.xlu0 %v561, 4
      %v641 = vpop.permute.xlu0 %640
      %vm682 = vcmask 1045504
      %v683 = vrot.slane %v341, 2
      %v684 = vrot.slane %v342, 2
      %v685 = vsel %vm682, %v683, %v684
      %v686 = vrot.slane %v343, 2
      %v687 = vsel %vm682, %v684, %v686
      %v688 = vrot.slane %v344, 2
      %v689 = vrot.slane %v345, 2
      %v690 = vsel %vm682, %v688, %v689
      %v691 = vrot.slane %v346, 2
      %v692 = vsel %vm682, %v689, %v691
      %v693 = vrot.slane %v347, 2
      %v694 = vrot.slane %v348, 2
      %v695 = vsel %vm682, %v693, %v694
      %v696 = vrot.slane %v349, 2
      %v697 = vsel %vm682, %v694, %v696
      %v698 = vrot.slane %v350, 2
      %v699 = vrot.slane %v351, 2
      %v700 = vsel %vm682, %v698, %v699
      %v701 = vrot.slane %v352, 2
      %v702 = vsel %vm682, %v699, %v701
      %v703 = vrot.slane %v353, 2
      %v704 = vrot.slane %v354, 2
      %v705 = vsel %vm682, %v703, %v704
      %v706 = vrot.slane %v355, 2
      %v707 = vsel %vm682, %v704, %v706
      %v708 = vrot.slane %v356, 2
      %v709 = vrot.slane %v357, 2
      %v710 = vsel %vm682, %v708, %v709
      %v711 = vrot.slane %v358, 2
      %v712 = vsel %vm682, %v709, %v711
      %v713 = vrot.slane %v359, 2
      %v714 = vrot.slane %v360, 2
      %v715 = vsel %vm682, %v713, %v714
      %v716 = vrot.slane %v361, 2
      %v717 = vsel %vm682, %v714, %v716
      %v718 = vrot.slane %v362, 2
      %v719 = vrot.slane %v363, 2
      %v720 = vsel %vm682, %v718, %v719
      %v721 = vrot.slane %v364, 2
      %v722 = vsel %vm682, %v719, %v721
      %v723 = vrot.slane %v365, 2
      %v724 = vrot.slane %v366, 2
      %v725 = vsel %vm682, %v723, %v724
      %v726 = vrot.slane %v367, 2
      %v727 = vsel %vm682, %v724, %v726
      %v728 = vrot.slane %v368, 2
      %v729 = vrot.slane %v369, 2
      %v730 = vsel %vm682, %v728, %v729
      %v731 = vrot.slane %v370, 2
      %v732 = vsel %vm682, %v729, %v731
      %v733 = vrot.slane %v371, 2
      %v734 = vrot.slane %v372, 2
      %v735 = vsel %vm682, %v733, %v734
      %v736 = vrot.slane %v373, 2
      %v737 = vsel %vm682, %v734, %v736
      %v738 = vrot.slane %v374, 2
      %v739 = vrot.slane %v375, 2
      %v740 = vsel %vm682, %v738, %v739
      %v741 = vrot.slane %v376, 2
      %v742 = vsel %vm682, %v739, %v741
      %v743 = vrot.slane %v377, 2
      %v744 = vrot.slane %v378, 2
      %v745 = vsel %vm682, %v743, %v744
      %v746 = vrot.slane %v379, 2
      %v747 = vsel %vm682, %v744, %v746
      %v748 = vrot.slane %v380, 2
      %v749 = vrot.slane %v381, 2
      %v750 = vsel %vm682, %v748, %v749
      %v751 = vrot.slane %v382, 2
      %v752 = vsel %vm682, %v749, %v751
      %v753 = vrot.slane %v383, 2
      %v754 = vrot.slane %v384, 2
      %v755 = vsel %vm682, %v753, %v754
      %v756 = vrot.slane %v385, 2
      %v757 = vsel %vm682, %v754, %v756
      %v758 = vrot.slane %v386, 2
      %v759 = vrot.slane %v387, 2
      %v760 = vsel %vm682, %v758, %v759
      %v761 = vrot.slane %v388, 2
      %v762 = vsel %vm682, %v759, %v761
      %v763 = vrot.slane %v389, 2
      %v764 = vrot.slane %v390, 2
      %v765 = vsel %vm682, %v763, %v764
      %v766 = vrot.slane %v391, 2
      %v767 = vsel %vm682, %v764, %v766
      %v768 = vrot.slane %v392, 2
      %v769 = vrot.slane %v393, 2
      %v770 = vsel %vm682, %v768, %v769
      %v771 = vrot.slane %v394, 2
      %v772 = vsel %vm682, %v769, %v771
      %v773 = vrot.slane %v395, 2
      %v774 = vrot.slane %v396, 2
      %v775 = vsel %vm682, %v773, %v774
      %v776 = vrot.slane %v397, 2
      %v777 = vsel %vm682, %v774, %v776
      %v778 = vrot.slane %v398, 2
      %v779 = vrot.slane %v399, 2
      %v780 = vsel %vm682, %v778, %v779
      %v781 = vrot.slane %v400, 2
      %v782 = vsel %vm682, %v779, %v781
      %783 = vrot.lane.b32.xlu0 %v685, 8
      %v784 = vpop.permute.xlu0 %783
      %785 = vrot.lane.b32.xlu0 %v687, 8
      %v786 = vpop.permute.xlu0 %785
      %787 = vrot.lane.b32.xlu0 %v690, 8
      %v788 = vpop.permute.xlu0 %787
      %789 = vrot.lane.b32.xlu0 %v692, 8
      %v790 = vpop.permute.xlu0 %789
      %791 = vrot.lane.b32.xlu0 %v695, 8
      %v792 = vpop.permute.xlu0 %791
      %793 = vrot.lane.b32.xlu0 %v697, 8
      %v794 = vpop.permute.xlu0 %793
      %795 = vrot.lane.b32.xlu0 %v700, 8
      %v796 = vpop.permute.xlu0 %795
      %797 = vrot.lane.b32.xlu0 %v702, 8
      %v798 = vpop.permute.xlu0 %797
      %799 = vrot.lane.b32.xlu0 %v705, 8
      %v800 = vpop.permute.xlu0 %799
      %801 = vrot.lane.b32.xlu0 %v707, 8
      %v802 = vpop.permute.xlu0 %801
      %803 = vrot.lane.b32.xlu0 %v710, 8
      %v804 = vpop.permute.xlu0 %803
      %805 = vrot.lane.b32.xlu0 %v712, 8
      %v806 = vpop.permute.xlu0 %805
      %807 = vrot.lane.b32.xlu0 %v715, 8
      %v808 = vpop.permute.xlu0 %807
      %809 = vrot.lane.b32.xlu0 %v717, 8
      %v810 = vpop.permute.xlu0 %809
      %811 = vrot.lane.b32.xlu0 %v720, 8
      %v812 = vpop.permute.xlu0 %811
      %813 = vrot.lane.b32.xlu0 %v722, 8
      %v814 = vpop.permute.xlu0 %813
      %815 = vrot.lane.b32.xlu0 %v725, 8
      %v816 = vpop.permute.xlu0 %815
      %817 = vrot.lane.b32.xlu0 %v727, 8
      %v818 = vpop.permute.xlu0 %817
      %819 = vrot.lane.b32.xlu0 %v730, 8
      %v820 = vpop.permute.xlu0 %819
      %821 = vrot.lane.b32.xlu0 %v732, 8
      %v822 = vpop.permute.xlu0 %821
      %823 = vrot.lane.b32.xlu0 %v735, 8
      %v824 = vpop.permute.xlu0 %823
      %825 = vrot.lane.b32.xlu0 %v737, 8
      %v826 = vpop.permute.xlu0 %825
      %827 = vrot.lane.b32.xlu0 %v740, 8
      %v828 = vpop.permute.xlu0 %827
      %829 = vrot.lane.b32.xlu0 %v742, 8
      %v830 = vpop.permute.xlu0 %829
      %831 = vrot.lane.b32.xlu0 %v745, 8
      %v832 = vpop.permute.xlu0 %831
      %833 = vrot.lane.b32.xlu0 %v747, 8
      %v834 = vpop.permute.xlu0 %833
      %835 = vrot.lane.b32.xlu0 %v750, 8
      %v836 = vpop.permute.xlu0 %835
      %837 = vrot.lane.b32.xlu0 %v752, 8
      %v838 = vpop.permute.xlu0 %837
      %839 = vrot.lane.b32.xlu0 %v755, 8
      %v840 = vpop.permute.xlu0 %839
      %841 = vrot.lane.b32.xlu0 %v757, 8
      %v842 = vpop.permute.xlu0 %841
      %843 = vrot.lane.b32.xlu0 %v760, 8
      %v844 = vpop.permute.xlu0 %843
      %845 = vrot.lane.b32.xlu0 %v762, 8
      %v846 = vpop.permute.xlu0 %845
      %847 = vrot.lane.b32.xlu0 %v765, 8
      %v848 = vpop.permute.xlu0 %847
      %849 = vrot.lane.b32.xlu0 %v767, 8
      %v850 = vpop.permute.xlu0 %849
      %851 = vrot.lane.b32.xlu0 %v770, 8
      %v852 = vpop.permute.xlu0 %851
      %853 = vrot.lane.b32.xlu0 %v772, 8
      %v854 = vpop.permute.xlu0 %853
      %855 = vrot.lane.b32.xlu0 %v775, 8
      %v856 = vpop.permute.xlu0 %855
      %857 = vrot.lane.b32.xlu0 %v777, 8
      %v858 = vpop.permute.xlu0 %857
      %859 = vrot.lane.b32.xlu0 %v780, 8
      %v860 = vpop.permute.xlu0 %859
      %861 = vrot.lane.b32.xlu0 %v782, 8
      %v862 = vpop.permute.xlu0 %861
      %vm903 = vcmask 1044480
      %v904 = vrot.slane %v341, 3
      %v905 = vrot.slane %v342, 3
      %v906 = vsel %vm903, %v904, %v905
      %v907 = vrot.slane %v343, 3
      %v908 = vsel %vm903, %v905, %v907
      %v909 = vrot.slane %v344, 3
      %v910 = vrot.slane %v345, 3
      %v911 = vsel %vm903, %v909, %v910
      %v912 = vrot.slane %v346, 3
      %v913 = vsel %vm903, %v910, %v912
      %v914 = vrot.slane %v347, 3
      %v915 = vrot.slane %v348, 3
      %v916 = vsel %vm903, %v914, %v915
      %v917 = vrot.slane %v349, 3
      %v918 = vsel %vm903, %v915, %v917
      %v919 = vrot.slane %v350, 3
      %v920 = vrot.slane %v351, 3
      %v921 = vsel %vm903, %v919, %v920
      %v922 = vrot.slane %v352, 3
      %v923 = vsel %vm903, %v920, %v922
      %v924 = vrot.slane %v353, 3
      %v925 = vrot.slane %v354, 3
      %v926 = vsel %vm903, %v924, %v925
      %v927 = vrot.slane %v355, 3
      %v928 = vsel %vm903, %v925, %v927
      %v929 = vrot.slane %v356, 3
      %v930 = vrot.slane %v357, 3
      %v931 = vsel %vm903, %v929, %v930
      %v932 = vrot.slane %v358, 3
      %v933 = vsel %vm903, %v930, %v932
      %v934 = vrot.slane %v359, 3
      %v935 = vrot.slane %v360, 3
      %v936 = vsel %vm903, %v934, %v935
      %v937 = vrot.slane %v361, 3
      %v938 = vsel %vm903, %v935, %v937
      %v939 = vrot.slane %v362, 3
      %v940 = vrot.slane %v363, 3
      %v941 = vsel %vm903, %v939, %v940
      %v942 = vrot.slane %v364, 3
      %v943 = vsel %vm903, %v940, %v942
      %v944 = vrot.slane %v365, 3
      %v945 = vrot.slane %v366, 3
      %v946 = vsel %vm903, %v944, %v945
      %v947 = vrot.slane %v367, 3
      %v948 = vsel %vm903, %v945, %v947
      %v949 = vrot.slane %v368, 3
      %v950 = vrot.slane %v369, 3
      %v951 = vsel %vm903, %v949, %v950
      %v952 = vrot.slane %v370, 3
      %v953 = vsel %vm903, %v950, %v952
      %v954 = vrot.slane %v371, 3
      %v955 = vrot.slane %v372, 3
      %v956 = vsel %vm903, %v954, %v955
      %v957 = vrot.slane %v373, 3
      %v958 = vsel %vm903, %v955, %v957
      %v959 = vrot.slane %v374, 3
      %v960 = vrot.slane %v375, 3
      %v961 = vsel %vm903, %v959, %v960
      %v962 = vrot.slane %v376, 3
      %v963 = vsel %vm903, %v960, %v962
      %v964 = vrot.slane %v377, 3
      %v965 = vrot.slane %v378, 3
      %v966 = vsel %vm903, %v964, %v965
      %v967 = vrot.slane %v379, 3
      %v968 = vsel %vm903, %v965, %v967
      %v969 = vrot.slane %v380, 3
      %v970 = vrot.slane %v381, 3
      %v971 = vsel %vm903, %v969, %v970
      %v972 = vrot.slane %v382, 3
      %v973 = vsel %vm903, %v970, %v972
      %v974 = vrot.slane %v383, 3
      %v975 = vrot.slane %v384, 3
      %v976 = vsel %vm903, %v974, %v975
      %v977 = vrot.slane %v385, 3
      %v978 = vsel %vm903, %v975, %v977
      %v979 = vrot.slane %v386, 3
      %v980 = vrot.slane %v387, 3
      %v981 = vsel %vm903, %v979, %v980
      %v982 = vrot.slane %v388, 3
      %v983 = vsel %vm903, %v980, %v982
      %v984 = vrot.slane %v389, 3
      %v985 = vrot.slane %v390, 3
      %v986 = vsel %vm903, %v984, %v985
      %v987 = vrot.slane %v391, 3
      %v988 = vsel %vm903, %v985, %v987
      %v989 = vrot.slane %v392, 3
      %v990 = vrot.slane %v393, 3
      %v991 = vsel %vm903, %v989, %v990
      %v992 = vrot.slane %v394, 3
      %v993 = vsel %vm903, %v990, %v992
      %v994 = vrot.slane %v395, 3
      %v995 = vrot.slane %v396, 3
      %v996 = vsel %vm903, %v994, %v995
      %v997 = vrot.slane %v397, 3
      %v998 = vsel %vm903, %v995, %v997
      %v999 = vrot.slane %v398, 3
      %v1000 = vrot.slane %v399, 3
      %v1001 = vsel %vm903, %v999, %v1000
      %v1002 = vrot.slane %v400, 3
      %v1003 = vsel %vm903, %v1000, %v1002
      %1004 = vrot.lane.b32.xlu0 %v906, 12
      %v1005 = vpop.permute.xlu0 %1004
      %1006 = vrot.lane.b32.xlu0 %v908, 12
      %v1007 = vpop.permute.xlu0 %1006
      %1008 = vrot.lane.b32.xlu0 %v911, 12
      %v1009 = vpop.permute.xlu0 %1008
      %1010 = vrot.lane.b32.xlu0 %v913, 12
      %v1011 = vpop.permute.xlu0 %1010
      %1012 = vrot.lane.b32.xlu0 %v916, 12
      %v1013 = vpop.permute.xlu0 %1012
      %1014 = vrot.lane.b32.xlu0 %v918, 12
      %v1015 = vpop.permute.xlu0 %1014
      %1016 = vrot.lane.b32.xlu0 %v921, 12
      %v1017 = vpop.permute.xlu0 %1016
      %1018 = vrot.lane.b32.xlu0 %v923, 12
      %v1019 = vpop.permute.xlu0 %1018
      %1020 = vrot.lane.b32.xlu0 %v926, 12
      %v1021 = vpop.permute.xlu0 %1020
      %1022 = vrot.lane.b32.xlu0 %v928, 12
      %v1023 = vpop.permute.xlu0 %1022
      %1024 = vrot.lane.b32.xlu0 %v931, 12
      %v1025 = vpop.permute.xlu0 %1024
      %1026 = vrot.lane.b32.xlu0 %v933, 12
      %v1027 = vpop.permute.xlu0 %1026
      %1028 = vrot.lane.b32.xlu0 %v936, 12
      %v1029 = vpop.permute.xlu0 %1028
      %1030 = vrot.lane.b32.xlu0 %v938, 12
      %v1031 = vpop.permute.xlu0 %1030
      %1032 = vrot.lane.b32.xlu0 %v941, 12
      %v1033 = vpop.permute.xlu0 %1032
      %1034 = vrot.lane.b32.xlu0 %v943, 12
      %v1035 = vpop.permute.xlu0 %1034
      %1036 = vrot.lane.b32.xlu0 %v946, 12
      %v1037 = vpop.permute.xlu0 %1036
      %1038 = vrot.lane.b32.xlu0 %v948, 12
      %v1039 = vpop.permute.xlu0 %1038
      %1040 = vrot.lane.b32.xlu0 %v951, 12
      %v1041 = vpop.permute.xlu0 %1040
      %1042 = vrot.lane.b32.xlu0 %v953, 12
      %v1043 = vpop.permute.xlu0 %1042
      %1044 = vrot.lane.b32.xlu0 %v956, 12
      %v1045 = vpop.permute.xlu0 %1044
      %1046 = vrot.lane.b32.xlu0 %v958, 12
      %v1047 = vpop.permute.xlu0 %1046
      %1048 = vrot.lane.b32.xlu0 %v961, 12
      %v1049 = vpop.permute.xlu0 %1048
      %1050 = vrot.lane.b32.xlu0 %v963, 12
      %v1051 = vpop.permute.xlu0 %1050
      %1052 = vrot.lane.b32.xlu0 %v966, 12
      %v1053 = vpop.permute.xlu0 %1052
      %1054 = vrot.lane.b32.xlu0 %v968, 12
      %v1055 = vpop.permute.xlu0 %1054
      %1056 = vrot.lane.b32.xlu0 %v971, 12
      %v1057 = vpop.permute.xlu0 %1056
      %1058 = vrot.lane.b32.xlu0 %v973, 12
      %v1059 = vpop.permute.xlu0 %1058
      %1060 = vrot.lane.b32.xlu0 %v976, 12
      %v1061 = vpop.permute.xlu0 %1060
      %1062 = vrot.lane.b32.xlu0 %v978, 12
      %v1063 = vpop.permute.xlu0 %1062
      %1064 = vrot.lane.b32.xlu0 %v981, 12
      %v1065 = vpop.permute.xlu0 %1064
      %1066 = vrot.lane.b32.xlu0 %v983, 12
      %v1067 = vpop.permute.xlu0 %1066
      %1068 = vrot.lane.b32.xlu0 %v986, 12
      %v1069 = vpop.permute.xlu0 %1068
      %1070 = vrot.lane.b32.xlu0 %v988, 12
      %v1071 = vpop.permute.xlu0 %1070
      %1072 = vrot.lane.b32.xlu0 %v991, 12
      %v1073 = vpop.permute.xlu0 %1072
      %1074 = vrot.lane.b32.xlu0 %v993, 12
      %v1075 = vpop.permute.xlu0 %1074
      %1076 = vrot.lane.b32.xlu0 %v996, 12
      %v1077 = vpop.permute.xlu0 %1076
      %1078 = vrot.lane.b32.xlu0 %v998, 12
      %v1079 = vpop.permute.xlu0 %1078
      %1080 = vrot.lane.b32.xlu0 %v1001, 12
      %v1081 = vpop.permute.xlu0 %1080
      %1082 = vrot.lane.b32.xlu0 %v1003, 12
      %v1083 = vpop.permute.xlu0 %1082
      %vm1124 = vcmask 1043456
      %v1125 = vrot.slane %v341, 4
      %v1126 = vrot.slane %v342, 4
      %v1127 = vsel %vm1124, %v1125, %v1126
      %v1128 = vrot.slane %v343, 4
      %v1129 = vsel %vm1124, %v1126, %v1128
      %v1130 = vrot.slane %v344, 4
      %v1131 = vrot.slane %v345, 4
      %v1132 = vsel %vm1124, %v1130, %v1131
      %v1133 = vrot.slane %v346, 4
      %v1134 = vsel %vm1124, %v1131, %v1133
      %v1135 = vrot.slane %v347, 4
      %v1136 = vrot.slane %v348, 4
      %v1137 = vsel %vm1124, %v1135, %v1136
      %v1138 = vrot.slane %v349, 4
      %v1139 = vsel %vm1124, %v1136, %v1138
      %v1140 = vrot.slane %v350, 4
      %v1141 = vrot.slane %v351, 4
      %v1142 = vsel %vm1124, %v1140, %v1141
      %v1143 = vrot.slane %v352, 4
      %v1144 = vsel %vm1124, %v1141, %v1143
      %v1145 = vrot.slane %v353, 4
      %v1146 = vrot.slane %v354, 4
      %v1147 = vsel %vm1124, %v1145, %v1146
      %v1148 = vrot.slane %v355, 4
      %v1149 = vsel %vm1124, %v1146, %v1148
      %v1150 = vrot.slane %v356, 4
      %v1151 = vrot.slane %v357, 4
      %v1152 = vsel %vm1124, %v1150, %v1151
      %v1153 = vrot.slane %v358, 4
      %v1154 = vsel %vm1124, %v1151, %v1153
      %v1155 = vrot.slane %v359, 4
      %v1156 = vrot.slane %v360, 4
      %v1157 = vsel %vm1124, %v1155, %v1156
      %v1158 = vrot.slane %v361, 4
      %v1159 = vsel %vm1124, %v1156, %v1158
      %v1160 = vrot.slane %v362, 4
      %v1161 = vrot.slane %v363, 4
      %v1162 = vsel %vm1124, %v1160, %v1161
      %v1163 = vrot.slane %v364, 4
      %v1164 = vsel %vm1124, %v1161, %v1163
      %v1165 = vrot.slane %v365, 4
      %v1166 = vrot.slane %v366, 4
      %v1167 = vsel %vm1124, %v1165, %v1166
      %v1168 = vrot.slane %v367, 4
      %v1169 = vsel %vm1124, %v1166, %v1168
      %v1170 = vrot.slane %v368, 4
      %v1171 = vrot.slane %v369, 4
      %v1172 = vsel %vm1124, %v1170, %v1171
      %v1173 = vrot.slane %v370, 4
      %v1174 = vsel %vm1124, %v1171, %v1173
      %v1175 = vrot.slane %v371, 4
      %v1176 = vrot.slane %v372, 4
      %v1177 = vsel %vm1124, %v1175, %v1176
      %v1178 = vrot.slane %v373, 4
      %v1179 = vsel %vm1124, %v1176, %v1178
      %v1180 = vrot.slane %v374, 4
      %v1181 = vrot.slane %v375, 4
      %v1182 = vsel %vm1124, %v1180, %v1181
      %v1183 = vrot.slane %v376, 4
      %v1184 = vsel %vm1124, %v1181, %v1183
      %v1185 = vrot.slane %v377, 4
      %v1186 = vrot.slane %v378, 4
      %v1187 = vsel %vm1124, %v1185, %v1186
      %v1188 = vrot.slane %v379, 4
      %v1189 = vsel %vm1124, %v1186, %v1188
      %v1190 = vrot.slane %v380, 4
      %v1191 = vrot.slane %v381, 4
      %v1192 = vsel %vm1124, %v1190, %v1191
      %v1193 = vrot.slane %v382, 4
      %v1194 = vsel %vm1124, %v1191, %v1193
      %v1195 = vrot.slane %v383, 4
      %v1196 = vrot.slane %v384, 4
      %v1197 = vsel %vm1124, %v1195, %v1196
      %v1198 = vrot.slane %v385, 4
      %v1199 = vsel %vm1124, %v1196, %v1198
      %v1200 = vrot.slane %v386, 4
      %v1201 = vrot.slane %v387, 4
      %v1202 = vsel %vm1124, %v1200, %v1201
      %v1203 = vrot.slane %v388, 4
      %v1204 = vsel %vm1124, %v1201, %v1203
      %v1205 = vrot.slane %v389, 4
      %v1206 = vrot.slane %v390, 4
      %v1207 = vsel %vm1124, %v1205, %v1206
      %v1208 = vrot.slane %v391, 4
      %v1209 = vsel %vm1124, %v1206, %v1208
      %v1210 = vrot.slane %v392, 4
      %v1211 = vrot.slane %v393, 4
      %v1212 = vsel %vm1124, %v1210, %v1211
      %v1213 = vrot.slane %v394, 4
      %v1214 = vsel %vm1124, %v1211, %v1213
      %v1215 = vrot.slane %v395, 4
      %v1216 = vrot.slane %v396, 4
      %v1217 = vsel %vm1124, %v1215, %v1216
      %v1218 = vrot.slane %v397, 4
      %v1219 = vsel %vm1124, %v1216, %v1218
      %v1220 = vrot.slane %v398, 4
      %v1221 = vrot.slane %v399, 4
      %v1222 = vsel %vm1124, %v1220, %v1221
      %v1223 = vrot.slane %v400, 4
      %v1224 = vsel %vm1124, %v1221, %v1223
      %1225 = vrot.lane.b32.xlu0 %v1127, 16
      %v1226 = vpop.permute.xlu0 %1225
      %1227 = vrot.lane.b32.xlu0 %v1129, 16
      %v1228 = vpop.permute.xlu0 %1227
      %1229 = vrot.lane.b32.xlu0 %v1132, 16
      %v1230 = vpop.permute.xlu0 %1229
      %1231 = vrot.lane.b32.xlu0 %v1134, 16
      %v1232 = vpop.permute.xlu0 %1231
      %1233 = vrot.lane.b32.xlu0 %v1137, 16
      %v1234 = vpop.permute.xlu0 %1233
      %1235 = vrot.lane.b32.xlu0 %v1139, 16
      %v1236 = vpop.permute.xlu0 %1235
      %1237 = vrot.lane.b32.xlu0 %v1142, 16
      %v1238 = vpop.permute.xlu0 %1237
      %1239 = vrot.lane.b32.xlu0 %v1144, 16
      %v1240 = vpop.permute.xlu0 %1239
      %1241 = vrot.lane.b32.xlu0 %v1147, 16
      %v1242 = vpop.permute.xlu0 %1241
      %1243 = vrot.lane.b32.xlu0 %v1149, 16
      %v1244 = vpop.permute.xlu0 %1243
      %1245 = vrot.lane.b32.xlu0 %v1152, 16
      %v1246 = vpop.permute.xlu0 %1245
      %1247 = vrot.lane.b32.xlu0 %v1154, 16
      %v1248 = vpop.permute.xlu0 %1247
      %1249 = vrot.lane.b32.xlu0 %v1157, 16
      %v1250 = vpop.permute.xlu0 %1249
      %1251 = vrot.lane.b32.xlu0 %v1159, 16
      %v1252 = vpop.permute.xlu0 %1251
      %1253 = vrot.lane.b32.xlu0 %v1162, 16
      %v1254 = vpop.permute.xlu0 %1253
      %1255 = vrot.lane.b32.xlu0 %v1164, 16
      %v1256 = vpop.permute.xlu0 %1255
      %1257 = vrot.lane.b32.xlu0 %v1167, 16
      %v1258 = vpop.permute.xlu0 %1257
      %1259 = vrot.lane.b32.xlu0 %v1169, 16
      %v1260 = vpop.permute.xlu0 %1259
      %1261 = vrot.lane.b32.xlu0 %v1172, 16
      %v1262 = vpop.permute.xlu0 %1261
      %1263 = vrot.lane.b32.xlu0 %v1174, 16
      %v1264 = vpop.permute.xlu0 %1263
      %1265 = vrot.lane.b32.xlu0 %v1177, 16
      %v1266 = vpop.permute.xlu0 %1265
      %1267 = vrot.lane.b32.xlu0 %v1179, 16
      %v1268 = vpop.permute.xlu0 %1267
      %1269 = vrot.lane.b32.xlu0 %v1182, 16
      %v1270 = vpop.permute.xlu0 %1269
      %1271 = vrot.lane.b32.xlu0 %v1184, 16
      %v1272 = vpop.permute.xlu0 %1271
      %1273 = vrot.lane.b32.xlu0 %v1187, 16
      %v1274 = vpop.permute.xlu0 %1273
      %1275 = vrot.lane.b32.xlu0 %v1189, 16
      %v1276 = vpop.permute.xlu0 %1275
      %1277 = vrot.lane.b32.xlu0 %v1192, 16
      %v1278 = vpop.permute.xlu0 %1277
      %1279 = vrot.lane.b32.xlu0 %v1194, 16
      %v1280 = vpop.permute.xlu0 %1279
      %1281 = vrot.lane.b32.xlu0 %v1197, 16
      %v1282 = vpop.permute.xlu0 %1281
      %1283 = vrot.lane.b32.xlu0 %v1199, 16
      %v1284 = vpop.permute.xlu0 %1283
      %1285 = vrot.lane.b32.xlu0 %v1202, 16
      %v1286 = vpop.permute.xlu0 %1285
      %1287 = vrot.lane.b32.xlu0 %v1204, 16
      %v1288 = vpop.permute.xlu0 %1287
      %1289 = vrot.lane.b32.xlu0 %v1207, 16
      %v1290 = vpop.permute.xlu0 %1289
      %1291 = vrot.lane.b32.xlu0 %v1209, 16
      %v1292 = vpop.permute.xlu0 %1291
      %1293 = vrot.lane.b32.xlu0 %v1212, 16
      %v1294 = vpop.permute.xlu0 %1293
      %1295 = vrot.lane.b32.xlu0 %v1214, 16
      %v1296 = vpop.permute.xlu0 %1295
      %1297 = vrot.lane.b32.xlu0 %v1217, 16
      %v1298 = vpop.permute.xlu0 %1297
      %1299 = vrot.lane.b32.xlu0 %v1219, 16
      %v1300 = vpop.permute.xlu0 %1299
      %1301 = vrot.lane.b32.xlu0 %v1222, 16
      %v1302 = vpop.permute.xlu0 %1301
      %1303 = vrot.lane.b32.xlu0 %v1224, 16
      %v1304 = vpop.permute.xlu0 %1303
      %v1345 = vsel %vm182, %v341, %v563
      %v1346 = vsel %vm182, %v342, %v565
      %v1347 = vsel %vm182, %v344, %v567
      %v1348 = vsel %vm182, %v345, %v569
      %v1349 = vsel %vm182, %v347, %v571
      %v1350 = vsel %vm182, %v348, %v573
      %v1351 = vsel %vm182, %v350, %v575
      %v1352 = vsel %vm182, %v351, %v577
      %v1353 = vsel %vm182, %v353, %v579
      %v1354 = vsel %vm182, %v354, %v581
      %v1355 = vsel %vm182, %v356, %v583
      %v1356 = vsel %vm182, %v357, %v585
      %v1357 = vsel %vm182, %v359, %v587
      %v1358 = vsel %vm182, %v360, %v589
      %v1359 = vsel %vm182, %v362, %v591
      %v1360 = vsel %vm182, %v363, %v593
      %v1361 = vsel %vm182, %v365, %v595
      %v1362 = vsel %vm182, %v366, %v597
      %v1363 = vsel %vm182, %v368, %v599
      %v1364 = vsel %vm182, %v369, %v601
      %v1365 = vsel %vm182, %v371, %v603
      %v1366 = vsel %vm182, %v372, %v605
      %v1367 = vsel %vm182, %v374, %v607
      %v1368 = vsel %vm182, %v375, %v609
      %v1369 = vsel %vm182, %v377, %v611
      %v1370 = vsel %vm182, %v378, %v613
      %v1371 = vsel %vm182, %v380, %v615
      %v1372 = vsel %vm182, %v381, %v617
      %v1373 = vsel %vm182, %v383, %v619
      %v1374 = vsel %vm182, %v384, %v621
      %v1375 = vsel %vm182, %v386, %v623
      %v1376 = vsel %vm182, %v387, %v625
      %v1377 = vsel %vm182, %v389, %v627
      %v1378 = vsel %vm182, %v390, %v629
      %v1379 = vsel %vm182, %v392, %v631
      %v1380 = vsel %vm182, %v393, %v633
      %v1381 = vsel %vm182, %v395, %v635
      %v1382 = vsel %vm182, %v396, %v637
      %v1383 = vsel %vm182, %v398, %v639
      %v1384 = vsel %vm182, %v399, %v641
      %vm1385 = vcmask 64512
      %v1386 = vsel %vm1385, %v1345, %v784
      %v1387 = vsel %vm1385, %v1346, %v786
      %v1388 = vsel %vm1385, %v1347, %v788
      %v1389 = vsel %vm1385, %v1348, %v790
      %v1390 = vsel %vm1385, %v1349, %v792
      %v1391 = vsel %vm1385, %v1350, %v794
      %v1392 = vsel %vm1385, %v1351, %v796
      %v1393 = vsel %vm1385, %v1352, %v798
      %v1394 = vsel %vm1385, %v1353, %v800
      %v1395 = vsel %vm1385, %v1354, %v802
      %v1396 = vsel %vm1385, %v1355, %v804
      %v1397 = vsel %vm1385, %v1356, %v806
      %v1398 = vsel %vm1385, %v1357, %v808
      %v1399 = vsel %vm1385, %v1358, %v810
      %v1400 = vsel %vm1385, %v1359, %v812
      %v1401 = vsel %vm1385, %v1360, %v814
      %v1402 = vsel %vm1385, %v1361, %v816
      %v1403 = vsel %vm1385, %v1362, %v818
      %v1404 = vsel %vm1385, %v1363, %v820
      %v1405 = vsel %vm1385, %v1364, %v822
      %v1406 = vsel %vm1385, %v1365, %v824
      %v1407 = vsel %vm1385, %v1366, %v826
      %v1408 = vsel %vm1385, %v1367, %v828
      %v1409 = vsel %vm1385, %v1368, %v830
      %v1410 = vsel %vm1385, %v1369, %v832
      %v1411 = vsel %vm1385, %v1370, %v834
      %v1412 = vsel %vm1385, %v1371, %v836
      %v1413 = vsel %vm1385, %v1372, %v838
      %v1414 = vsel %vm1385, %v1373, %v840
      %v1415 = vsel %vm1385, %v1374, %v842
      %v1416 = vsel %vm1385, %v1375, %v844
      %v1417 = vsel %vm1385, %v1376, %v846
      %v1418 = vsel %vm1385, %v1377, %v848
      %v1419 = vsel %vm1385, %v1378, %v850
      %v1420 = vsel %vm1385, %v1379, %v852
      %v1421 = vsel %vm1385, %v1380, %v854
      %v1422 = vsel %vm1385, %v1381, %v856
      %v1423 = vsel %vm1385, %v1382, %v858
      %v1424 = vsel %vm1385, %v1383, %v860
      %v1425 = vsel %vm1385, %v1384, %v862
      %vm1426 = vcmask 97280
      %v1427 = vsel %vm1426, %v1386, %v1005
      %v1428 = vsel %vm1426, %v1387, %v1007
      %v1429 = vsel %vm1426, %v1388, %v1009
      %v1430 = vsel %vm1426, %v1389, %v1011
      %v1431 = vsel %vm1426, %v1390, %v1013
      %v1432 = vsel %vm1426, %v1391, %v1015
      %v1433 = vsel %vm1426, %v1392, %v1017
      %v1434 = vsel %vm1426, %v1393, %v1019
      %v1435 = vsel %vm1426, %v1394, %v1021
      %v1436 = vsel %vm1426, %v1395, %v1023
      %v1437 = vsel %vm1426, %v1396, %v1025
      %v1438 = vsel %vm1426, %v1397, %v1027
      %v1439 = vsel %vm1426, %v1398, %v1029
      %v1440 = vsel %vm1426, %v1399, %v1031
      %v1441 = vsel %vm1426, %v1400, %v1033
      %v1442 = vsel %vm1426, %v1401, %v1035
      %v1443 = vsel %vm1426, %v1402, %v1037
      %v1444 = vsel %vm1426, %v1403, %v1039
      %v1445 = vsel %vm1426, %v1404, %v1041
      %v1446 = vsel %vm1426, %v1405, %v1043
      %v1447 = vsel %vm1426, %v1406, %v1045
      %v1448 = vsel %vm1426, %v1407, %v1047
      %v1449 = vsel %vm1426, %v1408, %v1049
      %v1450 = vsel %vm1426, %v1409, %v1051
      %v1451 = vsel %vm1426, %v1410, %v1053
      %v1452 = vsel %vm1426, %v1411, %v1055
      %v1453 = vsel %vm1426, %v1412, %v1057
      %v1454 = vsel %vm1426, %v1413, %v1059
      %v1455 = vsel %vm1426, %v1414, %v1061
      %v1456 = vsel %vm1426, %v1415, %v1063
      %v1457 = vsel %vm1426, %v1416, %v1065
      %v1458 = vsel %vm1426, %v1417, %v1067
      %v1459 = vsel %vm1426, %v1418, %v1069
      %v1460 = vsel %vm1426, %v1419, %v1071
      %v1461 = vsel %vm1426, %v1420, %v1073
      %v1462 = vsel %vm1426, %v1421, %v1075
      %v1463 = vsel %vm1426, %v1422, %v1077
      %v1464 = vsel %vm1426, %v1423, %v1079
      %v1465 = vsel %vm1426, %v1424, %v1081
      %v1466 = vsel %vm1426, %v1425, %v1083
      %vm1467 = vcmask 130048
      %v1468 = vsel %vm1467, %v1427, %v1226
      %v1469 = vsel %vm1467, %v1428, %v1228
      %v1470 = vsel %vm1467, %v1429, %v1230
      %v1471 = vsel %vm1467, %v1430, %v1232
      %v1472 = vsel %vm1467, %v1431, %v1234
      %v1473 = vsel %vm1467, %v1432, %v1236
      %v1474 = vsel %vm1467, %v1433, %v1238
      %v1475 = vsel %vm1467, %v1434, %v1240
      %v1476 = vsel %vm1467, %v1435, %v1242
      %v1477 = vsel %vm1467, %v1436, %v1244
      %v1478 = vsel %vm1467, %v1437, %v1246
      %v1479 = vsel %vm1467, %v1438, %v1248
      %v1480 = vsel %vm1467, %v1439, %v1250
      %v1481 = vsel %vm1467, %v1440, %v1252
      %v1482 = vsel %vm1467, %v1441, %v1254
      %v1483 = vsel %vm1467, %v1442, %v1256
      %v1484 = vsel %vm1467, %v1443, %v1258
      %v1485 = vsel %vm1467, %v1444, %v1260
      %v1486 = vsel %vm1467, %v1445, %v1262
      %v1487 = vsel %vm1467, %v1446, %v1264
      %v1488 = vsel %vm1467, %v1447, %v1266
      %v1489 = vsel %vm1467, %v1448, %v1268
      %v1490 = vsel %vm1467, %v1449, %v1270
      %v1491 = vsel %vm1467, %v1450, %v1272
      %v1492 = vsel %vm1467, %v1451, %v1274
      %v1493 = vsel %vm1467, %v1452, %v1276
      %v1494 = vsel %vm1467, %v1453, %v1278
      %v1495 = vsel %vm1467, %v1454, %v1280
      %v1496 = vsel %vm1467, %v1455, %v1282
      %v1497 = vsel %vm1467, %v1456, %v1284
      %v1498 = vsel %vm1467, %v1457, %v1286
      %v1499 = vsel %vm1467, %v1458, %v1288
      %v1500 = vsel %vm1467, %v1459, %v1290
      %v1501 = vsel %vm1467, %v1460, %v1292
      %v1502 = vsel %vm1467, %v1461, %v1294
      %v1503 = vsel %vm1467, %v1462, %v1296
      %v1504 = vsel %vm1467, %v1463, %v1298
      %v1505 = vsel %vm1467, %v1464, %v1300
      %v1506 = vsel %vm1467, %v1465, %v1302
      %v1507 = vsel %vm1467, %v1466, %v1304
      %v1508 = vpack.c.bf16 %v1469, %v1468
      %v1509 = vpack.c.bf16 %v1471, %v1470
      %v1510 = vpack.c.bf16 %v1473, %v1472
      %v1511 = vpack.c.bf16 %v1475, %v1474
      %v1512 = vpack.c.bf16 %v1477, %v1476
      %v1513 = vpack.c.bf16 %v1479, %v1478
      %v1514 = vpack.c.bf16 %v1481, %v1480
      %v1515 = vpack.c.bf16 %v1483, %v1482
      %v1516 = vpack.c.bf16 %v1485, %v1484
      %v1517 = vpack.c.bf16 %v1487, %v1486
      %v1518 = vpack.c.bf16 %v1489, %v1488
      %v1519 = vpack.c.bf16 %v1491, %v1490
      %v1520 = vpack.c.bf16 %v1493, %v1492
      %v1521 = vpack.c.bf16 %v1495, %v1494
      %v1522 = vpack.c.bf16 %v1497, %v1496
      %v1523 = vpack.c.bf16 %v1499, %v1498
      %v1524 = vpack.c.bf16 %v1501, %v1500
      %v1525 = vpack.c.bf16 %v1503, %v1502
      %v1526 = vpack.c.bf16 %v1505, %v1504
      %v1527 = vpack.c.bf16 %v1507, %v1506
      %v1528 = vld [vmem:[%s1] sm:$0xf]
      %v1529 = vld [vmem:[%s1 + $0x4] sm:$0xf]
      %v1530 = vld [vmem:[%s1 + $0x8] sm:$0x3]
      %v1531 = vld [vmem:[%s1 + $0xc] sm:$0xf]
      %v1532 = vld [vmem:[%s1 + $0x10] sm:$0xf]
      %v1533 = vld [vmem:[%s1 + $0x14] sm:$0x3]
      %v1534 = vld [vmem:[%s1 + $0x18] sm:$0xf]
      %v1535 = vld [vmem:[%s1 + $0x1c] sm:$0xf]
      %v1536 = vld [vmem:[%s1 + $0x20] sm:$0x3]
      %v1537 = vld [vmem:[%s1 + $0x24] sm:$0xf]
      %v1538 = vld [vmem:[%s1 + $0x28] sm:$0xf]
      %v1539 = vld [vmem:[%s1 + $0x2c] sm:$0x3]
      %v1540 = vld [vmem:[%s1 + $0x30] sm:$0xf]
      %v1541 = vld [vmem:[%s1 + $0x34] sm:$0xf]
      %v1542 = vld [vmem:[%s1 + $0x38] sm:$0x3]
      %v1546 = vunpack.c.l.b16 %v1531
      %v1547 = vunpack.c.l.b16 %v1532
      %v1548 = vunpack.c.l.b16 %v1533
      %v1549 = vpack.c.b16 %v1547, %v1546
      %v1550 = vpack.c.b16 %v1548, %v1548
      %vm1552 = vcmask 162816
      %v1554 = vsel %vm1552, %v1509, 0
      %v1557 = vsel %vm1552, %v1510, 0
      %v1560 = vsel %vm1552, %v1511, 0
      %v1563 = vsel %vm1552, %v1512, 0
      %v1566 = vsel %vm1552, %v1513, 0
      %v1569 = vsel %vm1552, %v1514, 0
      %v1572 = vsel %vm1552, %v1515, 0
      %v1575 = vsel %vm1552, %v1516, 0
      %v1578 = vsel %vm1552, %v1517, 0
      %v1581 = vsel %vm1552, %v1518, 0
      %v1584 = vsel %vm1552, %v1519, 0
      %v1587 = vsel %vm1552, %v1520, 0
      %v1590 = vsel %vm1552, %v1521, 0
      %v1593 = vsel %vm1552, %v1522, 0
      %v1596 = vsel %vm1552, %v1523, 0
      %v1599 = vsel %vm1552, %v1524, 0
      %vm1601 = vcmask 1041408
      %v1603 = vsel %vm1601, %v1550, 0
      %1605 = vmatprep.subr.bf16.mxu0 0
      %1606 = vmatpush1.bf16.msra.mxu0 %v1549
      %1607 = vmatprep.subr.bf16.mxu0 0
      %1608 = vmatpush1.bf16.msra.mxu0 %v1603
      %1609 = vmatprep.subr.bf16.mxu0 0
      %1610 = vmatpush1.bf16.msra.mxu0 0
      %1611 = vmatprep.subr.bf16.mxu0 0
      %1612 = vmatpush1.bf16.msra.mxu0 0
      %1613 = vmatprep.subr.bf16.mxu0 0
      %1614 = vmatpush1.bf16.msra.mxu0 0
      %1615 = vmatprep.subr.bf16.mxu0 0
      %1616 = vmatpush1.bf16.msra.mxu0 0
      %1617 = vmatprep.subr.bf16.mxu0 0
      %1618 = vmatpush1.bf16.msra.mxu0 0
      %1619 = vmatprep.subr.bf16.mxu0 0
      %1620 = vmatpush1.bf16.msra.mxu0 0
      %1621 = vmatprep.subr.bf16.mxu0 0
      %1622 = vmatpush1.bf16.msra.mxu0 0
      %1623 = vmatprep.subr.bf16.mxu0 0
      %1624 = vmatpush1.bf16.msra.mxu0 0
      %1625 = vmatprep.subr.bf16.mxu0 0
      %1626 = vmatpush1.bf16.msra.mxu0 0
      %1627 = vmatprep.subr.bf16.mxu0 0
      %1628 = vmatpush1.bf16.msra.mxu0 0
      %1629 = vmatprep.subr.bf16.mxu0 0
      %1630 = vmatpush1.bf16.msra.mxu0 0
      %1631 = vmatprep.subr.bf16.mxu0 0
      %1632 = vmatpush1.bf16.msra.mxu0 0
      %1633 = vmatprep.subr.bf16.mxu0 0
      %1634 = vmatpush1.bf16.msra.mxu0 0
      %1635 = vmatprep.subr.bf16.mxu0 0
      %1636 = vmatpush1.bf16.msra.mxu0 0
      %1637 = vmatprep.mubr.bf16.mxu0 0
      %1638 = vmatmul.mubr.bf16.gmra.mrb[0].mxu0 %v1554
      %v1639 = vpop.f32.mrb[0].mxu0
      %v1640 = vadd.f32 0.0, %v1639
      %v1641 = vpop.f32.mrb[0].mxu0
      %v1642 = vpop.f32.mrb[0].mxu0
      %v1643 = vadd.f32 0.0, %v1642
      %v1644 = vpop.f32.mrb[0].mxu0
      %1645 = vmatprep.mubr.bf16.mxu0 0
      %1646 = vmatmul.mubr.bf16.gmra.mrb[0].mxu0 %v1557
      %v1647 = vpop.f32.mrb[0].mxu0
      %v1648 = vadd.f32 0.0, %v1647
      %v1649 = vpop.f32.mrb[0].mxu0
      %v1650 = vpop.f32.mrb[0].mxu0
      %v1651 = vadd.f32 0.0, %v1650
      %v1652 = vpop.f32.mrb[0].mxu0
      %1653 = vmatprep.mubr.bf16.mxu0 0
      %1654 = vmatmul.mubr.bf16.gmra.mrb[0].mxu0 %v1560
      %v1655 = vpop.f32.mrb[0].mxu0
      %v1656 = vadd.f32 0.0, %v1655
      %v1657 = vpop.f32.mrb[0].mxu0
      %v1658 = vpop.f32.mrb[0].mxu0
      %v1659 = vadd.f32 0.0, %v1658
      %v1660 = vpop.f32.mrb[0].mxu0
      %1661 = vmatprep.mubr.bf16.mxu0 0
      %1662 = vmatmul.mubr.bf16.gmra.mrb[0].mxu0 %v1563
      %v1663 = vpop.f32.mrb[0].mxu0
      %v1664 = vadd.f32 0.0, %v1663
      %v1665 = vpop.f32.mrb[0].mxu0
      %v1666 = vpop.f32.mrb[0].mxu0
      %v1667 = vadd.f32 0.0, %v1666
      %v1668 = vpop.f32.mrb[0].mxu0
      %1669 = vmatprep.mubr.bf16.mxu0 0
      %1670 = vmatmul.mubr.bf16.gmra.mrb[0].mxu0 %v1566
      %v1671 = vpop.f32.mrb[0].mxu0
      %v1672 = vadd.f32 0.0, %v1671
      %v1673 = vpop.f32.mrb[0].mxu0
      %v1674 = vpop.f32.mrb[0].mxu0
      %v1675 = vadd.f32 0.0, %v1674
      %v1676 = vpop.f32.mrb[0].mxu0
      %1677 = vmatprep.mubr.bf16.mxu0 0
      %1678 = vmatmul.mubr.bf16.gmra.mrb[0].mxu0 %v1569
      %v1679 = vpop.f32.mrb[0].mxu0
      %v1680 = vadd.f32 0.0, %v1679
      %v1681 = vpop.f32.mrb[0].mxu0
      %v1682 = vpop.f32.mrb[0].mxu0
      %v1683 = vadd.f32 0.0, %v1682
      %v1684 = vpop.f32.mrb[0].mxu0
      %1685 = vmatprep.mubr.bf16.mxu0 0
      %1686 = vmatmul.mubr.bf16.gmra.mrb[0].mxu0 %v1572
      %v1687 = vpop.f32.mrb[0].mxu0
      %v1688 = vadd.f32 0.0, %v1687
      %v1689 = vpop.f32.mrb[0].mxu0
      %v1690 = vpop.f32.mrb[0].mxu0
      %v1691 = vadd.f32 0.0, %v1690
      %v1692 = vpop.f32.mrb[0].mxu0
      %1693 = vmatprep.mubr.bf16.mxu0 0
      %1694 = vmatmul.mubr.bf16.gmra.mrb[0].mxu0 %v1575
      %v1695 = vpop.f32.mrb[0].mxu0
      %v1696 = vadd.f32 0.0, %v1695
      %v1697 = vpop.f32.mrb[0].mxu0
      %v1698 = vpop.f32.mrb[0].mxu0
      %v1699 = vadd.f32 0.0, %v1698
      %v1700 = vpop.f32.mrb[0].mxu0
      %1701 = vmatprep.mubr.bf16.mxu0 0
      %1702 = vmatmul.mubr.bf16.gmra.mrb[0].mxu0 %v1578
      %v1703 = vpop.f32.mrb[0].mxu0
      %v1704 = vadd.f32 0.0, %v1703
      %v1705 = vpop.f32.mrb[0].mxu0
      %v1706 = vpop.f32.mrb[0].mxu0
      %v1707 = vadd.f32 0.0, %v1706
      %v1708 = vpop.f32.mrb[0].mxu0
      %1709 = vmatprep.mubr.bf16.mxu0 0
      %1710 = vmatmul.mubr.bf16.gmra.mrb[0].mxu0 %v1581
      %v1711 = vpop.f32.mrb[0].mxu0
      %v1712 = vadd.f32 0.0, %v1711
      %v1713 = vpop.f32.mrb[0].mxu0
      %v1714 = vpop.f32.mrb[0].mxu0
      %v1715 = vadd.f32 0.0, %v1714
      %v1716 = vpop.f32.mrb[0].mxu0
      %1717 = vmatprep.mubr.bf16.mxu0 0
      %1718 = vmatmul.mubr.bf16.gmra.mrb[0].mxu0 %v1584
      %v1719 = vpop.f32.mrb[0].mxu0
      %v1720 = vadd.f32 0.0, %v1719
      %v1721 = vpop.f32.mrb[0].mxu0
      %v1722 = vpop.f32.mrb[0].mxu0
      %v1723 = vadd.f32 0.0, %v1722
      %v1724 = vpop.f32.mrb[0].mxu0
      %1725 = vmatprep.mubr.bf16.mxu0 0
      %1726 = vmatmul.mubr.bf16.gmra.mrb[0].mxu0 %v1587
      %v1727 = vpop.f32.mrb[0].mxu0
      %v1728 = vadd.f32 0.0, %v1727
      %v1729 = vpop.f32.mrb[0].mxu0
      %v1730 = vpop.f32.mrb[0].mxu0
      %v1731 = vadd.f32 0.0, %v1730
      %v1732 = vpop.f32.mrb[0].mxu0
      %1733 = vmatprep.mubr.bf16.mxu0 0
      %1734 = vmatmul.mubr.bf16.gmra.mrb[0].mxu0 %v1590
      %v1735 = vpop.f32.mrb[0].mxu0
      %v1736 = vadd.f32 0.0, %v1735
      %v1737 = vpop.f32.mrb[0].mxu0
      %v1738 = vpop.f32.mrb[0].mxu0
      %v1739 = vadd.f32 0.0, %v1738
      %v1740 = vpop.f32.mrb[0].mxu0
      %1741 = vmatprep.mubr.bf16.mxu0 0
      %1742 = vmatmul.mubr.bf16.gmra.mrb[0].mxu0 %v1593
      %v1743 = vpop.f32.mrb[0].mxu0
      %v1744 = vadd.f32 0.0, %v1743
      %v1745 = vpop.f32.mrb[0].mxu0
      %v1746 = vpop.f32.mrb[0].mxu0
      %v1747 = vadd.f32 0.0, %v1746
      %v1748 = vpop.f32.mrb[0].mxu0
      %1749 = vmatprep.mubr.bf16.mxu0 0
      %1750 = vmatmul.mubr.bf16.gmra.mrb[0].mxu0 %v1596
      %v1751 = vpop.f32.mrb[0].mxu0
      %v1752 = vadd.f32 0.0, %v1751
      %v1753 = vpop.f32.mrb[0].mxu0
      %v1754 = vpop.f32.mrb[0].mxu0
      %v1755 = vadd.f32 0.0, %v1754
      %v1756 = vpop.f32.mrb[0].mxu0
      %1757 = vmatprep.mubr.bf16.mxu0 0
      %1758 = vmatmul.mubr.bf16.gmra.mrb[0].mxu0 %v1599
      %v1759 = vpop.f32.mrb[0].mxu0
      %v1760 = vadd.f32 0.0, %v1759
      %v1761 = vpop.f32.mrb[0].mxu0
      %v1762 = vpop.f32.mrb[0].mxu0
      %v1763 = vadd.f32 0.0, %v1762
      %v1764 = vpop.f32.mrb[0].mxu0
      %1765 = vdwg.mxu0
      %v1769 = vunpack.c.l.b16 %v1528
      %v1770 = vunpack.c.l.b16 %v1529
      %v1771 = vunpack.c.l.b16 %v1530
      %v1772 = vpack.c.b16 %v1770, %v1769
      %v1773 = vpack.c.b16 %v1771, %v1771
      %v1776 = vsel %vm1552, %v1508, 0
      %v1779 = vsel %vm1601, %v1773, 0
      %1781 = vmatprep.subr.bf16.mxu0 0
      %1782 = vmatpush1.bf16.msra.mxu0 %v1772
      %1783 = vmatprep.subr.bf16.mxu0 0
      %1784 = vmatpush1.bf16.msra.mxu0 %v1779
      %1785 = vmatprep.subr.bf16.mxu0 0
      %1786 = vmatpush1.bf16.msra.mxu0 0
      %1787 = vmatprep.subr.bf16.mxu0 0
      %1788 = vmatpush1.bf16.msra.mxu0 0
      %1789 = vmatprep.subr.bf16.mxu0 0
      %1790 = vmatpush1.bf16.msra.mxu0 0
      %1791 = vmatprep.subr.bf16.mxu0 0
      %1792 = vmatpush1.bf16.msra.mxu0 0
      %1793 = vmatprep.subr.bf16.mxu0 0
      %1794 = vmatpush1.bf16.msra.mxu0 0
      %1795 = vmatprep.subr.bf16.mxu0 0
      %1796 = vmatpush1.bf16.msra.mxu0 0
      %1797 = vmatprep.subr.bf16.mxu0 0
      %1798 = vmatpush1.bf16.msra.mxu0 0
      %1799 = vmatprep.subr.bf16.mxu0 0
      %1800 = vmatpush1.bf16.msra.mxu0 0
      %1801 = vmatprep.subr.bf16.mxu0 0
      %1802 = vmatpush1.bf16.msra.mxu0 0
      %1803 = vmatprep.subr.bf16.mxu0 0
      %1804 = vmatpush1.bf16.msra.mxu0 0
      %1805 = vmatprep.subr.bf16.mxu0 0
      %1806 = vmatpush1.bf16.msra.mxu0 0
      %1807 = vmatprep.subr.bf16.mxu0 0
      %1808 = vmatpush1.bf16.msra.mxu0 0
      %1809 = vmatprep.subr.bf16.mxu0 0
      %1810 = vmatpush1.bf16.msra.mxu0 0
      %1811 = vmatprep.subr.bf16.mxu0 0
      %1812 = vmatpush1.bf16.msra.mxu0 0
      %1813 = vmatprep.mubr.bf16.mxu0 0
      %1814 = vmatmul.mubr.bf16.gmra.mrb[0].mxu0 %v1776
      %v1815 = vpop.f32.mrb[0].mxu0
      %v1816 = vadd.f32 %v1640, %v1815
      %v1817 = vpop.f32.mrb[0].mxu0
      %v1818 = vpop.f32.mrb[0].mxu0
      %v1819 = vadd.f32 %v1643, %v1818
      %v1820 = vpop.f32.mrb[0].mxu0
      %1821 = vmatprep.mubr.bf16.mxu0 0
      %1822 = vmatmul.mubr.bf16.gmra.mrb[0].mxu0 %v1554
      %v1823 = vpop.f32.mrb[0].mxu0
      %v1824 = vadd.f32 %v1648, %v1823
      %v1825 = vpop.f32.mrb[0].mxu0
      %v1826 = vpop.f32.mrb[0].mxu0
      %v1827 = vadd.f32 %v1651, %v1826
      %v1828 = vpop.f32.mrb[0].mxu0
      %1829 = vmatprep.mubr.bf16.mxu0 0
      %1830 = vmatmul.mubr.bf16.gmra.mrb[0].mxu0 %v1557
      %v1831 = vpop.f32.mrb[0].mxu0
      %v1832 = vadd.f32 %v1656, %v1831
      %v1833 = vpop.f32.mrb[0].mxu0
      %v1834 = vpop.f32.mrb[0].mxu0
      %v1835 = vadd.f32 %v1659, %v1834
      %v1836 = vpop.f32.mrb[0].mxu0
      %1837 = vmatprep.mubr.bf16.mxu0 0
      %1838 = vmatmul.mubr.bf16.gmra.mrb[0].mxu0 %v1560
      %v1839 = vpop.f32.mrb[0].mxu0
      %v1840 = vadd.f32 %v1664, %v1839
      %v1841 = vpop.f32.mrb[0].mxu0
      %v1842 = vpop.f32.mrb[0].mxu0
      %v1843 = vadd.f32 %v1667, %v1842
      %v1844 = vpop.f32.mrb[0].mxu0
      %1845 = vmatprep.mubr.bf16.mxu0 0
      %1846 = vmatmul.mubr.bf16.gmra.mrb[0].mxu0 %v1563
      %v1847 = vpop.f32.mrb[0].mxu0
      %v1848 = vadd.f32 %v1672, %v1847
      %v1849 = vpop.f32.mrb[0].mxu0
      %v1850 = vpop.f32.mrb[0].mxu0
      %v1851 = vadd.f32 %v1675, %v1850
      %v1852 = vpop.f32.mrb[0].mxu0
      %1853 = vmatprep.mubr.bf16.mxu0 0
      %1854 = vmatmul.mubr.bf16.gmra.mrb[0].mxu0 %v1566
      %v1855 = vpop.f32.mrb[0].mxu0
      %v1856 = vadd.f32 %v1680, %v1855
      %v1857 = vpop.f32.mrb[0].mxu0
      %v1858 = vpop.f32.mrb[0].mxu0
      %v1859 = vadd.f32 %v1683, %v1858
      %v1860 = vpop.f32.mrb[0].mxu0
      %1861 = vmatprep.mubr.bf16.mxu0 0
      %1862 = vmatmul.mubr.bf16.gmra.mrb[0].mxu0 %v1569
      %v1863 = vpop.f32.mrb[0].mxu0
      %v1864 = vadd.f32 %v1688, %v1863
      %v1865 = vpop.f32.mrb[0].mxu0
      %v1866 = vpop.f32.mrb[0].mxu0
      %v1867 = vadd.f32 %v1691, %v1866
      %v1868 = vpop.f32.mrb[0].mxu0
      %1869 = vmatprep.mubr.bf16.mxu0 0
      %1870 = vmatmul.mubr.bf16.gmra.mrb[0].mxu0 %v1572
      %v1871 = vpop.f32.mrb[0].mxu0
      %v1872 = vadd.f32 %v1696, %v1871
      %v1873 = vpop.f32.mrb[0].mxu0
      %v1874 = vpop.f32.mrb[0].mxu0
      %v1875 = vadd.f32 %v1699, %v1874
      %v1876 = vpop.f32.mrb[0].mxu0
      %1877 = vmatprep.mubr.bf16.mxu0 0
      %1878 = vmatmul.mubr.bf16.gmra.mrb[0].mxu0 %v1575
      %v1879 = vpop.f32.mrb[0].mxu0
      %v1880 = vadd.f32 %v1704, %v1879
      %v1881 = vpop.f32.mrb[0].mxu0
      %v1882 = vpop.f32.mrb[0].mxu0
      %v1883 = vadd.f32 %v1707, %v1882
      %v1884 = vpop.f32.mrb[0].mxu0
      %1885 = vmatprep.mubr.bf16.mxu0 0
      %1886 = vmatmul.mubr.bf16.gmra.mrb[0].mxu0 %v1578
      %v1887 = vpop.f32.mrb[0].mxu0
      %v1888 = vadd.f32 %v1712, %v1887
      %v1889 = vpop.f32.mrb[0].mxu0
      %v1890 = vpop.f32.mrb[0].mxu0
      %v1891 = vadd.f32 %v1715, %v1890
      %v1892 = vpop.f32.mrb[0].mxu0
      %1893 = vmatprep.mubr.bf16.mxu0 0
      %1894 = vmatmul.mubr.bf16.gmra.mrb[0].mxu0 %v1581
      %v1895 = vpop.f32.mrb[0].mxu0
      %v1896 = vadd.f32 %v1720, %v1895
      %v1897 = vpop.f32.mrb[0].mxu0
      %v1898 = vpop.f32.mrb[0].mxu0
      %v1899 = vadd.f32 %v1723, %v1898
      %v1900 = vpop.f32.mrb[0].mxu0
      %1901 = vmatprep.mubr.bf16.mxu0 0
      %1902 = vmatmul.mubr.bf16.gmra.mrb[0].mxu0 %v1584
      %v1903 = vpop.f32.mrb[0].mxu0
      %v1904 = vadd.f32 %v1728, %v1903
      %v1905 = vpop.f32.mrb[0].mxu0
      %v1906 = vpop.f32.mrb[0].mxu0
      %v1907 = vadd.f32 %v1731, %v1906
      %v1908 = vpop.f32.mrb[0].mxu0
      %1909 = vmatprep.mubr.bf16.mxu0 0
      %1910 = vmatmul.mubr.bf16.gmra.mrb[0].mxu0 %v1587
      %v1911 = vpop.f32.mrb[0].mxu0
      %v1912 = vadd.f32 %v1736, %v1911
      %v1913 = vpop.f32.mrb[0].mxu0
      %v1914 = vpop.f32.mrb[0].mxu0
      %v1915 = vadd.f32 %v1739, %v1914
      %v1916 = vpop.f32.mrb[0].mxu0
      %1917 = vmatprep.mubr.bf16.mxu0 0
      %1918 = vmatmul.mubr.bf16.gmra.mrb[0].mxu0 %v1590
      %v1919 = vpop.f32.mrb[0].mxu0
      %v1920 = vadd.f32 %v1744, %v1919
      %v1921 = vpop.f32.mrb[0].mxu0
      %v1922 = vpop.f32.mrb[0].mxu0
      %v1923 = vadd.f32 %v1747, %v1922
      %v1924 = vpop.f32.mrb[0].mxu0
      %1925 = vmatprep.mubr.bf16.mxu0 0
      %1926 = vmatmul.mubr.bf16.gmra.mrb[0].mxu0 %v1593
      %v1927 = vpop.f32.mrb[0].mxu0
      %v1928 = vadd.f32 %v1752, %v1927
      %v1929 = vpop.f32.mrb[0].mxu0
      %v1930 = vpop.f32.mrb[0].mxu0
      %v1931 = vadd.f32 %v1755, %v1930
      %v1932 = vpop.f32.mrb[0].mxu0
      %1933 = vmatprep.mubr.bf16.mxu0 0
      %1934 = vmatmul.mubr.bf16.gmra.mrb[0].mxu0 %v1596
      %v1935 = vpop.f32.mrb[0].mxu0
      %v1936 = vadd.f32 %v1760, %v1935
      %v1937 = vpop.f32.mrb[0].mxu0
      %v1938 = vpop.f32.mrb[0].mxu0
      %v1939 = vadd.f32 %v1763, %v1938
      %v1940 = vpop.f32.mrb[0].mxu0
      %1941 = vdwg.mxu0
      %v1945 = vunpack.c.l.b16 %v1534
      %v1946 = vunpack.c.l.b16 %v1535
      %v1947 = vunpack.c.l.b16 %v1536
      %v1948 = vpack.c.b16 %v1946, %v1945
      %v1949 = vpack.c.b16 %v1947, %v1947
      %v1952 = vsel %vm1552, %v1525, 0
      %v1955 = vsel %vm1601, %v1949, 0
      %1957 = vmatprep.subr.bf16.mxu0 0
      %1958 = vmatpush1.bf16.msra.mxu0 %v1948
      %1959 = vmatprep.subr.bf16.mxu0 0
      %1960 = vmatpush1.bf16.msra.mxu0 %v1955
      %1961 = vmatprep.subr.bf16.mxu0 0
      %1962 = vmatpush1.bf16.msra.mxu0 0
      %1963 = vmatprep.subr.bf16.mxu0 0
      %1964 = vmatpush1.bf16.msra.mxu0 0
      %1965 = vmatprep.subr.bf16.mxu0 0
      %1966 = vmatpush1.bf16.msra.mxu0 0
      %1967 = vmatprep.subr.bf16.mxu0 0
      %1968 = vmatpush1.bf16.msra.mxu0 0
      %1969 = vmatprep.subr.bf16.mxu0 0
      %1970 = vmatpush1.bf16.msra.mxu0 0
      %1971 = vmatprep.subr.bf16.mxu0 0
      %1972 = vmatpush1.bf16.msra.mxu0 0
      %1973 = vmatprep.subr.bf16.mxu0 0
      %1974 = vmatpush1.bf16.msra.mxu0 0
      %1975 = vmatprep.subr.bf16.mxu0 0
      %1976 = vmatpush1.bf16.msra.mxu0 0
      %1977 = vmatprep.subr.bf16.mxu0 0
      %1978 = vmatpush1.bf16.msra.mxu0 0
      %1979 = vmatprep.subr.bf16.mxu0 0
      %1980 = vmatpush1.bf16.msra.mxu0 0
      %1981 = vmatprep.subr.bf16.mxu0 0
      %1982 = vmatpush1.bf16.msra.mxu0 0
      %1983 = vmatprep.subr.bf16.mxu0 0
      %1984 = vmatpush1.bf16.msra.mxu0 0
      %1985 = vmatprep.subr.bf16.mxu0 0
      %1986 = vmatpush1.bf16.msra.mxu0 0
      %1987 = vmatprep.subr.bf16.mxu0 0
      %1988 = vmatpush1.bf16.msra.mxu0 0
      %1989 = vmatprep.mubr.bf16.mxu0 0
      %1990 = vmatmul.mubr.bf16.gmra.mrb[0].mxu0 %v1557
      %v1991 = vpop.f32.mrb[0].mxu0
      %v1992 = vadd.f32 0.0, %v1991
      %v1993 = vpop.f32.mrb[0].mxu0
      %v1994 = vpop.f32.mrb[0].mxu0
      %v1995 = vadd.f32 0.0, %v1994
      %v1996 = vpop.f32.mrb[0].mxu0
      %1997 = vmatprep.mubr.bf16.mxu0 0
      %1998 = vmatmul.mubr.bf16.gmra.mrb[0].mxu0 %v1560
      %v1999 = vpop.f32.mrb[0].mxu0
      %v2000 = vadd.f32 0.0, %v1999
      %v2001 = vpop.f32.mrb[0].mxu0
      %v2002 = vpop.f32.mrb[0].mxu0
      %v2003 = vadd.f32 0.0, %v2002
      %v2004 = vpop.f32.mrb[0].mxu0
      %2005 = vmatprep.mubr.bf16.mxu0 0
      %2006 = vmatmul.mubr.bf16.gmra.mrb[0].mxu0 %v1563
      %v2007 = vpop.f32.mrb[0].mxu0
      %v2008 = vadd.f32 0.0, %v2007
      %v2009 = vpop.f32.mrb[0].mxu0
      %v2010 = vpop.f32.mrb[0].mxu0
      %v2011 = vadd.f32 0.0, %v2010
      %v2012 = vpop.f32.mrb[0].mxu0
      %2013 = vmatprep.mubr.bf16.mxu0 0
      %2014 = vmatmul.mubr.bf16.gmra.mrb[0].mxu0 %v1566
      %v2015 = vpop.f32.mrb[0].mxu0
      %v2016 = vadd.f32 0.0, %v2015
      %v2017 = vpop.f32.mrb[0].mxu0
      %v2018 = vpop.f32.mrb[0].mxu0
      %v2019 = vadd.f32 0.0, %v2018
      %v2020 = vpop.f32.mrb[0].mxu0
      %2021 = vmatprep.mubr.bf16.mxu0 0
      %2022 = vmatmul.mubr.bf16.gmra.mrb[0].mxu0 %v1569
      %v2023 = vpop.f32.mrb[0].mxu0
      %v2024 = vadd.f32 0.0, %v2023
      %v2025 = vpop.f32.mrb[0].mxu0
      %v2026 = vpop.f32.mrb[0].mxu0
      %v2027 = vadd.f32 0.0, %v2026
      %v2028 = vpop.f32.mrb[0].mxu0
      %2029 = vmatprep.mubr.bf16.mxu0 0
      %2030 = vmatmul.mubr.bf16.gmra.mrb[0].mxu0 %v1572
      %v2031 = vpop.f32.mrb[0].mxu0
      %v2032 = vadd.f32 0.0, %v2031
      %v2033 = vpop.f32.mrb[0].mxu0
      %v2034 = vpop.f32.mrb[0].mxu0
      %v2035 = vadd.f32 0.0, %v2034
      %v2036 = vpop.f32.mrb[0].mxu0
      %2037 = vmatprep.mubr.bf16.mxu0 0
      %2038 = vmatmul.mubr.bf16.gmra.mrb[0].mxu0 %v1575
      %v2039 = vpop.f32.mrb[0].mxu0
      %v2040 = vadd.f32 0.0, %v2039
      %v2041 = vpop.f32.mrb[0].mxu0
      %v2042 = vpop.f32.mrb[0].mxu0
      %v2043 = vadd.f32 0.0, %v2042
      %v2044 = vpop.f32.mrb[0].mxu0
      %2045 = vmatprep.mubr.bf16.mxu0 0
      %2046 = vmatmul.mubr.bf16.gmra.mrb[0].mxu0 %v1578
      %v2047 = vpop.f32.mrb[0].mxu0
      %v2048 = vadd.f32 0.0, %v2047
      %v2049 = vpop.f32.mrb[0].mxu0
      %v2050 = vpop.f32.mrb[0].mxu0
      %v2051 = vadd.f32 0.0, %v2050
      %v2052 = vpop.f32.mrb[0].mxu0
      %2053 = vmatprep.mubr.bf16.mxu0 0
      %2054 = vmatmul.mubr.bf16.gmra.mrb[0].mxu0 %v1581
      %v2055 = vpop.f32.mrb[0].mxu0
      %v2056 = vadd.f32 0.0, %v2055
      %v2057 = vpop.f32.mrb[0].mxu0
      %v2058 = vpop.f32.mrb[0].mxu0
      %v2059 = vadd.f32 0.0, %v2058
      %v2060 = vpop.f32.mrb[0].mxu0
      %2061 = vmatprep.mubr.bf16.mxu0 0
      %2062 = vmatmul.mubr.bf16.gmra.mrb[0].mxu0 %v1584
      %v2063 = vpop.f32.mrb[0].mxu0
      %v2064 = vadd.f32 0.0, %v2063
      %v2065 = vpop.f32.mrb[0].mxu0
      %v2066 = vpop.f32.mrb[0].mxu0
      %v2067 = vadd.f32 0.0, %v2066
      %v2068 = vpop.f32.mrb[0].mxu0
      %2069 = vmatprep.mubr.bf16.mxu0 0
      %2070 = vmatmul.mubr.bf16.gmra.mrb[0].mxu0 %v1587
      %v2071 = vpop.f32.mrb[0].mxu0
      %v2072 = vadd.f32 0.0, %v2071
      %v2073 = vpop.f32.mrb[0].mxu0
      %v2074 = vpop.f32.mrb[0].mxu0
      %v2075 = vadd.f32 0.0, %v2074
      %v2076 = vpop.f32.mrb[0].mxu0
      %2077 = vmatprep.mubr.bf16.mxu0 0
      %2078 = vmatmul.mubr.bf16.gmra.mrb[0].mxu0 %v1590
      %v2079 = vpop.f32.mrb[0].mxu0
      %v2080 = vadd.f32 0.0, %v2079
      %v2081 = vpop.f32.mrb[0].mxu0
      %v2082 = vpop.f32.mrb[0].mxu0
      %v2083 = vadd.f32 0.0, %v2082
      %v2084 = vpop.f32.mrb[0].mxu0
      %2085 = vmatprep.mubr.bf16.mxu0 0
      %2086 = vmatmul.mubr.bf16.gmra.mrb[0].mxu0 %v1593
      %v2087 = vpop.f32.mrb[0].mxu0
      %v2088 = vadd.f32 0.0, %v2087
      %v2089 = vpop.f32.mrb[0].mxu0
      %v2090 = vpop.f32.mrb[0].mxu0
      %v2091 = vadd.f32 0.0, %v2090
      %v2092 = vpop.f32.mrb[0].mxu0
      %2093 = vmatprep.mubr.bf16.mxu0 0
      %2094 = vmatmul.mubr.bf16.gmra.mrb[0].mxu0 %v1596
      %v2095 = vpop.f32.mrb[0].mxu0
      %v2096 = vadd.f32 0.0, %v2095
      %v2097 = vpop.f32.mrb[0].mxu0
      %v2098 = vpop.f32.mrb[0].mxu0
      %v2099 = vadd.f32 0.0, %v2098
      %v2100 = vpop.f32.mrb[0].mxu0
      %2101 = vmatprep.mubr.bf16.mxu0 0
      %2102 = vmatmul.mubr.bf16.gmra.mrb[0].mxu0 %v1599
      %v2103 = vpop.f32.mrb[0].mxu0
      %v2104 = vadd.f32 0.0, %v2103
      %v2105 = vpop.f32.mrb[0].mxu0
      %v2106 = vpop.f32.mrb[0].mxu0
      %v2107 = vadd.f32 0.0, %v2106
      %v2108 = vpop.f32.mrb[0].mxu0
      %2109 = vmatprep.mubr.bf16.mxu0 0
      %2110 = vmatmul.mubr.bf16.gmra.mrb[0].mxu0 %v1952
      %v2111 = vpop.f32.mrb[0].mxu0
      %v2112 = vadd.f32 0.0, %v2111
      %v2113 = vpop.f32.mrb[0].mxu0
      %v2114 = vpop.f32.mrb[0].mxu0
      %v2115 = vadd.f32 0.0, %v2114
      %v2116 = vpop.f32.mrb[0].mxu0
      %2117 = vdwg.mxu0
      %v2118 = vadd.f32 %v1816, %v1992
      %v2119 = vadd.f32 %v1819, %v1995
      %v2120 = vadd.f32 %v1824, %v2000
      %v2121 = vadd.f32 %v1827, %v2003
      %v2122 = vadd.f32 %v1832, %v2008
      %v2123 = vadd.f32 %v1835, %v2011
      %v2124 = vadd.f32 %v1840, %v2016
      %v2125 = vadd.f32 %v1843, %v2019
      %v2126 = vadd.f32 %v1848, %v2024
      %v2127 = vadd.f32 %v1851, %v2027
      %v2128 = vadd.f32 %v1856, %v2032
      %v2129 = vadd.f32 %v1859, %v2035
      %v2130 = vadd.f32 %v1864, %v2040
      %v2131 = vadd.f32 %v1867, %v2043
      %v2132 = vadd.f32 %v1872, %v2048
      %v2133 = vadd.f32 %v1875, %v2051
      %v2134 = vadd.f32 %v1880, %v2056
      %v2135 = vadd.f32 %v1883, %v2059
      %v2136 = vadd.f32 %v1888, %v2064
      %v2137 = vadd.f32 %v1891, %v2067
      %v2138 = vadd.f32 %v1896, %v2072
      %v2139 = vadd.f32 %v1899, %v2075
      %v2140 = vadd.f32 %v1904, %v2080
      %v2141 = vadd.f32 %v1907, %v2083
      %v2142 = vadd.f32 %v1912, %v2088
      %v2143 = vadd.f32 %v1915, %v2091
      %v2144 = vadd.f32 %v1920, %v2096
      %v2145 = vadd.f32 %v1923, %v2099
      %v2146 = vadd.f32 %v1928, %v2104
      %v2147 = vadd.f32 %v1931, %v2107
      %v2148 = vadd.f32 %v1936, %v2112
      %v2149 = vadd.f32 %v1939, %v2115
      %v2153 = vunpack.c.l.b16 %v1537
      %v2154 = vunpack.c.l.b16 %v1538
      %v2155 = vunpack.c.l.b16 %v1539
      %v2156 = vpack.c.b16 %v2154, %v2153
      %v2157 = vpack.c.b16 %v2155, %v2155
      %v2160 = vsel %vm1552, %v1526, 0
      %v2163 = vsel %vm1601, %v2157, 0
      %2165 = vmatprep.subr.bf16.mxu0 0
      %2166 = vmatpush1.bf16.msra.mxu0 %v2156
      %2167 = vmatprep.subr.bf16.mxu0 0
      %2168 = vmatpush1.bf16.msra.mxu0 %v2163
      %2169 = vmatprep.subr.bf16.mxu0 0
      %2170 = vmatpush1.bf16.msra.mxu0 0
      %2171 = vmatprep.subr.bf16.mxu0 0
      %2172 = vmatpush1.bf16.msra.mxu0 0
      %2173 = vmatprep.subr.bf16.mxu0 0
      %2174 = vmatpush1.bf16.msra.mxu0 0
      %2175 = vmatprep.subr.bf16.mxu0 0
      %2176 = vmatpush1.bf16.msra.mxu0 0
      %2177 = vmatprep.subr.bf16.mxu0 0
      %2178 = vmatpush1.bf16.msra.mxu0 0
      %2179 = vmatprep.subr.bf16.mxu0 0
      %2180 = vmatpush1.bf16.msra.mxu0 0
      %2181 = vmatprep.subr.bf16.mxu0 0
      %2182 = vmatpush1.bf16.msra.mxu0 0
      %2183 = vmatprep.subr.bf16.mxu0 0
      %2184 = vmatpush1.bf16.msra.mxu0 0
      %2185 = vmatprep.subr.bf16.mxu0 0
      %2186 = vmatpush1.bf16.msra.mxu0 0
      %2187 = vmatprep.subr.bf16.mxu0 0
      %2188 = vmatpush1.bf16.msra.mxu0 0
      %2189 = vmatprep.subr.bf16.mxu0 0
      %2190 = vmatpush1.bf16.msra.mxu0 0
      %2191 = vmatprep.subr.bf16.mxu0 0
      %2192 = vmatpush1.bf16.msra.mxu0 0
      %2193 = vmatprep.subr.bf16.mxu0 0
      %2194 = vmatpush1.bf16.msra.mxu0 0
      %2195 = vmatprep.subr.bf16.mxu0 0
      %2196 = vmatpush1.bf16.msra.mxu0 0
      %2197 = vmatprep.mubr.bf16.mxu0 0
      %2198 = vmatmul.mubr.bf16.gmra.mrb[0].mxu0 %v1560
      %v2199 = vpop.f32.mrb[0].mxu0
      %v2200 = vadd.f32 0.0, %v2199
      %v2201 = vpop.f32.mrb[0].mxu0
      %v2202 = vpop.f32.mrb[0].mxu0
      %v2203 = vadd.f32 0.0, %v2202
      %v2204 = vpop.f32.mrb[0].mxu0
      %2205 = vmatprep.mubr.bf16.mxu0 0
      %2206 = vmatmul.mubr.bf16.gmra.mrb[0].mxu0 %v1563
      %v2207 = vpop.f32.mrb[0].mxu0
      %v2208 = vadd.f32 0.0, %v2207
      %v2209 = vpop.f32.mrb[0].mxu0
      %v2210 = vpop.f32.mrb[0].mxu0
      %v2211 = vadd.f32 0.0, %v2210
      %v2212 = vpop.f32.mrb[0].mxu0
      %2213 = vmatprep.mubr.bf16.mxu0 0
      %2214 = vmatmul.mubr.bf16.gmra.mrb[0].mxu0 %v1566
      %v2215 = vpop.f32.mrb[0].mxu0
      %v2216 = vadd.f32 0.0, %v2215
      %v2217 = vpop.f32.mrb[0].mxu0
      %v2218 = vpop.f32.mrb[0].mxu0
      %v2219 = vadd.f32 0.0, %v2218
      %v2220 = vpop.f32.mrb[0].mxu0
      %2221 = vmatprep.mubr.bf16.mxu0 0
      %2222 = vmatmul.mubr.bf16.gmra.mrb[0].mxu0 %v1569
      %v2223 = vpop.f32.mrb[0].mxu0
      %v2224 = vadd.f32 0.0, %v2223
      %v2225 = vpop.f32.mrb[0].mxu0
      %v2226 = vpop.f32.mrb[0].mxu0
      %v2227 = vadd.f32 0.0, %v2226
      %v2228 = vpop.f32.mrb[0].mxu0
      %2229 = vmatprep.mubr.bf16.mxu0 0
      %2230 = vmatmul.mubr.bf16.gmra.mrb[0].mxu0 %v1572
      %v2231 = vpop.f32.mrb[0].mxu0
      %v2232 = vadd.f32 0.0, %v2231
      %v2233 = vpop.f32.mrb[0].mxu0
      %v2234 = vpop.f32.mrb[0].mxu0
      %v2235 = vadd.f32 0.0, %v2234
      %v2236 = vpop.f32.mrb[0].mxu0
      %2237 = vmatprep.mubr.bf16.mxu0 0
      %2238 = vmatmul.mubr.bf16.gmra.mrb[0].mxu0 %v1575
      %v2239 = vpop.f32.mrb[0].mxu0
      %v2240 = vadd.f32 0.0, %v2239
      %v2241 = vpop.f32.mrb[0].mxu0
      %v2242 = vpop.f32.mrb[0].mxu0
      %v2243 = vadd.f32 0.0, %v2242
      %v2244 = vpop.f32.mrb[0].mxu0
      %2245 = vmatprep.mubr.bf16.mxu0 0
      %2246 = vmatmul.mubr.bf16.gmra.mrb[0].mxu0 %v1578
      %v2247 = vpop.f32.mrb[0].mxu0
      %v2248 = vadd.f32 0.0, %v2247
      %v2249 = vpop.f32.mrb[0].mxu0
      %v2250 = vpop.f32.mrb[0].mxu0
      %v2251 = vadd.f32 0.0, %v2250
      %v2252 = vpop.f32.mrb[0].mxu0
      %2253 = vmatprep.mubr.bf16.mxu0 0
      %2254 = vmatmul.mubr.bf16.gmra.mrb[0].mxu0 %v1581
      %v2255 = vpop.f32.mrb[0].mxu0
      %v2256 = vadd.f32 0.0, %v2255
      %v2257 = vpop.f32.mrb[0].mxu0
      %v2258 = vpop.f32.mrb[0].mxu0
      %v2259 = vadd.f32 0.0, %v2258
      %v2260 = vpop.f32.mrb[0].mxu0
      %2261 = vmatprep.mubr.bf16.mxu0 0
      %2262 = vmatmul.mubr.bf16.gmra.mrb[0].mxu0 %v1584
      %v2263 = vpop.f32.mrb[0].mxu0
      %v2264 = vadd.f32 0.0, %v2263
      %v2265 = vpop.f32.mrb[0].mxu0
      %v2266 = vpop.f32.mrb[0].mxu0
      %v2267 = vadd.f32 0.0, %v2266
      %v2268 = vpop.f32.mrb[0].mxu0
      %2269 = vmatprep.mubr.bf16.mxu0 0
      %2270 = vmatmul.mubr.bf16.gmra.mrb[0].mxu0 %v1587
      %v2271 = vpop.f32.mrb[0].mxu0
      %v2272 = vadd.f32 0.0, %v2271
      %v2273 = vpop.f32.mrb[0].mxu0
      %v2274 = vpop.f32.mrb[0].mxu0
      %v2275 = vadd.f32 0.0, %v2274
      %v2276 = vpop.f32.mrb[0].mxu0
      %2277 = vmatprep.mubr.bf16.mxu0 0
      %2278 = vmatmul.mubr.bf16.gmra.mrb[0].mxu0 %v1590
      %v2279 = vpop.f32.mrb[0].mxu0
      %v2280 = vadd.f32 0.0, %v2279
      %v2281 = vpop.f32.mrb[0].mxu0
      %v2282 = vpop.f32.mrb[0].mxu0
      %v2283 = vadd.f32 0.0, %v2282
      %v2284 = vpop.f32.mrb[0].mxu0
      %2285 = vmatprep.mubr.bf16.mxu0 0
      %2286 = vmatmul.mubr.bf16.gmra.mrb[0].mxu0 %v1593
      %v2287 = vpop.f32.mrb[0].mxu0
      %v2288 = vadd.f32 0.0, %v2287
      %v2289 = vpop.f32.mrb[0].mxu0
      %v2290 = vpop.f32.mrb[0].mxu0
      %v2291 = vadd.f32 0.0, %v2290
      %v2292 = vpop.f32.mrb[0].mxu0
      %2293 = vmatprep.mubr.bf16.mxu0 0
      %2294 = vmatmul.mubr.bf16.gmra.mrb[0].mxu0 %v1596
      %v2295 = vpop.f32.mrb[0].mxu0
      %v2296 = vadd.f32 0.0, %v2295
      %v2297 = vpop.f32.mrb[0].mxu0
      %v2298 = vpop.f32.mrb[0].mxu0
      %v2299 = vadd.f32 0.0, %v2298
      %v2300 = vpop.f32.mrb[0].mxu0
      %2301 = vmatprep.mubr.bf16.mxu0 0
      %2302 = vmatmul.mubr.bf16.gmra.mrb[0].mxu0 %v1599
      %v2303 = vpop.f32.mrb[0].mxu0
      %v2304 = vadd.f32 0.0, %v2303
      %v2305 = vpop.f32.mrb[0].mxu0
      %v2306 = vpop.f32.mrb[0].mxu0
      %v2307 = vadd.f32 0.0, %v2306
      %v2308 = vpop.f32.mrb[0].mxu0
      %2309 = vmatprep.mubr.bf16.mxu0 0
      %2310 = vmatmul.mubr.bf16.gmra.mrb[0].mxu0 %v1952
      %v2311 = vpop.f32.mrb[0].mxu0
      %v2312 = vadd.f32 0.0, %v2311
      %v2313 = vpop.f32.mrb[0].mxu0
      %v2314 = vpop.f32.mrb[0].mxu0
      %v2315 = vadd.f32 0.0, %v2314
      %v2316 = vpop.f32.mrb[0].mxu0
      %2317 = vmatprep.mubr.bf16.mxu0 0
      %2318 = vmatmul.mubr.bf16.gmra.mrb[0].mxu0 %v2160
      %v2319 = vpop.f32.mrb[0].mxu0
      %v2320 = vadd.f32 0.0, %v2319
      %v2321 = vpop.f32.mrb[0].mxu0
      %v2322 = vpop.f32.mrb[0].mxu0
      %v2323 = vadd.f32 0.0, %v2322
      %v2324 = vpop.f32.mrb[0].mxu0
      %2325 = vdwg.mxu0
      %v2326 = vadd.f32 %v2118, %v2200
      %v2327 = vadd.f32 %v2119, %v2203
      %v2328 = vadd.f32 %v2120, %v2208
      %v2329 = vadd.f32 %v2121, %v2211
      %v2330 = vadd.f32 %v2122, %v2216
      %v2331 = vadd.f32 %v2123, %v2219
      %v2332 = vadd.f32 %v2124, %v2224
      %v2333 = vadd.f32 %v2125, %v2227
      %v2334 = vadd.f32 %v2126, %v2232
      %v2335 = vadd.f32 %v2127, %v2235
      %v2336 = vadd.f32 %v2128, %v2240
      %v2337 = vadd.f32 %v2129, %v2243
      %v2338 = vadd.f32 %v2130, %v2248
      %v2339 = vadd.f32 %v2131, %v2251
      %v2340 = vadd.f32 %v2132, %v2256
      %v2341 = vadd.f32 %v2133, %v2259
      %v2342 = vadd.f32 %v2134, %v2264
      %v2343 = vadd.f32 %v2135, %v2267
      %v2344 = vadd.f32 %v2136, %v2272
      %v2345 = vadd.f32 %v2137, %v2275
      %v2346 = vadd.f32 %v2138, %v2280
      %v2347 = vadd.f32 %v2139, %v2283
      %v2348 = vadd.f32 %v2140, %v2288
      %v2349 = vadd.f32 %v2141, %v2291
      %v2350 = vadd.f32 %v2142, %v2296
      %v2351 = vadd.f32 %v2143, %v2299
      %v2352 = vadd.f32 %v2144, %v2304
      %v2353 = vadd.f32 %v2145, %v2307
      %v2354 = vadd.f32 %v2146, %v2312
      %v2355 = vadd.f32 %v2147, %v2315
      %v2356 = vadd.f32 %v2148, %v2320
      %v2357 = vadd.f32 %v2149, %v2323
      %v2361 = vunpack.c.l.b16 %v1540
      %v2362 = vunpack.c.l.b16 %v1541
      %v2363 = vunpack.c.l.b16 %v1542
      %v2364 = vpack.c.b16 %v2362, %v2361
      %v2365 = vpack.c.b16 %v2363, %v2363
      %v2368 = vsel %vm1552, %v1527, 0
      %v2371 = vsel %vm1601, %v2365, 0
      %2373 = vmatprep.subr.bf16.mxu0 0
      %2374 = vmatpush1.bf16.msra.mxu0 %v2364
      %2375 = vmatprep.subr.bf16.mxu0 0
      %2376 = vmatpush1.bf16.msra.mxu0 %v2371
      %2377 = vmatprep.subr.bf16.mxu0 0
      %2378 = vmatpush1.bf16.msra.mxu0 0
      %2379 = vmatprep.subr.bf16.mxu0 0
      %2380 = vmatpush1.bf16.msra.mxu0 0
      %2381 = vmatprep.subr.bf16.mxu0 0
      %2382 = vmatpush1.bf16.msra.mxu0 0
      %2383 = vmatprep.subr.bf16.mxu0 0
      %2384 = vmatpush1.bf16.msra.mxu0 0
      %2385 = vmatprep.subr.bf16.mxu0 0
      %2386 = vmatpush1.bf16.msra.mxu0 0
      %2387 = vmatprep.subr.bf16.mxu0 0
      %2388 = vmatpush1.bf16.msra.mxu0 0
      %2389 = vmatprep.subr.bf16.mxu0 0
      %2390 = vmatpush1.bf16.msra.mxu0 0
      %2391 = vmatprep.subr.bf16.mxu0 0
      %2392 = vmatpush1.bf16.msra.mxu0 0
      %2393 = vmatprep.subr.bf16.mxu0 0
      %2394 = vmatpush1.bf16.msra.mxu0 0
      %2395 = vmatprep.subr.bf16.mxu0 0
      %2396 = vmatpush1.bf16.msra.mxu0 0
      %2397 = vmatprep.subr.bf16.mxu0 0
      %2398 = vmatpush1.bf16.msra.mxu0 0
      %2399 = vmatprep.subr.bf16.mxu0 0
      %2400 = vmatpush1.bf16.msra.mxu0 0
      %2401 = vmatprep.subr.bf16.mxu0 0
      %2402 = vmatpush1.bf16.msra.mxu0 0
      %2403 = vmatprep.subr.bf16.mxu0 0
      %2404 = vmatpush1.bf16.msra.mxu0 0
      %2405 = vmatprep.mubr.bf16.mxu0 0
      %2406 = vmatmul.mubr.bf16.gmra.mrb[0].mxu0 %v1563
      %v2407 = vpop.f32.mrb[0].mxu0
      %v2408 = vadd.f32 0.0, %v2407
      %v2409 = vpop.f32.mrb[0].mxu0
      %v2410 = vpop.f32.mrb[0].mxu0
      %v2411 = vadd.f32 0.0, %v2410
      %v2412 = vpop.f32.mrb[0].mxu0
      %2413 = vmatprep.mubr.bf16.mxu0 0
      %2414 = vmatmul.mubr.bf16.gmra.mrb[0].mxu0 %v1566
      %v2415 = vpop.f32.mrb[0].mxu0
      %v2416 = vadd.f32 0.0, %v2415
      %v2417 = vpop.f32.mrb[0].mxu0
      %v2418 = vpop.f32.mrb[0].mxu0
      %v2419 = vadd.f32 0.0, %v2418
      %v2420 = vpop.f32.mrb[0].mxu0
      %2421 = vmatprep.mubr.bf16.mxu0 0
      %2422 = vmatmul.mubr.bf16.gmra.mrb[0].mxu0 %v1569
      %v2423 = vpop.f32.mrb[0].mxu0
      %v2424 = vadd.f32 0.0, %v2423
      %v2425 = vpop.f32.mrb[0].mxu0
      %v2426 = vpop.f32.mrb[0].mxu0
      %v2427 = vadd.f32 0.0, %v2426
      %v2428 = vpop.f32.mrb[0].mxu0
      %2429 = vmatprep.mubr.bf16.mxu0 0
      %2430 = vmatmul.mubr.bf16.gmra.mrb[0].mxu0 %v1572
      %v2431 = vpop.f32.mrb[0].mxu0
      %v2432 = vadd.f32 0.0, %v2431
      %v2433 = vpop.f32.mrb[0].mxu0
      %v2434 = vpop.f32.mrb[0].mxu0
      %v2435 = vadd.f32 0.0, %v2434
      %v2436 = vpop.f32.mrb[0].mxu0
      %2437 = vmatprep.mubr.bf16.mxu0 0
      %2438 = vmatmul.mubr.bf16.gmra.mrb[0].mxu0 %v1575
      %v2439 = vpop.f32.mrb[0].mxu0
      %v2440 = vadd.f32 0.0, %v2439
      %v2441 = vpop.f32.mrb[0].mxu0
      %v2442 = vpop.f32.mrb[0].mxu0
      %v2443 = vadd.f32 0.0, %v2442
      %v2444 = vpop.f32.mrb[0].mxu0
      %2445 = vmatprep.mubr.bf16.mxu0 0
      %2446 = vmatmul.mubr.bf16.gmra.mrb[0].mxu0 %v1578
      %v2447 = vpop.f32.mrb[0].mxu0
      %v2448 = vadd.f32 0.0, %v2447
      %v2449 = vpop.f32.mrb[0].mxu0
      %v2450 = vpop.f32.mrb[0].mxu0
      %v2451 = vadd.f32 0.0, %v2450
      %v2452 = vpop.f32.mrb[0].mxu0
      %2453 = vmatprep.mubr.bf16.mxu0 0
      %2454 = vmatmul.mubr.bf16.gmra.mrb[0].mxu0 %v1581
      %v2455 = vpop.f32.mrb[0].mxu0
      %v2456 = vadd.f32 0.0, %v2455
      %v2457 = vpop.f32.mrb[0].mxu0
      %v2458 = vpop.f32.mrb[0].mxu0
      %v2459 = vadd.f32 0.0, %v2458
      %v2460 = vpop.f32.mrb[0].mxu0
      %2461 = vmatprep.mubr.bf16.mxu0 0
      %2462 = vmatmul.mubr.bf16.gmra.mrb[0].mxu0 %v1584
      %v2463 = vpop.f32.mrb[0].mxu0
      %v2464 = vadd.f32 0.0, %v2463
      %v2465 = vpop.f32.mrb[0].mxu0
      %v2466 = vpop.f32.mrb[0].mxu0
      %v2467 = vadd.f32 0.0, %v2466
      %v2468 = vpop.f32.mrb[0].mxu0
      %2469 = vmatprep.mubr.bf16.mxu0 0
      %2470 = vmatmul.mubr.bf16.gmra.mrb[0].mxu0 %v1587
      %v2471 = vpop.f32.mrb[0].mxu0
      %v2472 = vadd.f32 0.0, %v2471
      %v2473 = vpop.f32.mrb[0].mxu0
      %v2474 = vpop.f32.mrb[0].mxu0
      %v2475 = vadd.f32 0.0, %v2474
      %v2476 = vpop.f32.mrb[0].mxu0
      %2477 = vmatprep.mubr.bf16.mxu0 0
      %2478 = vmatmul.mubr.bf16.gmra.mrb[0].mxu0 %v1590
      %v2479 = vpop.f32.mrb[0].mxu0
      %v2480 = vadd.f32 0.0, %v2479
      %v2481 = vpop.f32.mrb[0].mxu0
      %v2482 = vpop.f32.mrb[0].mxu0
      %v2483 = vadd.f32 0.0, %v2482
      %v2484 = vpop.f32.mrb[0].mxu0
      %2485 = vmatprep.mubr.bf16.mxu0 0
      %2486 = vmatmul.mubr.bf16.gmra.mrb[0].mxu0 %v1593
      %v2487 = vpop.f32.mrb[0].mxu0
      %v2488 = vadd.f32 0.0, %v2487
      %v2489 = vpop.f32.mrb[0].mxu0
      %v2490 = vpop.f32.mrb[0].mxu0
      %v2491 = vadd.f32 0.0, %v2490
      %v2492 = vpop.f32.mrb[0].mxu0
      %2493 = vmatprep.mubr.bf16.mxu0 0
      %2494 = vmatmul.mubr.bf16.gmra.mrb[0].mxu0 %v1596
      %v2495 = vpop.f32.mrb[0].mxu0
      %v2496 = vadd.f32 0.0, %v2495
      %v2497 = vpop.f32.mrb[0].mxu0
      %v2498 = vpop.f32.mrb[0].mxu0
      %v2499 = vadd.f32 0.0, %v2498
      %v2500 = vpop.f32.mrb[0].mxu0
      %2501 = vmatprep.mubr.bf16.mxu0 0
      %2502 = vmatmul.mubr.bf16.gmra.mrb[0].mxu0 %v1599
      %v2503 = vpop.f32.mrb[0].mxu0
      %v2504 = vadd.f32 0.0, %v2503
      %v2505 = vpop.f32.mrb[0].mxu0
      %v2506 = vpop.f32.mrb[0].mxu0
      %v2507 = vadd.f32 0.0, %v2506
      %v2508 = vpop.f32.mrb[0].mxu0
      %2509 = vmatprep.mubr.bf16.mxu0 0
      %2510 = vmatmul.mubr.bf16.gmra.mrb[0].mxu0 %v1952
      %v2511 = vpop.f32.mrb[0].mxu0
      %v2512 = vadd.f32 0.0, %v2511
      %v2513 = vpop.f32.mrb[0].mxu0
      %v2514 = vpop.f32.mrb[0].mxu0
      %v2515 = vadd.f32 0.0, %v2514
      %v2516 = vpop.f32.mrb[0].mxu0
      %2517 = vmatprep.mubr.bf16.mxu0 0
      %2518 = vmatmul.mubr.bf16.gmra.mrb[0].mxu0 %v2160
      %v2519 = vpop.f32.mrb[0].mxu0
      %v2520 = vadd.f32 0.0, %v2519
      %v2521 = vpop.f32.mrb[0].mxu0
      %v2522 = vpop.f32.mrb[0].mxu0
      %v2523 = vadd.f32 0.0, %v2522
      %v2524 = vpop.f32.mrb[0].mxu0
      %2525 = vmatprep.mubr.bf16.mxu0 0
      %2526 = vmatmul.mubr.bf16.gmra.mrb[0].mxu0 %v2368
      %v2527 = vpop.f32.mrb[0].mxu0
      %v2528 = vadd.f32 0.0, %v2527
      %v2529 = vpop.f32.mrb[0].mxu0
      %v2530 = vpop.f32.mrb[0].mxu0
      %v2531 = vadd.f32 0.0, %v2530
      %v2532 = vpop.f32.mrb[0].mxu0
      %2533 = vdwg.mxu0
      %v2534 = vadd.f32 %v2326, %v2408
      %v2535 = vadd.f32 %v2327, %v2411
      %v2536 = vadd.f32 %v2328, %v2416
      %v2537 = vadd.f32 %v2329, %v2419
      %v2538 = vadd.f32 %v2330, %v2424
      %v2539 = vadd.f32 %v2331, %v2427
      %v2540 = vadd.f32 %v2332, %v2432
      %v2541 = vadd.f32 %v2333, %v2435
      %v2542 = vadd.f32 %v2334, %v2440
      %v2543 = vadd.f32 %v2335, %v2443
      %v2544 = vadd.f32 %v2336, %v2448
      %v2545 = vadd.f32 %v2337, %v2451
      %v2546 = vadd.f32 %v2338, %v2456
      %v2547 = vadd.f32 %v2339, %v2459
      %v2548 = vadd.f32 %v2340, %v2464
      %v2549 = vadd.f32 %v2341, %v2467
      %v2550 = vadd.f32 %v2342, %v2472
      %v2551 = vadd.f32 %v2343, %v2475
      %v2552 = vadd.f32 %v2344, %v2480
      %v2553 = vadd.f32 %v2345, %v2483
      %v2554 = vadd.f32 %v2346, %v2488
      %v2555 = vadd.f32 %v2347, %v2491
      %v2556 = vadd.f32 %v2348, %v2496
      %v2557 = vadd.f32 %v2349, %v2499
      %v2558 = vadd.f32 %v2350, %v2504
      %v2559 = vadd.f32 %v2351, %v2507
      %v2560 = vadd.f32 %v2352, %v2512
      %v2561 = vadd.f32 %v2353, %v2515
      %v2562 = vadd.f32 %v2354, %v2520
      %v2563 = vadd.f32 %v2355, %v2523
      %v2564 = vadd.f32 %v2356, %v2528
      %v2565 = vadd.f32 %v2357, %v2531
      %v2566 = vpack.c.bf16 %v2535, %v2534
      %v2567 = vpack.c.bf16 %v2537, %v2536
      %v2568 = vpack.c.bf16 %v2539, %v2538
      %v2569 = vpack.c.bf16 %v2541, %v2540
      %v2570 = vpack.c.bf16 %v2543, %v2542
      %v2571 = vpack.c.bf16 %v2545, %v2544
      %v2572 = vpack.c.bf16 %v2547, %v2546
      %v2573 = vpack.c.bf16 %v2549, %v2548
      %v2574 = vpack.c.bf16 %v2551, %v2550
      %v2575 = vpack.c.bf16 %v2553, %v2552
      %v2576 = vpack.c.bf16 %v2555, %v2554
      %v2577 = vpack.c.bf16 %v2557, %v2556
      %v2578 = vpack.c.bf16 %v2559, %v2558
      %v2579 = vpack.c.bf16 %v2561, %v2560
      %v2580 = vpack.c.bf16 %v2563, %v2562
      %v2581 = vpack.c.bf16 %v2565, %v2564
      %v2598 = vunpack.c.l.b16 %v2566
      %v2599 = vunpack.c.h.b16 %v2566
      %v2600 = vunpack.c.l.b16 %v2567
      %v2601 = vunpack.c.h.b16 %v2567
      %v2602 = vunpack.c.l.b16 %v2568
      %v2603 = vunpack.c.h.b16 %v2568
      %v2604 = vunpack.c.l.b16 %v2569
      %v2605 = vunpack.c.h.b16 %v2569
      %v2606 = vunpack.c.l.b16 %v2570
      %v2607 = vunpack.c.h.b16 %v2570
      %v2608 = vunpack.c.l.b16 %v2571
      %v2609 = vunpack.c.h.b16 %v2571
      %v2610 = vunpack.c.l.b16 %v2572
      %v2611 = vunpack.c.h.b16 %v2572
      %v2612 = vunpack.c.l.b16 %v2573
      %v2613 = vunpack.c.h.b16 %v2573
      %v2614 = vunpack.c.l.b16 %v2574
      %v2615 = vunpack.c.h.b16 %v2574
      %v2616 = vunpack.c.l.b16 %v2575
      %v2617 = vunpack.c.h.b16 %v2575
      %v2618 = vunpack.c.l.b16 %v2576
      %v2619 = vunpack.c.h.b16 %v2576
      %v2620 = vunpack.c.l.b16 %v2577
      %v2621 = vunpack.c.h.b16 %v2577
      %v2622 = vunpack.c.l.b16 %v2578
      %v2623 = vunpack.c.h.b16 %v2578
      %v2624 = vunpack.c.l.b16 %v2579
      %v2625 = vunpack.c.h.b16 %v2579
      %v2626 = vunpack.c.l.b16 %v2580
      %v2627 = vunpack.c.h.b16 %v2580
      %v2628 = vunpack.c.l.b16 %v2581
      %v2629 = vunpack.c.h.b16 %v2581
      %v2630 = vpack.c.b16 %v2598, %v2598
      %v2631 = vpack.c.b16 %v2599, %v2599
      %v2632 = vpack.c.b16 %v2600, %v2600
      %v2633 = vpack.c.b16 %v2601, %v2601
      %v2634 = vpack.c.b16 %v2602, %v2602
      %v2635 = vpack.c.b16 %v2603, %v2603
      %v2636 = vpack.c.b16 %v2604, %v2604
      %v2637 = vpack.c.b16 %v2605, %v2605
      %v2638 = vpack.c.b16 %v2606, %v2606
      %v2639 = vpack.c.b16 %v2607, %v2607
      %v2640 = vpack.c.b16 %v2608, %v2608
      %v2641 = vpack.c.b16 %v2609, %v2609
      %v2642 = vpack.c.b16 %v2610, %v2610
      %v2643 = vpack.c.b16 %v2611, %v2611
      %v2644 = vpack.c.b16 %v2612, %v2612
      %v2645 = vpack.c.b16 %v2613, %v2613
      %v2646 = vpack.c.b16 %v2614, %v2614
      %v2647 = vpack.c.b16 %v2615, %v2615
      %v2648 = vpack.c.b16 %v2616, %v2616
      %v2649 = vpack.c.b16 %v2617, %v2617
      %v2650 = vpack.c.b16 %v2618, %v2618
      %v2651 = vpack.c.b16 %v2619, %v2619
      %v2652 = vpack.c.b16 %v2620, %v2620
      %v2653 = vpack.c.b16 %v2621, %v2621
      %v2654 = vpack.c.b16 %v2622, %v2622
      %v2655 = vpack.c.b16 %v2623, %v2623
      %v2656 = vpack.c.b16 %v2624, %v2624
      %v2657 = vpack.c.b16 %v2625, %v2625
      %v2658 = vpack.c.b16 %v2626, %v2626
      %v2659 = vpack.c.b16 %v2627, %v2627
      %v2660 = vpack.c.b16 %v2628, %v2628
      %v2661 = vpack.c.b16 %v2629, %v2629
      %vm2694 = vcmask 60416
      %2695 = vst.msk [vmem:[%s176] sm:$0xf] %vm2694, %v2630
      %2696 = vst.msk [vmem:[%s176 + $0x4] sm:$0xf] %vm2694, %v2631
      %2697 = vst.msk [vmem:[%s176 + $0x8] sm:$0xf] %vm2694, %v2632
      %2698 = vst.msk [vmem:[%s176 + $0xc] sm:$0xf] %vm2694, %v2633
      %2699 = vst.msk [vmem:[%s176 + $0x10] sm:$0xf] %vm2694, %v2634
      %2700 = vst.msk [vmem:[%s176 + $0x14] sm:$0xf] %vm2694, %v2635
      %2701 = vst.msk [vmem:[%s176 + $0x18] sm:$0xf] %vm2694, %v2636
      %2702 = vst.msk [vmem:[%s176 + $0x1c] sm:$0xf] %vm2694, %v2637
      %2703 = vst.msk [vmem:[%s176 + $0x20] sm:$0xf] %vm2694, %v2638
      %2704 = vst.msk [vmem:[%s176 + $0x24] sm:$0xf] %vm2694, %v2639
      %2705 = vst.msk [vmem:[%s176 + $0x28] sm:$0xf] %vm2694, %v2640
      %2706 = vst.msk [vmem:[%s176 + $0x2c] sm:$0xf] %vm2694, %v2641
      %2707 = vst.msk [vmem:[%s176 + $0x30] sm:$0xf] %vm2694, %v2642
      %2708 = vst.msk [vmem:[%s176 + $0x34] sm:$0xf] %vm2694, %v2643
      %2709 = vst.msk [vmem:[%s176 + $0x38] sm:$0xf] %vm2694, %v2644
      %2710 = vst.msk [vmem:[%s176 + $0x3c] sm:$0xf] %vm2694, %v2645
      %2711 = vst.msk [vmem:[%s176 + $0x40] sm:$0xf] %vm2694, %v2646
      %2712 = vst.msk [vmem:[%s176 + $0x44] sm:$0xf] %vm2694, %v2647
      %2713 = vst.msk [vmem:[%s176 + $0x48] sm:$0xf] %vm2694, %v2648
      %2714 = vst.msk [vmem:[%s176 + $0x4c] sm:$0xf] %vm2694, %v2649
      %2715 = vst.msk [vmem:[%s176 + $0x50] sm:$0xf] %vm2694, %v2650
      %2716 = vst.msk [vmem:[%s176 + $0x54] sm:$0xf] %vm2694, %v2651
      %2717 = vst.msk [vmem:[%s176 + $0x58] sm:$0xf] %vm2694, %v2652
      %2718 = vst.msk [vmem:[%s176 + $0x5c] sm:$0xf] %vm2694, %v2653
      %2719 = vst.msk [vmem:[%s176 + $0x60] sm:$0xf] %vm2694, %v2654
      %2720 = vst.msk [vmem:[%s176 + $0x64] sm:$0xf] %vm2694, %v2655
      %2721 = vst.msk [vmem:[%s176 + $0x68] sm:$0xf] %vm2694, %v2656
      %2722 = vst.msk [vmem:[%s176 + $0x6c] sm:$0xf] %vm2694, %v2657
      %2723 = vst.msk [vmem:[%s176 + $0x70] sm:$0xf] %vm2694, %v2658
      %2724 = vst.msk [vmem:[%s176 + $0x74] sm:$0xf] %vm2694, %v2659
      %2725 = vst.msk [vmem:[%s176 + $0x78] sm:$0xf] %vm2694, %v2660
      %2726 = vst.msk [vmem:[%s176 + $0x7c] sm:$0xf] %vm2694, %v2661
      %v2727 = vsel %vm1385, %v2534, 0.0
      %v2728 = vsel %vm1385, %v2535, 0.0
      %v2729 = vadd.f32 %v2727, %v2728
      %v2730 = vsel %vm1385, %v2536, 0.0
      %v2731 = vadd.f32 %v2729, %v2730
      %v2732 = vsel %vm1385, %v2537, 0.0
      %v2733 = vadd.f32 %v2731, %v2732
      %v2734 = vsel %vm1385, %v2538, 0.0
      %v2735 = vadd.f32 %v2733, %v2734
      %v2736 = vsel %vm1385, %v2539, 0.0
      %v2737 = vadd.f32 %v2735, %v2736
      %v2738 = vsel %vm1385, %v2540, 0.0
      %v2739 = vadd.f32 %v2737, %v2738
      %v2740 = vsel %vm1385, %v2541, 0.0
      %v2741 = vadd.f32 %v2739, %v2740
      %v2742 = vsel %vm1385, %v2542, 0.0
      %v2743 = vadd.f32 %v2741, %v2742
      %v2744 = vsel %vm1385, %v2543, 0.0
      %v2745 = vadd.f32 %v2743, %v2744
      %v2746 = vsel %vm1385, %v2544, 0.0
      %v2747 = vadd.f32 %v2745, %v2746
      %v2748 = vsel %vm1385, %v2545, 0.0
      %v2749 = vadd.f32 %v2747, %v2748
      %v2750 = vsel %vm1385, %v2546, 0.0
      %v2751 = vadd.f32 %v2749, %v2750
      %v2752 = vsel %vm1385, %v2547, 0.0
      %v2753 = vadd.f32 %v2751, %v2752
      %v2754 = vsel %vm1385, %v2548, 0.0
      %v2755 = vadd.f32 %v2753, %v2754
      %v2756 = vsel %vm1385, %v2549, 0.0
      %v2757 = vadd.f32 %v2755, %v2756
      %v2758 = vsel %vm1385, %v2550, 0.0
      %v2759 = vadd.f32 %v2757, %v2758
      %v2760 = vsel %vm1385, %v2551, 0.0
      %v2761 = vadd.f32 %v2759, %v2760
      %v2762 = vsel %vm1385, %v2552, 0.0
      %v2763 = vadd.f32 %v2761, %v2762
      %v2764 = vsel %vm1385, %v2553, 0.0
      %v2765 = vadd.f32 %v2763, %v2764
      %v2766 = vsel %vm1385, %v2554, 0.0
      %v2767 = vadd.f32 %v2765, %v2766
      %v2768 = vsel %vm1385, %v2555, 0.0
      %v2769 = vadd.f32 %v2767, %v2768
      %v2770 = vsel %vm1385, %v2556, 0.0
      %v2771 = vadd.f32 %v2769, %v2770
      %v2772 = vsel %vm1385, %v2557, 0.0
      %v2773 = vadd.f32 %v2771, %v2772
      %v2774 = vsel %vm1385, %v2558, 0.0
      %v2775 = vadd.f32 %v2773, %v2774
      %v2776 = vsel %vm1385, %v2559, 0.0
      %v2777 = vadd.f32 %v2775, %v2776
      %v2778 = vsel %vm1385, %v2560, 0.0
      %v2779 = vadd.f32 %v2777, %v2778
      %v2780 = vsel %vm1385, %v2561, 0.0
      %v2781 = vadd.f32 %v2779, %v2780
      %v2782 = vsel %vm1385, %v2562, 0.0
      %v2783 = vadd.f32 %v2781, %v2782
      %v2784 = vsel %vm1385, %v2563, 0.0
      %v2785 = vadd.f32 %v2783, %v2784
      %v2786 = vsel %vm1385, %v2564, 0.0
      %v2787 = vadd.f32 %v2785, %v2786
      %v2788 = vsel %vm1385, %v2565, 0.0
      %v2789 = vadd.f32 %v2787, %v2788
      %v2790 = vrot.slane %v2789, 4
      %v2791 = vadd.f32 %v2789, %v2790
      %v2792 = vrot.slane %v2791, 2
      %v2793 = vadd.f32 %v2791, %v2792
      %v2794 = vrot.slane %v2793, 1
      %v2795 = vadd.f32 %v2793, %v2794
      %v2796 = vmul.f32 %v2534, %v2534
      %v2797 = vmul.f32 %v2535, %v2535
      %v2798 = vmul.f32 %v2536, %v2536
      %v2799 = vmul.f32 %v2537, %v2537
      %v2800 = vmul.f32 %v2538, %v2538
      %v2801 = vmul.f32 %v2539, %v2539
      %v2802 = vmul.f32 %v2540, %v2540
      %v2803 = vmul.f32 %v2541, %v2541
      %v2804 = vmul.f32 %v2542, %v2542
      %v2805 = vmul.f32 %v2543, %v2543
      %v2806 = vmul.f32 %v2544, %v2544
      %v2807 = vmul.f32 %v2545, %v2545
      %v2808 = vmul.f32 %v2546, %v2546
      %v2809 = vmul.f32 %v2547, %v2547
      %v2810 = vmul.f32 %v2548, %v2548
      %v2811 = vmul.f32 %v2549, %v2549
      %v2812 = vmul.f32 %v2550, %v2550
      %v2813 = vmul.f32 %v2551, %v2551
      %v2814 = vmul.f32 %v2552, %v2552
      %v2815 = vmul.f32 %v2553, %v2553
      %v2816 = vmul.f32 %v2554, %v2554
      %v2817 = vmul.f32 %v2555, %v2555
      %v2818 = vmul.f32 %v2556, %v2556
      %v2819 = vmul.f32 %v2557, %v2557
      %v2820 = vmul.f32 %v2558, %v2558
      %v2821 = vmul.f32 %v2559, %v2559
      %v2822 = vmul.f32 %v2560, %v2560
      %v2823 = vmul.f32 %v2561, %v2561
      %v2824 = vmul.f32 %v2562, %v2562
      %v2825 = vmul.f32 %v2563, %v2563
      %v2826 = vmul.f32 %v2564, %v2564
      %v2827 = vmul.f32 %v2565, %v2565
      %v2828 = vsel %vm1385, %v2796, 0.0
      %v2829 = vsel %vm1385, %v2797, 0.0
      %v2830 = vadd.f32 %v2828, %v2829
      %v2831 = vsel %vm1385, %v2798, 0.0
      %v2832 = vadd.f32 %v2830, %v2831
      %v2833 = vsel %vm1385, %v2799, 0.0
      %v2834 = vadd.f32 %v2832, %v2833
      %v2835 = vsel %vm1385, %v2800, 0.0
      %v2836 = vadd.f32 %v2834, %v2835
      %v2837 = vsel %vm1385, %v2801, 0.0
      %v2838 = vadd.f32 %v2836, %v2837
      %v2839 = vsel %vm1385, %v2802, 0.0
      %v2840 = vadd.f32 %v2838, %v2839
      %v2841 = vsel %vm1385, %v2803, 0.0
      %v2842 = vadd.f32 %v2840, %v2841
      %v2843 = vsel %vm1385, %v2804, 0.0
      %v2844 = vadd.f32 %v2842, %v2843
      %v2845 = vsel %vm1385, %v2805, 0.0
      %v2846 = vadd.f32 %v2844, %v2845
      %v2847 = vsel %vm1385, %v2806, 0.0
      %v2848 = vadd.f32 %v2846, %v2847
      %v2849 = vsel %vm1385, %v2807, 0.0
      %v2850 = vadd.f32 %v2848, %v2849
      %v2851 = vsel %vm1385, %v2808, 0.0
      %v2852 = vadd.f32 %v2850, %v2851
      %v2853 = vsel %vm1385, %v2809, 0.0
      %v2854 = vadd.f32 %v2852, %v2853
      %v2855 = vsel %vm1385, %v2810, 0.0
      %v2856 = vadd.f32 %v2854, %v2855
      %v2857 = vsel %vm1385, %v2811, 0.0
      %v2858 = vadd.f32 %v2856, %v2857
      %v2859 = vsel %vm1385, %v2812, 0.0
      %v2860 = vadd.f32 %v2858, %v2859
      %v2861 = vsel %vm1385, %v2813, 0.0
      %v2862 = vadd.f32 %v2860, %v2861
      %v2863 = vsel %vm1385, %v2814, 0.0
      %v2864 = vadd.f32 %v2862, %v2863
      %v2865 = vsel %vm1385, %v2815, 0.0
      %v2866 = vadd.f32 %v2864, %v2865
      %v2867 = vsel %vm1385, %v2816, 0.0
      %v2868 = vadd.f32 %v2866, %v2867
      %v2869 = vsel %vm1385, %v2817, 0.0
      %v2870 = vadd.f32 %v2868, %v2869
      %v2871 = vsel %vm1385, %v2818, 0.0
      %v2872 = vadd.f32 %v2870, %v2871
      %v2873 = vsel %vm1385, %v2819, 0.0
      %v2874 = vadd.f32 %v2872, %v2873
      %v2875 = vsel %vm1385, %v2820, 0.0
      %v2876 = vadd.f32 %v2874, %v2875
      %v2877 = vsel %vm1385, %v2821, 0.0
      %v2878 = vadd.f32 %v2876, %v2877
      %v2879 = vsel %vm1385, %v2822, 0.0
      %v2880 = vadd.f32 %v2878, %v2879
      %v2881 = vsel %vm1385, %v2823, 0.0
      %v2882 = vadd.f32 %v2880, %v2881
      %v2883 = vsel %vm1385, %v2824, 0.0
      %v2884 = vadd.f32 %v2882, %v2883
      %v2885 = vsel %vm1385, %v2825, 0.0
      %v2886 = vadd.f32 %v2884, %v2885
      %v2887 = vsel %vm1385, %v2826, 0.0
      %v2888 = vadd.f32 %v2886, %v2887
      %v2889 = vsel %vm1385, %v2827, 0.0
      %v2890 = vadd.f32 %v2888, %v2889
      %v2891 = vrot.slane %v2890, 4
      %v2892 = vadd.f32 %v2890, %v2891
      %v2893 = vrot.slane %v2892, 2
      %v2894 = vadd.f32 %v2892, %v2893
      %v2895 = vrot.slane %v2894, 1
      %v2896 = vadd.f32 %v2894, %v2895
      %2898 = vrot.lane.b32.xlu0 %v2896, 8
      %v2899 = vpop.permute.xlu0 %2898
      %v2901 = vsel %vm1385, %v2795, %v2899
      %vm2902 = vcmask 122880
      %2903 = vst.msk [vmem:[%s180] sm:$0x1] %vm2902, %v2901
      %s2904 = smul.u32 32, %s15
      %p2905 = scmp.lt.s32.totalorder %s2904, 63
      %s2906 = scalar_select %p2905, %s2904, 63
      %s2907 = smul.addr %s2906, 4
      %s2908 = scalar_lea.vmem %s2, %s2907
      %p2909 = scmp.lt.s32.totalorder %s15, 1
      %s2910 = scalar_select %p2909, %s15, 1
      %s2911 = scalar_lea.vmem %s3, %s2910
      // Predicated region
      $region29: #{inception_forward.7} parent=27 // pred_check
        %p2912 = pneg %p80
      $region30: #{inception_forward.7} parent=27 // pred_check_branch
        %2914 = sbr.rel (%p2912) target = $region32
      $region31: #{inception_forward.7} parent=27 // pred_region
        %s2915 = smul.u32 32, %s15
      $region32: #{inception_forward.7} parent=27 // pred_fallthru
        _
      // Predicated region
      $region33: #{inception_forward.7} parent=27 // pred_check
        %p2916 = pneg %p106
      $region34: #{inception_forward.7} parent=27 // pred_check_branch
        %2918 = sbr.rel (%p2916) target = $region36
      $region35: #{inception_forward.7} parent=27 // pred_region
        _
      $region36: #{inception_forward.7} parent=27 // pred_fallthru
        _
    $region28: #{inception_forward.7} parent=5 // pred_fallthru
      _
    %p2919 = scmp.le.s32.totalorder 2, %s10
    // Predicated region
    $region37: #{inception_forward.7} parent=5 // pred_check
      %p2920 = pneg %p2919
    $region38: #{inception_forward.7} parent=5 // pred_check_branch
      %2922 = sbr.rel (%p2920) target = $region40
    $region39: #{inception_forward.7} parent=5 // pred_region
      %s2923 = ssub.s32 %s10, 2
      // Predicated region
      $region41: #{inception_forward.7} parent=39 // pred_check
        %p2924 = pneg %p86
      $region42: #{inception_forward.7} parent=39 // pred_check_branch
        %2926 = sbr.rel (%p2924) target = $region44
      $region43: #{inception_forward.7} parent=39 // pred_region
        %s2927 = smul.u32 32, %s16
        %p2928 = scmp.lt.s32.totalorder %s2927, 63
        %s2929 = scalar_select %p2928, %s2927, 63
        %s2930 = smul.addr %s2929, 4
        %s2931 = scalar_lea.vmem %s2, %s2930
      $region44: #{inception_forward.7} parent=39 // pred_fallthru
        _
      // Predicated region
      $region45: #{inception_forward.7} parent=39 // pred_check
        %p2932 = pneg %p112
      $region46: #{inception_forward.7} parent=39 // pred_check_branch
        %2934 = sbr.rel (%p2932) target = $region48
      $region47: #{inception_forward.7} parent=39 // pred_region
        %p2935 = scmp.lt.s32.totalorder %s16, 1
        %s2936 = scalar_select %p2935, %s16, 1
        %s2937 = scalar_lea.vmem %s3, %s2936
      $region48: #{inception_forward.7} parent=39 // pred_fallthru
        _
    $region40: #{inception_forward.7} parent=5 // pred_fallthru
      _
  $region6: #{inception_forward.7} parent=0 // loop_footer
    %s14 = sadd.s32 1, %s10
  $region7: #{inception_forward.7} parent=0 // loop_footer_branch
    %9 = sbr.rel target = $region3
  $region8: #{inception_forward.7} parent=0 // loop_exit
    _

// kernel: inception_forward.8
$region0: #{inception_forward.8}
  #allocation0 [shape = 'u32[]', space=smem, size = 0x4, offset = 0x4, fixed_abs, tag = 'smem constant byte address 0x4 - core index']
  #allocation1 [shape = 'u32[144,128]{1,0:T(1,128)}', space=vmem, size = 0x12000, scoped, tag = 'internal scratch']
  #allocation2 [shape = 'bf16[18,18,4]{2,1,0:T(8,128)(2,1)}', space=vmem, size = 0x1b000, scoped, tag = 'scratch operand']
  %s0 = inlined_call_operand.vmem [shape: bf16[2,16,16,4], index: 0, kind: input, shape index: {}]
  %s1 = inlined_call_operand.vmem [shape: bf16[4,8], index: 1, kind: input, shape index: {}]
  %s2 = inlined_call_operand.vmem [shape: bf16[512,8], index: 2, kind: output, shape index: {0}]
  %s3 = inlined_call_operand.vmem [shape: f32[2,1,16], index: 3, kind: output, shape index: {1}]
  %4 = xla_tuple %s2, %s3
  %s5 = sld [smem:[#allocation0]]
  $region49: #{inception_forward.8} parent=0
    _
  %s7 = ssub.s32 1, %s5
  %s8 = scalar_select 0, %s7, %s5
  loop: start=0, step=1, limit=4
  $region2: #{inception_forward.8} parent=0 // loop_pre_header
    _
  $region3: #{inception_forward.8} parent=0 // loop_header
    %s10 = sphi 0, %s14
    %p11 = scmp.ge.s32.totalorder %s10, 4
    %s20 = sphi 0, %s22
    %s23 = sphi 0, %s20
    %s24 = sphi 0, %s23
    %s40 = sphi 0, %s24
    %s44 = sphi 0, %s44
    %s46 = sphi 0, %s44
    %s47 = sphi 0, %s46
    %s61 = sphi 0, %s47
    %s67 = sphi 0, %s69
    %s70 = sphi 0, %s67
    %s71 = sphi 0, %s70
    %s87 = sphi 0, %s71
    %s93 = sphi 0, %s95
    %s96 = sphi 0, %s93
    %s97 = sphi 0, %s96
    %s113 = sphi 0, %s97
  $region4: #{inception_forward.8} parent=0 // loop_header_branch
    %13 = sbr.rel (%p11) target = $region8
  $region5: #{inception_forward.8} parent=0 // loop_body
    %s15 = ssub.s32 %s10, 1
    %s16 = ssub.s32 %s10, 2
    %s17 = sadd.s32 %s10, 1
    %s18 = ssub.s32 %s10, %s17
    %p19 = scmp.eq.s32.totalorder %s18, 0
    %s21 = sadd.s32 %s20, 1
    %s22 = scalar_select %p19, %s20, %s21
    %p25 = pneg %p19
    %p26 = scmp.eq.s32.totalorder %s10, 1
    %p27 = por %p25, %p26
    %p28 = scmp.ne.s32.totalorder %s20, %s23
    %p29 = scmp.eq.s32.totalorder %s10, 0
    %p30 = por %p28, %p29
    %p31 = scmp.ne.s32.totalorder %s20, %s23
    %p32 = scmp.eq.s32.totalorder %s15, 1
    %p33 = por %p31, %p32
    %p34 = scmp.ne.s32.totalorder %s23, %s24
    %p35 = scmp.eq.s32.totalorder %s15, 0
    %p36 = por %p34, %p35
    %p37 = scmp.ne.s32.totalorder %s23, %s24
    %p38 = scmp.eq.s32.totalorder %s16, 1
    %p39 = por %p37, %p38
    %p41 = scmp.ne.s32.totalorder %s24, %s40
    %p42 = scmp.eq.s32.totalorder %s16, 0
    %p43 = por %p41, %p42
    %s45 = sadd.s32 %s44, 1
    %p48 = scmp.eq.s32.totalorder %s10, 1
    %p49 = scmp.ne.s32.totalorder %s44, %s46
    %p50 = scmp.eq.s32.totalorder %s10, 0
    %p51 = por %p49, %p50
    %p52 = scmp.ne.s32.totalorder %s44, %s46
    %p53 = scmp.eq.s32.totalorder %s15, 1
    %p54 = por %p52, %p53
    %p55 = scmp.ne.s32.totalorder %s46, %s47
    %p56 = scmp.eq.s32.totalorder %s15, 0
    %p57 = por %p55, %p56
    %p58 = scmp.ne.s32.totalorder %s46, %s47
    %p59 = scmp.eq.s32.totalorder %s16, 1
    %p60 = por %p58, %p59
    %p62 = scmp.ne.s32.totalorder %s47, %s61
    %p63 = scmp.eq.s32.totalorder %s16, 0
    %p64 = por %p62, %p63
    %s65 = ssub.s32 %s10, %s17
    %p66 = scmp.eq.s32.totalorder %s65, 0
    %s68 = sadd.s32 %s67, 1
    %s69 = scalar_select %p66, %s67, %s68
    %p72 = pneg %p66
    %p73 = scmp.eq.s32.totalorder %s10, 1
    %p74 = por %p72, %p73
    %p75 = scmp.ne.s32.totalorder %s67, %s70
    %p76 = scmp.eq.s32.totalorder %s10, 0
    %p77 = por %p75, %p76
    %p78 = scmp.ne.s32.totalorder %s67, %s70
    %p79 = scmp.eq.s32.totalorder %s15, 1
    %p80 = por %p78, %p79
    %p81 = scmp.ne.s32.totalorder %s70, %s71
    %p82 = scmp.eq.s32.totalorder %s15, 0
    %p83 = por %p81, %p82
    %p84 = scmp.ne.s32.totalorder %s70, %s71
    %p85 = scmp.eq.s32.totalorder %s16, 1
    %p86 = por %p84, %p85
    %p88 = scmp.ne.s32.totalorder %s71, %s87
    %p89 = scmp.eq.s32.totalorder %s16, 0
    %p90 = por %p88, %p89
    %s91 = ssub.s32 %s10, %s17
    %p92 = scmp.eq.s32.totalorder %s91, 0
    %s94 = sadd.s32 %s93, 1
    %s95 = scalar_select %p92, %s93, %s94
    %p98 = pneg %p92
    %p99 = scmp.eq.s32.totalorder %s10, 1
    %p100 = por %p98, %p99
    %p101 = scmp.ne.s32.totalorder %s93, %s96
    %p102 = scmp.eq.s32.totalorder %s10, 0
    %p103 = por %p101, %p102
    %p104 = scmp.ne.s32.totalorder %s93, %s96
    %p105 = scmp.eq.s32.totalorder %s15, 1
    %p106 = por %p104, %p105
    %p107 = scmp.ne.s32.totalorder %s96, %s97
    %p108 = scmp.eq.s32.totalorder %s15, 0
    %p109 = por %p107, %p108
    %p110 = scmp.ne.s32.totalorder %s96, %s97
    %p111 = scmp.eq.s32.totalorder %s16, 1
    %p112 = por %p110, %p111
    %p114 = scmp.ne.s32.totalorder %s97, %s113
    %p115 = scmp.eq.s32.totalorder %s16, 0
    %p116 = por %p114, %p115
    %p117 = scmp.le.s32.totalorder 1, %s10
    %p118 = scmp.lt.s32.totalorder %s10, 3
    %p119 = pnand %p117, %p118
    %p120 = pneg %p119
    // Predicated region
    $region9: #{inception_forward.8} parent=5 // pred_check
      _
    $region10: #{inception_forward.8} parent=5 // pred_check_branch
      %122 = sbr.rel (%p119) target = $region12
    $region11: #{inception_forward.8} parent=5 // pred_region
      %s123 = ssub.s32 %s10, 1
      // Predicated region
      $region13: #{inception_forward.8} parent=11 // pred_check
        %p124 = pneg %p57
      $region14: #{inception_forward.8} parent=11 // pred_check_branch
        %126 = sbr.rel (%p124) target = $region16
      $region15: #{inception_forward.8} parent=11 // pred_region
        _
      $region16: #{inception_forward.8} parent=11 // pred_fallthru
        _
    $region12: #{inception_forward.8} parent=5 // pred_fallthru
      _
    %p127 = scmp.lt.s32.totalorder %s10, 2
    // Predicated region
    $region17: #{inception_forward.8} parent=5 // pred_check
      %p128 = pneg %p127
    $region18: #{inception_forward.8} parent=5 // pred_check_branch
      %130 = sbr.rel (%p128) target = $region20
    $region19: #{inception_forward.8} parent=5 // pred_region
      // Predicated region
      $region21: #{inception_forward.8} parent=19 // pred_check
        %p131 = pneg %p30
      $region22: #{inception_forward.8} parent=19 // pred_check_branch
        %133 = sbr.rel (%p131) target = $region24
      $region23: #{inception_forward.8} parent=19 // pred_region
        %p134 = scmp.lt.s32.totalorder %s10, 1
        %s135 = scalar_select %p134, %s10, 1
        %s136 = smul.addr %s135, 32
        %s137 = smul.addr %s136, 4
        %s138 = scalar_lea.vmem %s0, %s137
      $region24: #{inception_forward.8} parent=19 // pred_fallthru
        _
    $region20: #{inception_forward.8} parent=5 // pred_fallthru
      _
    %p139 = scmp.le.s32.totalorder 1, %s10
    %p140 = scmp.lt.s32.totalorder %s10, 3
    %p141 = pnand %p139, %p140
    %p142 = pneg %p141
    // Predicated region
    $region25: #{inception_forward.8} parent=5 // pred_check
      _
    $region26: #{inception_forward.8} parent=5 // pred_check_branch
      %144 = sbr.rel (%p141) target = $region28
    $region27: #{inception_forward.8} parent=5 // pred_region
      %s145 = ssub.s32 %s10, 1
      %p146 = scmp.lt.s32.totalorder %s15, 1
      %s147 = scalar_select %p146, %s15, 1
      %s148 = smul.addr %s147, 32
      %s149 = smul.addr %s148, 4
      %s150 = scalar_lea.vmem %s0, %s149
      %p151 = pneg %p36
      %p152 = pneg %p33
      %p153 = pneg %p57
      %p154 = pneg %p54
      %p155 = pneg %p83
      %p156 = pneg %p80
      %s157 = smul.u32 32, %s15
      %p158 = scmp.lt.s32.totalorder %s157, 63
      %s159 = scalar_select %p158, %s157, 63
      %s160 = smul.addr %s159, 4
      %s161 = scalar_lea.vmem %s2, %s160
      %p162 = pneg %p109
      %p163 = pneg %p106
      %p164 = scmp.lt.s32.totalorder %s15, 1
      %s165 = scalar_select %p164, %s15, 1
      %s166 = scalar_lea.vmem %s3, %s165
      %p167 = scmp.lt.s32.totalorder %s15, 1
      %s168 = scalar_select %p167, %s15, 1
      %s169 = smul.addr %s168, 32
      %s170 = smul.addr %s169, 4
      %s171 = scalar_lea.vmem %s0, %s170
      %s172 = smul.u32 32, %s15
      %p173 = scmp.lt.s32.totalorder %s172, 63
      %s174 = scalar_select %p173, %s172, 63
      %s175 = smul.addr %s174, 4
      %s176 = scalar_lea.vmem %s2, %s175
      %s177 = smul.u32 32, %s15
      %p178 = scmp.lt.s32.totalorder %s15, 1
      %s179 = scalar_select %p178, %s15, 1
      %s180 = scalar_lea.vmem %s3, %s179
      %vm183 = vcmask 27648
      %184 = vst.msk [vmem:[#allocation2] sm:$0xf] %vm183, 4286644096
      %185 = vst.msk [vmem:[#allocation2 + $0x4] sm:$0xf] %vm183, 4286644096
      %vm186 = vcmask 24576
      %187 = vst.msk [vmem:[#allocation2 + $0x8] sm:$0x1] %vm186, 4286644096
      %188 = vst.msk [vmem:[#allocation2 + $0xc] sm:$0xf] %vm183, 4286644096
      %189 = vst.msk [vmem:[#allocation2 + $0x10] sm:$0xf] %vm183, 4286644096
      %190 = vst.msk [vmem:[#allocation2 + $0x14] sm:$0x1] %vm186, 4286644096
      %191 = vst.msk [vmem:[#allocation2 + $0x18] sm:$0xf] %vm183, 4286644096
      %192 = vst.msk [vmem:[#allocation2 + $0x1c] sm:$0xf] %vm183, 4286644096
      %193 = vst.msk [vmem:[#allocation2 + $0x20] sm:$0x1] %vm186, 4286644096
      %194 = vst.msk [vmem:[#allocation2 + $0x24] sm:$0xf] %vm183, 4286644096
      %195 = vst.msk [vmem:[#allocation2 + $0x28] sm:$0xf] %vm183, 4286644096
      %196 = vst.msk [vmem:[#allocation2 + $0x2c] sm:$0x1] %vm186, 4286644096
      %197 = vst.msk [vmem:[#allocation2 + $0x30] sm:$0xf] %vm183, 4286644096
      %198 = vst.msk [vmem:[#allocation2 + $0x34] sm:$0xf] %vm183, 4286644096
      %199 = vst.msk [vmem:[#allocation2 + $0x38] sm:$0x1] %vm186, 4286644096
      %200 = vst.msk [vmem:[#allocation2 + $0x3c] sm:$0xf] %vm183, 4286644096
      %201 = vst.msk [vmem:[#allocation2 + $0x40] sm:$0xf] %vm183, 4286644096
      %202 = vst.msk [vmem:[#allocation2 + $0x44] sm:$0x1] %vm186, 4286644096
      %203 = vst.msk [vmem:[#allocation2 + $0x48] sm:$0xf] %vm183, 4286644096
      %204 = vst.msk [vmem:[#allocation2 + $0x4c] sm:$0xf] %vm183, 4286644096
      %205 = vst.msk [vmem:[#allocation2 + $0x50] sm:$0x1] %vm186, 4286644096
      %206 = vst.msk [vmem:[#allocation2 + $0x54] sm:$0xf] %vm183, 4286644096
      %207 = vst.msk [vmem:[#allocation2 + $0x58] sm:$0xf] %vm183, 4286644096
      %208 = vst.msk [vmem:[#allocation2 + $0x5c] sm:$0x1] %vm186, 4286644096
      %209 = vst.msk [vmem:[#allocation2 + $0x60] sm:$0xf] %vm183, 4286644096
      %210 = vst.msk [vmem:[#allocation2 + $0x64] sm:$0xf] %vm183, 4286644096
      %211 = vst.msk [vmem:[#allocation2 + $0x68] sm:$0x1] %vm186, 4286644096
      %212 = vst.msk [vmem:[#allocation2 + $0x6c] sm:$0xf] %vm183, 4286644096
      %213 = vst.msk [vmem:[#allocation2 + $0x70] sm:$0xf] %vm183, 4286644096
      %214 = vst.msk [vmem:[#allocation2 + $0x74] sm:$0x1] %vm186, 4286644096
      %215 = vst.msk [vmem:[#allocation2 + $0x78] sm:$0xf] %vm183, 4286644096
      %216 = vst.msk [vmem:[#allocation2 + $0x7c] sm:$0xf] %vm183, 4286644096
      %217 = vst.msk [vmem:[#allocation2 + $0x80] sm:$0x1] %vm186, 4286644096
      %218 = vst.msk [vmem:[#allocation2 + $0x84] sm:$0xf] %vm183, 4286644096
      %219 = vst.msk [vmem:[#allocation2 + $0x88] sm:$0xf] %vm183, 4286644096
      %220 = vst.msk [vmem:[#allocation2 + $0x8c] sm:$0x1] %vm186, 4286644096
      %221 = vst.msk [vmem:[#allocation2 + $0x90] sm:$0xf] %vm183, 4286644096
      %222 = vst.msk [vmem:[#allocation2 + $0x94] sm:$0xf] %vm183, 4286644096
      %223 = vst.msk [vmem:[#allocation2 + $0x98] sm:$0x1] %vm186, 4286644096
      %224 = vst.msk [vmem:[#allocation2 + $0x9c] sm:$0xf] %vm183, 4286644096
      %225 = vst.msk [vmem:[#allocation2 + $0xa0] sm:$0xf] %vm183, 4286644096
      %226 = vst.msk [vmem:[#allocation2 + $0xa4] sm:$0x1] %vm186, 4286644096
      %227 = vst.msk [vmem:[#allocation2 + $0xa8] sm:$0xf] %vm183, 4286644096
      %228 = vst.msk [vmem:[#allocation2 + $0xac] sm:$0xf] %vm183, 4286644096
      %229 = vst.msk [vmem:[#allocation2 + $0xb0] sm:$0x1] %vm186, 4286644096
      %230 = vst.msk [vmem:[#allocation2 + $0xb4] sm:$0xf] %vm183, 4286644096
      %231 = vst.msk [vmem:[#allocation2 + $0xb8] sm:$0xf] %vm183, 4286644096
      %232 = vst.msk [vmem:[#allocation2 + $0xbc] sm:$0x1] %vm186, 4286644096
      %233 = vst.msk [vmem:[#allocation2 + $0xc0] sm:$0xf] %vm183, 4286644096
      %234 = vst.msk [vmem:[#allocation2 + $0xc4] sm:$0xf] %vm183, 4286644096
      %235 = vst.msk [vmem:[#allocation2 + $0xc8] sm:$0x1] %vm186, 4286644096
      %236 = vst.msk [vmem:[#allocation2 + $0xcc] sm:$0xf] %vm183, 4286644096
      %237 = vst.msk [vmem:[#allocation2 + $0xd0] sm:$0xf] %vm183, 4286644096
      %238 = vst.msk [vmem:[#allocation2 + $0xd4] sm:$0x1] %vm186, 4286644096
      %v239 = vld [vmem:[%s171] sm:$0xf]
      %v240 = vld [vmem:[%s171 + $0x4] sm:$0xf]
      %v241 = vld [vmem:[%s171 + $0x8] sm:$0xf]
      %v242 = vld [vmem:[%s171 + $0xc] sm:$0xf]
      %v243 = vld [vmem:[%s171 + $0x10] sm:$0xf]
      %v244 = vld [vmem:[%s171 + $0x14] sm:$0xf]
      %v245 = vld [vmem:[%s171 + $0x18] sm:$0xf]
      %v246 = vld [vmem:[%s171 + $0x1c] sm:$0xf]
      %v247 = vld [vmem:[%s171 + $0x20] sm:$0xf]
      %v248 = vld [vmem:[%s171 + $0x24] sm:$0xf]
      %v249 = vld [vmem:[%s171 + $0x28] sm:$0xf]
      %v250 = vld [vmem:[%s171 + $0x2c] sm:$0xf]
      %v251 = vld [vmem:[%s171 + $0x30] sm:$0xf]
      %v252 = vld [vmem:[%s171 + $0x34] sm:$0xf]
      %v253 = vld [vmem:[%s171 + $0x38] sm:$0xf]
      %v254 = vld [vmem:[%s171 + $0x3c] sm:$0xf]
      %v255 = vld [vmem:[%s171 + $0x40] sm:$0xf]
      %v256 = vld [vmem:[%s171 + $0x44] sm:$0xf]
      %v257 = vld [vmem:[%s171 + $0x48] sm:$0xf]
      %v258 = vld [vmem:[%s171 + $0x4c] sm:$0xf]
      %v259 = vld [vmem:[%s171 + $0x50] sm:$0xf]
      %v260 = vld [vmem:[%s171 + $0x54] sm:$0xf]
      %v261 = vld [vmem:[%s171 + $0x58] sm:$0xf]
      %v262 = vld [vmem:[%s171 + $0x5c] sm:$0xf]
      %v263 = vld [vmem:[%s171 + $0x60] sm:$0xf]
      %v264 = vld [vmem:[%s171 + $0x64] sm:$0xf]
      %v265 = vld [vmem:[%s171 + $0x68] sm:$0xf]
      %v266 = vld [vmem:[%s171 + $0x6c] sm:$0xf]
      %v267 = vld [vmem:[%s171 + $0x70] sm:$0xf]
      %v268 = vld [vmem:[%s171 + $0x74] sm:$0xf]
      %v269 = vld [vmem:[%s171 + $0x78] sm:$0xf]
      %v270 = vld [vmem:[%s171 + $0x7c] sm:$0xf]
      %vm271 = vsmask.f32 256
      %vm272 = vsmask.f32 4368
      %vm273 = vmor %vm271, %vm272
      %v275 = vshrl.u32 %v239, 16
      %v277 = vrot.slane %v275, 7
      %v278 = vshll.u32 %v239, 16
      %v280 = vor.u32 %v277, %v278
      %v281 = vrot.slane %v277, 4
      %v283 = vshrl.u32 %v240, 16
      %v285 = vrot.slane %v283, 7
      %v286 = vshll.u32 %v240, 16
      %v288 = vor.u32 %v285, %v286
      %v289 = vsel %vm273, %v281, %v288
      %v290 = vrot.slane %v285, 4
      %v292 = vshrl.u32 %v241, 16
      %v294 = vrot.slane %v292, 7
      %v295 = vshll.u32 %v241, 16
      %v297 = vor.u32 %v294, %v295
      %v298 = vrot.slane %v294, 4
      %v300 = vshrl.u32 %v242, 16
      %v302 = vrot.slane %v300, 7
      %v303 = vshll.u32 %v242, 16
      %v305 = vor.u32 %v302, %v303
      %v306 = vsel %vm273, %v298, %v305
      %v307 = vrot.slane %v302, 4
      %v309 = vshrl.u32 %v243, 16
      %v311 = vrot.slane %v309, 7
      %v312 = vshll.u32 %v243, 16
      %v314 = vor.u32 %v311, %v312
      %v315 = vrot.slane %v311, 4
      %v317 = vshrl.u32 %v244, 16
      %v319 = vrot.slane %v317, 7
      %v320 = vshll.u32 %v244, 16
      %v322 = vor.u32 %v319, %v320
      %v323 = vsel %vm273, %v315, %v322
      %v324 = vrot.slane %v319, 4
      %v326 = vshrl.u32 %v245, 16
      %v328 = vrot.slane %v326, 7
      %v329 = vshll.u32 %v245, 16
      %v331 = vor.u32 %v328, %v329
      %v332 = vrot.slane %v328, 4
      %v334 = vshrl.u32 %v246, 16
      %v336 = vrot.slane %v334, 7
      %v337 = vshll.u32 %v246, 16
      %v339 = vor.u32 %v336, %v337
      %v340 = vsel %vm273, %v332, %v339
      %v341 = vrot.slane %v336, 4
      %v343 = vshrl.u32 %v247, 16
      %v345 = vrot.slane %v343, 7
      %v346 = vshll.u32 %v247, 16
      %v348 = vor.u32 %v345, %v346
      %v349 = vrot.slane %v345, 4
      %v351 = vshrl.u32 %v248, 16
      %v353 = vrot.slane %v351, 7
      %v354 = vshll.u32 %v248, 16
      %v356 = vor.u32 %v353, %v354
      %v357 = vsel %vm273, %v349, %v356
      %v358 = vrot.slane %v353, 4
      %v360 = vshrl.u32 %v249, 16
      %v362 = vrot.slane %v360, 7
      %v363 = vshll.u32 %v249, 16
      %v365 = vor.u32 %v362, %v363
      %v366 = vrot.slane %v362, 4
      %v368 = vshrl.u32 %v250, 16
      %v370 = vrot.slane %v368, 7
      %v371 = vshll.u32 %v250, 16
      %v373 = vor.u32 %v370, %v371
      %v374 = vsel %vm273, %v366, %v373
      %v375 = vrot.slane %v370, 4
      %v377 = vshrl.u32 %v251, 16
      %v379 = vrot.slane %v377, 7
      %v380 = vshll.u32 %v251, 16
      %v382 = vor.u32 %v379, %v380
      %v383 = vrot.slane %v379, 4
      %v385 = vshrl.u32 %v252, 16
      %v387 = vrot.slane %v385, 7
      %v388 = vshll.u32 %v252, 16
      %v390 = vor.u32 %v387, %v388
      %v391 = vsel %vm273, %v383, %v390
      %v392 = vrot.slane %v387, 4
      %v394 = vshrl.u32 %v253, 16
      %v396 = vrot.slane %v394, 7
      %v397 = vshll.u32 %v253, 16
      %v399 = vor.u32 %v396, %v397
      %v400 = vrot.slane %v396, 4
      %v402 = vshrl.u32 %v254, 16
      %v404 = vrot.slane %v402, 7
      %v405 = vshll.u32 %v254, 16
      %v407 = vor.u32 %v404, %v405
      %v408 = vsel %vm273, %v400, %v407
      %v409 = vrot.slane %v404, 4
      %v411 = vshrl.u32 %v255, 16
      %v413 = vrot.slane %v411, 7
      %v414 = vshll.u32 %v255, 16
      %v416 = vor.u32 %v413, %v414
      %v417 = vrot.slane %v413, 4
      %v419 = vshrl.u32 %v256, 16
      %v421 = vrot.slane %v419, 7
      %v422 = vshll.u32 %v256, 16
      %v424 = vor.u32 %v421, %v422
      %v425 = vsel %vm273, %v417, %v424
      %v426 = vrot.slane %v421, 4
      %v428 = vshrl.u32 %v257, 16
      %v430 = vrot.slane %v428, 7
      %v431 = vshll.u32 %v257, 16
      %v433 = vor.u32 %v430, %v431
      %v434 = vrot.slane %v430, 4
      %v436 = vshrl.u32 %v258, 16
      %v438 = vrot.slane %v436, 7
      %v439 = vshll.u32 %v258, 16
      %v441 = vor.u32 %v438, %v439
      %v442 = vsel %vm273, %v434, %v441
      %v443 = vrot.slane %v438, 4
      %v445 = vshrl.u32 %v259, 16
      %v447 = vrot.slane %v445, 7
      %v448 = vshll.u32 %v259, 16
      %v450 = vor.u32 %v447, %v448
      %v451 = vrot.slane %v447, 4
      %v453 = vshrl.u32 %v260, 16
      %v455 = vrot.slane %v453, 7
      %v456 = vshll.u32 %v260, 16
      %v458 = vor.u32 %v455, %v456
      %v459 = vsel %vm273, %v451, %v458
      %v460 = vrot.slane %v455, 4
      %v462 = vshrl.u32 %v261, 16
      %v464 = vrot.slane %v462, 7
      %v465 = vshll.u32 %v261, 16
      %v467 = vor.u32 %v464, %v465
      %v468 = vrot.slane %v464, 4
      %v470 = vshrl.u32 %v262, 16
      %v472 = vrot.slane %v470, 7
      %v473 = vshll.u32 %v262, 16
      %v475 = vor.u32 %v472, %v473
      %v476 = vsel %vm273, %v468, %v475
      %v477 = vrot.slane %v472, 4
      %v479 = vshrl.u32 %v263, 16
      %v481 = vrot.slane %v479, 7
      %v482 = vshll.u32 %v263, 16
      %v484 = vor.u32 %v481, %v482
      %v485 = vrot.slane %v481, 4
      %v487 = vshrl.u32 %v264, 16
      %v489 = vrot.slane %v487, 7
      %v490 = vshll.u32 %v264, 16
      %v492 = vor.u32 %v489, %v490
      %v493 = vsel %vm273, %v485, %v492
      %v494 = vrot.slane %v489, 4
      %v496 = vshrl.u32 %v265, 16
      %v498 = vrot.slane %v496, 7
      %v499 = vshll.u32 %v265, 16
      %v501 = vor.u32 %v498, %v499
      %v502 = vrot.slane %v498, 4
      %v504 = vshrl.u32 %v266, 16
      %v506 = vrot.slane %v504, 7
      %v507 = vshll.u32 %v266, 16
      %v509 = vor.u32 %v506, %v507
      %v510 = vsel %vm273, %v502, %v509
      %v511 = vrot.slane %v506, 4
      %v513 = vshrl.u32 %v267, 16
      %v515 = vrot.slane %v513, 7
      %v516 = vshll.u32 %v267, 16
      %v518 = vor.u32 %v515, %v516
      %v519 = vrot.slane %v515, 4
      %v521 = vshrl.u32 %v268, 16
      %v523 = vrot.slane %v521, 7
      %v524 = vshll.u32 %v268, 16
      %v526 = vor.u32 %v523, %v524
      %v527 = vsel %vm273, %v519, %v526
      %v528 = vrot.slane %v523, 4
      %v530 = vshrl.u32 %v269, 16
      %v532 = vrot.slane %v530, 7
      %v533 = vshll.u32 %v269, 16
      %v535 = vor.u32 %v532, %v533
      %v536 = vrot.slane %v532, 4
      %v538 = vshrl.u32 %v270, 16
      %v540 = vrot.slane %v538, 7
      %v541 = vshll.u32 %v270, 16
      %v543 = vor.u32 %v540, %v541
      %v544 = vsel %vm273, %v536, %v543
      %v545 = vrot.slane %v540, 4
      %s594 = scalar_lea.vmem [#allocation2], 12
      %vm595 = vcmask 27648
      %vm596 = vsmask.f32 7938
      %vm597 = vmand %vm595, %vm596
      %v598 = vld [vmem:[%s594] sm:$0xf]
      %v599 = vsel %vm597, %v280, %v598
      %600 = vst [vmem:[%s594] sm:$0xf] %v599
      %601 = vst.msk [vmem:[%s594 + $0x4] sm:$0xf] %vm183, %v289
      %vm602 = vcmask 24576
      %vm603 = vmand %vm602, %vm271
      %v604 = vld [vmem:[%s594 + $0x8] sm:$0x1]
      %v605 = vsel %vm603, %v290, %v604
      %606 = vst [vmem:[%s594 + $0x8] sm:$0x1] %v605
      %v607 = vld [vmem:[%s594 + $0xc] sm:$0xf]
      %v608 = vsel %vm597, %v297, %v607
      %609 = vst [vmem:[%s594 + $0xc] sm:$0xf] %v608
      %610 = vst.msk [vmem:[%s594 + $0x10] sm:$0xf] %vm183, %v306
      %v611 = vld [vmem:[%s594 + $0x14] sm:$0x1]
      %v612 = vsel %vm603, %v307, %v611
      %613 = vst [vmem:[%s594 + $0x14] sm:$0x1] %v612
      %v614 = vld [vmem:[%s594 + $0x18] sm:$0xf]
      %v615 = vsel %vm597, %v314, %v614
      %616 = vst [vmem:[%s594 + $0x18] sm:$0xf] %v615
      %617 = vst.msk [vmem:[%s594 + $0x1c] sm:$0xf] %vm183, %v323
      %v618 = vld [vmem:[%s594 + $0x20] sm:$0x1]
      %v619 = vsel %vm603, %v324, %v618
      %620 = vst [vmem:[%s594 + $0x20] sm:$0x1] %v619
      %v621 = vld [vmem:[%s594 + $0x24] sm:$0xf]
      %v622 = vsel %vm597, %v331, %v621
      %623 = vst [vmem:[%s594 + $0x24] sm:$0xf] %v622
      %624 = vst.msk [vmem:[%s594 + $0x28] sm:$0xf] %vm183, %v340
      %v625 = vld [vmem:[%s594 + $0x2c] sm:$0x1]
      %v626 = vsel %vm603, %v341, %v625
      %627 = vst [vmem:[%s594 + $0x2c] sm:$0x1] %v626
      %v628 = vld [vmem:[%s594 + $0x30] sm:$0xf]
      %v629 = vsel %vm597, %v348, %v628
      %630 = vst [vmem:[%s594 + $0x30] sm:$0xf] %v629
      %631 = vst.msk [vmem:[%s594 + $0x34] sm:$0xf] %vm183, %v357
      %v632 = vld [vmem:[%s594 + $0x38] sm:$0x1]
      %v633 = vsel %vm603, %v358, %v632
      %634 = vst [vmem:[%s594 + $0x38] sm:$0x1] %v633
      %v635 = vld [vmem:[%s594 + $0x3c] sm:$0xf]
      %v636 = vsel %vm597, %v365, %v635
      %637 = vst [vmem:[%s594 + $0x3c] sm:$0xf] %v636
      %638 = vst.msk [vmem:[%s594 + $0x40] sm:$0xf] %vm183, %v374
      %v639 = vld [vmem:[%s594 + $0x44] sm:$0x1]
      %v640 = vsel %vm603, %v375, %v639
      %641 = vst [vmem:[%s594 + $0x44] sm:$0x1] %v640
      %v642 = vld [vmem:[%s594 + $0x48] sm:$0xf]
      %v643 = vsel %vm597, %v382, %v642
      %644 = vst [vmem:[%s594 + $0x48] sm:$0xf] %v643
      %645 = vst.msk [vmem:[%s594 + $0x4c] sm:$0xf] %vm183, %v391
      %v646 = vld [vmem:[%s594 + $0x50] sm:$0x1]
      %v647 = vsel %vm603, %v392, %v646
      %648 = vst [vmem:[%s594 + $0x50] sm:$0x1] %v647
      %v649 = vld [vmem:[%s594 + $0x54] sm:$0xf]
      %v650 = vsel %vm597, %v399, %v649
      %651 = vst [vmem:[%s594 + $0x54] sm:$0xf] %v650
      %652 = vst.msk [vmem:[%s594 + $0x58] sm:$0xf] %vm183, %v408
      %v653 = vld [vmem:[%s594 + $0x5c] sm:$0x1]
      %v654 = vsel %vm603, %v409, %v653
      %655 = vst [vmem:[%s594 + $0x5c] sm:$0x1] %v654
      %v656 = vld [vmem:[%s594 + $0x60] sm:$0xf]
      %v657 = vsel %vm597, %v416, %v656
      %658 = vst [vmem:[%s594 + $0x60] sm:$0xf] %v657
      %659 = vst.msk [vmem:[%s594 + $0x64] sm:$0xf] %vm183, %v425
      %v660 = vld [vmem:[%s594 + $0x68] sm:$0x1]
      %v661 = vsel %vm603, %v426, %v660
      %662 = vst [vmem:[%s594 + $0x68] sm:$0x1] %v661
      %v663 = vld [vmem:[%s594 + $0x6c] sm:$0xf]
      %v664 = vsel %vm597, %v433, %v663
      %665 = vst [vmem:[%s594 + $0x6c] sm:$0xf] %v664
      %666 = vst.msk [vmem:[%s594 + $0x70] sm:$0xf] %vm183, %v442
      %v667 = vld [vmem:[%s594 + $0x74] sm:$0x1]
      %v668 = vsel %vm603, %v443, %v667
      %669 = vst [vmem:[%s594 + $0x74] sm:$0x1] %v668
      %v670 = vld [vmem:[%s594 + $0x78] sm:$0xf]
      %v671 = vsel %vm597, %v450, %v670
      %672 = vst [vmem:[%s594 + $0x78] sm:$0xf] %v671
      %673 = vst.msk [vmem:[%s594 + $0x7c] sm:$0xf] %vm183, %v459
      %v674 = vld [vmem:[%s594 + $0x80] sm:$0x1]
      %v675 = vsel %vm603, %v460, %v674
      %676 = vst [vmem:[%s594 + $0x80] sm:$0x1] %v675
      %v677 = vld [vmem:[%s594 + $0x84] sm:$0xf]
      %v678 = vsel %vm597, %v467, %v677
      %679 = vst [vmem:[%s594 + $0x84] sm:$0xf] %v678
      %680 = vst.msk [vmem:[%s594 + $0x88] sm:$0xf] %vm183, %v476
      %v681 = vld [vmem:[%s594 + $0x8c] sm:$0x1]
      %v682 = vsel %vm603, %v477, %v681
      %683 = vst [vmem:[%s594 + $0x8c] sm:$0x1] %v682
      %v684 = vld [vmem:[%s594 + $0x90] sm:$0xf]
      %v685 = vsel %vm597, %v484, %v684
      %686 = vst [vmem:[%s594 + $0x90] sm:$0xf] %v685
      %687 = vst.msk [vmem:[%s594 + $0x94] sm:$0xf] %vm183, %v493
      %v688 = vld [vmem:[%s594 + $0x98] sm:$0x1]
      %v689 = vsel %vm603, %v494, %v688
      %690 = vst [vmem:[%s594 + $0x98] sm:$0x1] %v689
      %v691 = vld [vmem:[%s594 + $0x9c] sm:$0xf]
      %v692 = vsel %vm597, %v501, %v691
      %693 = vst [vmem:[%s594 + $0x9c] sm:$0xf] %v692
      %694 = vst.msk [vmem:[%s594 + $0xa0] sm:$0xf] %vm183, %v510
      %v695 = vld [vmem:[%s594 + $0xa4] sm:$0x1]
      %v696 = vsel %vm603, %v511, %v695
      %697 = vst [vmem:[%s594 + $0xa4] sm:$0x1] %v696
      %v698 = vld [vmem:[%s594 + $0xa8] sm:$0xf]
      %v699 = vsel %vm597, %v518, %v698
      %700 = vst [vmem:[%s594 + $0xa8] sm:$0xf] %v699
      %701 = vst.msk [vmem:[%s594 + $0xac] sm:$0xf] %vm183, %v527
      %v702 = vld [vmem:[%s594 + $0xb0] sm:$0x1]
      %v703 = vsel %vm603, %v528, %v702
      %704 = vst [vmem:[%s594 + $0xb0] sm:$0x1] %v703
      %v705 = vld [vmem:[%s594 + $0xb4] sm:$0xf]
      %v706 = vsel %vm597, %v535, %v705
      %707 = vst [vmem:[%s594 + $0xb4] sm:$0xf] %v706
      %708 = vst.msk [vmem:[%s594 + $0xb8] sm:$0xf] %vm183, %v544
      %v709 = vld [vmem:[%s594 + $0xbc] sm:$0x1]
      %v710 = vsel %vm603, %v545, %v709
      %711 = vst [vmem:[%s594 + $0xbc] sm:$0x1] %v710
      %v712 = vld [vmem:[#allocation2] sm:$0xf]
      %v713 = vld [vmem:[#allocation2 + $0x4] sm:$0xf]
      %v714 = vld [vmem:[#allocation2 + $0x8] sm:$0x1]
      %v715 = vld [vmem:[#allocation2 + $0xc] sm:$0xf]
      %v716 = vld [vmem:[#allocation2 + $0x10] sm:$0xf]
      %v717 = vld [vmem:[#allocation2 + $0x14] sm:$0x1]
      %v718 = vld [vmem:[#allocation2 + $0x18] sm:$0xf]
      %v719 = vld [vmem:[#allocation2 + $0x1c] sm:$0xf]
      %v720 = vld [vmem:[#allocation2 + $0x20] sm:$0x1]
      %v721 = vld [vmem:[#allocation2 + $0x24] sm:$0xf]
      %v722 = vld [vmem:[#allocation2 + $0x28] sm:$0xf]
      %v723 = vld [vmem:[#allocation2 + $0x2c] sm:$0x1]
      %v724 = vld [vmem:[#allocation2 + $0x30] sm:$0xf]
      %v725 = vld [vmem:[#allocation2 + $0x34] sm:$0xf]
      %v726 = vld [vmem:[#allocation2 + $0x38] sm:$0x1]
      %v727 = vld [vmem:[#allocation2 + $0x3c] sm:$0xf]
      %v728 = vld [vmem:[#allocation2 + $0x40] sm:$0xf]
      %v729 = vld [vmem:[#allocation2 + $0x44] sm:$0x1]
      %v730 = vld [vmem:[#allocation2 + $0x48] sm:$0xf]
      %v731 = vld [vmem:[#allocation2 + $0x4c] sm:$0xf]
      %v732 = vld [vmem:[#allocation2 + $0x50] sm:$0x1]
      %v733 = vld [vmem:[#allocation2 + $0x54] sm:$0xf]
      %v734 = vld [vmem:[#allocation2 + $0x58] sm:$0xf]
      %v735 = vld [vmem:[#allocation2 + $0x5c] sm:$0x1]
      %v736 = vld [vmem:[#allocation2 + $0x60] sm:$0xf]
      %v737 = vld [vmem:[#allocation2 + $0x64] sm:$0xf]
      %v738 = vld [vmem:[#allocation2 + $0x68] sm:$0x1]
      %v739 = vld [vmem:[#allocation2 + $0x6c] sm:$0xf]
      %v740 = vld [vmem:[#allocation2 + $0x70] sm:$0xf]
      %v741 = vld [vmem:[#allocation2 + $0x74] sm:$0x1]
      %v742 = vld [vmem:[#allocation2 + $0x78] sm:$0xf]
      %v743 = vld [vmem:[#allocation2 + $0x7c] sm:$0xf]
      %v744 = vld [vmem:[#allocation2 + $0x80] sm:$0x1]
      %v745 = vld [vmem:[#allocation2 + $0x84] sm:$0xf]
      %v746 = vld [vmem:[#allocation2 + $0x88] sm:$0xf]
      %v747 = vld [vmem:[#allocation2 + $0x8c] sm:$0x1]
      %v748 = vld [vmem:[#allocation2 + $0x90] sm:$0xf]
      %v749 = vld [vmem:[#allocation2 + $0x94] sm:$0xf]
      %v750 = vld [vmem:[#allocation2 + $0x98] sm:$0x1]
      %v751 = vld [vmem:[#allocation2 + $0x9c] sm:$0xf]
      %v752 = vld [vmem:[#allocation2 + $0xa0] sm:$0xf]
      %v753 = vld [vmem:[#allocation2 + $0xa4] sm:$0x1]
      %v754 = vld [vmem:[#allocation2 + $0xa8] sm:$0xf]
      %v755 = vld [vmem:[#allocation2 + $0xac] sm:$0xf]
      %v756 = vld [vmem:[#allocation2 + $0xb0] sm:$0x1]
      %v757 = vld [vmem:[#allocation2 + $0xb4] sm:$0xf]
      %v758 = vld [vmem:[#allocation2 + $0xb8] sm:$0xf]
      %v759 = vld [vmem:[#allocation2 + $0xbc] sm:$0x1]
      %v760 = vld [vmem:[#allocation2 + $0xc0] sm:$0xf]
      %v761 = vld [vmem:[#allocation2 + $0xc4] sm:$0xf]
      %v762 = vld [vmem:[#allocation2 + $0xc8] sm:$0x1]
      %v763 = vld [vmem:[#allocation2 + $0xcc] sm:$0xf]
      %v764 = vld [vmem:[#allocation2 + $0xd0] sm:$0xf]
      %v765 = vld [vmem:[#allocation2 + $0xd4] sm:$0x1]
      %vm766 = vsmask.f32 3328
      %vm767 = vsmask.f32 7440
      %vm768 = vmor %vm766, %vm767
      %v770 = vshrl.u32 %v712, 16
      %v772 = vrot.slane %v770, 4
      %v773 = vshll.u32 %v712, 16
      %v775 = vrot.slane %v773, 5
      %v776 = vor.u32 %v772, %v775
      %v777 = vrot.slane %v776, 4
      %v779 = vshll.u32 %v713, 16
      %v781 = vrot.slane %v779, 5
      %v782 = vsel %vm768, %v777, %v781
      %v783 = vshrl.u32 %v713, 16
      %v785 = vrot.slane %v783, 4
      %v786 = vor.u32 %v785, %v781
      %v787 = vrot.slane %v786, 4
      %v789 = vshll.u32 %v714, 16
      %v791 = vrot.slane %v789, 5
      %v792 = vsel %vm768, %v787, %v791
      %v794 = vshrl.u32 %v715, 16
      %v796 = vrot.slane %v794, 4
      %v797 = vshll.u32 %v715, 16
      %v799 = vrot.slane %v797, 5
      %v800 = vor.u32 %v796, %v799
      %v801 = vrot.slane %v800, 4
      %v803 = vshll.u32 %v716, 16
      %v805 = vrot.slane %v803, 5
      %v806 = vsel %vm768, %v801, %v805
      %v807 = vshrl.u32 %v716, 16
      %v809 = vrot.slane %v807, 4
      %v810 = vor.u32 %v809, %v805
      %v811 = vrot.slane %v810, 4
      %v813 = vshll.u32 %v717, 16
      %v815 = vrot.slane %v813, 5
      %v816 = vsel %vm768, %v811, %v815
      %v818 = vshrl.u32 %v718, 16
      %v820 = vrot.slane %v818, 4
      %v821 = vshll.u32 %v718, 16
      %v823 = vrot.slane %v821, 5
      %v824 = vor.u32 %v820, %v823
      %v825 = vrot.slane %v824, 4
      %v827 = vshll.u32 %v719, 16
      %v829 = vrot.slane %v827, 5
      %v830 = vsel %vm768, %v825, %v829
      %v831 = vshrl.u32 %v719, 16
      %v833 = vrot.slane %v831, 4
      %v834 = vor.u32 %v833, %v829
      %v835 = vrot.slane %v834, 4
      %v837 = vshll.u32 %v720, 16
      %v839 = vrot.slane %v837, 5
      %v840 = vsel %vm768, %v835, %v839
      %v842 = vshrl.u32 %v721, 16
      %v844 = vrot.slane %v842, 4
      %v845 = vshll.u32 %v721, 16
      %v847 = vrot.slane %v845, 5
      %v848 = vor.u32 %v844, %v847
      %v849 = vrot.slane %v848, 4
      %v851 = vshll.u32 %v722, 16
      %v853 = vrot.slane %v851, 5
      %v854 = vsel %vm768, %v849, %v853
      %v855 = vshrl.u32 %v722, 16
      %v857 = vrot.slane %v855, 4
      %v858 = vor.u32 %v857, %v853
      %v859 = vrot.slane %v858, 4
      %v861 = vshll.u32 %v723, 16
      %v863 = vrot.slane %v861, 5
      %v864 = vsel %vm768, %v859, %v863
      %v866 = vshrl.u32 %v724, 16
      %v868 = vrot.slane %v866, 4
      %v869 = vshll.u32 %v724, 16
      %v871 = vrot.slane %v869, 5
      %v872 = vor.u32 %v868, %v871
      %v873 = vrot.slane %v872, 4
      %v875 = vshll.u32 %v725, 16
      %v877 = vrot.slane %v875, 5
      %v878 = vsel %vm768, %v873, %v877
      %v879 = vshrl.u32 %v725, 16
      %v881 = vrot.slane %v879, 4
      %v882 = vor.u32 %v881, %v877
      %v883 = vrot.slane %v882, 4
      %v885 = vshll.u32 %v726, 16
      %v887 = vrot.slane %v885, 5
      %v888 = vsel %vm768, %v883, %v887
      %v890 = vshrl.u32 %v727, 16
      %v892 = vrot.slane %v890, 4
      %v893 = vshll.u32 %v727, 16
      %v895 = vrot.slane %v893, 5
      %v896 = vor.u32 %v892, %v895
      %v897 = vrot.slane %v896, 4
      %v899 = vshll.u32 %v728, 16
      %v901 = vrot.slane %v899, 5
      %v902 = vsel %vm768, %v897, %v901
      %v903 = vshrl.u32 %v728, 16
      %v905 = vrot.slane %v903, 4
      %v906 = vor.u32 %v905, %v901
      %v907 = vrot.slane %v906, 4
      %v909 = vshll.u32 %v729, 16
      %v911 = vrot.slane %v909, 5
      %v912 = vsel %vm768, %v907, %v911
      %v914 = vshrl.u32 %v730, 16
      %v916 = vrot.slane %v914, 4
      %v917 = vshll.u32 %v730, 16
      %v919 = vrot.slane %v917, 5
      %v920 = vor.u32 %v916, %v919
      %v921 = vrot.slane %v920, 4
      %v923 = vshll.u32 %v731, 16
      %v925 = vrot.slane %v923, 5
      %v926 = vsel %vm768, %v921, %v925
      %v927 = vshrl.u32 %v731, 16
      %v929 = vrot.slane %v927, 4
      %v930 = vor.u32 %v929, %v925
      %v931 = vrot.slane %v930, 4
      %v933 = vshll.u32 %v732, 16
      %v935 = vrot.slane %v933, 5
      %v936 = vsel %vm768, %v931, %v935
      %v938 = vshrl.u32 %v733, 16
      %v940 = vrot.slane %v938, 4
      %v941 = vshll.u32 %v733, 16
      %v943 = vrot.slane %v941, 5
      %v944 = vor.u32 %v940, %v943
      %v945 = vrot.slane %v944, 4
      %v947 = vshll.u32 %v734, 16
      %v949 = vrot.slane %v947, 5
      %v950 = vsel %vm768, %v945, %v949
      %v951 = vshrl.u32 %v734, 16
      %v953 = vrot.slane %v951, 4
      %v954 = vor.u32 %v953, %v949
      %v955 = vrot.slane %v954, 4
      %v957 = vshll.u32 %v735, 16
      %v959 = vrot.slane %v957, 5
      %v960 = vsel %vm768, %v955, %v959
      %v962 = vshrl.u32 %v736, 16
      %v964 = vrot.slane %v962, 4
      %v965 = vshll.u32 %v736, 16
      %v967 = vrot.slane %v965, 5
      %v968 = vor.u32 %v964, %v967
      %v969 = vrot.slane %v968, 4
      %v971 = vshll.u32 %v737, 16
      %v973 = vrot.slane %v971, 5
      %v974 = vsel %vm768, %v969, %v973
      %v975 = vshrl.u32 %v737, 16
      %v977 = vrot.slane %v975, 4
      %v978 = vor.u32 %v977, %v973
      %v979 = vrot.slane %v978, 4
      %v981 = vshll.u32 %v738, 16
      %v983 = vrot.slane %v981, 5
      %v984 = vsel %vm768, %v979, %v983
      %v986 = vshrl.u32 %v739, 16
      %v988 = vrot.slane %v986, 4
      %v989 = vshll.u32 %v739, 16
      %v991 = vrot.slane %v989, 5
      %v992 = vor.u32 %v988, %v991
      %v993 = vrot.slane %v992, 4
      %v995 = vshll.u32 %v740, 16
      %v997 = vrot.slane %v995, 5
      %v998 = vsel %vm768, %v993, %v997
      %v999 = vshrl.u32 %v740, 16
      %v1001 = vrot.slane %v999, 4
      %v1002 = vor.u32 %v1001, %v997
      %v1003 = vrot.slane %v1002, 4
      %v1005 = vshll.u32 %v741, 16
      %v1007 = vrot.slane %v1005, 5
      %v1008 = vsel %vm768, %v1003, %v1007
      %v1010 = vshrl.u32 %v742, 16
      %v1012 = vrot.slane %v1010, 4
      %v1013 = vshll.u32 %v742, 16
      %v1015 = vrot.slane %v1013, 5
      %v1016 = vor.u32 %v1012, %v1015
      %v1017 = vrot.slane %v1016, 4
      %v1019 = vshll.u32 %v743, 16
      %v1021 = vrot.slane %v1019, 5
      %v1022 = vsel %vm768, %v1017, %v1021
      %v1023 = vshrl.u32 %v743, 16
      %v1025 = vrot.slane %v1023, 4
      %v1026 = vor.u32 %v1025, %v1021
      %v1027 = vrot.slane %v1026, 4
      %v1029 = vshll.u32 %v744, 16
      %v1031 = vrot.slane %v1029, 5
      %v1032 = vsel %vm768, %v1027, %v1031
      %v1034 = vshrl.u32 %v745, 16
      %v1036 = vrot.slane %v1034, 4
      %v1037 = vshll.u32 %v745, 16
      %v1039 = vrot.slane %v1037, 5
      %v1040 = vor.u32 %v1036, %v1039
      %v1041 = vrot.slane %v1040, 4
      %v1043 = vshll.u32 %v746, 16
      %v1045 = vrot.slane %v1043, 5
      %v1046 = vsel %vm768, %v1041, %v1045
      %v1047 = vshrl.u32 %v746, 16
      %v1049 = vrot.slane %v1047, 4
      %v1050 = vor.u32 %v1049, %v1045
      %v1051 = vrot.slane %v1050, 4
      %v1053 = vshll.u32 %v747, 16
      %v1055 = vrot.slane %v1053, 5
      %v1056 = vsel %vm768, %v1051, %v1055
      %v1058 = vshrl.u32 %v748, 16
      %v1060 = vrot.slane %v1058, 4
      %v1061 = vshll.u32 %v748, 16
      %v1063 = vrot.slane %v1061, 5
      %v1064 = vor.u32 %v1060, %v1063
      %v1065 = vrot.slane %v1064, 4
      %v1067 = vshll.u32 %v749, 16
      %v1069 = vrot.slane %v1067, 5
      %v1070 = vsel %vm768, %v1065, %v1069
      %v1071 = vshrl.u32 %v749, 16
      %v1073 = vrot.slane %v1071, 4
      %v1074 = vor.u32 %v1073, %v1069
      %v1075 = vrot.slane %v1074, 4
      %v1077 = vshll.u32 %v750, 16
      %v1079 = vrot.slane %v1077, 5
      %v1080 = vsel %vm768, %v1075, %v1079
      %v1082 = vshrl.u32 %v751, 16
      %v1084 = vrot.slane %v1082, 4
      %v1085 = vshll.u32 %v751, 16
      %v1087 = vrot.slane %v1085, 5
      %v1088 = vor.u32 %v1084, %v1087
      %v1089 = vrot.slane %v1088, 4
      %v1091 = vshll.u32 %v752, 16
      %v1093 = vrot.slane %v1091, 5
      %v1094 = vsel %vm768, %v1089, %v1093
      %v1095 = vshrl.u32 %v752, 16
      %v1097 = vrot.slane %v1095, 4
      %v1098 = vor.u32 %v1097, %v1093
      %v1099 = vrot.slane %v1098, 4
      %v1101 = vshll.u32 %v753, 16
      %v1103 = vrot.slane %v1101, 5
      %v1104 = vsel %vm768, %v1099, %v1103
      %v1106 = vshrl.u32 %v754, 16
      %v1108 = vrot.slane %v1106, 4
      %v1109 = vshll.u32 %v754, 16
      %v1111 = vrot.slane %v1109, 5
      %v1112 = vor.u32 %v1108, %v1111
      %v1113 = vrot.slane %v1112, 4
      %v1115 = vshll.u32 %v755, 16
      %v1117 = vrot.slane %v1115, 5
      %v1118 = vsel %vm768, %v1113, %v1117
      %v1119 = vshrl.u32 %v755, 16
      %v1121 = vrot.slane %v1119, 4
      %v1122 = vor.u32 %v1121, %v1117
      %v1123 = vrot.slane %v1122, 4
      %v1125 = vshll.u32 %v756, 16
      %v1127 = vrot.slane %v1125, 5
      %v1128 = vsel %vm768, %v1123, %v1127
      %v1130 = vshrl.u32 %v757, 16
      %v1132 = vrot.slane %v1130, 4
      %v1133 = vshll.u32 %v757, 16
      %v1135 = vrot.slane %v1133, 5
      %v1136 = vor.u32 %v1132, %v1135
      %v1137 = vrot.slane %v1136, 4
      %v1139 = vshll.u32 %v758, 16
      %v1141 = vrot.slane %v1139, 5
      %v1142 = vsel %vm768, %v1137, %v1141
      %v1143 = vshrl.u32 %v758, 16
      %v1145 = vrot.slane %v1143, 4
      %v1146 = vor.u32 %v1145, %v1141
      %v1147 = vrot.slane %v1146, 4
      %v1149 = vshll.u32 %v759, 16
      %v1151 = vrot.slane %v1149, 5
      %v1152 = vsel %vm768, %v1147, %v1151
      %v1154 = vshrl.u32 %v760, 16
      %v1156 = vrot.slane %v1154, 4
      %v1157 = vshll.u32 %v760, 16
      %v1159 = vrot.slane %v1157, 5
      %v1160 = vor.u32 %v1156, %v1159
      %v1161 = vrot.slane %v1160, 4
      %v1163 = vshll.u32 %v761, 16
      %v1165 = vrot.slane %v1163, 5
      %v1166 = vsel %vm768, %v1161, %v1165
      %v1167 = vshrl.u32 %v761, 16
      %v1169 = vrot.slane %v1167, 4
      %v1170 = vor.u32 %v1169, %v1165
      %v1171 = vrot.slane %v1170, 4
      %v1173 = vshll.u32 %v762, 16
      %v1175 = vrot.slane %v1173, 5
      %v1176 = vsel %vm768, %v1171, %v1175
      %v1178 = vshrl.u32 %v763, 16
      %v1180 = vrot.slane %v1178, 4
      %v1181 = vshll.u32 %v763, 16
      %v1183 = vrot.slane %v1181, 5
      %v1184 = vor.u32 %v1180, %v1183
      %v1185 = vrot.slane %v1184, 4
      %v1187 = vshll.u32 %v764, 16
      %v1189 = vrot.slane %v1187, 5
      %v1190 = vsel %vm768, %v1185, %v1189
      %v1191 = vshrl.u32 %v764, 16
      %v1193 = vrot.slane %v1191, 4
      %v1194 = vor.u32 %v1193, %v1189
      %v1195 = vrot.slane %v1194, 4
      %v1197 = vshll.u32 %v765, 16
      %v1199 = vrot.slane %v1197, 5
      %v1200 = vsel %vm768, %v1195, %v1199
      %v1237 = vmax.bf16 %v712, %v782
      %v1238 = vmax.bf16 %v713, %v792
      %v1239 = vmax.bf16 %v715, %v806
      %v1240 = vmax.bf16 %v716, %v816
      %v1241 = vmax.bf16 %v718, %v830
      %v1242 = vmax.bf16 %v719, %v840
      %v1243 = vmax.bf16 %v721, %v854
      %v1244 = vmax.bf16 %v722, %v864
      %v1245 = vmax.bf16 %v724, %v878
      %v1246 = vmax.bf16 %v725, %v888
      %v1247 = vmax.bf16 %v727, %v902
      %v1248 = vmax.bf16 %v728, %v912
      %v1249 = vmax.bf16 %v730, %v926
      %v1250 = vmax.bf16 %v731, %v936
      %v1251 = vmax.bf16 %v733, %v950
      %v1252 = vmax.bf16 %v734, %v960
      %v1253 = vmax.bf16 %v736, %v974
      %v1254 = vmax.bf16 %v737, %v984
      %v1255 = vmax.bf16 %v739, %v998
      %v1256 = vmax.bf16 %v740, %v1008
      %v1257 = vmax.bf16 %v742, %v1022
      %v1258 = vmax.bf16 %v743, %v1032
      %v1259 = vmax.bf16 %v745, %v1046
      %v1260 = vmax.bf16 %v746, %v1056
      %v1261 = vmax.bf16 %v748, %v1070
      %v1262 = vmax.bf16 %v749, %v1080
      %v1263 = vmax.bf16 %v751, %v1094
      %v1264 = vmax.bf16 %v752, %v1104
      %v1265 = vmax.bf16 %v754, %v1118
      %v1266 = vmax.bf16 %v755, %v1128
      %v1267 = vmax.bf16 %v757, %v1142
      %v1268 = vmax.bf16 %v758, %v1152
      %v1269 = vmax.bf16 %v760, %v1166
      %v1270 = vmax.bf16 %v761, %v1176
      %v1271 = vmax.bf16 %v763, %v1190
      %v1272 = vmax.bf16 %v764, %v1200
      %vm1327 = vcmask 1042432
      %vm1328 = vcmask 1046532
      %vm1329 = vmor %vm1327, %vm1328
      %v1330 = vrot.slane %v712, 5
      %v1331 = vrot.slane %v1330, 4
      %v1332 = vrot.slane %v713, 5
      %v1333 = vsel %vm1329, %v1331, %v1332
      %v1334 = vrot.slane %v1332, 4
      %v1335 = vrot.slane %v714, 5
      %v1336 = vsel %vm1329, %v1334, %v1335
      %v1337 = vrot.slane %v715, 5
      %v1338 = vrot.slane %v1337, 4
      %v1339 = vrot.slane %v716, 5
      %v1340 = vsel %vm1329, %v1338, %v1339
      %v1341 = vrot.slane %v1339, 4
      %v1342 = vrot.slane %v717, 5
      %v1343 = vsel %vm1329, %v1341, %v1342
      %v1344 = vrot.slane %v718, 5
      %v1345 = vrot.slane %v1344, 4
      %v1346 = vrot.slane %v719, 5
      %v1347 = vsel %vm1329, %v1345, %v1346
      %v1348 = vrot.slane %v1346, 4
      %v1349 = vrot.slane %v720, 5
      %v1350 = vsel %vm1329, %v1348, %v1349
      %v1351 = vrot.slane %v721, 5
      %v1352 = vrot.slane %v1351, 4
      %v1353 = vrot.slane %v722, 5
      %v1354 = vsel %vm1329, %v1352, %v1353
      %v1355 = vrot.slane %v1353, 4
      %v1356 = vrot.slane %v723, 5
      %v1357 = vsel %vm1329, %v1355, %v1356
      %v1358 = vrot.slane %v724, 5
      %v1359 = vrot.slane %v1358, 4
      %v1360 = vrot.slane %v725, 5
      %v1361 = vsel %vm1329, %v1359, %v1360
      %v1362 = vrot.slane %v1360, 4
      %v1363 = vrot.slane %v726, 5
      %v1364 = vsel %vm1329, %v1362, %v1363
      %v1365 = vrot.slane %v727, 5
      %v1366 = vrot.slane %v1365, 4
      %v1367 = vrot.slane %v728, 5
      %v1368 = vsel %vm1329, %v1366, %v1367
      %v1369 = vrot.slane %v1367, 4
      %v1370 = vrot.slane %v729, 5
      %v1371 = vsel %vm1329, %v1369, %v1370
      %v1372 = vrot.slane %v730, 5
      %v1373 = vrot.slane %v1372, 4
      %v1374 = vrot.slane %v731, 5
      %v1375 = vsel %vm1329, %v1373, %v1374
      %v1376 = vrot.slane %v1374, 4
      %v1377 = vrot.slane %v732, 5
      %v1378 = vsel %vm1329, %v1376, %v1377
      %v1379 = vrot.slane %v733, 5
      %v1380 = vrot.slane %v1379, 4
      %v1381 = vrot.slane %v734, 5
      %v1382 = vsel %vm1329, %v1380, %v1381
      %v1383 = vrot.slane %v1381, 4
      %v1384 = vrot.slane %v735, 5
      %v1385 = vsel %vm1329, %v1383, %v1384
      %v1386 = vrot.slane %v736, 5
      %v1387 = vrot.slane %v1386, 4
      %v1388 = vrot.slane %v737, 5
      %v1389 = vsel %vm1329, %v1387, %v1388
      %v1390 = vrot.slane %v1388, 4
      %v1391 = vrot.slane %v738, 5
      %v1392 = vsel %vm1329, %v1390, %v1391
      %v1393 = vrot.slane %v739, 5
      %v1394 = vrot.slane %v1393, 4
      %v1395 = vrot.slane %v740, 5
      %v1396 = vsel %vm1329, %v1394, %v1395
      %v1397 = vrot.slane %v1395, 4
      %v1398 = vrot.slane %v741, 5
      %v1399 = vsel %vm1329, %v1397, %v1398
      %v1400 = vrot.slane %v742, 5
      %v1401 = vrot.slane %v1400, 4
      %v1402 = vrot.slane %v743, 5
      %v1403 = vsel %vm1329, %v1401, %v1402
      %v1404 = vrot.slane %v1402, 4
      %v1405 = vrot.slane %v744, 5
      %v1406 = vsel %vm1329, %v1404, %v1405
      %v1407 = vrot.slane %v745, 5
      %v1408 = vrot.slane %v1407, 4
      %v1409 = vrot.slane %v746, 5
      %v1410 = vsel %vm1329, %v1408, %v1409
      %v1411 = vrot.slane %v1409, 4
      %v1412 = vrot.slane %v747, 5
      %v1413 = vsel %vm1329, %v1411, %v1412
      %v1414 = vrot.slane %v748, 5
      %v1415 = vrot.slane %v1414, 4
      %v1416 = vrot.slane %v749, 5
      %v1417 = vsel %vm1329, %v1415, %v1416
      %v1418 = vrot.slane %v1416, 4
      %v1419 = vrot.slane %v750, 5
      %v1420 = vsel %vm1329, %v1418, %v1419
      %v1421 = vrot.slane %v751, 5
      %v1422 = vrot.slane %v1421, 4
      %v1423 = vrot.slane %v752, 5
      %v1424 = vsel %vm1329, %v1422, %v1423
      %v1425 = vrot.slane %v1423, 4
      %v1426 = vrot.slane %v753, 5
      %v1427 = vsel %vm1329, %v1425, %v1426
      %v1428 = vrot.slane %v754, 5
      %v1429 = vrot.slane %v1428, 4
      %v1430 = vrot.slane %v755, 5
      %v1431 = vsel %vm1329, %v1429, %v1430
      %v1432 = vrot.slane %v1430, 4
      %v1433 = vrot.slane %v756, 5
      %v1434 = vsel %vm1329, %v1432, %v1433
      %v1435 = vrot.slane %v757, 5
      %v1436 = vrot.slane %v1435, 4
      %v1437 = vrot.slane %v758, 5
      %v1438 = vsel %vm1329, %v1436, %v1437
      %v1439 = vrot.slane %v1437, 4
      %v1440 = vrot.slane %v759, 5
      %v1441 = vsel %vm1329, %v1439, %v1440
      %v1442 = vrot.slane %v760, 5
      %v1443 = vrot.slane %v1442, 4
      %v1444 = vrot.slane %v761, 5
      %v1445 = vsel %vm1329, %v1443, %v1444
      %v1446 = vrot.slane %v1444, 4
      %v1447 = vrot.slane %v762, 5
      %v1448 = vsel %vm1329, %v1446, %v1447
      %v1449 = vrot.slane %v763, 5
      %v1450 = vrot.slane %v1449, 4
      %v1451 = vrot.slane %v764, 5
      %v1452 = vsel %vm1329, %v1450, %v1451
      %v1453 = vrot.slane %v1451, 4
      %v1454 = vrot.slane %v765, 5
      %v1455 = vsel %vm1329, %v1453, %v1454
      %v1492 = vmax.bf16 %v1237, %v1333
      %v1493 = vmax.bf16 %v1238, %v1336
      %v1494 = vmax.bf16 %v1239, %v1340
      %v1495 = vmax.bf16 %v1240, %v1343
      %v1496 = vmax.bf16 %v1241, %v1347
      %v1497 = vmax.bf16 %v1242, %v1350
      %v1498 = vmax.bf16 %v1243, %v1354
      %v1499 = vmax.bf16 %v1244, %v1357
      %v1500 = vmax.bf16 %v1245, %v1361
      %v1501 = vmax.bf16 %v1246, %v1364
      %v1502 = vmax.bf16 %v1247, %v1368
      %v1503 = vmax.bf16 %v1248, %v1371
      %v1504 = vmax.bf16 %v1249, %v1375
      %v1505 = vmax.bf16 %v1250, %v1378
      %v1506 = vmax.bf16 %v1251, %v1382
      %v1507 = vmax.bf16 %v1252, %v1385
      %v1508 = vmax.bf16 %v1253, %v1389
      %v1509 = vmax.bf16 %v1254, %v1392
      %v1510 = vmax.bf16 %v1255, %v1396
      %v1511 = vmax.bf16 %v1256, %v1399
      %v1512 = vmax.bf16 %v1257, %v1403
      %v1513 = vmax.bf16 %v1258, %v1406
      %v1514 = vmax.bf16 %v1259, %v1410
      %v1515 = vmax.bf16 %v1260, %v1413
      %v1516 = vmax.bf16 %v1261, %v1417
      %v1517 = vmax.bf16 %v1262, %v1420
      %v1518 = vmax.bf16 %v1263, %v1424
      %v1519 = vmax.bf16 %v1264, %v1427
      %v1520 = vmax.bf16 %v1265, %v1431
      %v1521 = vmax.bf16 %v1266, %v1434
      %v1522 = vmax.bf16 %v1267, %v1438
      %v1523 = vmax.bf16 %v1268, %v1441
      %v1524 = vmax.bf16 %v1269, %v1445
      %v1525 = vmax.bf16 %v1270, %v1448
      %v1526 = vmax.bf16 %v1271, %v1452
      %v1527 = vmax.bf16 %v1272, %v1455
      %v1528 = vmax.bf16 %v1492, %v1494
      %v1529 = vmax.bf16 %v1493, %v1495
      %v1530 = vmax.bf16 %v1494, %v1496
      %v1531 = vmax.bf16 %v1495, %v1497
      %v1532 = vmax.bf16 %v1496, %v1498
      %v1533 = vmax.bf16 %v1497, %v1499
      %v1534 = vmax.bf16 %v1498, %v1500
      %v1535 = vmax.bf16 %v1499, %v1501
      %v1536 = vmax.bf16 %v1500, %v1502
      %v1537 = vmax.bf16 %v1501, %v1503
      %v1538 = vmax.bf16 %v1502, %v1504
      %v1539 = vmax.bf16 %v1503, %v1505
      %v1540 = vmax.bf16 %v1504, %v1506
      %v1541 = vmax.bf16 %v1505, %v1507
      %v1542 = vmax.bf16 %v1506, %v1508
      %v1543 = vmax.bf16 %v1507, %v1509
      %v1544 = vmax.bf16 %v1508, %v1510
      %v1545 = vmax.bf16 %v1509, %v1511
      %v1546 = vmax.bf16 %v1510, %v1512
      %v1547 = vmax.bf16 %v1511, %v1513
      %v1548 = vmax.bf16 %v1512, %v1514
      %v1549 = vmax.bf16 %v1513, %v1515
      %v1550 = vmax.bf16 %v1514, %v1516
      %v1551 = vmax.bf16 %v1515, %v1517
      %v1552 = vmax.bf16 %v1516, %v1518
      %v1553 = vmax.bf16 %v1517, %v1519
      %v1554 = vmax.bf16 %v1518, %v1520
      %v1555 = vmax.bf16 %v1519, %v1521
      %v1556 = vmax.bf16 %v1520, %v1522
      %v1557 = vmax.bf16 %v1521, %v1523
      %v1558 = vmax.bf16 %v1522, %v1524
      %v1559 = vmax.bf16 %v1523, %v1525
      %v1560 = vmax.bf16 %v1528, %v1496
      %v1561 = vmax.bf16 %v1529, %v1497
      %v1562 = vmax.bf16 %v1530, %v1498
      %v1563 = vmax.bf16 %v1531, %v1499
      %v1564 = vmax.bf16 %v1532, %v1500
      %v1565 = vmax.bf16 %v1533, %v1501
      %v1566 = vmax.bf16 %v1534, %v1502
      %v1567 = vmax.bf16 %v1535, %v1503
      %v1568 = vmax.bf16 %v1536, %v1504
      %v1569 = vmax.bf16 %v1537, %v1505
      %v1570 = vmax.bf16 %v1538, %v1506
      %v1571 = vmax.bf16 %v1539, %v1507
      %v1572 = vmax.bf16 %v1540, %v1508
      %v1573 = vmax.bf16 %v1541, %v1509
      %v1574 = vmax.bf16 %v1542, %v1510
      %v1575 = vmax.bf16 %v1543, %v1511
      %v1576 = vmax.bf16 %v1544, %v1512
      %v1577 = vmax.bf16 %v1545, %v1513
      %v1578 = vmax.bf16 %v1546, %v1514
      %v1579 = vmax.bf16 %v1547, %v1515
      %v1580 = vmax.bf16 %v1548, %v1516
      %v1581 = vmax.bf16 %v1549, %v1517
      %v1582 = vmax.bf16 %v1550, %v1518
      %v1583 = vmax.bf16 %v1551, %v1519
      %v1584 = vmax.bf16 %v1552, %v1520
      %v1585 = vmax.bf16 %v1553, %v1521
      %v1586 = vmax.bf16 %v1554, %v1522
      %v1587 = vmax.bf16 %v1555, %v1523
      %v1588 = vmax.bf16 %v1556, %v1524
      %v1589 = vmax.bf16 %v1557, %v1525
      %v1590 = vmax.bf16 %v1558, %v1526
      %v1591 = vmax.bf16 %v1559, %v1527
      %v1592 = vld [vmem:[%s1] sm:$0x3]
      %v1625 = vunpack.c.l.b16 %v1560
      %v1626 = vunpack.c.l.b16 %v1561
      %v1627 = vunpack.c.l.b16 %v1562
      %v1628 = vunpack.c.l.b16 %v1563
      %v1629 = vunpack.c.l.b16 %v1564
      %v1630 = vunpack.c.l.b16 %v1565
      %v1631 = vunpack.c.l.b16 %v1566
      %v1632 = vunpack.c.l.b16 %v1567
      %v1633 = vunpack.c.l.b16 %v1568
      %v1634 = vunpack.c.l.b16 %v1569
      %v1635 = vunpack.c.l.b16 %v1570
      %v1636 = vunpack.c.l.b16 %v1571
      %v1637 = vunpack.c.l.b16 %v1572
      %v1638 = vunpack.c.l.b16 %v1573
      %v1639 = vunpack.c.l.b16 %v1574
      %v1640 = vunpack.c.l.b16 %v1575
      %v1641 = vunpack.c.l.b16 %v1576
      %v1642 = vunpack.c.l.b16 %v1577
      %v1643 = vunpack.c.l.b16 %v1578
      %v1644 = vunpack.c.l.b16 %v1579
      %v1645 = vunpack.c.l.b16 %v1580
      %v1646 = vunpack.c.l.b16 %v1581
      %v1647 = vunpack.c.l.b16 %v1582
      %v1648 = vunpack.c.l.b16 %v1583
      %v1649 = vunpack.c.l.b16 %v1584
      %v1650 = vunpack.c.l.b16 %v1585
      %v1651 = vunpack.c.l.b16 %v1586
      %v1652 = vunpack.c.l.b16 %v1587
      %v1653 = vunpack.c.l.b16 %v1588
      %v1654 = vunpack.c.l.b16 %v1589
      %v1655 = vunpack.c.l.b16 %v1590
      %v1656 = vunpack.c.l.b16 %v1591
      %v1657 = vpack.c.b16 %v1626, %v1625
      %v1658 = vpack.c.b16 %v1628, %v1627
      %v1659 = vpack.c.b16 %v1630, %v1629
      %v1660 = vpack.c.b16 %v1632, %v1631
      %v1661 = vpack.c.b16 %v1634, %v1633
      %v1662 = vpack.c.b16 %v1636, %v1635
      %v1663 = vpack.c.b16 %v1638, %v1637
      %v1664 = vpack.c.b16 %v1640, %v1639
      %v1665 = vpack.c.b16 %v1642, %v1641
      %v1666 = vpack.c.b16 %v1644, %v1643
      %v1667 = vpack.c.b16 %v1646, %v1645
      %v1668 = vpack.c.b16 %v1648, %v1647
      %v1669 = vpack.c.b16 %v1650, %v1649
      %v1670 = vpack.c.b16 %v1652, %v1651
      %v1671 = vpack.c.b16 %v1654, %v1653
      %v1672 = vpack.c.b16 %v1656, %v1655
      %vm1673 = vcmask 31744
      %v1675 = vsel %vm1673, %v1657, 0
      %v1678 = vsel %vm1673, %v1658, 0
      %v1681 = vsel %vm1673, %v1659, 0
      %v1684 = vsel %vm1673, %v1660, 0
      %v1687 = vsel %vm1673, %v1661, 0
      %v1690 = vsel %vm1673, %v1662, 0
      %v1693 = vsel %vm1673, %v1663, 0
      %v1696 = vsel %vm1673, %v1664, 0
      %v1699 = vsel %vm1673, %v1665, 0
      %v1702 = vsel %vm1673, %v1666, 0
      %v1705 = vsel %vm1673, %v1667, 0
      %v1708 = vsel %vm1673, %v1668, 0
      %v1711 = vsel %vm1673, %v1669, 0
      %v1714 = vsel %vm1673, %v1670, 0
      %v1717 = vsel %vm1673, %v1671, 0
      %v1720 = vsel %vm1673, %v1672, 0
      %vm1722 = vcmask 1041408
      %v1724 = vsel %vm1722, %v1592, 0
      %1726 = vmatprep.subr.bf16.mxu0 0
      %1727 = vmatpush1.bf16.msra.mxu0 %v1724
      %1728 = vmatprep.subr.bf16.mxu0 0
      %1729 = vmatpush1.bf16.msra.mxu0 0
      %1730 = vmatprep.subr.bf16.mxu0 0
      %1731 = vmatpush1.bf16.msra.mxu0 0
      %1732 = vmatprep.subr.bf16.mxu0 0
      %1733 = vmatpush1.bf16.msra.mxu0 0
      %1734 = vmatprep.subr.bf16.mxu0 0
      %1735 = vmatpush1.bf16.msra.mxu0 0
      %1736 = vmatprep.subr.bf16.mxu0 0
      %1737 = vmatpush1.bf16.msra.mxu0 0
      %1738 = vmatprep.subr.bf16.mxu0 0
      %1739 = vmatpush1.bf16.msra.mxu0 0
      %1740 = vmatprep.subr.bf16.mxu0 0
      %1741 = vmatpush1.bf16.msra.mxu0 0
      %1742 = vmatprep.subr.bf16.mxu0 0
      %1743 = vmatpush1.bf16.msra.mxu0 0
      %1744 = vmatprep.subr.bf16.mxu0 0
      %1745 = vmatpush1.bf16.msra.mxu0 0
      %1746 = vmatprep.subr.bf16.mxu0 0
      %1747 = vmatpush1.bf16.msra.mxu0 0
      %1748 = vmatprep.subr.bf16.mxu0 0
      %1749 = vmatpush1.bf16.msra.mxu0 0
      %1750 = vmatprep.subr.bf16.mxu0 0
      %1751 = vmatpush1.bf16.msra.mxu0 0
      %1752 = vmatprep.subr.bf16.mxu0 0
      %1753 = vmatpush1.bf16.msra.mxu0 0
      %1754 = vmatprep.subr.bf16.mxu0 0
      %1755 = vmatpush1.bf16.msra.mxu0 0
      %1756 = vmatprep.subr.bf16.mxu0 0
      %1757 = vmatpush1.bf16.msra.mxu0 0
      %1758 = vmatprep.mubr.bf16.mxu0 0
      %1759 = vmatmul.mubr.bf16.gmra.mrb[0].mxu0 %v1675
      %v1760 = vpop.f32.mrb[0].mxu0
      %v1761 = vadd.f32 0.0, %v1760
      %v1762 = vpop.f32.mrb[0].mxu0
      %v1763 = vpop.f32.mrb[0].mxu0
      %v1764 = vadd.f32 0.0, %v1763
      %v1765 = vpop.f32.mrb[0].mxu0
      %1766 = vmatprep.mubr.bf16.mxu0 0
      %1767 = vmatmul.mubr.bf16.gmra.mrb[0].mxu0 %v1678
      %v1768 = vpop.f32.mrb[0].mxu0
      %v1769 = vadd.f32 0.0, %v1768
      %v1770 = vpop.f32.mrb[0].mxu0
      %v1771 = vpop.f32.mrb[0].mxu0
      %v1772 = vadd.f32 0.0, %v1771
      %v1773 = vpop.f32.mrb[0].mxu0
      %1774 = vmatprep.mubr.bf16.mxu0 0
      %1775 = vmatmul.mubr.bf16.gmra.mrb[0].mxu0 %v1681
      %v1776 = vpop.f32.mrb[0].mxu0
      %v1777 = vadd.f32 0.0, %v1776
      %v1778 = vpop.f32.mrb[0].mxu0
      %v1779 = vpop.f32.mrb[0].mxu0
      %v1780 = vadd.f32 0.0, %v1779
      %v1781 = vpop.f32.mrb[0].mxu0
      %1782 = vmatprep.mubr.bf16.mxu0 0
      %1783 = vmatmul.mubr.bf16.gmra.mrb[0].mxu0 %v1684
      %v1784 = vpop.f32.mrb[0].mxu0
      %v1785 = vadd.f32 0.0, %v1784
      %v1786 = vpop.f32.mrb[0].mxu0
      %v1787 = vpop.f32.mrb[0].mxu0
      %v1788 = vadd.f32 0.0, %v1787
      %v1789 = vpop.f32.mrb[0].mxu0
      %1790 = vmatprep.mubr.bf16.mxu0 0
      %1791 = vmatmul.mubr.bf16.gmra.mrb[0].mxu0 %v1687
      %v1792 = vpop.f32.mrb[0].mxu0
      %v1793 = vadd.f32 0.0, %v1792
      %v1794 = vpop.f32.mrb[0].mxu0
      %v1795 = vpop.f32.mrb[0].mxu0
      %v1796 = vadd.f32 0.0, %v1795
      %v1797 = vpop.f32.mrb[0].mxu0
      %1798 = vmatprep.mubr.bf16.mxu0 0
      %1799 = vmatmul.mubr.bf16.gmra.mrb[0].mxu0 %v1690
      %v1800 = vpop.f32.mrb[0].mxu0
      %v1801 = vadd.f32 0.0, %v1800
      %v1802 = vpop.f32.mrb[0].mxu0
      %v1803 = vpop.f32.mrb[0].mxu0
      %v1804 = vadd.f32 0.0, %v1803
      %v1805 = vpop.f32.mrb[0].mxu0
      %1806 = vmatprep.mubr.bf16.mxu0 0
      %1807 = vmatmul.mubr.bf16.gmra.mrb[0].mxu0 %v1693
      %v1808 = vpop.f32.mrb[0].mxu0
      %v1809 = vadd.f32 0.0, %v1808
      %v1810 = vpop.f32.mrb[0].mxu0
      %v1811 = vpop.f32.mrb[0].mxu0
      %v1812 = vadd.f32 0.0, %v1811
      %v1813 = vpop.f32.mrb[0].mxu0
      %1814 = vmatprep.mubr.bf16.mxu0 0
      %1815 = vmatmul.mubr.bf16.gmra.mrb[0].mxu0 %v1696
      %v1816 = vpop.f32.mrb[0].mxu0
      %v1817 = vadd.f32 0.0, %v1816
      %v1818 = vpop.f32.mrb[0].mxu0
      %v1819 = vpop.f32.mrb[0].mxu0
      %v1820 = vadd.f32 0.0, %v1819
      %v1821 = vpop.f32.mrb[0].mxu0
      %1822 = vmatprep.mubr.bf16.mxu0 0
      %1823 = vmatmul.mubr.bf16.gmra.mrb[0].mxu0 %v1699
      %v1824 = vpop.f32.mrb[0].mxu0
      %v1825 = vadd.f32 0.0, %v1824
      %v1826 = vpop.f32.mrb[0].mxu0
      %v1827 = vpop.f32.mrb[0].mxu0
      %v1828 = vadd.f32 0.0, %v1827
      %v1829 = vpop.f32.mrb[0].mxu0
      %1830 = vmatprep.mubr.bf16.mxu0 0
      %1831 = vmatmul.mubr.bf16.gmra.mrb[0].mxu0 %v1702
      %v1832 = vpop.f32.mrb[0].mxu0
      %v1833 = vadd.f32 0.0, %v1832
      %v1834 = vpop.f32.mrb[0].mxu0
      %v1835 = vpop.f32.mrb[0].mxu0
      %v1836 = vadd.f32 0.0, %v1835
      %v1837 = vpop.f32.mrb[0].mxu0
      %1838 = vmatprep.mubr.bf16.mxu0 0
      %1839 = vmatmul.mubr.bf16.gmra.mrb[0].mxu0 %v1705
      %v1840 = vpop.f32.mrb[0].mxu0
      %v1841 = vadd.f32 0.0, %v1840
      %v1842 = vpop.f32.mrb[0].mxu0
      %v1843 = vpop.f32.mrb[0].mxu0
      %v1844 = vadd.f32 0.0, %v1843
      %v1845 = vpop.f32.mrb[0].mxu0
      %1846 = vmatprep.mubr.bf16.mxu0 0
      %1847 = vmatmul.mubr.bf16.gmra.mrb[0].mxu0 %v1708
      %v1848 = vpop.f32.mrb[0].mxu0
      %v1849 = vadd.f32 0.0, %v1848
      %v1850 = vpop.f32.mrb[0].mxu0
      %v1851 = vpop.f32.mrb[0].mxu0
      %v1852 = vadd.f32 0.0, %v1851
      %v1853 = vpop.f32.mrb[0].mxu0
      %1854 = vmatprep.mubr.bf16.mxu0 0
      %1855 = vmatmul.mubr.bf16.gmra.mrb[0].mxu0 %v1711
      %v1856 = vpop.f32.mrb[0].mxu0
      %v1857 = vadd.f32 0.0, %v1856
      %v1858 = vpop.f32.mrb[0].mxu0
      %v1859 = vpop.f32.mrb[0].mxu0
      %v1860 = vadd.f32 0.0, %v1859
      %v1861 = vpop.f32.mrb[0].mxu0
      %1862 = vmatprep.mubr.bf16.mxu0 0
      %1863 = vmatmul.mubr.bf16.gmra.mrb[0].mxu0 %v1714
      %v1864 = vpop.f32.mrb[0].mxu0
      %v1865 = vadd.f32 0.0, %v1864
      %v1866 = vpop.f32.mrb[0].mxu0
      %v1867 = vpop.f32.mrb[0].mxu0
      %v1868 = vadd.f32 0.0, %v1867
      %v1869 = vpop.f32.mrb[0].mxu0
      %1870 = vmatprep.mubr.bf16.mxu0 0
      %1871 = vmatmul.mubr.bf16.gmra.mrb[0].mxu0 %v1717
      %v1872 = vpop.f32.mrb[0].mxu0
      %v1873 = vadd.f32 0.0, %v1872
      %v1874 = vpop.f32.mrb[0].mxu0
      %v1875 = vpop.f32.mrb[0].mxu0
      %v1876 = vadd.f32 0.0, %v1875
      %v1877 = vpop.f32.mrb[0].mxu0
      %1878 = vmatprep.mubr.bf16.mxu0 0
      %1879 = vmatmul.mubr.bf16.gmra.mrb[0].mxu0 %v1720
      %v1880 = vpop.f32.mrb[0].mxu0
      %v1881 = vadd.f32 0.0, %v1880
      %v1882 = vpop.f32.mrb[0].mxu0
      %v1883 = vpop.f32.mrb[0].mxu0
      %v1884 = vadd.f32 0.0, %v1883
      %v1885 = vpop.f32.mrb[0].mxu0
      %1886 = vdwg.mxu0
      %v1887 = vpack.c.bf16 %v1764, %v1761
      %v1888 = vpack.c.bf16 %v1772, %v1769
      %v1889 = vpack.c.bf16 %v1780, %v1777
      %v1890 = vpack.c.bf16 %v1788, %v1785
      %v1891 = vpack.c.bf16 %v1796, %v1793
      %v1892 = vpack.c.bf16 %v1804, %v1801
      %v1893 = vpack.c.bf16 %v1812, %v1809
      %v1894 = vpack.c.bf16 %v1820, %v1817
      %v1895 = vpack.c.bf16 %v1828, %v1825
      %v1896 = vpack.c.bf16 %v1836, %v1833
      %v1897 = vpack.c.bf16 %v1844, %v1841
      %v1898 = vpack.c.bf16 %v1852, %v1849
      %v1899 = vpack.c.bf16 %v1860, %v1857
      %v1900 = vpack.c.bf16 %v1868, %v1865
      %v1901 = vpack.c.bf16 %v1876, %v1873
      %v1902 = vpack.c.bf16 %v1884, %v1881
      %v1919 = vunpack.c.l.b16 %v1887
      %v1920 = vunpack.c.h.b16 %v1887
      %v1921 = vunpack.c.l.b16 %v1888
      %v1922 = vunpack.c.h.b16 %v1888
      %v1923 = vunpack.c.l.b16 %v1889
      %v1924 = vunpack.c.h.b16 %v1889
      %v1925 = vunpack.c.l.b16 %v1890
      %v1926 = vunpack.c.h.b16 %v1890
      %v1927 = vunpack.c.l.b16 %v1891
      %v1928 = vunpack.c.h.b16 %v1891
      %v1929 = vunpack.c.l.b16 %v1892
      %v1930 = vunpack.c.h.b16 %v1892
      %v1931 = vunpack.c.l.b16 %v1893
      %v1932 = vunpack.c.h.b16 %v1893
      %v1933 = vunpack.c.l.b16 %v1894
      %v1934 = vunpack.c.h.b16 %v1894
      %v1935 = vunpack.c.l.b16 %v1895
      %v1936 = vunpack.c.h.b16 %v1895
      %v1937 = vunpack.c.l.b16 %v1896
      %v1938 = vunpack.c.h.b16 %v1896
      %v1939 = vunpack.c.l.b16 %v1897
      %v1940 = vunpack.c.h.b16 %v1897
      %v1941 = vunpack.c.l.b16 %v1898
      %v1942 = vunpack.c.h.b16 %v1898
      %v1943 = vunpack.c.l.b16 %v1899
      %v1944 = vunpack.c.h.b16 %v1899
      %v1945 = vunpack.c.l.b16 %v1900
      %v1946 = vunpack.c.h.b16 %v1900
      %v1947 = vunpack.c.l.b16 %v1901
      %v1948 = vunpack.c.h.b16 %v1901
      %v1949 = vunpack.c.l.b16 %v1902
      %v1950 = vunpack.c.h.b16 %v1902
      %v1951 = vpack.c.b16 %v1919, %v1919
      %v1952 = vpack.c.b16 %v1920, %v1920
      %v1953 = vpack.c.b16 %v1921, %v1921
      %v1954 = vpack.c.b16 %v1922, %v1922
      %v1955 = vpack.c.b16 %v1923, %v1923
      %v1956 = vpack.c.b16 %v1924, %v1924
      %v1957 = vpack.c.b16 %v1925, %v1925
      %v1958 = vpack.c.b16 %v1926, %v1926
      %v1959 = vpack.c.b16 %v1927, %v1927
      %v1960 = vpack.c.b16 %v1928, %v1928
      %v1961 = vpack.c.b16 %v1929, %v1929
      %v1962 = vpack.c.b16 %v1930, %v1930
      %v1963 = vpack.c.b16 %v1931, %v1931
      %v1964 = vpack.c.b16 %v1932, %v1932
      %v1965 = vpack.c.b16 %v1933, %v1933
      %v1966 = vpack.c.b16 %v1934, %v1934
      %v1967 = vpack.c.b16 %v1935, %v1935
      %v1968 = vpack.c.b16 %v1936, %v1936
      %v1969 = vpack.c.b16 %v1937, %v1937
      %v1970 = vpack.c.b16 %v1938, %v1938
      %v1971 = vpack.c.b16 %v1939, %v1939
      %v1972 = vpack.c.b16 %v1940, %v1940
      %v1973 = vpack.c.b16 %v1941, %v1941
      %v1974 = vpack.c.b16 %v1942, %v1942
      %v1975 = vpack.c.b16 %v1943, %v1943
      %v1976 = vpack.c.b16 %v1944, %v1944
      %v1977 = vpack.c.b16 %v1945, %v1945
      %v1978 = vpack.c.b16 %v1946, %v1946
      %v1979 = vpack.c.b16 %v1947, %v1947
      %v1980 = vpack.c.b16 %v1948, %v1948
      %v1981 = vpack.c.b16 %v1949, %v1949
      %v1982 = vpack.c.b16 %v1950, %v1950
      %vm2015 = vcmask 60416
      %2016 = vst.msk [vmem:[%s176] sm:$0xf] %vm2015, %v1951
      %2017 = vst.msk [vmem:[%s176 + $0x4] sm:$0xf] %vm2015, %v1952
      %2018 = vst.msk [vmem:[%s176 + $0x8] sm:$0xf] %vm2015, %v1953
      %2019 = vst.msk [vmem:[%s176 + $0xc] sm:$0xf] %vm2015, %v1954
      %2020 = vst.msk [vmem:[%s176 + $0x10] sm:$0xf] %vm2015, %v1955
      %2021 = vst.msk [vmem:[%s176 + $0x14] sm:$0xf] %vm2015, %v1956
      %2022 = vst.msk [vmem:[%s176 + $0x18] sm:$0xf] %vm2015, %v1957
      %2023 = vst.msk [vmem:[%s176 + $0x1c] sm:$0xf] %vm2015, %v1958
      %2024 = vst.msk [vmem:[%s176 + $0x20] sm:$0xf] %vm2015, %v1959
      %2025 = vst.msk [vmem:[%s176 + $0x24] sm:$0xf] %vm2015, %v1960
      %2026 = vst.msk [vmem:[%s176 + $0x28] sm:$0xf] %vm2015, %v1961
      %2027 = vst.msk [vmem:[%s176 + $0x2c] sm:$0xf] %vm2015, %v1962
      %2028 = vst.msk [vmem:[%s176 + $0x30] sm:$0xf] %vm2015, %v1963
      %2029 = vst.msk [vmem:[%s176 + $0x34] sm:$0xf] %vm2015, %v1964
      %2030 = vst.msk [vmem:[%s176 + $0x38] sm:$0xf] %vm2015, %v1965
      %2031 = vst.msk [vmem:[%s176 + $0x3c] sm:$0xf] %vm2015, %v1966
      %2032 = vst.msk [vmem:[%s176 + $0x40] sm:$0xf] %vm2015, %v1967
      %2033 = vst.msk [vmem:[%s176 + $0x44] sm:$0xf] %vm2015, %v1968
      %2034 = vst.msk [vmem:[%s176 + $0x48] sm:$0xf] %vm2015, %v1969
      %2035 = vst.msk [vmem:[%s176 + $0x4c] sm:$0xf] %vm2015, %v1970
      %2036 = vst.msk [vmem:[%s176 + $0x50] sm:$0xf] %vm2015, %v1971
      %2037 = vst.msk [vmem:[%s176 + $0x54] sm:$0xf] %vm2015, %v1972
      %2038 = vst.msk [vmem:[%s176 + $0x58] sm:$0xf] %vm2015, %v1973
      %2039 = vst.msk [vmem:[%s176 + $0x5c] sm:$0xf] %vm2015, %v1974
      %2040 = vst.msk [vmem:[%s176 + $0x60] sm:$0xf] %vm2015, %v1975
      %2041 = vst.msk [vmem:[%s176 + $0x64] sm:$0xf] %vm2015, %v1976
      %2042 = vst.msk [vmem:[%s176 + $0x68] sm:$0xf] %vm2015, %v1977
      %2043 = vst.msk [vmem:[%s176 + $0x6c] sm:$0xf] %vm2015, %v1978
      %2044 = vst.msk [vmem:[%s176 + $0x70] sm:$0xf] %vm2015, %v1979
      %2045 = vst.msk [vmem:[%s176 + $0x74] sm:$0xf] %vm2015, %v1980
      %2046 = vst.msk [vmem:[%s176 + $0x78] sm:$0xf] %vm2015, %v1981
      %2047 = vst.msk [vmem:[%s176 + $0x7c] sm:$0xf] %vm2015, %v1982
      %vm2048 = vcmask 64512
      %v2049 = vsel %vm2048, %v1761, 0.0
      %v2050 = vsel %vm2048, %v1764, 0.0
      %v2051 = vadd.f32 %v2049, %v2050
      %v2052 = vsel %vm2048, %v1769, 0.0
      %v2053 = vadd.f32 %v2051, %v2052
      %v2054 = vsel %vm2048, %v1772, 0.0
      %v2055 = vadd.f32 %v2053, %v2054
      %v2056 = vsel %vm2048, %v1777, 0.0
      %v2057 = vadd.f32 %v2055, %v2056
      %v2058 = vsel %vm2048, %v1780, 0.0
      %v2059 = vadd.f32 %v2057, %v2058
      %v2060 = vsel %vm2048, %v1785, 0.0
      %v2061 = vadd.f32 %v2059, %v2060
      %v2062 = vsel %vm2048, %v1788, 0.0
      %v2063 = vadd.f32 %v2061, %v2062
      %v2064 = vsel %vm2048, %v1793, 0.0
      %v2065 = vadd.f32 %v2063, %v2064
      %v2066 = vsel %vm2048, %v1796, 0.0
      %v2067 = vadd.f32 %v2065, %v2066
      %v2068 = vsel %vm2048, %v1801, 0.0
      %v2069 = vadd.f32 %v2067, %v2068
      %v2070 = vsel %vm2048, %v1804, 0.0
      %v2071 = vadd.f32 %v2069, %v2070
      %v2072 = vsel %vm2048, %v1809, 0.0
      %v2073 = vadd.f32 %v2071, %v2072
      %v2074 = vsel %vm2048, %v1812, 0.0
      %v2075 = vadd.f32 %v2073, %v2074
      %v2076 = vsel %vm2048, %v1817, 0.0
      %v2077 = vadd.f32 %v2075, %v2076
      %v2078 = vsel %vm2048, %v1820, 0.0
      %v2079 = vadd.f32 %v2077, %v2078
      %v2080 = vsel %vm2048, %v1825, 0.0
      %v2081 = vadd.f32 %v2079, %v2080
      %v2082 = vsel %vm2048, %v1828, 0.0
      %v2083 = vadd.f32 %v2081, %v2082
      %v2084 = vsel %vm2048, %v1833, 0.0
      %v2085 = vadd.f32 %v2083, %v2084
      %v2086 = vsel %vm2048, %v1836, 0.0
      %v2087 = vadd.f32 %v2085, %v2086
      %v2088 = vsel %vm2048, %v1841, 0.0
      %v2089 = vadd.f32 %v2087, %v2088
      %v2090 = vsel %vm2048, %v1844, 0.0
      %v2091 = vadd.f32 %v2089, %v2090
      %v2092 = vsel %vm2048, %v1849, 0.0
      %v2093 = vadd.f32 %v2091, %v2092
      %v2094 = vsel %vm2048, %v1852, 0.0
      %v2095 = vadd.f32 %v2093, %v2094
      %v2096 = vsel %vm2048, %v1857, 0.0
      %v2097 = vadd.f32 %v2095, %v2096
      %v2098 = vsel %vm2048, %v1860, 0.0
      %v2099 = vadd.f32 %v2097, %v2098
      %v2100 = vsel %vm2048, %v1865, 0.0
      %v2101 = vadd.f32 %v2099, %v2100
      %v2102 = vsel %vm2048, %v1868, 0.0
      %v2103 = vadd.f32 %v2101, %v2102
      %v2104 = vsel %vm2048, %v1873, 0.0
      %v2105 = vadd.f32 %v2103, %v2104
      %v2106 = vsel %vm2048, %v1876, 0.0
      %v2107 = vadd.f32 %v2105, %v2106
      %v2108 = vsel %vm2048, %v1881, 0.0
      %v2109 = vadd.f32 %v2107, %v2108
      %v2110 = vsel %vm2048, %v1884, 0.0
      %v2111 = vadd.f32 %v2109, %v2110
      %v2112 = vrot.slane %v2111, 4
      %v2113 = vadd.f32 %v2111, %v2112
      %v2114 = vrot.slane %v2113, 2
      %v2115 = vadd.f32 %v2113, %v2114
      %v2116 = vrot.slane %v2115, 1
      %v2117 = vadd.f32 %v2115, %v2116
      %v2118 = vmul.f32 %v1761, %v1761
      %v2119 = vmul.f32 %v1764, %v1764
      %v2120 = vmul.f32 %v1769, %v1769
      %v2121 = vmul.f32 %v1772, %v1772
      %v2122 = vmul.f32 %v1777, %v1777
      %v2123 = vmul.f32 %v1780, %v1780
      %v2124 = vmul.f32 %v1785, %v1785
      %v2125 = vmul.f32 %v1788, %v1788
      %v2126 = vmul.f32 %v1793, %v1793
      %v2127 = vmul.f32 %v1796, %v1796
      %v2128 = vmul.f32 %v1801, %v1801
      %v2129 = vmul.f32 %v1804, %v1804
      %v2130 = vmul.f32 %v1809, %v1809
      %v2131 = vmul.f32 %v1812, %v1812
      %v2132 = vmul.f32 %v1817, %v1817
      %v2133 = vmul.f32 %v1820, %v1820
      %v2134 = vmul.f32 %v1825, %v1825
      %v2135 = vmul.f32 %v1828, %v1828
      %v2136 = vmul.f32 %v1833, %v1833
      %v2137 = vmul.f32 %v1836, %v1836
      %v2138 = vmul.f32 %v1841, %v1841
      %v2139 = vmul.f32 %v1844, %v1844
      %v2140 = vmul.f32 %v1849, %v1849
      %v2141 = vmul.f32 %v1852, %v1852
      %v2142 = vmul.f32 %v1857, %v1857
      %v2143 = vmul.f32 %v1860, %v1860
      %v2144 = vmul.f32 %v1865, %v1865
      %v2145 = vmul.f32 %v1868, %v1868
      %v2146 = vmul.f32 %v1873, %v1873
      %v2147 = vmul.f32 %v1876, %v1876
      %v2148 = vmul.f32 %v1881, %v1881
      %v2149 = vmul.f32 %v1884, %v1884
      %v2150 = vsel %vm2048, %v2118, 0.0
      %v2151 = vsel %vm2048, %v2119, 0.0
      %v2152 = vadd.f32 %v2150, %v2151
      %v2153 = vsel %vm2048, %v2120, 0.0
      %v2154 = vadd.f32 %v2152, %v2153
      %v2155 = vsel %vm2048, %v2121, 0.0
      %v2156 = vadd.f32 %v2154, %v2155
      %v2157 = vsel %vm2048, %v2122, 0.0
      %v2158 = vadd.f32 %v2156, %v2157
      %v2159 = vsel %vm2048, %v2123, 0.0
      %v2160 = vadd.f32 %v2158, %v2159
      %v2161 = vsel %vm2048, %v2124, 0.0
      %v2162 = vadd.f32 %v2160, %v2161
      %v2163 = vsel %vm2048, %v2125, 0.0
      %v2164 = vadd.f32 %v2162, %v2163
      %v2165 = vsel %vm2048, %v2126, 0.0
      %v2166 = vadd.f32 %v2164, %v2165
      %v2167 = vsel %vm2048, %v2127, 0.0
      %v2168 = vadd.f32 %v2166, %v2167
      %v2169 = vsel %vm2048, %v2128, 0.0
      %v2170 = vadd.f32 %v2168, %v2169
      %v2171 = vsel %vm2048, %v2129, 0.0
      %v2172 = vadd.f32 %v2170, %v2171
      %v2173 = vsel %vm2048, %v2130, 0.0
      %v2174 = vadd.f32 %v2172, %v2173
      %v2175 = vsel %vm2048, %v2131, 0.0
      %v2176 = vadd.f32 %v2174, %v2175
      %v2177 = vsel %vm2048, %v2132, 0.0
      %v2178 = vadd.f32 %v2176, %v2177
      %v2179 = vsel %vm2048, %v2133, 0.0
      %v2180 = vadd.f32 %v2178, %v2179
      %v2181 = vsel %vm2048, %v2134, 0.0
      %v2182 = vadd.f32 %v2180, %v2181
      %v2183 = vsel %vm2048, %v2135, 0.0
      %v2184 = vadd.f32 %v2182, %v2183
      %v2185 = vsel %vm2048, %v2136, 0.0
      %v2186 = vadd.f32 %v2184, %v2185
      %v2187 = vsel %vm2048, %v2137, 0.0
      %v2188 = vadd.f32 %v2186, %v2187
      %v2189 = vsel %vm2048, %v2138, 0.0
      %v2190 = vadd.f32 %v2188, %v2189
      %v2191 = vsel %vm2048, %v2139, 0.0
      %v2192 = vadd.f32 %v2190, %v2191
      %v2193 = vsel %vm2048, %v2140, 0.0
      %v2194 = vadd.f32 %v2192, %v2193
      %v2195 = vsel %vm2048, %v2141, 0.0
      %v2196 = vadd.f32 %v2194, %v2195
      %v2197 = vsel %vm2048, %v2142, 0.0
      %v2198 = vadd.f32 %v2196, %v2197
      %v2199 = vsel %vm2048, %v2143, 0.0
      %v2200 = vadd.f32 %v2198, %v2199
      %v2201 = vsel %vm2048, %v2144, 0.0
      %v2202 = vadd.f32 %v2200, %v2201
      %v2203 = vsel %vm2048, %v2145, 0.0
      %v2204 = vadd.f32 %v2202, %v2203
      %v2205 = vsel %vm2048, %v2146, 0.0
      %v2206 = vadd.f32 %v2204, %v2205
      %v2207 = vsel %vm2048, %v2147, 0.0
      %v2208 = vadd.f32 %v2206, %v2207
      %v2209 = vsel %vm2048, %v2148, 0.0
      %v2210 = vadd.f32 %v2208, %v2209
      %v2211 = vsel %vm2048, %v2149, 0.0
      %v2212 = vadd.f32 %v2210, %v2211
      %v2213 = vrot.slane %v2212, 4
      %v2214 = vadd.f32 %v2212, %v2213
      %v2215 = vrot.slane %v2214, 2
      %v2216 = vadd.f32 %v2214, %v2215
      %v2217 = vrot.slane %v2216, 1
      %v2218 = vadd.f32 %v2216, %v2217
      %2220 = vrot.lane.b32.xlu0 %v2218, 8
      %v2221 = vpop.permute.xlu0 %2220
      %v2223 = vsel %vm2048, %v2117, %v2221
      %vm2224 = vcmask 122880
      %2225 = vst.msk [vmem:[%s180] sm:$0x1] %vm2224, %v2223
      %s2226 = smul.u32 32, %s15
      %p2227 = scmp.lt.s32.totalorder %s2226, 63
      %s2228 = scalar_select %p2227, %s2226, 63
      %s2229 = smul.addr %s2228, 4
      %s2230 = scalar_lea.vmem %s2, %s2229
      %p2231 = scmp.lt.s32.totalorder %s15, 1
      %s2232 = scalar_select %p2231, %s15, 1
      %s2233 = scalar_lea.vmem %s3, %s2232
      // Predicated region
      $region29: #{inception_forward.8} parent=27 // pred_check
        %p2234 = pneg %p80
      $region30: #{inception_forward.8} parent=27 // pred_check_branch
        %2236 = sbr.rel (%p2234) target = $region32
      $region31: #{inception_forward.8} parent=27 // pred_region
        %s2237 = smul.u32 32, %s15
      $region32: #{inception_forward.8} parent=27 // pred_fallthru
        _
      // Predicated region
      $region33: #{inception_forward.8} parent=27 // pred_check
        %p2238 = pneg %p106
      $region34: #{inception_forward.8} parent=27 // pred_check_branch
        %2240 = sbr.rel (%p2238) target = $region36
      $region35: #{inception_forward.8} parent=27 // pred_region
        _
      $region36: #{inception_forward.8} parent=27 // pred_fallthru
        _
    $region28: #{inception_forward.8} parent=5 // pred_fallthru
      _
    %p2241 = scmp.le.s32.totalorder 2, %s10
    // Predicated region
    $region37: #{inception_forward.8} parent=5 // pred_check
      %p2242 = pneg %p2241
    $region38: #{inception_forward.8} parent=5 // pred_check_branch
      %2244 = sbr.rel (%p2242) target = $region40
    $region39: #{inception_forward.8} parent=5 // pred_region
      %s2245 = ssub.s32 %s10, 2
      // Predicated region
      $region41: #{inception_forward.8} parent=39 // pred_check
        %p2246 = pneg %p86
      $region42: #{inception_forward.8} parent=39 // pred_check_branch
        %2248 = sbr.rel (%p2246) target = $region44
      $region43: #{inception_forward.8} parent=39 // pred_region
        %s2249 = smul.u32 32, %s16
        %p2250 = scmp.lt.s32.totalorder %s2249, 63
        %s2251 = scalar_select %p2250, %s2249, 63
        %s2252 = smul.addr %s2251, 4
        %s2253 = scalar_lea.vmem %s2, %s2252
      $region44: #{inception_forward.8} parent=39 // pred_fallthru
        _
      // Predicated region
      $region45: #{inception_forward.8} parent=39 // pred_check
        %p2254 = pneg %p112
      $region46: #{inception_forward.8} parent=39 // pred_check_branch
        %2256 = sbr.rel (%p2254) target = $region48
      $region47: #{inception_forward.8} parent=39 // pred_region
        %p2257 = scmp.lt.s32.totalorder %s16, 1
        %s2258 = scalar_select %p2257, %s16, 1
        %s2259 = scalar_lea.vmem %s3, %s2258
      $region48: #{inception_forward.8} parent=39 // pred_fallthru
        _
    $region40: #{inception_forward.8} parent=5 // pred_fallthru
      _
  $region6: #{inception_forward.8} parent=0 // loop_footer
    %s14 = sadd.s32 1, %s10
  $region7: #{inception_forward.8} parent=0 // loop_footer_branch
    %9 = sbr.rel target = $region3
  $region8: #{inception_forward.8} parent=0 // loop_exit
    _

// kernel: inception_forward.9
$region0: #{inception_forward.9}
  #allocation0 [shape = 'u32[]', space=smem, size = 0x4, offset = 0x4, fixed_abs, tag = 'smem constant byte address 0x4 - core index']
  #allocation1 [shape = 'u32[144,128]{1,0:T(1,128)}', space=vmem, size = 0x12000, scoped, tag = 'internal scratch']
  %s0 = inlined_call_operand.vmem [shape: bf16[512,8], index: 0, kind: input, shape index: {}]
  %s1 = inlined_call_operand.vmem [shape: bf16[512,8], index: 1, kind: input, shape index: {}]
  %s2 = inlined_call_operand.vmem [shape: bf16[512,8], index: 2, kind: input, shape index: {}]
  %s3 = inlined_call_operand.vmem [shape: bf16[512,8], index: 3, kind: input, shape index: {}]
  %s4 = inlined_call_operand.vmem [shape: f32[1,32], index: 4, kind: input, shape index: {}]
  %s5 = inlined_call_operand.vmem [shape: f32[1,32], index: 5, kind: input, shape index: {}]
  %s6 = inlined_call_operand.vmem [shape: f32[2,32,256], index: 6, kind: output, shape index: {}]
  %s7 = sld [smem:[#allocation0]]
  $region57: #{inception_forward.9} parent=0
    _
  %s9 = ssub.s32 1, %s7
  %s10 = scalar_select 0, %s9, %s7
  loop: start=0, step=1, limit=4
  $region2: #{inception_forward.9} parent=0 // loop_pre_header
    _
  $region3: #{inception_forward.9} parent=0 // loop_header
    %s12 = sphi 0, %s16
    %p13 = scmp.ge.s32.totalorder %s12, 4
    %s22 = sphi 0, %s24
    %s25 = sphi 0, %s22
    %s26 = sphi 0, %s25
    %s42 = sphi 0, %s26
    %s48 = sphi 0, %s50
    %s51 = sphi 0, %s48
    %s52 = sphi 0, %s51
    %s68 = sphi 0, %s52
    %s74 = sphi 0, %s76
    %s77 = sphi 0, %s74
    %s78 = sphi 0, %s77
    %s94 = sphi 0, %s78
    %s100 = sphi 0, %s102
    %s103 = sphi 0, %s100
    %s104 = sphi 0, %s103
    %s120 = sphi 0, %s104
    %s124 = sphi 0, %s124
    %s126 = sphi 0, %s124
    %s127 = sphi 0, %s126
    %s141 = sphi 0, %s127
    %s145 = sphi 0, %s145
    %s147 = sphi 0, %s145
    %s148 = sphi 0, %s147
    %s162 = sphi 0, %s148
    %s168 = sphi 0, %s170
    %s171 = sphi 0, %s168
    %s172 = sphi 0, %s171
    %s188 = sphi 0, %s172
  $region4: #{inception_forward.9} parent=0 // loop_header_branch
    %15 = sbr.rel (%p13) target = $region8
  $region5: #{inception_forward.9} parent=0 // loop_body
    %s17 = ssub.s32 %s12, 1
    %s18 = ssub.s32 %s12, 2
    %s19 = sadd.s32 %s12, 1
    %s20 = ssub.s32 %s12, %s19
    %p21 = scmp.eq.s32.totalorder %s20, 0
    %s23 = sadd.s32 %s22, 1
    %s24 = scalar_select %p21, %s22, %s23
    %p27 = pneg %p21
    %p28 = scmp.eq.s32.totalorder %s12, 1
    %p29 = por %p27, %p28
    %p30 = scmp.ne.s32.totalorder %s22, %s25
    %p31 = scmp.eq.s32.totalorder %s12, 0
    %p32 = por %p30, %p31
    %p33 = scmp.ne.s32.totalorder %s22, %s25
    %p34 = scmp.eq.s32.totalorder %s17, 1
    %p35 = por %p33, %p34
    %p36 = scmp.ne.s32.totalorder %s25, %s26
    %p37 = scmp.eq.s32.totalorder %s17, 0
    %p38 = por %p36, %p37
    %p39 = scmp.ne.s32.totalorder %s25, %s26
    %p40 = scmp.eq.s32.totalorder %s18, 1
    %p41 = por %p39, %p40
    %p43 = scmp.ne.s32.totalorder %s26, %s42
    %p44 = scmp.eq.s32.totalorder %s18, 0
    %p45 = por %p43, %p44
    %s46 = ssub.s32 %s12, %s19
    %p47 = scmp.eq.s32.totalorder %s46, 0
    %s49 = sadd.s32 %s48, 1
    %s50 = scalar_select %p47, %s48, %s49
    %p53 = pneg %p47
    %p54 = scmp.eq.s32.totalorder %s12, 1
    %p55 = por %p53, %p54
    %p56 = scmp.ne.s32.totalorder %s48, %s51
    %p57 = scmp.eq.s32.totalorder %s12, 0
    %p58 = por %p56, %p57
    %p59 = scmp.ne.s32.totalorder %s48, %s51
    %p60 = scmp.eq.s32.totalorder %s17, 1
    %p61 = por %p59, %p60
    %p62 = scmp.ne.s32.totalorder %s51, %s52
    %p63 = scmp.eq.s32.totalorder %s17, 0
    %p64 = por %p62, %p63
    %p65 = scmp.ne.s32.totalorder %s51, %s52
    %p66 = scmp.eq.s32.totalorder %s18, 1
    %p67 = por %p65, %p66
    %p69 = scmp.ne.s32.totalorder %s52, %s68
    %p70 = scmp.eq.s32.totalorder %s18, 0
    %p71 = por %p69, %p70
    %s72 = ssub.s32 %s12, %s19
    %p73 = scmp.eq.s32.totalorder %s72, 0
    %s75 = sadd.s32 %s74, 1
    %s76 = scalar_select %p73, %s74, %s75
    %p79 = pneg %p73
    %p80 = scmp.eq.s32.totalorder %s12, 1
    %p81 = por %p79, %p80
    %p82 = scmp.ne.s32.totalorder %s74, %s77
    %p83 = scmp.eq.s32.totalorder %s12, 0
    %p84 = por %p82, %p83
    %p85 = scmp.ne.s32.totalorder %s74, %s77
    %p86 = scmp.eq.s32.totalorder %s17, 1
    %p87 = por %p85, %p86
    %p88 = scmp.ne.s32.totalorder %s77, %s78
    %p89 = scmp.eq.s32.totalorder %s17, 0
    %p90 = por %p88, %p89
    %p91 = scmp.ne.s32.totalorder %s77, %s78
    %p92 = scmp.eq.s32.totalorder %s18, 1
    %p93 = por %p91, %p92
    %p95 = scmp.ne.s32.totalorder %s78, %s94
    %p96 = scmp.eq.s32.totalorder %s18, 0
    %p97 = por %p95, %p96
    %s98 = ssub.s32 %s12, %s19
    %p99 = scmp.eq.s32.totalorder %s98, 0
    %s101 = sadd.s32 %s100, 1
    %s102 = scalar_select %p99, %s100, %s101
    %p105 = pneg %p99
    %p106 = scmp.eq.s32.totalorder %s12, 1
    %p107 = por %p105, %p106
    %p108 = scmp.ne.s32.totalorder %s100, %s103
    %p109 = scmp.eq.s32.totalorder %s12, 0
    %p110 = por %p108, %p109
    %p111 = scmp.ne.s32.totalorder %s100, %s103
    %p112 = scmp.eq.s32.totalorder %s17, 1
    %p113 = por %p111, %p112
    %p114 = scmp.ne.s32.totalorder %s103, %s104
    %p115 = scmp.eq.s32.totalorder %s17, 0
    %p116 = por %p114, %p115
    %p117 = scmp.ne.s32.totalorder %s103, %s104
    %p118 = scmp.eq.s32.totalorder %s18, 1
    %p119 = por %p117, %p118
    %p121 = scmp.ne.s32.totalorder %s104, %s120
    %p122 = scmp.eq.s32.totalorder %s18, 0
    %p123 = por %p121, %p122
    %s125 = sadd.s32 %s124, 1
    %p128 = scmp.eq.s32.totalorder %s12, 1
    %p129 = scmp.ne.s32.totalorder %s124, %s126
    %p130 = scmp.eq.s32.totalorder %s12, 0
    %p131 = por %p129, %p130
    %p132 = scmp.ne.s32.totalorder %s124, %s126
    %p133 = scmp.eq.s32.totalorder %s17, 1
    %p134 = por %p132, %p133
    %p135 = scmp.ne.s32.totalorder %s126, %s127
    %p136 = scmp.eq.s32.totalorder %s17, 0
    %p137 = por %p135, %p136
    %p138 = scmp.ne.s32.totalorder %s126, %s127
    %p139 = scmp.eq.s32.totalorder %s18, 1
    %p140 = por %p138, %p139
    %p142 = scmp.ne.s32.totalorder %s127, %s141
    %p143 = scmp.eq.s32.totalorder %s18, 0
    %p144 = por %p142, %p143
    %s146 = sadd.s32 %s145, 1
    %p149 = scmp.eq.s32.totalorder %s12, 1
    %p150 = scmp.ne.s32.totalorder %s145, %s147
    %p151 = scmp.eq.s32.totalorder %s12, 0
    %p152 = por %p150, %p151
    %p153 = scmp.ne.s32.totalorder %s145, %s147
    %p154 = scmp.eq.s32.totalorder %s17, 1
    %p155 = por %p153, %p154
    %p156 = scmp.ne.s32.totalorder %s147, %s148
    %p157 = scmp.eq.s32.totalorder %s17, 0
    %p158 = por %p156, %p157
    %p159 = scmp.ne.s32.totalorder %s147, %s148
    %p160 = scmp.eq.s32.totalorder %s18, 1
    %p161 = por %p159, %p160
    %p163 = scmp.ne.s32.totalorder %s148, %s162
    %p164 = scmp.eq.s32.totalorder %s18, 0
    %p165 = por %p163, %p164
    %s166 = ssub.s32 %s12, %s19
    %p167 = scmp.eq.s32.totalorder %s166, 0
    %s169 = sadd.s32 %s168, 1
    %s170 = scalar_select %p167, %s168, %s169
    %p173 = pneg %p167
    %p174 = scmp.eq.s32.totalorder %s12, 1
    %p175 = por %p173, %p174
    %p176 = scmp.ne.s32.totalorder %s168, %s171
    %p177 = scmp.eq.s32.totalorder %s12, 0
    %p178 = por %p176, %p177
    %p179 = scmp.ne.s32.totalorder %s168, %s171
    %p180 = scmp.eq.s32.totalorder %s17, 1
    %p181 = por %p179, %p180
    %p182 = scmp.ne.s32.totalorder %s171, %s172
    %p183 = scmp.eq.s32.totalorder %s17, 0
    %p184 = por %p182, %p183
    %p185 = scmp.ne.s32.totalorder %s171, %s172
    %p186 = scmp.eq.s32.totalorder %s18, 1
    %p187 = por %p185, %p186
    %p189 = scmp.ne.s32.totalorder %s172, %s188
    %p190 = scmp.eq.s32.totalorder %s18, 0
    %p191 = por %p189, %p190
    %p192 = scmp.le.s32.totalorder 1, %s12
    %p193 = scmp.lt.s32.totalorder %s12, 3
    %p194 = pnand %p192, %p193
    %p195 = pneg %p194
    // Predicated region
    $region9: #{inception_forward.9} parent=5 // pred_check
      _
    $region10: #{inception_forward.9} parent=5 // pred_check_branch
      %197 = sbr.rel (%p194) target = $region12
    $region11: #{inception_forward.9} parent=5 // pred_region
      %s198 = ssub.s32 %s12, 1
      // Predicated region
      $region13: #{inception_forward.9} parent=11 // pred_check
        %p199 = pneg %p137
      $region14: #{inception_forward.9} parent=11 // pred_check_branch
        %201 = sbr.rel (%p199) target = $region16
      $region15: #{inception_forward.9} parent=11 // pred_region
        _
      $region16: #{inception_forward.9} parent=11 // pred_fallthru
        _
      // Predicated region
      $region17: #{inception_forward.9} parent=11 // pred_check
        %p202 = pneg %p158
      $region18: #{inception_forward.9} parent=11 // pred_check_branch
        %204 = sbr.rel (%p202) target = $region20
      $region19: #{inception_forward.9} parent=11 // pred_region
        _
      $region20: #{inception_forward.9} parent=11 // pred_fallthru
        _
    $region12: #{inception_forward.9} parent=5 // pred_fallthru
      _
    %p205 = scmp.lt.s32.totalorder %s12, 2
    // Predicated region
    $region21: #{inception_forward.9} parent=5 // pred_check
      %p206 = pneg %p205
    $region22: #{inception_forward.9} parent=5 // pred_check_branch
      %208 = sbr.rel (%p206) target = $region24
    $region23: #{inception_forward.9} parent=5 // pred_region
      // Predicated region
      $region25: #{inception_forward.9} parent=23 // pred_check
        %p209 = pneg %p32
      $region26: #{inception_forward.9} parent=23 // pred_check_branch
        %211 = sbr.rel (%p209) target = $region28
      $region27: #{inception_forward.9} parent=23 // pred_region
        %s212 = smul.u32 32, %s12
        %p213 = scmp.lt.s32.totalorder %s212, 63
        %s214 = scalar_select %p213, %s212, 63
        %s215 = smul.addr %s214, 4
        %s216 = scalar_lea.vmem %s0, %s215
        %s217 = smul.u32 32, %s12
      $region28: #{inception_forward.9} parent=23 // pred_fallthru
        _
      // Predicated region
      $region29: #{inception_forward.9} parent=23 // pred_check
        %p218 = pneg %p58
      $region30: #{inception_forward.9} parent=23 // pred_check_branch
        %220 = sbr.rel (%p218) target = $region32
      $region31: #{inception_forward.9} parent=23 // pred_region
        %s221 = smul.u32 32, %s12
        %p222 = scmp.lt.s32.totalorder %s221, 63
        %s223 = scalar_select %p222, %s221, 63
        %s224 = smul.addr %s223, 4
        %s225 = scalar_lea.vmem %s1, %s224
        %s226 = smul.u32 32, %s12
      $region32: #{inception_forward.9} parent=23 // pred_fallthru
        _
      // Predicated region
      $region33: #{inception_forward.9} parent=23 // pred_check
        %p227 = pneg %p84
      $region34: #{inception_forward.9} parent=23 // pred_check_branch
        %229 = sbr.rel (%p227) target = $region36
      $region35: #{inception_forward.9} parent=23 // pred_region
        %s230 = smul.u32 32, %s12
        %p231 = scmp.lt.s32.totalorder %s230, 63
        %s232 = scalar_select %p231, %s230, 63
        %s233 = smul.addr %s232, 4
        %s234 = scalar_lea.vmem %s2, %s233
        %s235 = smul.u32 32, %s12
      $region36: #{inception_forward.9} parent=23 // pred_fallthru
        _
      // Predicated region
      $region37: #{inception_forward.9} parent=23 // pred_check
        %p236 = pneg %p110
      $region38: #{inception_forward.9} parent=23 // pred_check_branch
        %238 = sbr.rel (%p236) target = $region40
      $region39: #{inception_forward.9} parent=23 // pred_region
        %s239 = smul.u32 32, %s12
        %p240 = scmp.lt.s32.totalorder %s239, 63
        %s241 = scalar_select %p240, %s239, 63
        %s242 = smul.addr %s241, 4
        %s243 = scalar_lea.vmem %s3, %s242
        %s244 = smul.u32 32, %s12
      $region40: #{inception_forward.9} parent=23 // pred_fallthru
        _
    $region24: #{inception_forward.9} parent=5 // pred_fallthru
      _
    %p245 = scmp.le.s32.totalorder 1, %s12
    %p246 = scmp.lt.s32.totalorder %s12, 3
    %p247 = pnand %p245, %p246
    %p248 = pneg %p247
    // Predicated region
    $region41: #{inception_forward.9} parent=5 // pred_check
      _
    $region42: #{inception_forward.9} parent=5 // pred_check_branch
      %250 = sbr.rel (%p247) target = $region44
    $region43: #{inception_forward.9} parent=5 // pred_region
      %s251 = ssub.s32 %s12, 1
      %s252 = smul.u32 32, %s17
      %p253 = scmp.lt.s32.totalorder %s252, 63
      %s254 = scalar_select %p253, %s252, 63
      %s255 = smul.addr %s254, 4
      %s256 = scalar_lea.vmem %s0, %s255
      %p257 = pneg %p38
      %p258 = pneg %p35
      %s259 = smul.u32 32, %s17
      %p260 = scmp.lt.s32.totalorder %s259, 63
      %s261 = scalar_select %p260, %s259, 63
      %s262 = smul.addr %s261, 4
      %s263 = scalar_lea.vmem %s1, %s262
      %p264 = pneg %p64
      %p265 = pneg %p61
      %s266 = smul.u32 32, %s17
      %p267 = scmp.lt.s32.totalorder %s266, 63
      %s268 = scalar_select %p267, %s266, 63
      %s269 = smul.addr %s268, 4
      %s270 = scalar_lea.vmem %s2, %s269
      %p271 = pneg %p90
      %p272 = pneg %p87
      %s273 = smul.u32 32, %s17
      %p274 = scmp.lt.s32.totalorder %s273, 63
      %s275 = scalar_select %p274, %s273, 63
      %s276 = smul.addr %s275, 4
      %s277 = scalar_lea.vmem %s3, %s276
      %p278 = pneg %p116
      %p279 = pneg %p113
      %p280 = pneg %p137
      %p281 = pneg %p134
      %p282 = pneg %p158
      %p283 = pneg %p155
      %p284 = pneg %p184
      %p285 = pneg %p181
      %p286 = scmp.lt.s32.totalorder %s17, 1
      %s287 = scalar_select %p286, %s17, 1
      %s288 = smul.addr %s287, 8
      %s289 = smul.addr %s288, 8
      %s290 = scalar_lea.vmem %s6, %s289
      %s291 = smul.u32 32, %s17
      %p292 = scmp.lt.s32.totalorder %s291, 63
      %s293 = scalar_select %p292, %s291, 63
      %s294 = smul.addr %s293, 4
      %s295 = scalar_lea.vmem %s0, %s294
      %s296 = smul.u32 32, %s17
      %s297 = smul.u32 32, %s17
      %p298 = scmp.lt.s32.totalorder %s297, 63
      %s299 = scalar_select %p298, %s297, 63
      %s300 = smul.addr %s299, 4
      %s301 = scalar_lea.vmem %s1, %s300
      %s302 = smul.u32 32, %s17
      %s303 = smul.u32 32, %s17
      %p304 = scmp.lt.s32.totalorder %s303, 63
      %s305 = scalar_select %p304, %s303, 63
      %s306 = smul.addr %s305, 4
      %s307 = scalar_lea.vmem %s2, %s306
      %s308 = smul.u32 32, %s17
      %s309 = smul.u32 32, %s17
      %p310 = scmp.lt.s32.totalorder %s309, 63
      %s311 = scalar_select %p310, %s309, 63
      %s312 = smul.addr %s311, 4
      %s313 = scalar_lea.vmem %s3, %s312
      %s314 = smul.u32 32, %s17
      %p315 = scmp.lt.s32.totalorder %s17, 1
      %s316 = scalar_select %p315, %s17, 1
      %s317 = smul.addr %s316, 8
      %s318 = smul.addr %s317, 8
      %s319 = scalar_lea.vmem %s6, %s318
      %v320 = vld [vmem:[%s295] sm:$0xf]
      %v321 = vld [vmem:[%s295 + $0x4] sm:$0xf]
      %v322 = vld [vmem:[%s295 + $0x8] sm:$0xf]
      %v323 = vld [vmem:[%s295 + $0xc] sm:$0xf]
      %v324 = vld [vmem:[%s295 + $0x10] sm:$0xf]
      %v325 = vld [vmem:[%s295 + $0x14] sm:$0xf]
      %v326 = vld [vmem:[%s295 + $0x18] sm:$0xf]
      %v327 = vld [vmem:[%s295 + $0x1c] sm:$0xf]
      %v328 = vld [vmem:[%s295 + $0x20] sm:$0xf]
      %v329 = vld [vmem:[%s295 + $0x24] sm:$0xf]
      %v330 = vld [vmem:[%s295 + $0x28] sm:$0xf]
      %v331 = vld [vmem:[%s295 + $0x2c] sm:$0xf]
      %v332 = vld [vmem:[%s295 + $0x30] sm:$0xf]
      %v333 = vld [vmem:[%s295 + $0x34] sm:$0xf]
      %v334 = vld [vmem:[%s295 + $0x38] sm:$0xf]
      %v335 = vld [vmem:[%s295 + $0x3c] sm:$0xf]
      %v336 = vld [vmem:[%s295 + $0x40] sm:$0xf]
      %v337 = vld [vmem:[%s295 + $0x44] sm:$0xf]
      %v338 = vld [vmem:[%s295 + $0x48] sm:$0xf]
      %v339 = vld [vmem:[%s295 + $0x4c] sm:$0xf]
      %v340 = vld [vmem:[%s295 + $0x50] sm:$0xf]
      %v341 = vld [vmem:[%s295 + $0x54] sm:$0xf]
      %v342 = vld [vmem:[%s295 + $0x58] sm:$0xf]
      %v343 = vld [vmem:[%s295 + $0x5c] sm:$0xf]
      %v344 = vld [vmem:[%s295 + $0x60] sm:$0xf]
      %v345 = vld [vmem:[%s295 + $0x64] sm:$0xf]
      %v346 = vld [vmem:[%s295 + $0x68] sm:$0xf]
      %v347 = vld [vmem:[%s295 + $0x6c] sm:$0xf]
      %v348 = vld [vmem:[%s295 + $0x70] sm:$0xf]
      %v349 = vld [vmem:[%s295 + $0x74] sm:$0xf]
      %v350 = vld [vmem:[%s295 + $0x78] sm:$0xf]
      %v351 = vld [vmem:[%s295 + $0x7c] sm:$0xf]
      %v352 = vunpack.c.l.bf16 %v320
      %v353 = vunpack.c.l.bf16 %v321
      %v354 = vunpack.c.l.bf16 %v322
      %v355 = vunpack.c.l.bf16 %v323
      %v356 = vunpack.c.l.bf16 %v324
      %v357 = vunpack.c.l.bf16 %v325
      %v358 = vunpack.c.l.bf16 %v326
      %v359 = vunpack.c.l.bf16 %v327
      %v360 = vunpack.c.l.bf16 %v328
      %v361 = vunpack.c.l.bf16 %v329
      %v362 = vunpack.c.l.bf16 %v330
      %v363 = vunpack.c.l.bf16 %v331
      %v364 = vunpack.c.l.bf16 %v332
      %v365 = vunpack.c.l.bf16 %v333
      %v366 = vunpack.c.l.bf16 %v334
      %v367 = vunpack.c.l.bf16 %v335
      %v368 = vunpack.c.l.bf16 %v336
      %v369 = vunpack.c.l.bf16 %v337
      %v370 = vunpack.c.l.bf16 %v338
      %v371 = vunpack.c.l.bf16 %v339
      %v372 = vunpack.c.l.bf16 %v340
      %v373 = vunpack.c.l.bf16 %v341
      %v374 = vunpack.c.l.bf16 %v342
      %v375 = vunpack.c.l.bf16 %v343
      %v376 = vunpack.c.l.bf16 %v344
      %v377 = vunpack.c.l.bf16 %v345
      %v378 = vunpack.c.l.bf16 %v346
      %v379 = vunpack.c.l.bf16 %v347
      %v380 = vunpack.c.l.bf16 %v348
      %v381 = vunpack.c.l.bf16 %v349
      %v382 = vunpack.c.l.bf16 %v350
      %v383 = vunpack.c.l.bf16 %v351
      %v384 = vld [vmem:[%s301] sm:$0xf]
      %v385 = vld [vmem:[%s301 + $0x4] sm:$0xf]
      %v386 = vld [vmem:[%s301 + $0x8] sm:$0xf]
      %v387 = vld [vmem:[%s301 + $0xc] sm:$0xf]
      %v388 = vld [vmem:[%s301 + $0x10] sm:$0xf]
      %v389 = vld [vmem:[%s301 + $0x14] sm:$0xf]
      %v390 = vld [vmem:[%s301 + $0x18] sm:$0xf]
      %v391 = vld [vmem:[%s301 + $0x1c] sm:$0xf]
      %v392 = vld [vmem:[%s301 + $0x20] sm:$0xf]
      %v393 = vld [vmem:[%s301 + $0x24] sm:$0xf]
      %v394 = vld [vmem:[%s301 + $0x28] sm:$0xf]
      %v395 = vld [vmem:[%s301 + $0x2c] sm:$0xf]
      %v396 = vld [vmem:[%s301 + $0x30] sm:$0xf]
      %v397 = vld [vmem:[%s301 + $0x34] sm:$0xf]
      %v398 = vld [vmem:[%s301 + $0x38] sm:$0xf]
      %v399 = vld [vmem:[%s301 + $0x3c] sm:$0xf]
      %v400 = vld [vmem:[%s301 + $0x40] sm:$0xf]
      %v401 = vld [vmem:[%s301 + $0x44] sm:$0xf]
      %v402 = vld [vmem:[%s301 + $0x48] sm:$0xf]
      %v403 = vld [vmem:[%s301 + $0x4c] sm:$0xf]
      %v404 = vld [vmem:[%s301 + $0x50] sm:$0xf]
      %v405 = vld [vmem:[%s301 + $0x54] sm:$0xf]
      %v406 = vld [vmem:[%s301 + $0x58] sm:$0xf]
      %v407 = vld [vmem:[%s301 + $0x5c] sm:$0xf]
      %v408 = vld [vmem:[%s301 + $0x60] sm:$0xf]
      %v409 = vld [vmem:[%s301 + $0x64] sm:$0xf]
      %v410 = vld [vmem:[%s301 + $0x68] sm:$0xf]
      %v411 = vld [vmem:[%s301 + $0x6c] sm:$0xf]
      %v412 = vld [vmem:[%s301 + $0x70] sm:$0xf]
      %v413 = vld [vmem:[%s301 + $0x74] sm:$0xf]
      %v414 = vld [vmem:[%s301 + $0x78] sm:$0xf]
      %v415 = vld [vmem:[%s301 + $0x7c] sm:$0xf]
      %v416 = vunpack.c.l.bf16 %v384
      %v417 = vunpack.c.l.bf16 %v385
      %v418 = vunpack.c.l.bf16 %v386
      %v419 = vunpack.c.l.bf16 %v387
      %v420 = vunpack.c.l.bf16 %v388
      %v421 = vunpack.c.l.bf16 %v389
      %v422 = vunpack.c.l.bf16 %v390
      %v423 = vunpack.c.l.bf16 %v391
      %v424 = vunpack.c.l.bf16 %v392
      %v425 = vunpack.c.l.bf16 %v393
      %v426 = vunpack.c.l.bf16 %v394
      %v427 = vunpack.c.l.bf16 %v395
      %v428 = vunpack.c.l.bf16 %v396
      %v429 = vunpack.c.l.bf16 %v397
      %v430 = vunpack.c.l.bf16 %v398
      %v431 = vunpack.c.l.bf16 %v399
      %v432 = vunpack.c.l.bf16 %v400
      %v433 = vunpack.c.l.bf16 %v401
      %v434 = vunpack.c.l.bf16 %v402
      %v435 = vunpack.c.l.bf16 %v403
      %v436 = vunpack.c.l.bf16 %v404
      %v437 = vunpack.c.l.bf16 %v405
      %v438 = vunpack.c.l.bf16 %v406
      %v439 = vunpack.c.l.bf16 %v407
      %v440 = vunpack.c.l.bf16 %v408
      %v441 = vunpack.c.l.bf16 %v409
      %v442 = vunpack.c.l.bf16 %v410
      %v443 = vunpack.c.l.bf16 %v411
      %v444 = vunpack.c.l.bf16 %v412
      %v445 = vunpack.c.l.bf16 %v413
      %v446 = vunpack.c.l.bf16 %v414
      %v447 = vunpack.c.l.bf16 %v415
      %v448 = vld [vmem:[%s307] sm:$0xf]
      %v449 = vld [vmem:[%s307 + $0x4] sm:$0xf]
      %v450 = vld [vmem:[%s307 + $0x8] sm:$0xf]
      %v451 = vld [vmem:[%s307 + $0xc] sm:$0xf]
      %v452 = vld [vmem:[%s307 + $0x10] sm:$0xf]
      %v453 = vld [vmem:[%s307 + $0x14] sm:$0xf]
      %v454 = vld [vmem:[%s307 + $0x18] sm:$0xf]
      %v455 = vld [vmem:[%s307 + $0x1c] sm:$0xf]
      %v456 = vld [vmem:[%s307 + $0x20] sm:$0xf]
      %v457 = vld [vmem:[%s307 + $0x24] sm:$0xf]
      %v458 = vld [vmem:[%s307 + $0x28] sm:$0xf]
      %v459 = vld [vmem:[%s307 + $0x2c] sm:$0xf]
      %v460 = vld [vmem:[%s307 + $0x30] sm:$0xf]
      %v461 = vld [vmem:[%s307 + $0x34] sm:$0xf]
      %v462 = vld [vmem:[%s307 + $0x38] sm:$0xf]
      %v463 = vld [vmem:[%s307 + $0x3c] sm:$0xf]
      %v464 = vld [vmem:[%s307 + $0x40] sm:$0xf]
      %v465 = vld [vmem:[%s307 + $0x44] sm:$0xf]
      %v466 = vld [vmem:[%s307 + $0x48] sm:$0xf]
      %v467 = vld [vmem:[%s307 + $0x4c] sm:$0xf]
      %v468 = vld [vmem:[%s307 + $0x50] sm:$0xf]
      %v469 = vld [vmem:[%s307 + $0x54] sm:$0xf]
      %v470 = vld [vmem:[%s307 + $0x58] sm:$0xf]
      %v471 = vld [vmem:[%s307 + $0x5c] sm:$0xf]
      %v472 = vld [vmem:[%s307 + $0x60] sm:$0xf]
      %v473 = vld [vmem:[%s307 + $0x64] sm:$0xf]
      %v474 = vld [vmem:[%s307 + $0x68] sm:$0xf]
      %v475 = vld [vmem:[%s307 + $0x6c] sm:$0xf]
      %v476 = vld [vmem:[%s307 + $0x70] sm:$0xf]
      %v477 = vld [vmem:[%s307 + $0x74] sm:$0xf]
      %v478 = vld [vmem:[%s307 + $0x78] sm:$0xf]
      %v479 = vld [vmem:[%s307 + $0x7c] sm:$0xf]
      %v480 = vunpack.c.l.bf16 %v448
      %v481 = vunpack.c.l.bf16 %v449
      %v482 = vunpack.c.l.bf16 %v450
      %v483 = vunpack.c.l.bf16 %v451
      %v484 = vunpack.c.l.bf16 %v452
      %v485 = vunpack.c.l.bf16 %v453
      %v486 = vunpack.c.l.bf16 %v454
      %v487 = vunpack.c.l.bf16 %v455
      %v488 = vunpack.c.l.bf16 %v456
      %v489 = vunpack.c.l.bf16 %v457
      %v490 = vunpack.c.l.bf16 %v458
      %v491 = vunpack.c.l.bf16 %v459
      %v492 = vunpack.c.l.bf16 %v460
      %v493 = vunpack.c.l.bf16 %v461
      %v494 = vunpack.c.l.bf16 %v462
      %v495 = vunpack.c.l.bf16 %v463
      %v496 = vunpack.c.l.bf16 %v464
      %v497 = vunpack.c.l.bf16 %v465
      %v498 = vunpack.c.l.bf16 %v466
      %v499 = vunpack.c.l.bf16 %v467
      %v500 = vunpack.c.l.bf16 %v468
      %v501 = vunpack.c.l.bf16 %v469
      %v502 = vunpack.c.l.bf16 %v470
      %v503 = vunpack.c.l.bf16 %v471
      %v504 = vunpack.c.l.bf16 %v472
      %v505 = vunpack.c.l.bf16 %v473
      %v506 = vunpack.c.l.bf16 %v474
      %v507 = vunpack.c.l.bf16 %v475
      %v508 = vunpack.c.l.bf16 %v476
      %v509 = vunpack.c.l.bf16 %v477
      %v510 = vunpack.c.l.bf16 %v478
      %v511 = vunpack.c.l.bf16 %v479
      %v512 = vld [vmem:[%s313] sm:$0xf]
      %v513 = vld [vmem:[%s313 + $0x4] sm:$0xf]
      %v514 = vld [vmem:[%s313 + $0x8] sm:$0xf]
      %v515 = vld [vmem:[%s313 + $0xc] sm:$0xf]
      %v516 = vld [vmem:[%s313 + $0x10] sm:$0xf]
      %v517 = vld [vmem:[%s313 + $0x14] sm:$0xf]
      %v518 = vld [vmem:[%s313 + $0x18] sm:$0xf]
      %v519 = vld [vmem:[%s313 + $0x1c] sm:$0xf]
      %v520 = vld [vmem:[%s313 + $0x20] sm:$0xf]
      %v521 = vld [vmem:[%s313 + $0x24] sm:$0xf]
      %v522 = vld [vmem:[%s313 + $0x28] sm:$0xf]
      %v523 = vld [vmem:[%s313 + $0x2c] sm:$0xf]
      %v524 = vld [vmem:[%s313 + $0x30] sm:$0xf]
      %v525 = vld [vmem:[%s313 + $0x34] sm:$0xf]
      %v526 = vld [vmem:[%s313 + $0x38] sm:$0xf]
      %v527 = vld [vmem:[%s313 + $0x3c] sm:$0xf]
      %v528 = vld [vmem:[%s313 + $0x40] sm:$0xf]
      %v529 = vld [vmem:[%s313 + $0x44] sm:$0xf]
      %v530 = vld [vmem:[%s313 + $0x48] sm:$0xf]
      %v531 = vld [vmem:[%s313 + $0x4c] sm:$0xf]
      %v532 = vld [vmem:[%s313 + $0x50] sm:$0xf]
      %v533 = vld [vmem:[%s313 + $0x54] sm:$0xf]
      %v534 = vld [vmem:[%s313 + $0x58] sm:$0xf]
      %v535 = vld [vmem:[%s313 + $0x5c] sm:$0xf]
      %v536 = vld [vmem:[%s313 + $0x60] sm:$0xf]
      %v537 = vld [vmem:[%s313 + $0x64] sm:$0xf]
      %v538 = vld [vmem:[%s313 + $0x68] sm:$0xf]
      %v539 = vld [vmem:[%s313 + $0x6c] sm:$0xf]
      %v540 = vld [vmem:[%s313 + $0x70] sm:$0xf]
      %v541 = vld [vmem:[%s313 + $0x74] sm:$0xf]
      %v542 = vld [vmem:[%s313 + $0x78] sm:$0xf]
      %v543 = vld [vmem:[%s313 + $0x7c] sm:$0xf]
      %v544 = vunpack.c.l.bf16 %v512
      %v545 = vunpack.c.l.bf16 %v513
      %v546 = vunpack.c.l.bf16 %v514
      %v547 = vunpack.c.l.bf16 %v515
      %v548 = vunpack.c.l.bf16 %v516
      %v549 = vunpack.c.l.bf16 %v517
      %v550 = vunpack.c.l.bf16 %v518
      %v551 = vunpack.c.l.bf16 %v519
      %v552 = vunpack.c.l.bf16 %v520
      %v553 = vunpack.c.l.bf16 %v521
      %v554 = vunpack.c.l.bf16 %v522
      %v555 = vunpack.c.l.bf16 %v523
      %v556 = vunpack.c.l.bf16 %v524
      %v557 = vunpack.c.l.bf16 %v525
      %v558 = vunpack.c.l.bf16 %v526
      %v559 = vunpack.c.l.bf16 %v527
      %v560 = vunpack.c.l.bf16 %v528
      %v561 = vunpack.c.l.bf16 %v529
      %v562 = vunpack.c.l.bf16 %v530
      %v563 = vunpack.c.l.bf16 %v531
      %v564 = vunpack.c.l.bf16 %v532
      %v565 = vunpack.c.l.bf16 %v533
      %v566 = vunpack.c.l.bf16 %v534
      %v567 = vunpack.c.l.bf16 %v535
      %v568 = vunpack.c.l.bf16 %v536
      %v569 = vunpack.c.l.bf16 %v537
      %v570 = vunpack.c.l.bf16 %v538
      %v571 = vunpack.c.l.bf16 %v539
      %v572 = vunpack.c.l.bf16 %v540
      %v573 = vunpack.c.l.bf16 %v541
      %v574 = vunpack.c.l.bf16 %v542
      %v575 = vunpack.c.l.bf16 %v543
      %608 = vrot.lane.b32.xlu0 %v416, 8
      %v609 = vpop.permute.xlu0 %608
      %610 = vrot.lane.b32.xlu0 %v417, 8
      %v611 = vpop.permute.xlu0 %610
      %612 = vrot.lane.b32.xlu0 %v418, 8
      %v613 = vpop.permute.xlu0 %612
      %614 = vrot.lane.b32.xlu0 %v419, 8
      %v615 = vpop.permute.xlu0 %614
      %616 = vrot.lane.b32.xlu0 %v420, 8
      %v617 = vpop.permute.xlu0 %616
      %618 = vrot.lane.b32.xlu0 %v421, 8
      %v619 = vpop.permute.xlu0 %618
      %620 = vrot.lane.b32.xlu0 %v422, 8
      %v621 = vpop.permute.xlu0 %620
      %622 = vrot.lane.b32.xlu0 %v423, 8
      %v623 = vpop.permute.xlu0 %622
      %624 = vrot.lane.b32.xlu0 %v424, 8
      %v625 = vpop.permute.xlu0 %624
      %626 = vrot.lane.b32.xlu0 %v425, 8
      %v627 = vpop.permute.xlu0 %626
      %628 = vrot.lane.b32.xlu0 %v426, 8
      %v629 = vpop.permute.xlu0 %628
      %630 = vrot.lane.b32.xlu0 %v427, 8
      %v631 = vpop.permute.xlu0 %630
      %632 = vrot.lane.b32.xlu0 %v428, 8
      %v633 = vpop.permute.xlu0 %632
      %634 = vrot.lane.b32.xlu0 %v429, 8
      %v635 = vpop.permute.xlu0 %634
      %636 = vrot.lane.b32.xlu0 %v430, 8
      %v637 = vpop.permute.xlu0 %636
      %638 = vrot.lane.b32.xlu0 %v431, 8
      %v639 = vpop.permute.xlu0 %638
      %640 = vrot.lane.b32.xlu0 %v432, 8
      %v641 = vpop.permute.xlu0 %640
      %642 = vrot.lane.b32.xlu0 %v433, 8
      %v643 = vpop.permute.xlu0 %642
      %644 = vrot.lane.b32.xlu0 %v434, 8
      %v645 = vpop.permute.xlu0 %644
      %646 = vrot.lane.b32.xlu0 %v435, 8
      %v647 = vpop.permute.xlu0 %646
      %648 = vrot.lane.b32.xlu0 %v436, 8
      %v649 = vpop.permute.xlu0 %648
      %650 = vrot.lane.b32.xlu0 %v437, 8
      %v651 = vpop.permute.xlu0 %650
      %652 = vrot.lane.b32.xlu0 %v438, 8
      %v653 = vpop.permute.xlu0 %652
      %654 = vrot.lane.b32.xlu0 %v439, 8
      %v655 = vpop.permute.xlu0 %654
      %656 = vrot.lane.b32.xlu0 %v440, 8
      %v657 = vpop.permute.xlu0 %656
      %658 = vrot.lane.b32.xlu0 %v441, 8
      %v659 = vpop.permute.xlu0 %658
      %660 = vrot.lane.b32.xlu0 %v442, 8
      %v661 = vpop.permute.xlu0 %660
      %662 = vrot.lane.b32.xlu0 %v443, 8
      %v663 = vpop.permute.xlu0 %662
      %664 = vrot.lane.b32.xlu0 %v444, 8
      %v665 = vpop.permute.xlu0 %664
      %666 = vrot.lane.b32.xlu0 %v445, 8
      %v667 = vpop.permute.xlu0 %666
      %668 = vrot.lane.b32.xlu0 %v446, 8
      %v669 = vpop.permute.xlu0 %668
      %670 = vrot.lane.b32.xlu0 %v447, 8
      %v671 = vpop.permute.xlu0 %670
      %736 = vrot.lane.b32.xlu0 %v480, 16
      %v737 = vpop.permute.xlu0 %736
      %738 = vrot.lane.b32.xlu0 %v481, 16
      %v739 = vpop.permute.xlu0 %738
      %740 = vrot.lane.b32.xlu0 %v482, 16
      %v741 = vpop.permute.xlu0 %740
      %742 = vrot.lane.b32.xlu0 %v483, 16
      %v743 = vpop.permute.xlu0 %742
      %744 = vrot.lane.b32.xlu0 %v484, 16
      %v745 = vpop.permute.xlu0 %744
      %746 = vrot.lane.b32.xlu0 %v485, 16
      %v747 = vpop.permute.xlu0 %746
      %748 = vrot.lane.b32.xlu0 %v486, 16
      %v749 = vpop.permute.xlu0 %748
      %750 = vrot.lane.b32.xlu0 %v487, 16
      %v751 = vpop.permute.xlu0 %750
      %752 = vrot.lane.b32.xlu0 %v488, 16
      %v753 = vpop.permute.xlu0 %752
      %754 = vrot.lane.b32.xlu0 %v489, 16
      %v755 = vpop.permute.xlu0 %754
      %756 = vrot.lane.b32.xlu0 %v490, 16
      %v757 = vpop.permute.xlu0 %756
      %758 = vrot.lane.b32.xlu0 %v491, 16
      %v759 = vpop.permute.xlu0 %758
      %760 = vrot.lane.b32.xlu0 %v492, 16
      %v761 = vpop.permute.xlu0 %760
      %762 = vrot.lane.b32.xlu0 %v493, 16
      %v763 = vpop.permute.xlu0 %762
      %764 = vrot.lane.b32.xlu0 %v494, 16
      %v765 = vpop.permute.xlu0 %764
      %766 = vrot.lane.b32.xlu0 %v495, 16
      %v767 = vpop.permute.xlu0 %766
      %768 = vrot.lane.b32.xlu0 %v496, 16
      %v769 = vpop.permute.xlu0 %768
      %770 = vrot.lane.b32.xlu0 %v497, 16
      %v771 = vpop.permute.xlu0 %770
      %772 = vrot.lane.b32.xlu0 %v498, 16
      %v773 = vpop.permute.xlu0 %772
      %774 = vrot.lane.b32.xlu0 %v499, 16
      %v775 = vpop.permute.xlu0 %774
      %776 = vrot.lane.b32.xlu0 %v500, 16
      %v777 = vpop.permute.xlu0 %776
      %778 = vrot.lane.b32.xlu0 %v501, 16
      %v779 = vpop.permute.xlu0 %778
      %780 = vrot.lane.b32.xlu0 %v502, 16
      %v781 = vpop.permute.xlu0 %780
      %782 = vrot.lane.b32.xlu0 %v503, 16
      %v783 = vpop.permute.xlu0 %782
      %784 = vrot.lane.b32.xlu0 %v504, 16
      %v785 = vpop.permute.xlu0 %784
      %786 = vrot.lane.b32.xlu0 %v505, 16
      %v787 = vpop.permute.xlu0 %786
      %788 = vrot.lane.b32.xlu0 %v506, 16
      %v789 = vpop.permute.xlu0 %788
      %790 = vrot.lane.b32.xlu0 %v507, 16
      %v791 = vpop.permute.xlu0 %790
      %792 = vrot.lane.b32.xlu0 %v508, 16
      %v793 = vpop.permute.xlu0 %792
      %794 = vrot.lane.b32.xlu0 %v509, 16
      %v795 = vpop.permute.xlu0 %794
      %796 = vrot.lane.b32.xlu0 %v510, 16
      %v797 = vpop.permute.xlu0 %796
      %798 = vrot.lane.b32.xlu0 %v511, 16
      %v799 = vpop.permute.xlu0 %798
      %864 = vrot.lane.b32.xlu0 %v544, 24
      %v865 = vpop.permute.xlu0 %864
      %866 = vrot.lane.b32.xlu0 %v545, 24
      %v867 = vpop.permute.xlu0 %866
      %868 = vrot.lane.b32.xlu0 %v546, 24
      %v869 = vpop.permute.xlu0 %868
      %870 = vrot.lane.b32.xlu0 %v547, 24
      %v871 = vpop.permute.xlu0 %870
      %872 = vrot.lane.b32.xlu0 %v548, 24
      %v873 = vpop.permute.xlu0 %872
      %874 = vrot.lane.b32.xlu0 %v549, 24
      %v875 = vpop.permute.xlu0 %874
      %876 = vrot.lane.b32.xlu0 %v550, 24
      %v877 = vpop.permute.xlu0 %876
      %878 = vrot.lane.b32.xlu0 %v551, 24
      %v879 = vpop.permute.xlu0 %878
      %880 = vrot.lane.b32.xlu0 %v552, 24
      %v881 = vpop.permute.xlu0 %880
      %882 = vrot.lane.b32.xlu0 %v553, 24
      %v883 = vpop.permute.xlu0 %882
      %884 = vrot.lane.b32.xlu0 %v554, 24
      %v885 = vpop.permute.xlu0 %884
      %886 = vrot.lane.b32.xlu0 %v555, 24
      %v887 = vpop.permute.xlu0 %886
      %888 = vrot.lane.b32.xlu0 %v556, 24
      %v889 = vpop.permute.xlu0 %888
      %890 = vrot.lane.b32.xlu0 %v557, 24
      %v891 = vpop.permute.xlu0 %890
      %892 = vrot.lane.b32.xlu0 %v558, 24
      %v893 = vpop.permute.xlu0 %892
      %894 = vrot.lane.b32.xlu0 %v559, 24
      %v895 = vpop.permute.xlu0 %894
      %896 = vrot.lane.b32.xlu0 %v560, 24
      %v897 = vpop.permute.xlu0 %896
      %898 = vrot.lane.b32.xlu0 %v561, 24
      %v899 = vpop.permute.xlu0 %898
      %900 = vrot.lane.b32.xlu0 %v562, 24
      %v901 = vpop.permute.xlu0 %900
      %902 = vrot.lane.b32.xlu0 %v563, 24
      %v903 = vpop.permute.xlu0 %902
      %904 = vrot.lane.b32.xlu0 %v564, 24
      %v905 = vpop.permute.xlu0 %904
      %906 = vrot.lane.b32.xlu0 %v565, 24
      %v907 = vpop.permute.xlu0 %906
      %908 = vrot.lane.b32.xlu0 %v566, 24
      %v909 = vpop.permute.xlu0 %908
      %910 = vrot.lane.b32.xlu0 %v567, 24
      %v911 = vpop.permute.xlu0 %910
      %912 = vrot.lane.b32.xlu0 %v568, 24
      %v913 = vpop.permute.xlu0 %912
      %914 = vrot.lane.b32.xlu0 %v569, 24
      %v915 = vpop.permute.xlu0 %914
      %916 = vrot.lane.b32.xlu0 %v570, 24
      %v917 = vpop.permute.xlu0 %916
      %918 = vrot.lane.b32.xlu0 %v571, 24
      %v919 = vpop.permute.xlu0 %918
      %920 = vrot.lane.b32.xlu0 %v572, 24
      %v921 = vpop.permute.xlu0 %920
      %922 = vrot.lane.b32.xlu0 %v573, 24
      %v923 = vpop.permute.xlu0 %922
      %924 = vrot.lane.b32.xlu0 %v574, 24
      %v925 = vpop.permute.xlu0 %924
      %926 = vrot.lane.b32.xlu0 %v575, 24
      %v927 = vpop.permute.xlu0 %926
      %vm960 = vcmask 64512
      %v961 = vsel %vm960, %v352, %v609
      %v962 = vsel %vm960, %v353, %v611
      %v963 = vsel %vm960, %v354, %v613
      %v964 = vsel %vm960, %v355, %v615
      %v965 = vsel %vm960, %v356, %v617
      %v966 = vsel %vm960, %v357, %v619
      %v967 = vsel %vm960, %v358, %v621
      %v968 = vsel %vm960, %v359, %v623
      %v969 = vsel %vm960, %v360, %v625
      %v970 = vsel %vm960, %v361, %v627
      %v971 = vsel %vm960, %v362, %v629
      %v972 = vsel %vm960, %v363, %v631
      %v973 = vsel %vm960, %v364, %v633
      %v974 = vsel %vm960, %v365, %v635
      %v975 = vsel %vm960, %v366, %v637
      %v976 = vsel %vm960, %v367, %v639
      %v977 = vsel %vm960, %v368, %v641
      %v978 = vsel %vm960, %v369, %v643
      %v979 = vsel %vm960, %v370, %v645
      %v980 = vsel %vm960, %v371, %v647
      %v981 = vsel %vm960, %v372, %v649
      %v982 = vsel %vm960, %v373, %v651
      %v983 = vsel %vm960, %v374, %v653
      %v984 = vsel %vm960, %v375, %v655
      %v985 = vsel %vm960, %v376, %v657
      %v986 = vsel %vm960, %v377, %v659
      %v987 = vsel %vm960, %v378, %v661
      %v988 = vsel %vm960, %v379, %v663
      %v989 = vsel %vm960, %v380, %v665
      %v990 = vsel %vm960, %v381, %v667
      %v991 = vsel %vm960, %v382, %v669
      %v992 = vsel %vm960, %v383, %v671
      %vm993 = vcmask 130048
      %v994 = vsel %vm993, %v961, %v737
      %v995 = vsel %vm993, %v962, %v739
      %v996 = vsel %vm993, %v963, %v741
      %v997 = vsel %vm993, %v964, %v743
      %v998 = vsel %vm993, %v965, %v745
      %v999 = vsel %vm993, %v966, %v747
      %v1000 = vsel %vm993, %v967, %v749
      %v1001 = vsel %vm993, %v968, %v751
      %v1002 = vsel %vm993, %v969, %v753
      %v1003 = vsel %vm993, %v970, %v755
      %v1004 = vsel %vm993, %v971, %v757
      %v1005 = vsel %vm993, %v972, %v759
      %v1006 = vsel %vm993, %v973, %v761
      %v1007 = vsel %vm993, %v974, %v763
      %v1008 = vsel %vm993, %v975, %v765
      %v1009 = vsel %vm993, %v976, %v767
      %v1010 = vsel %vm993, %v977, %v769
      %v1011 = vsel %vm993, %v978, %v771
      %v1012 = vsel %vm993, %v979, %v773
      %v1013 = vsel %vm993, %v980, %v775
      %v1014 = vsel %vm993, %v981, %v777
      %v1015 = vsel %vm993, %v982, %v779
      %v1016 = vsel %vm993, %v983, %v781
      %v1017 = vsel %vm993, %v984, %v783
      %v1018 = vsel %vm993, %v985, %v785
      %v1019 = vsel %vm993, %v986, %v787
      %v1020 = vsel %vm993, %v987, %v789
      %v1021 = vsel %vm993, %v988, %v791
      %v1022 = vsel %vm993, %v989, %v793
      %v1023 = vsel %vm993, %v990, %v795
      %v1024 = vsel %vm993, %v991, %v797
      %v1025 = vsel %vm993, %v992, %v799
      %vm1026 = vcmask 195584
      %v1027 = vsel %vm1026, %v994, %v865
      %v1028 = vsel %vm1026, %v995, %v867
      %v1029 = vsel %vm1026, %v996, %v869
      %v1030 = vsel %vm1026, %v997, %v871
      %v1031 = vsel %vm1026, %v998, %v873
      %v1032 = vsel %vm1026, %v999, %v875
      %v1033 = vsel %vm1026, %v1000, %v877
      %v1034 = vsel %vm1026, %v1001, %v879
      %v1035 = vsel %vm1026, %v1002, %v881
      %v1036 = vsel %vm1026, %v1003, %v883
      %v1037 = vsel %vm1026, %v1004, %v885
      %v1038 = vsel %vm1026, %v1005, %v887
      %v1039 = vsel %vm1026, %v1006, %v889
      %v1040 = vsel %vm1026, %v1007, %v891
      %v1041 = vsel %vm1026, %v1008, %v893
      %v1042 = vsel %vm1026, %v1009, %v895
      %v1043 = vsel %vm1026, %v1010, %v897
      %v1044 = vsel %vm1026, %v1011, %v899
      %v1045 = vsel %vm1026, %v1012, %v901
      %v1046 = vsel %vm1026, %v1013, %v903
      %v1047 = vsel %vm1026, %v1014, %v905
      %v1048 = vsel %vm1026, %v1015, %v907
      %v1049 = vsel %vm1026, %v1016, %v909
      %v1050 = vsel %vm1026, %v1017, %v911
      %v1051 = vsel %vm1026, %v1018, %v913
      %v1052 = vsel %vm1026, %v1019, %v915
      %v1053 = vsel %vm1026, %v1020, %v917
      %v1054 = vsel %vm1026, %v1021, %v919
      %v1055 = vsel %vm1026, %v1022, %v921
      %v1056 = vsel %vm1026, %v1023, %v923
      %v1057 = vsel %vm1026, %v1024, %v925
      %v1058 = vsel %vm1026, %v1025, %v927
      %v1059 = vld [vmem:[%s4] sm:$0x1]
      %v1061 = vlaneseq
      %v1062 = vshrl.u32 %v1061, 7
      %v1063 = vsub.s32 0, %v1062
      %v1064 = vrot.slane %v1059, %v1063
      %v1066 = vmul.f32 %v1027, %v1064
      %v1067 = vmul.f32 %v1028, %v1064
      %v1068 = vmul.f32 %v1029, %v1064
      %v1069 = vmul.f32 %v1030, %v1064
      %v1070 = vmul.f32 %v1031, %v1064
      %v1071 = vmul.f32 %v1032, %v1064
      %v1072 = vmul.f32 %v1033, %v1064
      %v1073 = vmul.f32 %v1034, %v1064
      %v1074 = vmul.f32 %v1035, %v1064
      %v1075 = vmul.f32 %v1036, %v1064
      %v1076 = vmul.f32 %v1037, %v1064
      %v1077 = vmul.f32 %v1038, %v1064
      %v1078 = vmul.f32 %v1039, %v1064
      %v1079 = vmul.f32 %v1040, %v1064
      %v1080 = vmul.f32 %v1041, %v1064
      %v1081 = vmul.f32 %v1042, %v1064
      %v1082 = vmul.f32 %v1043, %v1064
      %v1083 = vmul.f32 %v1044, %v1064
      %v1084 = vmul.f32 %v1045, %v1064
      %v1085 = vmul.f32 %v1046, %v1064
      %v1086 = vmul.f32 %v1047, %v1064
      %v1087 = vmul.f32 %v1048, %v1064
      %v1088 = vmul.f32 %v1049, %v1064
      %v1089 = vmul.f32 %v1050, %v1064
      %v1090 = vmul.f32 %v1051, %v1064
      %v1091 = vmul.f32 %v1052, %v1064
      %v1092 = vmul.f32 %v1053, %v1064
      %v1093 = vmul.f32 %v1054, %v1064
      %v1094 = vmul.f32 %v1055, %v1064
      %v1095 = vmul.f32 %v1056, %v1064
      %v1096 = vmul.f32 %v1057, %v1064
      %v1097 = vmul.f32 %v1058, %v1064
      %v1098 = vld [vmem:[%s5] sm:$0x1]
      %v1100 = vlaneseq
      %v1101 = vshrl.u32 %v1100, 7
      %v1102 = vsub.s32 0, %v1101
      %v1103 = vrot.slane %v1098, %v1102
      %v1105 = vadd.f32 %v1066, %v1103
      %v1106 = vadd.f32 %v1067, %v1103
      %v1107 = vadd.f32 %v1068, %v1103
      %v1108 = vadd.f32 %v1069, %v1103
      %v1109 = vadd.f32 %v1070, %v1103
      %v1110 = vadd.f32 %v1071, %v1103
      %v1111 = vadd.f32 %v1072, %v1103
      %v1112 = vadd.f32 %v1073, %v1103
      %v1113 = vadd.f32 %v1074, %v1103
      %v1114 = vadd.f32 %v1075, %v1103
      %v1115 = vadd.f32 %v1076, %v1103
      %v1116 = vadd.f32 %v1077, %v1103
      %v1117 = vadd.f32 %v1078, %v1103
      %v1118 = vadd.f32 %v1079, %v1103
      %v1119 = vadd.f32 %v1080, %v1103
      %v1120 = vadd.f32 %v1081, %v1103
      %v1121 = vadd.f32 %v1082, %v1103
      %v1122 = vadd.f32 %v1083, %v1103
      %v1123 = vadd.f32 %v1084, %v1103
      %v1124 = vadd.f32 %v1085, %v1103
      %v1125 = vadd.f32 %v1086, %v1103
      %v1126 = vadd.f32 %v1087, %v1103
      %v1127 = vadd.f32 %v1088, %v1103
      %v1128 = vadd.f32 %v1089, %v1103
      %v1129 = vadd.f32 %v1090, %v1103
      %v1130 = vadd.f32 %v1091, %v1103
      %v1131 = vadd.f32 %v1092, %v1103
      %v1132 = vadd.f32 %v1093, %v1103
      %v1133 = vadd.f32 %v1094, %v1103
      %v1134 = vadd.f32 %v1095, %v1103
      %v1135 = vadd.f32 %v1096, %v1103
      %v1136 = vadd.f32 %v1097, %v1103
      %v1137 = vmax.f32 %v1105, 0.0
      %v1138 = vmax.f32 %v1106, 0.0
      %v1139 = vmax.f32 %v1107, 0.0
      %v1140 = vmax.f32 %v1108, 0.0
      %v1141 = vmax.f32 %v1109, 0.0
      %v1142 = vmax.f32 %v1110, 0.0
      %v1143 = vmax.f32 %v1111, 0.0
      %v1144 = vmax.f32 %v1112, 0.0
      %v1145 = vmax.f32 %v1113, 0.0
      %v1146 = vmax.f32 %v1114, 0.0
      %v1147 = vmax.f32 %v1115, 0.0
      %v1148 = vmax.f32 %v1116, 0.0
      %v1149 = vmax.f32 %v1117, 0.0
      %v1150 = vmax.f32 %v1118, 0.0
      %v1151 = vmax.f32 %v1119, 0.0
      %v1152 = vmax.f32 %v1120, 0.0
      %v1153 = vmax.f32 %v1121, 0.0
      %v1154 = vmax.f32 %v1122, 0.0
      %v1155 = vmax.f32 %v1123, 0.0
      %v1156 = vmax.f32 %v1124, 0.0
      %v1157 = vmax.f32 %v1125, 0.0
      %v1158 = vmax.f32 %v1126, 0.0
      %v1159 = vmax.f32 %v1127, 0.0
      %v1160 = vmax.f32 %v1128, 0.0
      %v1161 = vmax.f32 %v1129, 0.0
      %v1162 = vmax.f32 %v1130, 0.0
      %v1163 = vmax.f32 %v1131, 0.0
      %v1164 = vmax.f32 %v1132, 0.0
      %v1165 = vmax.f32 %v1133, 0.0
      %v1166 = vmax.f32 %v1134, 0.0
      %v1167 = vmax.f32 %v1135, 0.0
      %v1168 = vmax.f32 %v1136, 0.0
      %vm1169 = vcmask 261120
      %v1170 = vsel %vm1169, %v1137, 0.0
      %v1171 = vsel %vm1169, %v1138, 0.0
      %v1172 = vsel %vm1169, %v1139, 0.0
      %v1173 = vsel %vm1169, %v1140, 0.0
      %v1174 = vsel %vm1169, %v1141, 0.0
      %v1175 = vsel %vm1169, %v1142, 0.0
      %v1176 = vsel %vm1169, %v1143, 0.0
      %v1177 = vsel %vm1169, %v1144, 0.0
      %v1178 = vsel %vm1169, %v1145, 0.0
      %v1179 = vsel %vm1169, %v1146, 0.0
      %v1180 = vsel %vm1169, %v1147, 0.0
      %v1181 = vsel %vm1169, %v1148, 0.0
      %v1182 = vsel %vm1169, %v1149, 0.0
      %v1183 = vsel %vm1169, %v1150, 0.0
      %v1184 = vsel %vm1169, %v1151, 0.0
      %v1185 = vsel %vm1169, %v1152, 0.0
      %v1186 = vsel %vm1169, %v1153, 0.0
      %v1187 = vsel %vm1169, %v1154, 0.0
      %v1188 = vsel %vm1169, %v1155, 0.0
      %v1189 = vsel %vm1169, %v1156, 0.0
      %v1190 = vsel %vm1169, %v1157, 0.0
      %v1191 = vsel %vm1169, %v1158, 0.0
      %v1192 = vsel %vm1169, %v1159, 0.0
      %v1193 = vsel %vm1169, %v1160, 0.0
      %v1194 = vsel %vm1169, %v1161, 0.0
      %v1195 = vsel %vm1169, %v1162, 0.0
      %v1196 = vsel %vm1169, %v1163, 0.0
      %v1197 = vsel %vm1169, %v1164, 0.0
      %v1198 = vsel %vm1169, %v1165, 0.0
      %v1199 = vsel %vm1169, %v1166, 0.0
      %v1200 = vsel %vm1169, %v1167, 0.0
      %v1201 = vsel %vm1169, %v1168, 0.0
      %1202 = vxpose.xlu0.b32.start [1/16] %v1170, 128
      %1203 = vxpose.xlu0.b32.cont [2/16] %v1171, 128
      %1204 = vxpose.xlu0.b32.cont [3/16] %v1172, 128
      %1205 = vxpose.xlu0.b32.cont [4/16] %v1173, 128
      %1206 = vxpose.xlu0.b32.cont [5/16] %v1174, 128
      %1207 = vxpose.xlu0.b32.cont [6/16] %v1175, 128
      %1208 = vxpose.xlu0.b32.cont [7/16] %v1176, 128
      %1209 = vxpose.xlu0.b32.cont [8/16] %v1177, 128
      %1210 = vxpose.xlu0.b32.cont [9/16] %v1178, 128
      %1211 = vxpose.xlu0.b32.cont [10/16] %v1179, 128
      %1212 = vxpose.xlu0.b32.cont [11/16] %v1180, 128
      %1213 = vxpose.xlu0.b32.cont [12/16] %v1181, 128
      %1214 = vxpose.xlu0.b32.cont [13/16] %v1182, 128
      %1215 = vxpose.xlu0.b32.cont [14/16] %v1183, 128
      %1216 = vxpose.xlu0.b32.cont [15/16] %v1184, 128
      %1217 = vxpose.xlu0.b32.end [16/16] %v1185, 128
      %v1218 = vpop.trf.xlu0
      %v1219 = vpop.trf.xlu0
      %v1220 = vpop.trf.xlu0
      %v1221 = vpop.trf.xlu0
      %v1222 = vpop.trf.xlu0
      %v1223 = vpop.trf.xlu0
      %v1224 = vpop.trf.xlu0
      %v1225 = vpop.trf.xlu0
      %v1226 = vpop.trf.xlu0
      %v1227 = vpop.trf.xlu0
      %v1228 = vpop.trf.xlu0
      %v1229 = vpop.trf.xlu0
      %v1230 = vpop.trf.xlu0
      %v1231 = vpop.trf.xlu0
      %v1232 = vpop.trf.xlu0
      %v1233 = vpop.trf.xlu0
      %1234 = vxpose.xlu0.b32.start [1/16] %v1186, 128
      %1235 = vxpose.xlu0.b32.cont [2/16] %v1187, 128
      %1236 = vxpose.xlu0.b32.cont [3/16] %v1188, 128
      %1237 = vxpose.xlu0.b32.cont [4/16] %v1189, 128
      %1238 = vxpose.xlu0.b32.cont [5/16] %v1190, 128
      %1239 = vxpose.xlu0.b32.cont [6/16] %v1191, 128
      %1240 = vxpose.xlu0.b32.cont [7/16] %v1192, 128
      %1241 = vxpose.xlu0.b32.cont [8/16] %v1193, 128
      %1242 = vxpose.xlu0.b32.cont [9/16] %v1194, 128
      %1243 = vxpose.xlu0.b32.cont [10/16] %v1195, 128
      %1244 = vxpose.xlu0.b32.cont [11/16] %v1196, 128
      %1245 = vxpose.xlu0.b32.cont [12/16] %v1197, 128
      %1246 = vxpose.xlu0.b32.cont [13/16] %v1198, 128
      %1247 = vxpose.xlu0.b32.cont [14/16] %v1199, 128
      %1248 = vxpose.xlu0.b32.cont [15/16] %v1200, 128
      %1249 = vxpose.xlu0.b32.end [16/16] %v1201, 128
      %v1250 = vpop.trf.xlu0
      %v1251 = vpop.trf.xlu0
      %v1252 = vpop.trf.xlu0
      %v1253 = vpop.trf.xlu0
      %v1254 = vpop.trf.xlu0
      %v1255 = vpop.trf.xlu0
      %v1256 = vpop.trf.xlu0
      %v1257 = vpop.trf.xlu0
      %v1258 = vpop.trf.xlu0
      %v1259 = vpop.trf.xlu0
      %v1260 = vpop.trf.xlu0
      %v1261 = vpop.trf.xlu0
      %v1262 = vpop.trf.xlu0
      %v1263 = vpop.trf.xlu0
      %v1264 = vpop.trf.xlu0
      %v1265 = vpop.trf.xlu0
      %1266 = vst [vmem:[%s319] sm:$0xff] %v1218
      %1267 = vst [vmem:[%s319 + $0x8] sm:$0xff] %v1250
      %1268 = vst [vmem:[%s319 + $0x10] sm:$0xff] %v1219
      %1269 = vst [vmem:[%s319 + $0x18] sm:$0xff] %v1251
      %1270 = vst [vmem:[%s319 + $0x20] sm:$0xff] %v1220
      %1271 = vst [vmem:[%s319 + $0x28] sm:$0xff] %v1252
      %1272 = vst [vmem:[%s319 + $0x30] sm:$0xff] %v1221
      %1273 = vst [vmem:[%s319 + $0x38] sm:$0xff] %v1253
      %p1274 = scmp.lt.s32.totalorder %s17, 1
      %s1275 = scalar_select %p1274, %s17, 1
      %s1276 = smul.addr %s1275, 8
      %s1277 = smul.addr %s1276, 8
      %s1278 = scalar_lea.vmem %s6, %s1277
      // Predicated region
      $region45: #{inception_forward.9} parent=43 // pred_check
        %p1279 = pneg %p181
      $region46: #{inception_forward.9} parent=43 // pred_check_branch
        %1281 = sbr.rel (%p1279) target = $region48
      $region47: #{inception_forward.9} parent=43 // pred_region
        _
      $region48: #{inception_forward.9} parent=43 // pred_fallthru
        _
    $region44: #{inception_forward.9} parent=5 // pred_fallthru
      _
    %p1282 = scmp.le.s32.totalorder 2, %s12
    // Predicated region
    $region49: #{inception_forward.9} parent=5 // pred_check
      %p1283 = pneg %p1282
    $region50: #{inception_forward.9} parent=5 // pred_check_branch
      %1285 = sbr.rel (%p1283) target = $region52
    $region51: #{inception_forward.9} parent=5 // pred_region
      %s1286 = ssub.s32 %s12, 2
      // Predicated region
      $region53: #{inception_forward.9} parent=51 // pred_check
        %p1287 = pneg %p187
      $region54: #{inception_forward.9} parent=51 // pred_check_branch
        %1289 = sbr.rel (%p1287) target = $region56
      $region55: #{inception_forward.9} parent=51 // pred_region
        %p1290 = scmp.lt.s32.totalorder %s18, 1
        %s1291 = scalar_select %p1290, %s18, 1
        %s1292 = smul.addr %s1291, 8
        %s1293 = smul.addr %s1292, 8
        %s1294 = scalar_lea.vmem %s6, %s1293
      $region56: #{inception_forward.9} parent=51 // pred_fallthru
        _
    $region52: #{inception_forward.9} parent=5 // pred_fallthru
      _
  $region6: #{inception_forward.9} parent=0 // loop_footer
    %s16 = sadd.s32 1, %s12
  $region7: #{inception_forward.9} parent=0 // loop_footer_branch
    %11 = sbr.rel target = $region3
  $region8: #{inception_forward.9} parent=0 // loop_exit
    _

</llo_original>
